<compile_context>
chip_gen: v5e
topology: v5e:2x2
jax: 0.10.0
libtpu: 0.0.40
codegen_flags: <defaults>
</compile_context>

<pallas_src>
import functools

import numpy as np

import jax
import jax.numpy as jnp
from jax.experimental import pallas as pl
from jax.experimental.pallas import tpu as pltpu


# ----------------------------------------------------------------------------
# Static model config (spatial size fixed at 32x32 by the fc1 8*8*32 flatten)
# ----------------------------------------------------------------------------
IMG = 32
C_IN, C1, C2 = 3, 32, 32
FC2_PAD = 128   # lane-dense fc2 output width (real logits = 10)


# ----------------------------------------------------------------------------
# Parameter init (PyTorch layouts / init semantics)
# ----------------------------------------------------------------------------
def kaiming_normal(key, shape, fan_in):
    std = (2.0 / fan_in) ** 0.5
    return std * jax.random.normal(key, shape, dtype=jnp.float32)


def init_params(key):
    ks = jax.random.split(key, 8)
    return {
        "conv1_w": kaiming_normal(ks[0], (C1, C_IN, 3, 3), fan_in=C_IN * 9),
        "conv1_b": jnp.zeros((C1,), jnp.float32),
        "conv2_w": kaiming_normal(ks[1], (C2, C1, 3, 3), fan_in=C1 * 9),
        "conv2_b": jnp.zeros((C2,), jnp.float32),
        "fc1a_w": kaiming_normal(ks[2], (512, 8 * 8 * 32), fan_in=8 * 8 * 32),
        "fc1a_b": jnp.zeros((512,), jnp.float32),
        "fc1b_w": kaiming_normal(ks[3], (256, 512), fan_in=512),
        "fc1b_b": jnp.zeros((256,), jnp.float32),
        # fc2 keeps PyTorch default Linear init (uniform +/- 1/sqrt(fan_in))
        "fc2_w": jax.random.uniform(ks[4], (10, 256), jnp.float32, -1 / 16, 1 / 16),
        "fc2_b": jax.random.uniform(ks[5], (10,), jnp.float32, -1 / 16, 1 / 16),
    }


# ----------------------------------------------------------------------------
# Init-time weight preparation (banded / merged / permuted / bf16)
# ----------------------------------------------------------------------------
def _banded_conv_weights(w_oihw, width):
    """3x3/stride1/pad1 conv -> clipped-band matmul weight (even|odd columns).

    Returns (3, width*Cin, 2*L) bf16, L=(width//2)*Cout, such that for a slab
    of rows laid out as lane = x*Cin + ci (x = 0..width-1, NO column padding),
    the pre-bias conv output at column 2*x' (+1) and channel c is
        sum_ky rows[y+ky] @ band[ky][:, (0|L) + x'*Cout + c].
    Out-of-range kx taps are dropped from the band (== SAME zero padding).
    """
    w = np.asarray(w_oihw, np.float32)            # (Cout, Cin, 3, 3)
    co, ci = w.shape[0], w.shape[1]
    l = (width // 2) * co
    band = np.zeros((3, width * ci, 2 * l), np.float32)
    for ky in range(3):
        for x in range(width):
            col0 = (x % 2) * l + (x // 2) * co    # even cols -> [0:L), odd -> [L:2L)
            for kx in range(3):
                u = x + kx - 1                    # input column for this tap
                if 0 <= u < width:
                    band[ky, u * ci:(u + 1) * ci, col0:col0 + co] = w[:, :, ky, kx].T
    return jnp.asarray(band, jnp.bfloat16)


def _pool_select(blk, s_in, pad_top, out_rows):
    """0/1 selection matrix for height-pool + garbage drop + pad-row insert.

    Slab conv rows live at b*s_in + y (y = 0..s_in-3 valid); pooled row q of
    image b is max(row b*s_in+2q, row b*s_in+2q+1), written to output row
    b*out_rows + pad_top + q.  Rows not written stay exactly 0 (conv2 padding).
    """
    h = s_in - 2
    p = h // 2
    mr = blk * s_in - 2
    ro = blk * out_rows
    sel = np.zeros((2 * ro, mr), np.float32)
    for b in range(blk):
        for q in range(p):
            r = b * out_rows + pad_top + q
            sel[r, b * s_in + 2 * q] = 1.0            # even-row half
            sel[ro + r, b * s_in + 2 * q + 1] = 1.0   # odd-row half
    return jnp.asarray(sel, jnp.bfloat16)


def prepare_params(p):
    """One-time conversion to kernel-ready layouts."""
    kp = {}
    kp["conv1_w"] = _banded_conv_weights(p["conv1_w"], IMG)            # (3, 96, 1024)
    kp["conv1_b"] = jnp.tile(p["conv1_b"], IMG).reshape(1, -1).astype(jnp.float32)
    kp["conv2_w"] = _banded_conv_weights(p["conv2_w"], IMG // 2)       # (3, 512, 512)
    kp["conv2_b"] = jnp.tile(p["conv2_b"], IMG // 2).reshape(1, -1).astype(jnp.float32)
    # fc1a: torch weight is (512, 2048) indexed by NCHW flatten c*64 + y*8 + x.
    # Permute rows once so it consumes our NHWC flatten y*256 + x*32 + c.
    w = p["fc1a_w"].T.reshape(32, 8, 8, 512)           # (c, y, x, out)
    w = jnp.transpose(w, (1, 2, 0, 3)).reshape(2048, 512)
    kp["fc1a_w"] = w.astype(jnp.bfloat16)
    kp["fc1a_b"] = p["fc1a_b"].reshape(1, -1).astype(jnp.float32)
    kp["fc1b_w"] = p["fc1b_w"].T.astype(jnp.bfloat16)   # (512, 256)
    kp["fc1b_b"] = p["fc1b_b"].reshape(1, -1).astype(jnp.float32)
    # fc2: lane-dense padded to 128 output columns (sliced to 10 outside).
    kp["fc2_w"] = jnp.pad(p["fc2_w"].T, ((0, 0), (0, FC2_PAD - 10))).astype(jnp.bfloat16)
    kp["fc2_b"] = jnp.pad(p["fc2_b"], (0, FC2_PAD - 10)).reshape(1, -1).astype(jnp.float32)
    return kp


# ----------------------------------------------------------------------------
# Pallas kernel 1: batched fused conv3x3 + bias + ReLU + 2x2 maxpool
# ----------------------------------------------------------------------------
def _conv_pool_kernel(xs_ref, w_ref, b_ref, sel_ref, o_ref, *, mr, l):
    # xs_ref : (B*s_in, K)     bf16 row slab (1 zero pad row top/bottom per image)
    # w_ref  : (3, K, 2L)      bf16 merged even/odd banded weights
    # b_ref  : (1, 2L)         f32 per-lane bias (per-channel, tiled)
    # sel_ref: (2*RO, mr)      bf16 0/1 pool/placement matrix
    # o_ref  : (RO, L)         bf16 pooled output (conv2-slab layout for stage 1)
    xs = xs_ref[...]
    acc = jnp.dot(xs[0:mr], w_ref[0], preferred_element_type=jnp.float32)
    acc += jnp.dot(xs[1:mr + 1], w_ref[1], preferred_element_type=jnp.float32)
    acc += jnp.dot(xs[2:mr + 2], w_ref[2], preferred_element_type=jnp.float32)
    # bias + ReLU before pooling (per-channel bias / monotone ops -> equivalent),
    # so rows not selected below stay exactly zero.
    h = jnp.maximum(acc + b_ref[...], 0.0)
    # width half of the 2x2 pool: even/odd column halves of the lane dim.
    m = jnp.maximum(h[:, :l], h[:, l:]).astype(jnp.bfloat16)        # (mr, L)
    # height half + garbage-row drop + pad-row insertion: one 0/1 matmul.
    ps = jnp.dot(sel_ref[...], m, preferred_element_type=jnp.float32)  # (2*RO, L)
    ro = sel_ref.shape[0] // 2
    out = jnp.maximum(ps[:ro], ps[ro:])                             # (RO, L)
    o_ref[...] = out.astype(o_ref.dtype)


def conv3x3_relu_pool(xs, w, bias, sel, *, s_in, n_imgs, blk, l, out_rows):
    kdim = xs.shape[1]
    mr = blk * s_in - 2
    ro = blk * out_rows
    nblk = n_imgs // blk
    flops = int(2 * nblk * (3 * mr * kdim * 2 * l + 2 * ro * mr * l))
    bytes_accessed = int(xs.size * 2 + w.size * 2 + sel.size * 2 +
                         bias.size * 4 + n_imgs * out_rows * l * 2)
    return pl.pallas_call(
        functools.partial(_conv_pool_kernel, mr=mr, l=l),
        out_shape=jax.ShapeDtypeStruct((n_imgs * out_rows, l), jnp.bfloat16),
        grid_spec=pltpu.PrefetchScalarGridSpec(
            num_scalar_prefetch=0,
            grid=(nblk,),
            in_specs=[
                pl.BlockSpec((blk * s_in, kdim), lambda i: (i, 0)),
                pl.BlockSpec((3, kdim, 2 * l), lambda i: (0, 0, 0)),
                pl.BlockSpec((1, 2 * l), lambda i: (0, 0)),
                pl.BlockSpec((2 * ro, mr), lambda i: (0, 0)),
            ],
            out_specs=pl.BlockSpec((ro, l), lambda i: (i, 0)),
        ),
        compiler_params=pltpu.CompilerParams(
            dimension_semantics=("parallel",),
            vmem_limit_bytes=32 * 1024 * 1024),
        cost_estimate=pl.CostEstimate(
            flops=flops, transcendentals=0, bytes_accessed=bytes_accessed),
    )(xs, w, bias, sel)


# ----------------------------------------------------------------------------
# Pallas kernel 2: fused fc1a -> ReLU -> fc1b -> ReLU -> fc2 (lane-dense out)
# ----------------------------------------------------------------------------
def _fc_chain_kernel(x_ref, w1_ref, b1_ref, w2_ref, b2_ref, w3_ref, b3_ref, o_ref):
    h = jnp.dot(x_ref[...], w1_ref[...], preferred_element_type=jnp.float32)
    h = jnp.maximum(h + b1_ref[...], 0.0).astype(jnp.bfloat16)
    h = jnp.dot(h, w2_ref[...], preferred_element_type=jnp.float32)
    h = jnp.maximum(h + b2_ref[...], 0.0).astype(jnp.bfloat16)
    o = jnp.dot(h, w3_ref[...], preferred_element_type=jnp.float32) + b3_ref[...]
    o_ref[...] = o.astype(o_ref.dtype)


def fc_chain(x, w1, b1, w2, b2, w3, b3):
    m, k = x.shape
    tm = min(512, m)
    mp = pl.cdiv(m, tm) * tm
    if mp != m:
        x = jnp.pad(x, ((0, mp - m), (0, 0)))
    n1, n2, n3 = w1.shape[1], w2.shape[1], w3.shape[1]
    flops = int(2 * mp * (k * n1 + n1 * n2 + n2 * n3))
    bytes_accessed = int(x.size * 2 + (w1.size + w2.size + w3.size) * 2 +
                         (b1.size + b2.size + b3.size) * 4 + mp * n3 * 4)
    return pl.pallas_call(
        _fc_chain_kernel,
        out_shape=jax.ShapeDtypeStruct((mp, n3), jnp.float32),
        grid_spec=pltpu.PrefetchScalarGridSpec(
            num_scalar_prefetch=0,
            grid=(mp // tm,),
            in_specs=[
                pl.BlockSpec((tm, k), lambda i: (i, 0)),
                pl.BlockSpec((k, n1), lambda i: (0, 0)),
                pl.BlockSpec((1, n1), lambda i: (0, 0)),
                pl.BlockSpec((n1, n2), lambda i: (0, 0)),
                pl.BlockSpec((1, n2), lambda i: (0, 0)),
                pl.BlockSpec((n2, n3), lambda i: (0, 0)),
                pl.BlockSpec((1, n3), lambda i: (0, 0)),
            ],
            out_specs=pl.BlockSpec((tm, n3), lambda i: (i, 0)),
        ),
        compiler_params=pltpu.CompilerParams(
            dimension_semantics=("parallel",),
            vmem_limit_bytes=32 * 1024 * 1024),
        cost_estimate=pl.CostEstimate(
            flops=flops, transcendentals=0, bytes_accessed=bytes_accessed),
    )(x, w1, b1, w2, b2, w3, b3)


# ----------------------------------------------------------------------------
# Forward pass (eval-mode semantics of ModelCNNCinic10.forward)
# ----------------------------------------------------------------------------
def _pick_b(n, cands):
    for b in cands:
        if n % b == 0:
            return b
    return None


@jax.jit
def forward(kp, x_nchw):
    n = x_nchw.shape[0]
    npad = ((n + 3) // 4) * 4                 # image-group sizes need B % 4 == 0
    b1 = _pick_b(npad, (8, 4))
    b2 = _pick_b(npad, (16, 8, 4))
    x = x_nchw.astype(jnp.bfloat16)           # cast before transpose (half traffic)
    x = jnp.transpose(x, (0, 2, 3, 1)).reshape(n, IMG, IMG * C_IN)
    if npad != n:
        x = jnp.pad(x, ((0, npad - n), (0, 0), (0, 0)))
    x = jnp.pad(x, ((0, 0), (1, 1), (0, 0)))  # conv1 top/bottom zero rows
    x = x.reshape(npad * (IMG + 2), IMG * C_IN)                      # (npad*34, 96)

    sel1 = _pool_select(b1, IMG + 2, 1, IMG // 2 + 2)
    x = conv3x3_relu_pool(x, kp["conv1_w"], kp["conv1_b"], sel1,
                          s_in=IMG + 2, n_imgs=npad, blk=b1,
                          l=(IMG // 2) * C1, out_rows=IMG // 2 + 2)  # (npad*18, 512)

    sel2 = _pool_select(b2, IMG // 2 + 2, 0, IMG // 4)
    x = conv3x3_relu_pool(x, kp["conv2_w"], kp["conv2_b"], sel2,
                          s_in=IMG // 2 + 2, n_imgs=npad, blk=b2,
                          l=(IMG // 4) * C2, out_rows=IMG // 4)      # (npad*8, 256)

    x = x.reshape(npad, 8 * 8 * 32)           # NHWC flatten; fc1a rows pre-permuted
    # TODO(synk): Dropout(p=0.2) layers are identity in eval mode; training-mode RNG dropout not implemented.
    logits = fc_chain(x, kp["fc1a_w"], kp["fc1a_b"], kp["fc1b_w"], kp["fc1b_b"],
                      kp["fc2_w"], kp["fc2_b"])                      # (>=npad, 128)
    return logits[:n, :10]


# ----------------------------------------------------------------------------
# Plain-JAX f32 reference (numerical self-check of the Pallas path)
# ----------------------------------------------------------------------------
def reference_forward(p, x_nchw):
    def conv(x, w, b):
        y = jax.lax.conv_general_dilated(
            x, w, window_strides=(1, 1), padding=((1, 1), (1, 1)),
            dimension_numbers=("NCHW", "OIHW", "NCHW"))
        return jax.nn.relu(y + b[None, :, None, None])

    def pool(x):
        return jax.lax.reduce_window(x, -jnp.inf, jax.lax.max,
                                     (1, 1, 2, 2), (1, 1, 2, 2), "VALID")

    x = pool(conv(x_nchw, p["conv1_w"], p["conv1_b"]))
    x = pool(conv(x, p["conv2_w"], p["conv2_b"]))
    x = x.reshape(x.shape[0], -1)                    # NCHW flatten (torch .view)
    x = jax.nn.relu(x @ p["fc1a_w"].T + p["fc1a_b"])
    x = jax.nn.relu(x @ p["fc1b_w"].T + p["fc1b_b"])
    return x @ p["fc2_w"].T + p["fc2_b"]


if __name__ == "__main__":
    key = jax.random.PRNGKey(0)
    pkey, xkey = jax.random.split(key)
    params = init_params(pkey)
    kparams = prepare_params(params)
    x = jax.random.normal(xkey, (2, 3, 32, 32), dtype=jnp.float32)

    out = jax.block_until_ready(forward(kparams, x))
    assert out.shape == (2, 10) and out.dtype == jnp.float32

    ref = jax.block_until_ready(reference_forward(params, x))
    max_err = float(jnp.max(jnp.abs(out - ref)))
    assert max_err < 0.2, f"Pallas forward mismatch vs reference: max_err={max_err}"
    print("KERNEL_OK")
</pallas_src>

<mosaic_0001>
module attributes {stable_mosaic.version = 11 : i64} {
  func.func @_fc_chain_kernel(%arg0: i32, %arg1: memref<4x2048xbf16, #tpu.memory_space<vmem>>, %arg2: memref<2048x512xbf16, #tpu.memory_space<vmem>>, %arg3: memref<1x512xf32, #tpu.memory_space<vmem>>, %arg4: memref<512x256xbf16, #tpu.memory_space<vmem>>, %arg5: memref<1x256xf32, #tpu.memory_space<vmem>>, %arg6: memref<256x128xbf16, #tpu.memory_space<vmem>>, %arg7: memref<1x128xf32, #tpu.memory_space<vmem>>, %arg8: memref<4x128xf32, #tpu.memory_space<vmem>>) attributes {dimension_semantics = [#tpu.dimension_semantics<parallel>], iteration_bounds = array<i64: 1>, scalar_prefetch = 0 : i64, scratch_operands = 0 : i64, tpu.core_type = #tpu.core_type<tc>, window_params = [{transform_indices = @transform_0, window_bounds = array<i64: 4, 2048>}, {pipeline_mode = #tpu.pipeline_mode<synchronous>, transform_indices = @transform_1, window_bounds = array<i64: 2048, 512>}, {pipeline_mode = #tpu.pipeline_mode<synchronous>, transform_indices = @transform_2, window_bounds = array<i64: 1, 512>}, {pipeline_mode = #tpu.pipeline_mode<synchronous>, transform_indices = @transform_3, window_bounds = array<i64: 512, 256>}, {pipeline_mode = #tpu.pipeline_mode<synchronous>, transform_indices = @transform_4, window_bounds = array<i64: 1, 256>}, {pipeline_mode = #tpu.pipeline_mode<synchronous>, transform_indices = @transform_5, window_bounds = array<i64: 256, 128>}, {pipeline_mode = #tpu.pipeline_mode<synchronous>, transform_indices = @transform_6, window_bounds = array<i64: 1, 128>}, {transform_indices = @transform_7, window_bounds = array<i64: 4, 128>}]} {
    %c0 = arith.constant 0 : index
    %c0_0 = arith.constant 0 : index
    %0 = vector.load %arg1[%c0, %c0_0] : memref<4x2048xbf16, #tpu.memory_space<vmem>>, vector<4x2048xbf16>
    %c0_1 = arith.constant 0 : index
    %c0_2 = arith.constant 0 : index
    %1 = vector.load %arg2[%c0_1, %c0_2] : memref<2048x512xbf16, #tpu.memory_space<vmem>>, vector<2048x512xbf16>
    %cst = arith.constant dense<0.000000e+00> : vector<4x512xf32>
    %2 = tpu.matmul %0, %1, %cst {dimension_numbers = #tpu.dot_dimension_numbers<[1], [0], [0], [1], [0, 0, 1, 1], [], []>} : vector<4x2048xbf16>, vector<2048x512xbf16>, vector<4x512xf32> -> vector<4x512xf32>
    %c0_3 = arith.constant 0 : index
    %c0_4 = arith.constant 0 : index
    %3 = vector.load %arg3[%c0_3, %c0_4] : memref<1x512xf32, #tpu.memory_space<vmem>>, vector<1x512xf32>
    %4 = vector.broadcast %3 : vector<1x512xf32> to vector<4x512xf32>
    %5 = arith.addf %2, %4 : vector<4x512xf32>
    %cst_5 = arith.constant 0.000000e+00 : f32
    %6 = vector.broadcast %cst_5 : f32 to vector<4x512xf32>
    %7 = arith.maximumf %5, %6 : vector<4x512xf32>
    %8 = arith.truncf %7 : vector<4x512xf32> to vector<4x512xbf16>
    %c0_6 = arith.constant 0 : index
    %c0_7 = arith.constant 0 : index
    %9 = vector.load %arg4[%c0_6, %c0_7] : memref<512x256xbf16, #tpu.memory_space<vmem>>, vector<512x256xbf16>
    %cst_8 = arith.constant dense<0.000000e+00> : vector<4x256xf32>
    %10 = tpu.matmul %8, %9, %cst_8 {dimension_numbers = #tpu.dot_dimension_numbers<[1], [0], [0], [1], [0, 0, 1, 1], [], []>} : vector<4x512xbf16>, vector<512x256xbf16>, vector<4x256xf32> -> vector<4x256xf32>
    %c0_9 = arith.constant 0 : index
    %c0_10 = arith.constant 0 : index
    %11 = vector.load %arg5[%c0_9, %c0_10] : memref<1x256xf32, #tpu.memory_space<vmem>>, vector<1x256xf32>
    %12 = vector.broadcast %11 : vector<1x256xf32> to vector<4x256xf32>
    %13 = arith.addf %10, %12 : vector<4x256xf32>
    %cst_11 = arith.constant 0.000000e+00 : f32
    %14 = vector.broadcast %cst_11 : f32 to vector<4x256xf32>
    %15 = arith.maximumf %13, %14 : vector<4x256xf32>
    %16 = arith.truncf %15 : vector<4x256xf32> to vector<4x256xbf16>
    %c0_12 = arith.constant 0 : index
    %c0_13 = arith.constant 0 : index
    %17 = vector.load %arg6[%c0_12, %c0_13] : memref<256x128xbf16, #tpu.memory_space<vmem>>, vector<256x128xbf16>
    %cst_14 = arith.constant dense<0.000000e+00> : vector<4x128xf32>
    %18 = tpu.matmul %16, %17, %cst_14 {dimension_numbers = #tpu.dot_dimension_numbers<[1], [0], [0], [1], [0, 0, 1, 1], [], []>} : vector<4x256xbf16>, vector<256x128xbf16>, vector<4x128xf32> -> vector<4x128xf32>
    %c0_15 = arith.constant 0 : index
    %c0_16 = arith.constant 0 : index
    %19 = vector.load %arg7[%c0_15, %c0_16] : memref<1x128xf32, #tpu.memory_space<vmem>>, vector<1x128xf32>
    %20 = vector.broadcast %19 : vector<1x128xf32> to vector<4x128xf32>
    %21 = arith.addf %18, %20 : vector<4x128xf32>
    %c0_17 = arith.constant 0 : index
    %c0_18 = arith.constant 0 : index
    %22 = vector.load %arg8[%c0_17, %c0_18] : memref<4x128xf32, #tpu.memory_space<vmem>>, vector<4x128xf32>
    tpu.vector_store %arg8[%c0_17, %c0_18], %21 {strides = array<i32>} : memref<4x128xf32, #tpu.memory_space<vmem>>, vector<4x128xf32>,
    return
  }
  func.func @transform_0(%arg0: i32) -> (i32, i32) {
    %c0_i32 = arith.constant 0 : i32
    %c0_i32_0 = arith.constant 0 : i32
    return %arg0, %c0_i32 : i32, i32
  }
  func.func @transform_1(%arg0: i32) -> (i32, i32) {
    %c0_i32 = arith.constant 0 : i32
    %c0_i32_0 = arith.constant 0 : i32
    %c0_i32_1 = arith.constant 0 : i32
    return %c0_i32, %c0_i32_0 : i32, i32
  }
  func.func @transform_2(%arg0: i32) -> (i32, i32) {
    %c0_i32 = arith.constant 0 : i32
    %c0_i32_0 = arith.constant 0 : i32
    %c0_i32_1 = arith.constant 0 : i32
    return %c0_i32, %c0_i32_0 : i32, i32
  }
  func.func @transform_3(%arg0: i32) -> (i32, i32) {
    %c0_i32 = arith.constant 0 : i32
    %c0_i32_0 = arith.constant 0 : i32
    %c0_i32_1 = arith.constant 0 : i32
    return %c0_i32, %c0_i32_0 : i32, i32
  }
  func.func @transform_4(%arg0: i32) -> (i32, i32) {
    %c0_i32 = arith.constant 0 : i32
    %c0_i32_0 = arith.constant 0 : i32
    %c0_i32_1 = arith.constant 0 : i32
    return %c0_i32, %c0_i32_0 : i32, i32
  }
  func.func @transform_5(%arg0: i32) -> (i32, i32) {
    %c0_i32 = arith.constant 0 : i32
    %c0_i32_0 = arith.constant 0 : i32
    %c0_i32_1 = arith.constant 0 : i32
    return %c0_i32, %c0_i32_0 : i32, i32
  }
  func.func @transform_6(%arg0: i32) -> (i32, i32) {
    %c0_i32 = arith.constant 0 : i32
    %c0_i32_0 = arith.constant 0 : i32
    %c0_i32_1 = arith.constant 0 : i32
    return %c0_i32, %c0_i32_0 : i32, i32
  }
  func.func @transform_7(%arg0: i32) -> (i32, i32) {
    %c0_i32 = arith.constant 0 : i32
    %c0_i32_0 = arith.constant 0 : i32
    return %arg0, %c0_i32 : i32, i32
  }
}

module attributes {stable_mosaic.version = 11 : i64} {
  func.func @_conv_pool_kernel(%arg0: i32, %arg1: memref<72x512xbf16, #tpu.memory_space<vmem>>, %arg2: memref<3x512x512xbf16, #tpu.memory_space<vmem>>, %arg3: memref<1x512xf32, #tpu.memory_space<vmem>>, %arg4: memref<64x70xbf16, #tpu.memory_space<vmem>>, %arg5: memref<32x256xbf16, #tpu.memory_space<vmem>>) attributes {dimension_semantics = [#tpu.dimension_semantics<parallel>], iteration_bounds = array<i64: 1>, scalar_prefetch = 0 : i64, scratch_operands = 0 : i64, tpu.core_type = #tpu.core_type<tc>, window_params = [{transform_indices = @transform_0, window_bounds = array<i64: 72, 512>}, {pipeline_mode = #tpu.pipeline_mode<synchronous>, transform_indices = @transform_1, window_bounds = array<i64: 3, 512, 512>}, {pipeline_mode = #tpu.pipeline_mode<synchronous>, transform_indices = @transform_2, window_bounds = array<i64: 1, 512>}, {pipeline_mode = #tpu.pipeline_mode<synchronous>, transform_indices = @transform_3, window_bounds = array<i64: 64, 70>}, {transform_indices = @transform_4, window_bounds = array<i64: 32, 256>}]} {
    %c0 = arith.constant 0 : index
    %c0_0 = arith.constant 0 : index
    %0 = vector.load %arg1[%c0, %c0_0] : memref<72x512xbf16, #tpu.memory_space<vmem>>, vector<72x512xbf16>
    %1 = vector.extract_strided_slice %0 {offsets = [0, 0], sizes = [70, 512], strides = [1, 1]} : vector<72x512xbf16> to vector<70x512xbf16>
    %c0_1 = arith.constant 0 : index
    %c0_2 = arith.constant 0 : index
    %c0_3 = arith.constant 0 : index
    %2 = vector.load %arg2[%c0_1, %c0_2, %c0_3] : memref<3x512x512xbf16, #tpu.memory_space<vmem>>, vector<1x512x512xbf16>
    %3 = vector.shape_cast %2 : vector<1x512x512xbf16> to vector<512x512xbf16>
    %cst = arith.constant dense<0.000000e+00> : vector<70x512xf32>
    %4 = tpu.matmul %1, %3, %cst {dimension_numbers = #tpu.dot_dimension_numbers<[1], [0], [0], [1], [0, 0, 1, 1], [], []>} : vector<70x512xbf16>, vector<512x512xbf16>, vector<70x512xf32> -> vector<70x512xf32>
    %5 = vector.extract_strided_slice %0 {offsets = [1, 0], sizes = [70, 512], strides = [1, 1]} : vector<72x512xbf16> to vector<70x512xbf16>
    %c1 = arith.constant 1 : index
    %c0_4 = arith.constant 0 : index
    %c0_5 = arith.constant 0 : index
    %6 = vector.load %arg2[%c1, %c0_4, %c0_5] : memref<3x512x512xbf16, #tpu.memory_space<vmem>>, vector<1x512x512xbf16>
    %7 = vector.shape_cast %6 : vector<1x512x512xbf16> to vector<512x512xbf16>
    %cst_6 = arith.constant dense<0.000000e+00> : vector<70x512xf32>
    %8 = tpu.matmul %5, %7, %cst_6 {dimension_numbers = #tpu.dot_dimension_numbers<[1], [0], [0], [1], [0, 0, 1, 1], [], []>} : vector<70x512xbf16>, vector<512x512xbf16>, vector<70x512xf32> -> vector<70x512xf32>
    %9 = arith.addf %4, %8 : vector<70x512xf32>
    %10 = vector.extract_strided_slice %0 {offsets = [2, 0], sizes = [70, 512], strides = [1, 1]} : vector<72x512xbf16> to vector<70x512xbf16>
    %c2 = arith.constant 2 : index
    %c0_7 = arith.constant 0 : index
    %c0_8 = arith.constant 0 : index
    %11 = vector.load %arg2[%c2, %c0_7, %c0_8] : memref<3x512x512xbf16, #tpu.memory_space<vmem>>, vector<1x512x512xbf16>
    %12 = vector.shape_cast %11 : vector<1x512x512xbf16> to vector<512x512xbf16>
    %cst_9 = arith.constant dense<0.000000e+00> : vector<70x512xf32>
    %13 = tpu.matmul %10, %12, %cst_9 {dimension_numbers = #tpu.dot_dimension_numbers<[1], [0], [0], [1], [0, 0, 1, 1], [], []>} : vector<70x512xbf16>, vector<512x512xbf16>, vector<70x512xf32> -> vector<70x512xf32>
    %14 = arith.addf %9, %13 : vector<70x512xf32>
    %c0_10 = arith.constant 0 : index
    %c0_11 = arith.constant 0 : index
    %15 = vector.load %arg3[%c0_10, %c0_11] : memref<1x512xf32, #tpu.memory_space<vmem>>, vector<1x512xf32>
    %16 = vector.broadcast %15 : vector<1x512xf32> to vector<70x512xf32>
    %17 = arith.addf %14, %16 : vector<70x512xf32>
    %cst_12 = arith.constant 0.000000e+00 : f32
    %18 = vector.broadcast %cst_12 : f32 to vector<70x512xf32>
    %19 = arith.maximumf %17, %18 : vector<70x512xf32>
    %20 = vector.extract_strided_slice %19 {offsets = [0, 0], sizes = [70, 256], strides = [1, 1]} : vector<70x512xf32> to vector<70x256xf32>
    %21 = vector.extract_strided_slice %19 {offsets = [0, 256], sizes = [70, 256], strides = [1, 1]} : vector<70x512xf32> to vector<70x256xf32>
    %22 = arith.maximumf %20, %21 : vector<70x256xf32>
    %23 = arith.truncf %22 : vector<70x256xf32> to vector<70x256xbf16>
    %c0_13 = arith.constant 0 : index
    %c0_14 = arith.constant 0 : index
    %24 = vector.load %arg4[%c0_13, %c0_14] : memref<64x70xbf16, #tpu.memory_space<vmem>>, vector<64x70xbf16>
    %cst_15 = arith.constant dense<0.000000e+00> : vector<64x256xf32>
    %25 = tpu.matmul %24, %23, %cst_15 {dimension_numbers = #tpu.dot_dimension_numbers<[1], [0], [0], [1], [0, 0, 1, 1], [], []>} : vector<64x70xbf16>, vector<70x256xbf16>, vector<64x256xf32> -> vector<64x256xf32>
    %26 = vector.extract_strided_slice %25 {offsets = [0, 0], sizes = [32, 256], strides = [1, 1]} : vector<64x256xf32> to vector<32x256xf32>
    %27 = vector.extract_strided_slice %25 {offsets = [32, 0], sizes = [32, 256], strides = [1, 1]} : vector<64x256xf32> to vector<32x256xf32>
    %28 = arith.maximumf %26, %27 : vector<32x256xf32>
    %29 = arith.truncf %28 : vector<32x256xf32> to vector<32x256xbf16>
    %c0_16 = arith.constant 0 : index
    %c0_17 = arith.constant 0 : index
    %30 = vector.load %arg5[%c0_16, %c0_17] : memref<32x256xbf16, #tpu.memory_space<vmem>>, vector<32x256xbf16>
    tpu.vector_store %arg5[%c0_16, %c0_17], %29 {strides = array<i32>} : memref<32x256xbf16, #tpu.memory_space<vmem>>, vector<32x256xbf16>,
    return
  }
  func.func @transform_0(%arg0: i32) -> (i32, i32) {
    %c0_i32 = arith.constant 0 : i32
    %c0_i32_0 = arith.constant 0 : i32
    return %arg0, %c0_i32 : i32, i32
  }
  func.func @transform_1(%arg0: i32) -> (i32, i32, i32) {
    %c0_i32 = arith.constant 0 : i32
    %c0_i32_0 = arith.constant 0 : i32
    %c0_i32_1 = arith.constant 0 : i32
    %c0_i32_2 = arith.constant 0 : i32
    return %c0_i32, %c0_i32_0, %c0_i32_1 : i32, i32, i32
  }
  func.func @transform_2(%arg0: i32) -> (i32, i32) {
    %c0_i32 = arith.constant 0 : i32
    %c0_i32_0 = arith.constant 0 : i32
    %c0_i32_1 = arith.constant 0 : i32
    return %c0_i32, %c0_i32_0 : i32, i32
  }
  func.func @transform_3(%arg0: i32) -> (i32, i32) {
    %c0_i32 = arith.constant 0 : i32
    %c0_i32_0 = arith.constant 0 : i32
    %c0_i32_1 = arith.constant 0 : i32
    return %c0_i32, %c0_i32_0 : i32, i32
  }
  func.func @transform_4(%arg0: i32) -> (i32, i32) {
    %c0_i32 = arith.constant 0 : i32
    %c0_i32_0 = arith.constant 0 : i32
    return %arg0, %c0_i32 : i32, i32
  }
}

module attributes {stable_mosaic.version = 11 : i64} {
  func.func @_conv_pool_kernel(%arg0: i32, %arg1: memref<136x96xbf16, #tpu.memory_space<vmem>>, %arg2: memref<3x96x1024xbf16, #tpu.memory_space<vmem>>, %arg3: memref<1x1024xf32, #tpu.memory_space<vmem>>, %arg4: memref<144x134xbf16, #tpu.memory_space<vmem>>, %arg5: memref<72x512xbf16, #tpu.memory_space<vmem>>) attributes {dimension_semantics = [#tpu.dimension_semantics<parallel>], iteration_bounds = array<i64: 1>, scalar_prefetch = 0 : i64, scratch_operands = 0 : i64, tpu.core_type = #tpu.core_type<tc>, window_params = [{transform_indices = @transform_0, window_bounds = array<i64: 136, 96>}, {pipeline_mode = #tpu.pipeline_mode<synchronous>, transform_indices = @transform_1, window_bounds = array<i64: 3, 96, 1024>}, {pipeline_mode = #tpu.pipeline_mode<synchronous>, transform_indices = @transform_2, window_bounds = array<i64: 1, 1024>}, {pipeline_mode = #tpu.pipeline_mode<synchronous>, transform_indices = @transform_3, window_bounds = array<i64: 144, 134>}, {transform_indices = @transform_4, window_bounds = array<i64: 72, 512>}]} {
    %c0 = arith.constant 0 : index
    %c0_0 = arith.constant 0 : index
    %0 = vector.load %arg1[%c0, %c0_0] : memref<136x96xbf16, #tpu.memory_space<vmem>>, vector<136x96xbf16>
    %1 = vector.extract_strided_slice %0 {offsets = [0, 0], sizes = [134, 96], strides = [1, 1]} : vector<136x96xbf16> to vector<134x96xbf16>
    %c0_1 = arith.constant 0 : index
    %c0_2 = arith.constant 0 : index
    %c0_3 = arith.constant 0 : index
    %2 = vector.load %arg2[%c0_1, %c0_2, %c0_3] : memref<3x96x1024xbf16, #tpu.memory_space<vmem>>, vector<1x96x1024xbf16>
    %3 = vector.shape_cast %2 : vector<1x96x1024xbf16> to vector<96x1024xbf16>
    %cst = arith.constant dense<0.000000e+00> : vector<134x1024xf32>
    %4 = tpu.matmul %1, %3, %cst {dimension_numbers = #tpu.dot_dimension_numbers<[1], [0], [0], [1], [0, 0, 1, 1], [], []>} : vector<134x96xbf16>, vector<96x1024xbf16>, vector<134x1024xf32> -> vector<134x1024xf32>
    %5 = vector.extract_strided_slice %0 {offsets = [1, 0], sizes = [134, 96], strides = [1, 1]} : vector<136x96xbf16> to vector<134x96xbf16>
    %c1 = arith.constant 1 : index
    %c0_4 = arith.constant 0 : index
    %c0_5 = arith.constant 0 : index
    %6 = vector.load %arg2[%c1, %c0_4, %c0_5] : memref<3x96x1024xbf16, #tpu.memory_space<vmem>>, vector<1x96x1024xbf16>
    %7 = vector.shape_cast %6 : vector<1x96x1024xbf16> to vector<96x1024xbf16>
    %cst_6 = arith.constant dense<0.000000e+00> : vector<134x1024xf32>
    %8 = tpu.matmul %5, %7, %cst_6 {dimension_numbers = #tpu.dot_dimension_numbers<[1], [0], [0], [1], [0, 0, 1, 1], [], []>} : vector<134x96xbf16>, vector<96x1024xbf16>, vector<134x1024xf32> -> vector<134x1024xf32>
    %9 = arith.addf %4, %8 : vector<134x1024xf32>
    %10 = vector.extract_strided_slice %0 {offsets = [2, 0], sizes = [134, 96], strides = [1, 1]} : vector<136x96xbf16> to vector<134x96xbf16>
    %c2 = arith.constant 2 : index
    %c0_7 = arith.constant 0 : index
    %c0_8 = arith.constant 0 : index
    %11 = vector.load %arg2[%c2, %c0_7, %c0_8] : memref<3x96x1024xbf16, #tpu.memory_space<vmem>>, vector<1x96x1024xbf16>
    %12 = vector.shape_cast %11 : vector<1x96x1024xbf16> to vector<96x1024xbf16>
    %cst_9 = arith.constant dense<0.000000e+00> : vector<134x1024xf32>
    %13 = tpu.matmul %10, %12, %cst_9 {dimension_numbers = #tpu.dot_dimension_numbers<[1], [0], [0], [1], [0, 0, 1, 1], [], []>} : vector<134x96xbf16>, vector<96x1024xbf16>, vector<134x1024xf32> -> vector<134x1024xf32>
    %14 = arith.addf %9, %13 : vector<134x1024xf32>
    %c0_10 = arith.constant 0 : index
    %c0_11 = arith.constant 0 : index
    %15 = vector.load %arg3[%c0_10, %c0_11] : memref<1x1024xf32, #tpu.memory_space<vmem>>, vector<1x1024xf32>
    %16 = vector.broadcast %15 : vector<1x1024xf32> to vector<134x1024xf32>
    %17 = arith.addf %14, %16 : vector<134x1024xf32>
    %cst_12 = arith.constant 0.000000e+00 : f32
    %18 = vector.broadcast %cst_12 : f32 to vector<134x1024xf32>
    %19 = arith.maximumf %17, %18 : vector<134x1024xf32>
    %20 = vector.extract_strided_slice %19 {offsets = [0, 0], sizes = [134, 512], strides = [1, 1]} : vector<134x1024xf32> to vector<134x512xf32>
    %21 = vector.extract_strided_slice %19 {offsets = [0, 512], sizes = [134, 512], strides = [1, 1]} : vector<134x1024xf32> to vector<134x512xf32>
    %22 = arith.maximumf %20, %21 : vector<134x512xf32>
    %23 = arith.truncf %22 : vector<134x512xf32> to vector<134x512xbf16>
    %c0_13 = arith.constant 0 : index
    %c0_14 = arith.constant 0 : index
    %24 = vector.load %arg4[%c0_13, %c0_14] : memref<144x134xbf16, #tpu.memory_space<vmem>>, vector<144x134xbf16>
    %cst_15 = arith.constant dense<0.000000e+00> : vector<144x512xf32>
    %25 = tpu.matmul %24, %23, %cst_15 {dimension_numbers = #tpu.dot_dimension_numbers<[1], [0], [0], [1], [0, 0, 1, 1], [], []>} : vector<144x134xbf16>, vector<134x512xbf16>, vector<144x512xf32> -> vector<144x512xf32>
    %26 = vector.extract_strided_slice %25 {offsets = [0, 0], sizes = [72, 512], strides = [1, 1]} : vector<144x512xf32> to vector<72x512xf32>
    %27 = vector.extract_strided_slice %25 {offsets = [72, 0], sizes = [72, 512], strides = [1, 1]} : vector<144x512xf32> to vector<72x512xf32>
    %28 = arith.maximumf %26, %27 : vector<72x512xf32>
    %29 = arith.truncf %28 : vector<72x512xf32> to vector<72x512xbf16>
    %c0_16 = arith.constant 0 : index
    %c0_17 = arith.constant 0 : index
    %30 = vector.load %arg5[%c0_16, %c0_17] : memref<72x512xbf16, #tpu.memory_space<vmem>>, vector<72x512xbf16>
    tpu.vector_store %arg5[%c0_16, %c0_17], %29 {strides = array<i32>} : memref<72x512xbf16, #tpu.memory_space<vmem>>, vector<72x512xbf16>,
    return
  }
  func.func @transform_0(%arg0: i32) -> (i32, i32) {
    %c0_i32 = arith.constant 0 : i32
    %c0_i32_0 = arith.constant 0 : i32
    return %arg0, %c0_i32 : i32, i32
  }
  func.func @transform_1(%arg0: i32) -> (i32, i32, i32) {
    %c0_i32 = arith.constant 0 : i32
    %c0_i32_0 = arith.constant 0 : i32
    %c0_i32_1 = arith.constant 0 : i32
    %c0_i32_2 = arith.constant 0 : i32
    return %c0_i32, %c0_i32_0, %c0_i32_1 : i32, i32, i32
  }
  func.func @transform_2(%arg0: i32) -> (i32, i32) {
    %c0_i32 = arith.constant 0 : i32
    %c0_i32_0 = arith.constant 0 : i32
    %c0_i32_1 = arith.constant 0 : i32
    return %c0_i32, %c0_i32_0 : i32, i32
  }
  func.func @transform_3(%arg0: i32) -> (i32, i32) {
    %c0_i32 = arith.constant 0 : i32
    %c0_i32_0 = arith.constant 0 : i32
    %c0_i32_1 = arith.constant 0 : i32
    return %c0_i32, %c0_i32_0 : i32, i32
  }
  func.func @transform_4(%arg0: i32) -> (i32, i32) {
    %c0_i32 = arith.constant 0 : i32
    %c0_i32_0 = arith.constant 0 : i32
    return %arg0, %c0_i32 : i32, i32
  }
}

</mosaic_0001>

<llo_original>
// kernel: forward.3
$region0: #{forward.3}
  #allocation0 [shape = 'u32[]', space=smem, size = 0x4, offset = 0x4, fixed_abs, tag = 'smem constant byte address 0x4 - core index']
  #allocation1 [shape = 'u32[72,128]{1,0:T(1,128)}', space=vmem, size = 0x9000, scoped, tag = 'internal scratch']
  %s0 = inlined_call_operand.vmem [shape: bf16[136,96], index: 0, kind: input, shape index: {}]
  %s1 = inlined_call_operand.hbm [shape: bf16[3,96,1024], index: 1, kind: input, shape index: {}]
  %s2 = inlined_call_operand.hbm [shape: f32[1,1024], index: 2, kind: input, shape index: {}]
  %s3 = inlined_call_operand.hbm [shape: bf16[144,134], index: 3, kind: input, shape index: {}]
  %s4 = inlined_call_operand.vmem [shape: bf16[72,512], index: 4, kind: output, shape index: {}]
  %s5 = sld [smem:[#allocation0]]
  $region38: #{forward.3} parent=0
    _
  %s7 = ssub.s32 1, %s5
  %s8 = scalar_select 0, %s7, %s5
  $region1: #{forward.3} parent=0
    #allocation2 [shape = 'u8[589824]{0}', space=vmem, size = 0x90000, scoped, tag = 'input window, operand 1, single buffered']
    #allocation3 [shape = 's32[1]{0}', space=sflag, size = 0x4, scoped, tag = 'scoped memory for forward.3']
    #allocation4 [shape = 'u8[4096]{0}', space=vmem, size = 0x1000, scoped, tag = 'input window, operand 2, single buffered']
    #allocation5 [shape = 's32[1]{0}', space=sflag, size = 0x4, scoped, tag = 'scoped memory for forward.3']
    #allocation6 [shape = 'u8[73728]{0}', space=vmem, size = 0x12000, scoped, tag = 'input window, operand 3, single buffered']
    %9 = vsyncpa [#allocation3], 0
    %10 = vsyncpa [#allocation5], 0
    // Predicated region
    $region2: #{forward.3} parent=1 // pred_check
      _
    $region3: #{forward.3} parent=1 // pred_check_branch
      %12 = sbr.rel (0) target = $region5
    $region4: #{forward.3} parent=1 // pred_region
      _
    $region5: #{forward.3} parent=1 // pred_fallthru
      _
    // Predicated region
    $region6: #{forward.3} parent=1 // pred_check
      _
    $region7: #{forward.3} parent=1 // pred_check_branch
      %14 = sbr.rel (0) target = $region9
    $region8: #{forward.3} parent=1 // pred_region
      %16 = vsyncadd [#allocation3], 0
      %s17 = sshll.u32 %s1, 4
      %s18 = int_to_ptr.hbm [resolvable:$true] %s17
      %s19 = sshll.u32 [#allocation2], 4
      %s20 = int_to_ptr.vmem [resolvable:$true] %s19
      %25 = dma.hbm_to_vmem [thread:$0]  %s18, 18432, %s20, [#allocation3], 512, 512, 32
    $region9: #{forward.3} parent=1 // pred_fallthru
      _
    // Predicated region
    $region10: #{forward.3} parent=1 // pred_check
      _
    $region11: #{forward.3} parent=1 // pred_check_branch
      %27 = sbr.rel (0) target = $region13
    $region12: #{forward.3} parent=1 // pred_region
      %29 = vsyncadd [#allocation5], 0
      %s31 = sshll.u32 %s2, 4
      %s32 = int_to_ptr.hbm [resolvable:$true] %s31
      %s33 = sshll.u32 [#allocation4], 4
      %s34 = int_to_ptr.vmem [resolvable:$true] %s33
      %36 = dma.hbm_to_vmem [thread:$0]  %s32, 128, %s34, [#allocation5]
    $region13: #{forward.3} parent=1 // pred_fallthru
      _
    // Predicated region
    $region14: #{forward.3} parent=1 // pred_check
      _
    $region15: #{forward.3} parent=1 // pred_check_branch
      %38 = sbr.rel (0) target = $region17
    $region16: #{forward.3} parent=1 // pred_region
      %40 = vsyncadd [#allocation5], 0
      %s41 = sshll.u32 %s3, 4
      %s42 = int_to_ptr.hbm [resolvable:$true] %s41
      %s43 = sshll.u32 [#allocation6], 4
      %s44 = int_to_ptr.vmem [resolvable:$true] %s43
      %49 = dma.hbm_to_vmem [thread:$0]  %s42, 2304, %s44, [#allocation5], 128, 128, 8
    $region17: #{forward.3} parent=1 // pred_fallthru
      _
    // Predicated region
    $region18: #{forward.3} parent=1 // pred_check
      _
    $region19: #{forward.3} parent=1 // pred_check_branch
      %51 = sbr.rel (0) target = $region21
    $region20: #{forward.3} parent=1 // pred_region
      %53 = dma.done [#allocation3], 18432
    $region21: #{forward.3} parent=1 // pred_fallthru
      _
    // Predicated region
    $region22: #{forward.3} parent=1 // pred_check
      _
    $region23: #{forward.3} parent=1 // pred_check_branch
      %55 = sbr.rel (0) target = $region25
    $region24: #{forward.3} parent=1 // pred_region
      %57 = dma.done [#allocation5], 128
    $region25: #{forward.3} parent=1 // pred_fallthru
      _
    // Predicated region
    $region26: #{forward.3} parent=1 // pred_check
      _
    $region27: #{forward.3} parent=1 // pred_check_branch
      %59 = sbr.rel (0) target = $region29
    $region28: #{forward.3} parent=1 // pred_region
      %61 = dma.done [#allocation5], 2304
    $region29: #{forward.3} parent=1 // pred_fallthru
      _
    %v63 = vld [vmem:[%s0] sm:$0xf]
    %v64 = vld [vmem:[%s0 + $0x4] sm:$0xf]
    %v65 = vld [vmem:[%s0 + $0x8] sm:$0xf]
    %v66 = vld [vmem:[%s0 + $0xc] sm:$0xf]
    %v67 = vld [vmem:[%s0 + $0x10] sm:$0xf]
    %v68 = vld [vmem:[%s0 + $0x14] sm:$0xf]
    %v69 = vld [vmem:[%s0 + $0x18] sm:$0xf]
    %v70 = vld [vmem:[%s0 + $0x1c] sm:$0xf]
    %v71 = vld [vmem:[%s0 + $0x20] sm:$0xf]
    %v72 = vld [vmem:[%s0 + $0x24] sm:$0xf]
    %v73 = vld [vmem:[%s0 + $0x28] sm:$0xf]
    %v74 = vld [vmem:[%s0 + $0x2c] sm:$0xf]
    %v75 = vld [vmem:[%s0 + $0x30] sm:$0xf]
    %v76 = vld [vmem:[%s0 + $0x34] sm:$0xf]
    %v77 = vld [vmem:[%s0 + $0x38] sm:$0xf]
    %v78 = vld [vmem:[%s0 + $0x3c] sm:$0xf]
    %v79 = vld [vmem:[%s0 + $0x40] sm:$0xf]
    %v80 = vld [vmem:[#allocation2] sm:$0xff]
    %v81 = vld [vmem:[#allocation2 + $0x8] sm:$0xff]
    %v82 = vld [vmem:[#allocation2 + $0x10] sm:$0xff]
    %v83 = vld [vmem:[#allocation2 + $0x18] sm:$0xff]
    %v84 = vld [vmem:[#allocation2 + $0x20] sm:$0xff]
    %v85 = vld [vmem:[#allocation2 + $0x28] sm:$0xff]
    %v86 = vld [vmem:[#allocation2 + $0x30] sm:$0xff]
    %v87 = vld [vmem:[#allocation2 + $0x38] sm:$0xff]
    %v88 = vld [vmem:[#allocation2 + $0x40] sm:$0xff]
    %v89 = vld [vmem:[#allocation2 + $0x48] sm:$0xff]
    %v90 = vld [vmem:[#allocation2 + $0x50] sm:$0xff]
    %v91 = vld [vmem:[#allocation2 + $0x58] sm:$0xff]
    %v92 = vld [vmem:[#allocation2 + $0x60] sm:$0xff]
    %v93 = vld [vmem:[#allocation2 + $0x68] sm:$0xff]
    %v94 = vld [vmem:[#allocation2 + $0x70] sm:$0xff]
    %v95 = vld [vmem:[#allocation2 + $0x78] sm:$0xff]
    %v96 = vld [vmem:[#allocation2 + $0x80] sm:$0xff]
    %v97 = vld [vmem:[#allocation2 + $0x88] sm:$0xff]
    %v98 = vld [vmem:[#allocation2 + $0x90] sm:$0xff]
    %v99 = vld [vmem:[#allocation2 + $0x98] sm:$0xff]
    %v100 = vld [vmem:[#allocation2 + $0xa0] sm:$0xff]
    %v101 = vld [vmem:[#allocation2 + $0xa8] sm:$0xff]
    %v102 = vld [vmem:[#allocation2 + $0xb0] sm:$0xff]
    %v103 = vld [vmem:[#allocation2 + $0xb8] sm:$0xff]
    %v104 = vld [vmem:[#allocation2 + $0xc0] sm:$0xff]
    %v105 = vld [vmem:[#allocation2 + $0xc8] sm:$0xff]
    %v106 = vld [vmem:[#allocation2 + $0xd0] sm:$0xff]
    %v107 = vld [vmem:[#allocation2 + $0xd8] sm:$0xff]
    %v108 = vld [vmem:[#allocation2 + $0xe0] sm:$0xff]
    %v109 = vld [vmem:[#allocation2 + $0xe8] sm:$0xff]
    %v110 = vld [vmem:[#allocation2 + $0xf0] sm:$0xff]
    %v111 = vld [vmem:[#allocation2 + $0xf8] sm:$0xff]
    %v112 = vld [vmem:[#allocation2 + $0x100] sm:$0xff]
    %v113 = vld [vmem:[#allocation2 + $0x108] sm:$0xff]
    %v114 = vld [vmem:[#allocation2 + $0x110] sm:$0xff]
    %v115 = vld [vmem:[#allocation2 + $0x118] sm:$0xff]
    %v116 = vld [vmem:[#allocation2 + $0x120] sm:$0xff]
    %v117 = vld [vmem:[#allocation2 + $0x128] sm:$0xff]
    %v118 = vld [vmem:[#allocation2 + $0x130] sm:$0xff]
    %v119 = vld [vmem:[#allocation2 + $0x138] sm:$0xff]
    %v120 = vld [vmem:[#allocation2 + $0x140] sm:$0xff]
    %v121 = vld [vmem:[#allocation2 + $0x148] sm:$0xff]
    %v122 = vld [vmem:[#allocation2 + $0x150] sm:$0xff]
    %v123 = vld [vmem:[#allocation2 + $0x158] sm:$0xff]
    %v124 = vld [vmem:[#allocation2 + $0x160] sm:$0xff]
    %v125 = vld [vmem:[#allocation2 + $0x168] sm:$0xff]
    %v126 = vld [vmem:[#allocation2 + $0x170] sm:$0xff]
    %v127 = vld [vmem:[#allocation2 + $0x178] sm:$0xff]
    %s128 = scalar_lea.vmem [#allocation2], 384
    %v129 = vld [vmem:[%s128] sm:$0xff]
    %v130 = vld [vmem:[%s128 + $0x8] sm:$0xff]
    %v131 = vld [vmem:[%s128 + $0x10] sm:$0xff]
    %v132 = vld [vmem:[%s128 + $0x18] sm:$0xff]
    %v133 = vld [vmem:[%s128 + $0x20] sm:$0xff]
    %v134 = vld [vmem:[%s128 + $0x28] sm:$0xff]
    %v135 = vld [vmem:[%s128 + $0x30] sm:$0xff]
    %v136 = vld [vmem:[%s128 + $0x38] sm:$0xff]
    %v137 = vld [vmem:[%s128 + $0x40] sm:$0xff]
    %v138 = vld [vmem:[%s128 + $0x48] sm:$0xff]
    %v139 = vld [vmem:[%s128 + $0x50] sm:$0xff]
    %v140 = vld [vmem:[%s128 + $0x58] sm:$0xff]
    %v141 = vld [vmem:[%s128 + $0x60] sm:$0xff]
    %v142 = vld [vmem:[%s128 + $0x68] sm:$0xff]
    %v143 = vld [vmem:[%s128 + $0x70] sm:$0xff]
    %v144 = vld [vmem:[%s128 + $0x78] sm:$0xff]
    %v145 = vld [vmem:[%s128 + $0x80] sm:$0xff]
    %v146 = vld [vmem:[%s128 + $0x88] sm:$0xff]
    %v147 = vld [vmem:[%s128 + $0x90] sm:$0xff]
    %v148 = vld [vmem:[%s128 + $0x98] sm:$0xff]
    %v149 = vld [vmem:[%s128 + $0xa0] sm:$0xff]
    %v150 = vld [vmem:[%s128 + $0xa8] sm:$0xff]
    %v151 = vld [vmem:[%s128 + $0xb0] sm:$0xff]
    %v152 = vld [vmem:[%s128 + $0xb8] sm:$0xff]
    %v153 = vld [vmem:[%s128 + $0xc0] sm:$0xff]
    %v154 = vld [vmem:[%s128 + $0xc8] sm:$0xff]
    %v155 = vld [vmem:[%s128 + $0xd0] sm:$0xff]
    %v156 = vld [vmem:[%s128 + $0xd8] sm:$0xff]
    %v157 = vld [vmem:[%s128 + $0xe0] sm:$0xff]
    %v158 = vld [vmem:[%s128 + $0xe8] sm:$0xff]
    %v159 = vld [vmem:[%s128 + $0xf0] sm:$0xff]
    %v160 = vld [vmem:[%s128 + $0xf8] sm:$0xff]
    %v161 = vld [vmem:[%s128 + $0x100] sm:$0xff]
    %v162 = vld [vmem:[%s128 + $0x108] sm:$0xff]
    %v163 = vld [vmem:[%s128 + $0x110] sm:$0xff]
    %v164 = vld [vmem:[%s128 + $0x118] sm:$0xff]
    %v165 = vld [vmem:[%s128 + $0x120] sm:$0xff]
    %v166 = vld [vmem:[%s128 + $0x128] sm:$0xff]
    %v167 = vld [vmem:[%s128 + $0x130] sm:$0xff]
    %v168 = vld [vmem:[%s128 + $0x138] sm:$0xff]
    %v169 = vld [vmem:[%s128 + $0x140] sm:$0xff]
    %v170 = vld [vmem:[%s128 + $0x148] sm:$0xff]
    %v171 = vld [vmem:[%s128 + $0x150] sm:$0xff]
    %v172 = vld [vmem:[%s128 + $0x158] sm:$0xff]
    %v173 = vld [vmem:[%s128 + $0x160] sm:$0xff]
    %v174 = vld [vmem:[%s128 + $0x168] sm:$0xff]
    %v175 = vld [vmem:[%s128 + $0x170] sm:$0xff]
    %v176 = vld [vmem:[%s128 + $0x178] sm:$0xff]
    %v194 = vunpack.c.l.b16 %v63
    %v195 = vunpack.c.l.b16 %v64
    %v196 = vunpack.c.l.b16 %v65
    %v197 = vunpack.c.l.b16 %v66
    %v198 = vunpack.c.l.b16 %v67
    %v199 = vunpack.c.l.b16 %v68
    %v200 = vunpack.c.l.b16 %v69
    %v201 = vunpack.c.l.b16 %v70
    %v202 = vunpack.c.l.b16 %v71
    %v203 = vunpack.c.l.b16 %v72
    %v204 = vunpack.c.l.b16 %v73
    %v205 = vunpack.c.l.b16 %v74
    %v206 = vunpack.c.l.b16 %v75
    %v207 = vunpack.c.l.b16 %v76
    %v208 = vunpack.c.l.b16 %v77
    %v209 = vunpack.c.l.b16 %v78
    %v210 = vunpack.c.l.b16 %v79
    %v211 = vpack.c.b16 %v195, %v194
    %v212 = vpack.c.b16 %v197, %v196
    %v213 = vpack.c.b16 %v199, %v198
    %v214 = vpack.c.b16 %v201, %v200
    %v215 = vpack.c.b16 %v203, %v202
    %v216 = vpack.c.b16 %v205, %v204
    %v217 = vpack.c.b16 %v207, %v206
    %v218 = vpack.c.b16 %v209, %v208
    %v219 = vpack.c.b16 %v210, %v210
    %vm220 = vsmask.f32 7424
    %v222 = vshrl.u32 %v211, 16
    %v224 = vshll.u32 %v211, 16
    %v226 = vrot.slane %v224, 1
    %v227 = vor.u32 %v222, %v226
    %v229 = vshll.u32 %v212, 16
    %v231 = vrot.slane %v229, 1
    %v232 = vsel %vm220, %v227, %v231
    %v233 = vshrl.u32 %v212, 16
    %v235 = vor.u32 %v233, %v231
    %v237 = vshll.u32 %v213, 16
    %v239 = vrot.slane %v237, 1
    %v240 = vsel %vm220, %v235, %v239
    %v241 = vshrl.u32 %v213, 16
    %v243 = vor.u32 %v241, %v239
    %v245 = vshll.u32 %v214, 16
    %v247 = vrot.slane %v245, 1
    %v248 = vsel %vm220, %v243, %v247
    %v249 = vshrl.u32 %v214, 16
    %v251 = vor.u32 %v249, %v247
    %v253 = vshll.u32 %v215, 16
    %v255 = vrot.slane %v253, 1
    %v256 = vsel %vm220, %v251, %v255
    %v257 = vshrl.u32 %v215, 16
    %v259 = vor.u32 %v257, %v255
    %v261 = vshll.u32 %v216, 16
    %v263 = vrot.slane %v261, 1
    %v264 = vsel %vm220, %v259, %v263
    %v265 = vshrl.u32 %v216, 16
    %v267 = vor.u32 %v265, %v263
    %v269 = vshll.u32 %v217, 16
    %v271 = vrot.slane %v269, 1
    %v272 = vsel %vm220, %v267, %v271
    %v273 = vshrl.u32 %v217, 16
    %v275 = vor.u32 %v273, %v271
    %v277 = vshll.u32 %v218, 16
    %v279 = vrot.slane %v277, 1
    %v280 = vsel %vm220, %v275, %v279
    %v281 = vshrl.u32 %v218, 16
    %v283 = vor.u32 %v281, %v279
    %v285 = vshll.u32 %v219, 16
    %v287 = vrot.slane %v285, 1
    %v288 = vsel %vm220, %v283, %v287
    %v289 = vshrl.u32 %v219, 16
    %v291 = vor.u32 %v289, %v287
    %v340 = vunpack.c.l.b16 %v129
    %v341 = vunpack.c.h.b16 %v129
    %v342 = vunpack.c.l.b16 %v130
    %v343 = vunpack.c.h.b16 %v130
    %v344 = vunpack.c.l.b16 %v131
    %v345 = vunpack.c.h.b16 %v131
    %v346 = vunpack.c.l.b16 %v132
    %v347 = vunpack.c.h.b16 %v132
    %v348 = vunpack.c.l.b16 %v133
    %v349 = vunpack.c.h.b16 %v133
    %v350 = vunpack.c.l.b16 %v134
    %v351 = vunpack.c.h.b16 %v134
    %v352 = vunpack.c.l.b16 %v135
    %v353 = vunpack.c.h.b16 %v135
    %v354 = vunpack.c.l.b16 %v136
    %v355 = vunpack.c.h.b16 %v136
    %v356 = vunpack.c.l.b16 %v137
    %v357 = vunpack.c.h.b16 %v137
    %v358 = vunpack.c.l.b16 %v138
    %v359 = vunpack.c.h.b16 %v138
    %v360 = vunpack.c.l.b16 %v139
    %v361 = vunpack.c.h.b16 %v139
    %v362 = vunpack.c.l.b16 %v140
    %v363 = vunpack.c.h.b16 %v140
    %v364 = vunpack.c.l.b16 %v141
    %v365 = vunpack.c.h.b16 %v141
    %v366 = vunpack.c.l.b16 %v142
    %v367 = vunpack.c.h.b16 %v142
    %v368 = vunpack.c.l.b16 %v143
    %v369 = vunpack.c.h.b16 %v143
    %v370 = vunpack.c.l.b16 %v144
    %v371 = vunpack.c.h.b16 %v144
    %v372 = vunpack.c.l.b16 %v145
    %v373 = vunpack.c.h.b16 %v145
    %v374 = vunpack.c.l.b16 %v146
    %v375 = vunpack.c.h.b16 %v146
    %v376 = vunpack.c.l.b16 %v147
    %v377 = vunpack.c.h.b16 %v147
    %v378 = vunpack.c.l.b16 %v148
    %v379 = vunpack.c.h.b16 %v148
    %v380 = vunpack.c.l.b16 %v149
    %v381 = vunpack.c.h.b16 %v149
    %v382 = vunpack.c.l.b16 %v150
    %v383 = vunpack.c.h.b16 %v150
    %v384 = vunpack.c.l.b16 %v151
    %v385 = vunpack.c.h.b16 %v151
    %v386 = vunpack.c.l.b16 %v152
    %v387 = vunpack.c.h.b16 %v152
    %v388 = vunpack.c.l.b16 %v153
    %v389 = vunpack.c.h.b16 %v153
    %v390 = vunpack.c.l.b16 %v154
    %v391 = vunpack.c.h.b16 %v154
    %v392 = vunpack.c.l.b16 %v155
    %v393 = vunpack.c.h.b16 %v155
    %v394 = vunpack.c.l.b16 %v156
    %v395 = vunpack.c.h.b16 %v156
    %v396 = vunpack.c.l.b16 %v157
    %v397 = vunpack.c.h.b16 %v157
    %v398 = vunpack.c.l.b16 %v158
    %v399 = vunpack.c.h.b16 %v158
    %v400 = vunpack.c.l.b16 %v159
    %v401 = vunpack.c.h.b16 %v159
    %v402 = vunpack.c.l.b16 %v160
    %v403 = vunpack.c.h.b16 %v160
    %v404 = vunpack.c.l.b16 %v161
    %v405 = vunpack.c.h.b16 %v161
    %v406 = vunpack.c.l.b16 %v162
    %v407 = vunpack.c.h.b16 %v162
    %v408 = vunpack.c.l.b16 %v163
    %v409 = vunpack.c.h.b16 %v163
    %v410 = vunpack.c.l.b16 %v164
    %v411 = vunpack.c.h.b16 %v164
    %v412 = vunpack.c.l.b16 %v165
    %v413 = vunpack.c.h.b16 %v165
    %v414 = vunpack.c.l.b16 %v166
    %v415 = vunpack.c.h.b16 %v166
    %v416 = vunpack.c.l.b16 %v167
    %v417 = vunpack.c.h.b16 %v167
    %v418 = vunpack.c.l.b16 %v168
    %v419 = vunpack.c.h.b16 %v168
    %v420 = vunpack.c.l.b16 %v169
    %v421 = vunpack.c.h.b16 %v169
    %v422 = vunpack.c.l.b16 %v170
    %v423 = vunpack.c.h.b16 %v170
    %v424 = vunpack.c.l.b16 %v171
    %v425 = vunpack.c.h.b16 %v171
    %v426 = vunpack.c.l.b16 %v172
    %v427 = vunpack.c.h.b16 %v172
    %v428 = vunpack.c.l.b16 %v173
    %v429 = vunpack.c.h.b16 %v173
    %v430 = vunpack.c.l.b16 %v174
    %v431 = vunpack.c.h.b16 %v174
    %v432 = vunpack.c.l.b16 %v175
    %v433 = vunpack.c.h.b16 %v175
    %v434 = vunpack.c.l.b16 %v176
    %v435 = vunpack.c.h.b16 %v176
    %v436 = vpack.c.b16 %v348, %v340
    %v437 = vpack.c.b16 %v349, %v341
    %v438 = vpack.c.b16 %v350, %v342
    %v439 = vpack.c.b16 %v351, %v343
    %v440 = vpack.c.b16 %v352, %v344
    %v441 = vpack.c.b16 %v353, %v345
    %v442 = vpack.c.b16 %v354, %v346
    %v443 = vpack.c.b16 %v355, %v347
    %v444 = vpack.c.b16 %v364, %v356
    %v445 = vpack.c.b16 %v365, %v357
    %v446 = vpack.c.b16 %v366, %v358
    %v447 = vpack.c.b16 %v367, %v359
    %v448 = vpack.c.b16 %v368, %v360
    %v449 = vpack.c.b16 %v369, %v361
    %v450 = vpack.c.b16 %v370, %v362
    %v451 = vpack.c.b16 %v371, %v363
    %v452 = vpack.c.b16 %v380, %v372
    %v453 = vpack.c.b16 %v381, %v373
    %v454 = vpack.c.b16 %v382, %v374
    %v455 = vpack.c.b16 %v383, %v375
    %v456 = vpack.c.b16 %v384, %v376
    %v457 = vpack.c.b16 %v385, %v377
    %v458 = vpack.c.b16 %v386, %v378
    %v459 = vpack.c.b16 %v387, %v379
    %v460 = vpack.c.b16 %v396, %v388
    %v461 = vpack.c.b16 %v397, %v389
    %v462 = vpack.c.b16 %v398, %v390
    %v463 = vpack.c.b16 %v399, %v391
    %v464 = vpack.c.b16 %v400, %v392
    %v465 = vpack.c.b16 %v401, %v393
    %v466 = vpack.c.b16 %v402, %v394
    %v467 = vpack.c.b16 %v403, %v395
    %v468 = vpack.c.b16 %v412, %v404
    %v469 = vpack.c.b16 %v413, %v405
    %v470 = vpack.c.b16 %v414, %v406
    %v471 = vpack.c.b16 %v415, %v407
    %v472 = vpack.c.b16 %v416, %v408
    %v473 = vpack.c.b16 %v417, %v409
    %v474 = vpack.c.b16 %v418, %v410
    %v475 = vpack.c.b16 %v419, %v411
    %v476 = vpack.c.b16 %v428, %v420
    %v477 = vpack.c.b16 %v429, %v421
    %v478 = vpack.c.b16 %v430, %v422
    %v479 = vpack.c.b16 %v431, %v423
    %v480 = vpack.c.b16 %v432, %v424
    %v481 = vpack.c.b16 %v433, %v425
    %v482 = vpack.c.b16 %v434, %v426
    %v483 = vpack.c.b16 %v435, %v427
    %vm532 = vcmask 785408
    %v534 = vsel %vm532, %v232, 0
    %v537 = vsel %vm532, %v240, 0
    %v540 = vsel %vm532, %v248, 0
    %v543 = vsel %vm532, %v256, 0
    %v546 = vsel %vm532, %v264, 0
    %v549 = vsel %vm532, %v272, 0
    %v552 = vsel %vm532, %v280, 0
    %v555 = vsel %vm532, %v288, 0
    %v558 = vsel %vm532, %v291, 0
    %560 = vmatpush.bf16.msra.mxu0 0
    %561 = vmatpush.bf16.msra.mxu0 0
    %562 = vmatpush.bf16.msra.mxu0 %v476
    %563 = vmatpush.bf16.msra.mxu0 %v468
    %564 = vmatpush.bf16.msra.mxu0 %v460
    %565 = vmatpush.bf16.msra.mxu0 %v452
    %566 = vmatpush.bf16.msra.mxu0 %v444
    %567 = vmatpush.bf16.msra.mxu0 %v436
    %568 = vmatmul.bf16.gmra.mxu0 %v534
    %v569 = vpop.f32.mrf.mxu0
    %v570 = vadd.f32 0.0, %v569
    %v571 = vpop.f32.mrf.mxu0
    %v572 = vadd.f32 0.0, %v571
    %573 = vmatmul.bf16.gmra.mxu0 %v537
    %v574 = vpop.f32.mrf.mxu0
    %v575 = vadd.f32 0.0, %v574
    %v576 = vpop.f32.mrf.mxu0
    %v577 = vadd.f32 0.0, %v576
    %578 = vmatmul.bf16.gmra.mxu0 %v540
    %v579 = vpop.f32.mrf.mxu0
    %v580 = vadd.f32 0.0, %v579
    %v581 = vpop.f32.mrf.mxu0
    %v582 = vadd.f32 0.0, %v581
    %583 = vmatmul.bf16.gmra.mxu0 %v543
    %v584 = vpop.f32.mrf.mxu0
    %v585 = vadd.f32 0.0, %v584
    %v586 = vpop.f32.mrf.mxu0
    %v587 = vadd.f32 0.0, %v586
    %588 = vmatmul.bf16.gmra.mxu0 %v546
    %v589 = vpop.f32.mrf.mxu0
    %v590 = vadd.f32 0.0, %v589
    %v591 = vpop.f32.mrf.mxu0
    %v592 = vadd.f32 0.0, %v591
    %593 = vmatmul.bf16.gmra.mxu0 %v549
    %v594 = vpop.f32.mrf.mxu0
    %v595 = vadd.f32 0.0, %v594
    %v596 = vpop.f32.mrf.mxu0
    %v597 = vadd.f32 0.0, %v596
    %598 = vmatmul.bf16.gmra.mxu0 %v552
    %v599 = vpop.f32.mrf.mxu0
    %v600 = vadd.f32 0.0, %v599
    %v601 = vpop.f32.mrf.mxu0
    %v602 = vadd.f32 0.0, %v601
    %603 = vmatmul.bf16.gmra.mxu0 %v555
    %v604 = vpop.f32.mrf.mxu0
    %v605 = vadd.f32 0.0, %v604
    %v606 = vpop.f32.mrf.mxu0
    %v607 = vadd.f32 0.0, %v606
    %608 = vmatmul.bf16.gmra.mxu0 %v558
    %v609 = vpop.f32.mrf.mxu0
    %v610 = vadd.f32 0.0, %v609
    %v611 = vpop.f32.mrf.mxu0
    %612 = vdwg.mxu0
    %613 = vmatpush.bf16.msra.mxu0 0
    %614 = vmatpush.bf16.msra.mxu0 0
    %615 = vmatpush.bf16.msra.mxu0 %v477
    %616 = vmatpush.bf16.msra.mxu0 %v469
    %617 = vmatpush.bf16.msra.mxu0 %v461
    %618 = vmatpush.bf16.msra.mxu0 %v453
    %619 = vmatpush.bf16.msra.mxu0 %v445
    %620 = vmatpush.bf16.msra.mxu0 %v437
    %621 = vmatmul.bf16.gmra.mxu0 %v534
    %v622 = vpop.f32.mrf.mxu0
    %v623 = vadd.f32 0.0, %v622
    %v624 = vpop.f32.mrf.mxu0
    %v625 = vadd.f32 0.0, %v624
    %626 = vmatmul.bf16.gmra.mxu0 %v537
    %v627 = vpop.f32.mrf.mxu0
    %v628 = vadd.f32 0.0, %v627
    %v629 = vpop.f32.mrf.mxu0
    %v630 = vadd.f32 0.0, %v629
    %631 = vmatmul.bf16.gmra.mxu0 %v540
    %v632 = vpop.f32.mrf.mxu0
    %v633 = vadd.f32 0.0, %v632
    %v634 = vpop.f32.mrf.mxu0
    %v635 = vadd.f32 0.0, %v634
    %636 = vmatmul.bf16.gmra.mxu0 %v543
    %v637 = vpop.f32.mrf.mxu0
    %v638 = vadd.f32 0.0, %v637
    %v639 = vpop.f32.mrf.mxu0
    %v640 = vadd.f32 0.0, %v639
    %641 = vmatmul.bf16.gmra.mxu0 %v546
    %v642 = vpop.f32.mrf.mxu0
    %v643 = vadd.f32 0.0, %v642
    %v644 = vpop.f32.mrf.mxu0
    %v645 = vadd.f32 0.0, %v644
    %646 = vmatmul.bf16.gmra.mxu0 %v549
    %v647 = vpop.f32.mrf.mxu0
    %v648 = vadd.f32 0.0, %v647
    %v649 = vpop.f32.mrf.mxu0
    %v650 = vadd.f32 0.0, %v649
    %651 = vmatmul.bf16.gmra.mxu0 %v552
    %v652 = vpop.f32.mrf.mxu0
    %v653 = vadd.f32 0.0, %v652
    %v654 = vpop.f32.mrf.mxu0
    %v655 = vadd.f32 0.0, %v654
    %656 = vmatmul.bf16.gmra.mxu0 %v555
    %v657 = vpop.f32.mrf.mxu0
    %v658 = vadd.f32 0.0, %v657
    %v659 = vpop.f32.mrf.mxu0
    %v660 = vadd.f32 0.0, %v659
    %661 = vmatmul.bf16.gmra.mxu0 %v558
    %v662 = vpop.f32.mrf.mxu0
    %v663 = vadd.f32 0.0, %v662
    %v664 = vpop.f32.mrf.mxu0
    %665 = vdwg.mxu0
    %666 = vmatpush.bf16.msra.mxu0 0
    %667 = vmatpush.bf16.msra.mxu0 0
    %668 = vmatpush.bf16.msra.mxu0 %v478
    %669 = vmatpush.bf16.msra.mxu0 %v470
    %670 = vmatpush.bf16.msra.mxu0 %v462
    %671 = vmatpush.bf16.msra.mxu0 %v454
    %672 = vmatpush.bf16.msra.mxu0 %v446
    %673 = vmatpush.bf16.msra.mxu0 %v438
    %674 = vmatmul.bf16.gmra.mxu0 %v534
    %v675 = vpop.f32.mrf.mxu0
    %v676 = vadd.f32 0.0, %v675
    %v677 = vpop.f32.mrf.mxu0
    %v678 = vadd.f32 0.0, %v677
    %679 = vmatmul.bf16.gmra.mxu0 %v537
    %v680 = vpop.f32.mrf.mxu0
    %v681 = vadd.f32 0.0, %v680
    %v682 = vpop.f32.mrf.mxu0
    %v683 = vadd.f32 0.0, %v682
    %684 = vmatmul.bf16.gmra.mxu0 %v540
    %v685 = vpop.f32.mrf.mxu0
    %v686 = vadd.f32 0.0, %v685
    %v687 = vpop.f32.mrf.mxu0
    %v688 = vadd.f32 0.0, %v687
    %689 = vmatmul.bf16.gmra.mxu0 %v543
    %v690 = vpop.f32.mrf.mxu0
    %v691 = vadd.f32 0.0, %v690
    %v692 = vpop.f32.mrf.mxu0
    %v693 = vadd.f32 0.0, %v692
    %694 = vmatmul.bf16.gmra.mxu0 %v546
    %v695 = vpop.f32.mrf.mxu0
    %v696 = vadd.f32 0.0, %v695
    %v697 = vpop.f32.mrf.mxu0
    %v698 = vadd.f32 0.0, %v697
    %699 = vmatmul.bf16.gmra.mxu0 %v549
    %v700 = vpop.f32.mrf.mxu0
    %v701 = vadd.f32 0.0, %v700
    %v702 = vpop.f32.mrf.mxu0
    %v703 = vadd.f32 0.0, %v702
    %704 = vmatmul.bf16.gmra.mxu0 %v552
    %v705 = vpop.f32.mrf.mxu0
    %v706 = vadd.f32 0.0, %v705
    %v707 = vpop.f32.mrf.mxu0
    %v708 = vadd.f32 0.0, %v707
    %709 = vmatmul.bf16.gmra.mxu0 %v555
    %v710 = vpop.f32.mrf.mxu0
    %v711 = vadd.f32 0.0, %v710
    %v712 = vpop.f32.mrf.mxu0
    %v713 = vadd.f32 0.0, %v712
    %714 = vmatmul.bf16.gmra.mxu0 %v558
    %v715 = vpop.f32.mrf.mxu0
    %v716 = vadd.f32 0.0, %v715
    %v717 = vpop.f32.mrf.mxu0
    %718 = vdwg.mxu0
    %719 = vmatpush.bf16.msra.mxu0 0
    %720 = vmatpush.bf16.msra.mxu0 0
    %721 = vmatpush.bf16.msra.mxu0 %v479
    %722 = vmatpush.bf16.msra.mxu0 %v471
    %723 = vmatpush.bf16.msra.mxu0 %v463
    %724 = vmatpush.bf16.msra.mxu0 %v455
    %725 = vmatpush.bf16.msra.mxu0 %v447
    %726 = vmatpush.bf16.msra.mxu0 %v439
    %727 = vmatmul.bf16.gmra.mxu0 %v534
    %v728 = vpop.f32.mrf.mxu0
    %v729 = vadd.f32 0.0, %v728
    %v730 = vpop.f32.mrf.mxu0
    %v731 = vadd.f32 0.0, %v730
    %732 = vmatmul.bf16.gmra.mxu0 %v537
    %v733 = vpop.f32.mrf.mxu0
    %v734 = vadd.f32 0.0, %v733
    %v735 = vpop.f32.mrf.mxu0
    %v736 = vadd.f32 0.0, %v735
    %737 = vmatmul.bf16.gmra.mxu0 %v540
    %v738 = vpop.f32.mrf.mxu0
    %v739 = vadd.f32 0.0, %v738
    %v740 = vpop.f32.mrf.mxu0
    %v741 = vadd.f32 0.0, %v740
    %742 = vmatmul.bf16.gmra.mxu0 %v543
    %v743 = vpop.f32.mrf.mxu0
    %v744 = vadd.f32 0.0, %v743
    %v745 = vpop.f32.mrf.mxu0
    %v746 = vadd.f32 0.0, %v745
    %747 = vmatmul.bf16.gmra.mxu0 %v546
    %v748 = vpop.f32.mrf.mxu0
    %v749 = vadd.f32 0.0, %v748
    %v750 = vpop.f32.mrf.mxu0
    %v751 = vadd.f32 0.0, %v750
    %752 = vmatmul.bf16.gmra.mxu0 %v549
    %v753 = vpop.f32.mrf.mxu0
    %v754 = vadd.f32 0.0, %v753
    %v755 = vpop.f32.mrf.mxu0
    %v756 = vadd.f32 0.0, %v755
    %757 = vmatmul.bf16.gmra.mxu0 %v552
    %v758 = vpop.f32.mrf.mxu0
    %v759 = vadd.f32 0.0, %v758
    %v760 = vpop.f32.mrf.mxu0
    %v761 = vadd.f32 0.0, %v760
    %762 = vmatmul.bf16.gmra.mxu0 %v555
    %v763 = vpop.f32.mrf.mxu0
    %v764 = vadd.f32 0.0, %v763
    %v765 = vpop.f32.mrf.mxu0
    %v766 = vadd.f32 0.0, %v765
    %767 = vmatmul.bf16.gmra.mxu0 %v558
    %v768 = vpop.f32.mrf.mxu0
    %v769 = vadd.f32 0.0, %v768
    %v770 = vpop.f32.mrf.mxu0
    %771 = vdwg.mxu0
    %772 = vmatpush.bf16.msra.mxu0 0
    %773 = vmatpush.bf16.msra.mxu0 0
    %774 = vmatpush.bf16.msra.mxu0 %v480
    %775 = vmatpush.bf16.msra.mxu0 %v472
    %776 = vmatpush.bf16.msra.mxu0 %v464
    %777 = vmatpush.bf16.msra.mxu0 %v456
    %778 = vmatpush.bf16.msra.mxu0 %v448
    %779 = vmatpush.bf16.msra.mxu0 %v440
    %780 = vmatmul.bf16.gmra.mxu0 %v534
    %v781 = vpop.f32.mrf.mxu0
    %v782 = vadd.f32 0.0, %v781
    %v783 = vpop.f32.mrf.mxu0
    %v784 = vadd.f32 0.0, %v783
    %785 = vmatmul.bf16.gmra.mxu0 %v537
    %v786 = vpop.f32.mrf.mxu0
    %v787 = vadd.f32 0.0, %v786
    %v788 = vpop.f32.mrf.mxu0
    %v789 = vadd.f32 0.0, %v788
    %790 = vmatmul.bf16.gmra.mxu0 %v540
    %v791 = vpop.f32.mrf.mxu0
    %v792 = vadd.f32 0.0, %v791
    %v793 = vpop.f32.mrf.mxu0
    %v794 = vadd.f32 0.0, %v793
    %795 = vmatmul.bf16.gmra.mxu0 %v543
    %v796 = vpop.f32.mrf.mxu0
    %v797 = vadd.f32 0.0, %v796
    %v798 = vpop.f32.mrf.mxu0
    %v799 = vadd.f32 0.0, %v798
    %800 = vmatmul.bf16.gmra.mxu0 %v546
    %v801 = vpop.f32.mrf.mxu0
    %v802 = vadd.f32 0.0, %v801
    %v803 = vpop.f32.mrf.mxu0
    %v804 = vadd.f32 0.0, %v803
    %805 = vmatmul.bf16.gmra.mxu0 %v549
    %v806 = vpop.f32.mrf.mxu0
    %v807 = vadd.f32 0.0, %v806
    %v808 = vpop.f32.mrf.mxu0
    %v809 = vadd.f32 0.0, %v808
    %810 = vmatmul.bf16.gmra.mxu0 %v552
    %v811 = vpop.f32.mrf.mxu0
    %v812 = vadd.f32 0.0, %v811
    %v813 = vpop.f32.mrf.mxu0
    %v814 = vadd.f32 0.0, %v813
    %815 = vmatmul.bf16.gmra.mxu0 %v555
    %v816 = vpop.f32.mrf.mxu0
    %v817 = vadd.f32 0.0, %v816
    %v818 = vpop.f32.mrf.mxu0
    %v819 = vadd.f32 0.0, %v818
    %820 = vmatmul.bf16.gmra.mxu0 %v558
    %v821 = vpop.f32.mrf.mxu0
    %v822 = vadd.f32 0.0, %v821
    %v823 = vpop.f32.mrf.mxu0
    %824 = vdwg.mxu0
    %825 = vmatpush.bf16.msra.mxu0 0
    %826 = vmatpush.bf16.msra.mxu0 0
    %827 = vmatpush.bf16.msra.mxu0 %v481
    %828 = vmatpush.bf16.msra.mxu0 %v473
    %829 = vmatpush.bf16.msra.mxu0 %v465
    %830 = vmatpush.bf16.msra.mxu0 %v457
    %831 = vmatpush.bf16.msra.mxu0 %v449
    %832 = vmatpush.bf16.msra.mxu0 %v441
    %833 = vmatmul.bf16.gmra.mxu0 %v534
    %v834 = vpop.f32.mrf.mxu0
    %v835 = vadd.f32 0.0, %v834
    %v836 = vpop.f32.mrf.mxu0
    %v837 = vadd.f32 0.0, %v836
    %838 = vmatmul.bf16.gmra.mxu0 %v537
    %v839 = vpop.f32.mrf.mxu0
    %v840 = vadd.f32 0.0, %v839
    %v841 = vpop.f32.mrf.mxu0
    %v842 = vadd.f32 0.0, %v841
    %843 = vmatmul.bf16.gmra.mxu0 %v540
    %v844 = vpop.f32.mrf.mxu0
    %v845 = vadd.f32 0.0, %v844
    %v846 = vpop.f32.mrf.mxu0
    %v847 = vadd.f32 0.0, %v846
    %848 = vmatmul.bf16.gmra.mxu0 %v543
    %v849 = vpop.f32.mrf.mxu0
    %v850 = vadd.f32 0.0, %v849
    %v851 = vpop.f32.mrf.mxu0
    %v852 = vadd.f32 0.0, %v851
    %853 = vmatmul.bf16.gmra.mxu0 %v546
    %v854 = vpop.f32.mrf.mxu0
    %v855 = vadd.f32 0.0, %v854
    %v856 = vpop.f32.mrf.mxu0
    %v857 = vadd.f32 0.0, %v856
    %858 = vmatmul.bf16.gmra.mxu0 %v549
    %v859 = vpop.f32.mrf.mxu0
    %v860 = vadd.f32 0.0, %v859
    %v861 = vpop.f32.mrf.mxu0
    %v862 = vadd.f32 0.0, %v861
    %863 = vmatmul.bf16.gmra.mxu0 %v552
    %v864 = vpop.f32.mrf.mxu0
    %v865 = vadd.f32 0.0, %v864
    %v866 = vpop.f32.mrf.mxu0
    %v867 = vadd.f32 0.0, %v866
    %868 = vmatmul.bf16.gmra.mxu0 %v555
    %v869 = vpop.f32.mrf.mxu0
    %v870 = vadd.f32 0.0, %v869
    %v871 = vpop.f32.mrf.mxu0
    %v872 = vadd.f32 0.0, %v871
    %873 = vmatmul.bf16.gmra.mxu0 %v558
    %v874 = vpop.f32.mrf.mxu0
    %v875 = vadd.f32 0.0, %v874
    %v876 = vpop.f32.mrf.mxu0
    %877 = vdwg.mxu0
    %878 = vmatpush.bf16.msra.mxu0 0
    %879 = vmatpush.bf16.msra.mxu0 0
    %880 = vmatpush.bf16.msra.mxu0 %v482
    %881 = vmatpush.bf16.msra.mxu0 %v474
    %882 = vmatpush.bf16.msra.mxu0 %v466
    %883 = vmatpush.bf16.msra.mxu0 %v458
    %884 = vmatpush.bf16.msra.mxu0 %v450
    %885 = vmatpush.bf16.msra.mxu0 %v442
    %886 = vmatmul.bf16.gmra.mxu0 %v534
    %v887 = vpop.f32.mrf.mxu0
    %v888 = vadd.f32 0.0, %v887
    %v889 = vpop.f32.mrf.mxu0
    %v890 = vadd.f32 0.0, %v889
    %891 = vmatmul.bf16.gmra.mxu0 %v537
    %v892 = vpop.f32.mrf.mxu0
    %v893 = vadd.f32 0.0, %v892
    %v894 = vpop.f32.mrf.mxu0
    %v895 = vadd.f32 0.0, %v894
    %896 = vmatmul.bf16.gmra.mxu0 %v540
    %v897 = vpop.f32.mrf.mxu0
    %v898 = vadd.f32 0.0, %v897
    %v899 = vpop.f32.mrf.mxu0
    %v900 = vadd.f32 0.0, %v899
    %901 = vmatmul.bf16.gmra.mxu0 %v543
    %v902 = vpop.f32.mrf.mxu0
    %v903 = vadd.f32 0.0, %v902
    %v904 = vpop.f32.mrf.mxu0
    %v905 = vadd.f32 0.0, %v904
    %906 = vmatmul.bf16.gmra.mxu0 %v546
    %v907 = vpop.f32.mrf.mxu0
    %v908 = vadd.f32 0.0, %v907
    %v909 = vpop.f32.mrf.mxu0
    %v910 = vadd.f32 0.0, %v909
    %911 = vmatmul.bf16.gmra.mxu0 %v549
    %v912 = vpop.f32.mrf.mxu0
    %v913 = vadd.f32 0.0, %v912
    %v914 = vpop.f32.mrf.mxu0
    %v915 = vadd.f32 0.0, %v914
    %916 = vmatmul.bf16.gmra.mxu0 %v552
    %v917 = vpop.f32.mrf.mxu0
    %v918 = vadd.f32 0.0, %v917
    %v919 = vpop.f32.mrf.mxu0
    %v920 = vadd.f32 0.0, %v919
    %921 = vmatmul.bf16.gmra.mxu0 %v555
    %v922 = vpop.f32.mrf.mxu0
    %v923 = vadd.f32 0.0, %v922
    %v924 = vpop.f32.mrf.mxu0
    %v925 = vadd.f32 0.0, %v924
    %926 = vmatmul.bf16.gmra.mxu0 %v558
    %v927 = vpop.f32.mrf.mxu0
    %v928 = vadd.f32 0.0, %v927
    %v929 = vpop.f32.mrf.mxu0
    %930 = vdwg.mxu0
    %931 = vmatpush.bf16.msra.mxu0 0
    %932 = vmatpush.bf16.msra.mxu0 0
    %933 = vmatpush.bf16.msra.mxu0 %v483
    %934 = vmatpush.bf16.msra.mxu0 %v475
    %935 = vmatpush.bf16.msra.mxu0 %v467
    %936 = vmatpush.bf16.msra.mxu0 %v459
    %937 = vmatpush.bf16.msra.mxu0 %v451
    %938 = vmatpush.bf16.msra.mxu0 %v443
    %939 = vmatmul.bf16.gmra.mxu0 %v534
    %v940 = vpop.f32.mrf.mxu0
    %v941 = vadd.f32 0.0, %v940
    %v942 = vpop.f32.mrf.mxu0
    %v943 = vadd.f32 0.0, %v942
    %944 = vmatmul.bf16.gmra.mxu0 %v537
    %v945 = vpop.f32.mrf.mxu0
    %v946 = vadd.f32 0.0, %v945
    %v947 = vpop.f32.mrf.mxu0
    %v948 = vadd.f32 0.0, %v947
    %949 = vmatmul.bf16.gmra.mxu0 %v540
    %v950 = vpop.f32.mrf.mxu0
    %v951 = vadd.f32 0.0, %v950
    %v952 = vpop.f32.mrf.mxu0
    %v953 = vadd.f32 0.0, %v952
    %954 = vmatmul.bf16.gmra.mxu0 %v543
    %v955 = vpop.f32.mrf.mxu0
    %v956 = vadd.f32 0.0, %v955
    %v957 = vpop.f32.mrf.mxu0
    %v958 = vadd.f32 0.0, %v957
    %959 = vmatmul.bf16.gmra.mxu0 %v546
    %v960 = vpop.f32.mrf.mxu0
    %v961 = vadd.f32 0.0, %v960
    %v962 = vpop.f32.mrf.mxu0
    %v963 = vadd.f32 0.0, %v962
    %964 = vmatmul.bf16.gmra.mxu0 %v549
    %v965 = vpop.f32.mrf.mxu0
    %v966 = vadd.f32 0.0, %v965
    %v967 = vpop.f32.mrf.mxu0
    %v968 = vadd.f32 0.0, %v967
    %969 = vmatmul.bf16.gmra.mxu0 %v552
    %v970 = vpop.f32.mrf.mxu0
    %v971 = vadd.f32 0.0, %v970
    %v972 = vpop.f32.mrf.mxu0
    %v973 = vadd.f32 0.0, %v972
    %974 = vmatmul.bf16.gmra.mxu0 %v555
    %v975 = vpop.f32.mrf.mxu0
    %v976 = vadd.f32 0.0, %v975
    %v977 = vpop.f32.mrf.mxu0
    %v978 = vadd.f32 0.0, %v977
    %979 = vmatmul.bf16.gmra.mxu0 %v558
    %v980 = vpop.f32.mrf.mxu0
    %v981 = vadd.f32 0.0, %v980
    %v982 = vpop.f32.mrf.mxu0
    %983 = vdwg.mxu0
    %v1032 = vunpack.c.l.b16 %v80
    %v1033 = vunpack.c.h.b16 %v80
    %v1034 = vunpack.c.l.b16 %v81
    %v1035 = vunpack.c.h.b16 %v81
    %v1036 = vunpack.c.l.b16 %v82
    %v1037 = vunpack.c.h.b16 %v82
    %v1038 = vunpack.c.l.b16 %v83
    %v1039 = vunpack.c.h.b16 %v83
    %v1040 = vunpack.c.l.b16 %v84
    %v1041 = vunpack.c.h.b16 %v84
    %v1042 = vunpack.c.l.b16 %v85
    %v1043 = vunpack.c.h.b16 %v85
    %v1044 = vunpack.c.l.b16 %v86
    %v1045 = vunpack.c.h.b16 %v86
    %v1046 = vunpack.c.l.b16 %v87
    %v1047 = vunpack.c.h.b16 %v87
    %v1048 = vunpack.c.l.b16 %v88
    %v1049 = vunpack.c.h.b16 %v88
    %v1050 = vunpack.c.l.b16 %v89
    %v1051 = vunpack.c.h.b16 %v89
    %v1052 = vunpack.c.l.b16 %v90
    %v1053 = vunpack.c.h.b16 %v90
    %v1054 = vunpack.c.l.b16 %v91
    %v1055 = vunpack.c.h.b16 %v91
    %v1056 = vunpack.c.l.b16 %v92
    %v1057 = vunpack.c.h.b16 %v92
    %v1058 = vunpack.c.l.b16 %v93
    %v1059 = vunpack.c.h.b16 %v93
    %v1060 = vunpack.c.l.b16 %v94
    %v1061 = vunpack.c.h.b16 %v94
    %v1062 = vunpack.c.l.b16 %v95
    %v1063 = vunpack.c.h.b16 %v95
    %v1064 = vunpack.c.l.b16 %v96
    %v1065 = vunpack.c.h.b16 %v96
    %v1066 = vunpack.c.l.b16 %v97
    %v1067 = vunpack.c.h.b16 %v97
    %v1068 = vunpack.c.l.b16 %v98
    %v1069 = vunpack.c.h.b16 %v98
    %v1070 = vunpack.c.l.b16 %v99
    %v1071 = vunpack.c.h.b16 %v99
    %v1072 = vunpack.c.l.b16 %v100
    %v1073 = vunpack.c.h.b16 %v100
    %v1074 = vunpack.c.l.b16 %v101
    %v1075 = vunpack.c.h.b16 %v101
    %v1076 = vunpack.c.l.b16 %v102
    %v1077 = vunpack.c.h.b16 %v102
    %v1078 = vunpack.c.l.b16 %v103
    %v1079 = vunpack.c.h.b16 %v103
    %v1080 = vunpack.c.l.b16 %v104
    %v1081 = vunpack.c.h.b16 %v104
    %v1082 = vunpack.c.l.b16 %v105
    %v1083 = vunpack.c.h.b16 %v105
    %v1084 = vunpack.c.l.b16 %v106
    %v1085 = vunpack.c.h.b16 %v106
    %v1086 = vunpack.c.l.b16 %v107
    %v1087 = vunpack.c.h.b16 %v107
    %v1088 = vunpack.c.l.b16 %v108
    %v1089 = vunpack.c.h.b16 %v108
    %v1090 = vunpack.c.l.b16 %v109
    %v1091 = vunpack.c.h.b16 %v109
    %v1092 = vunpack.c.l.b16 %v110
    %v1093 = vunpack.c.h.b16 %v110
    %v1094 = vunpack.c.l.b16 %v111
    %v1095 = vunpack.c.h.b16 %v111
    %v1096 = vunpack.c.l.b16 %v112
    %v1097 = vunpack.c.h.b16 %v112
    %v1098 = vunpack.c.l.b16 %v113
    %v1099 = vunpack.c.h.b16 %v113
    %v1100 = vunpack.c.l.b16 %v114
    %v1101 = vunpack.c.h.b16 %v114
    %v1102 = vunpack.c.l.b16 %v115
    %v1103 = vunpack.c.h.b16 %v115
    %v1104 = vunpack.c.l.b16 %v116
    %v1105 = vunpack.c.h.b16 %v116
    %v1106 = vunpack.c.l.b16 %v117
    %v1107 = vunpack.c.h.b16 %v117
    %v1108 = vunpack.c.l.b16 %v118
    %v1109 = vunpack.c.h.b16 %v118
    %v1110 = vunpack.c.l.b16 %v119
    %v1111 = vunpack.c.h.b16 %v119
    %v1112 = vunpack.c.l.b16 %v120
    %v1113 = vunpack.c.h.b16 %v120
    %v1114 = vunpack.c.l.b16 %v121
    %v1115 = vunpack.c.h.b16 %v121
    %v1116 = vunpack.c.l.b16 %v122
    %v1117 = vunpack.c.h.b16 %v122
    %v1118 = vunpack.c.l.b16 %v123
    %v1119 = vunpack.c.h.b16 %v123
    %v1120 = vunpack.c.l.b16 %v124
    %v1121 = vunpack.c.h.b16 %v124
    %v1122 = vunpack.c.l.b16 %v125
    %v1123 = vunpack.c.h.b16 %v125
    %v1124 = vunpack.c.l.b16 %v126
    %v1125 = vunpack.c.h.b16 %v126
    %v1126 = vunpack.c.l.b16 %v127
    %v1127 = vunpack.c.h.b16 %v127
    %v1128 = vpack.c.b16 %v1040, %v1032
    %v1129 = vpack.c.b16 %v1041, %v1033
    %v1130 = vpack.c.b16 %v1042, %v1034
    %v1131 = vpack.c.b16 %v1043, %v1035
    %v1132 = vpack.c.b16 %v1044, %v1036
    %v1133 = vpack.c.b16 %v1045, %v1037
    %v1134 = vpack.c.b16 %v1046, %v1038
    %v1135 = vpack.c.b16 %v1047, %v1039
    %v1136 = vpack.c.b16 %v1056, %v1048
    %v1137 = vpack.c.b16 %v1057, %v1049
    %v1138 = vpack.c.b16 %v1058, %v1050
    %v1139 = vpack.c.b16 %v1059, %v1051
    %v1140 = vpack.c.b16 %v1060, %v1052
    %v1141 = vpack.c.b16 %v1061, %v1053
    %v1142 = vpack.c.b16 %v1062, %v1054
    %v1143 = vpack.c.b16 %v1063, %v1055
    %v1144 = vpack.c.b16 %v1072, %v1064
    %v1145 = vpack.c.b16 %v1073, %v1065
    %v1146 = vpack.c.b16 %v1074, %v1066
    %v1147 = vpack.c.b16 %v1075, %v1067
    %v1148 = vpack.c.b16 %v1076, %v1068
    %v1149 = vpack.c.b16 %v1077, %v1069
    %v1150 = vpack.c.b16 %v1078, %v1070
    %v1151 = vpack.c.b16 %v1079, %v1071
    %v1152 = vpack.c.b16 %v1088, %v1080
    %v1153 = vpack.c.b16 %v1089, %v1081
    %v1154 = vpack.c.b16 %v1090, %v1082
    %v1155 = vpack.c.b16 %v1091, %v1083
    %v1156 = vpack.c.b16 %v1092, %v1084
    %v1157 = vpack.c.b16 %v1093, %v1085
    %v1158 = vpack.c.b16 %v1094, %v1086
    %v1159 = vpack.c.b16 %v1095, %v1087
    %v1160 = vpack.c.b16 %v1104, %v1096
    %v1161 = vpack.c.b16 %v1105, %v1097
    %v1162 = vpack.c.b16 %v1106, %v1098
    %v1163 = vpack.c.b16 %v1107, %v1099
    %v1164 = vpack.c.b16 %v1108, %v1100
    %v1165 = vpack.c.b16 %v1109, %v1101
    %v1166 = vpack.c.b16 %v1110, %v1102
    %v1167 = vpack.c.b16 %v1111, %v1103
    %v1168 = vpack.c.b16 %v1120, %v1112
    %v1169 = vpack.c.b16 %v1121, %v1113
    %v1170 = vpack.c.b16 %v1122, %v1114
    %v1171 = vpack.c.b16 %v1123, %v1115
    %v1172 = vpack.c.b16 %v1124, %v1116
    %v1173 = vpack.c.b16 %v1125, %v1117
    %v1174 = vpack.c.b16 %v1126, %v1118
    %v1175 = vpack.c.b16 %v1127, %v1119
    %v1224 = vsel %vm532, %v211, 0
    %v1226 = vsel %vm532, %v212, 0
    %v1228 = vsel %vm532, %v213, 0
    %v1230 = vsel %vm532, %v214, 0
    %v1232 = vsel %vm532, %v215, 0
    %v1234 = vsel %vm532, %v216, 0
    %v1236 = vsel %vm532, %v217, 0
    %v1238 = vsel %vm532, %v218, 0
    %v1240 = vsel %vm532, %v219, 0
    %1242 = vmatpush.bf16.msra.mxu0 0
    %1243 = vmatpush.bf16.msra.mxu0 0
    %1244 = vmatpush.bf16.msra.mxu0 %v1168
    %1245 = vmatpush.bf16.msra.mxu0 %v1160
    %1246 = vmatpush.bf16.msra.mxu0 %v1152
    %1247 = vmatpush.bf16.msra.mxu0 %v1144
    %1248 = vmatpush.bf16.msra.mxu0 %v1136
    %1249 = vmatpush.bf16.msra.mxu0 %v1128
    %1250 = vmatmul.bf16.gmra.mxu0 %v1224
    %v1251 = vpop.f32.mrf.mxu0
    %v1252 = vadd.f32 %v570, %v1251
    %v1253 = vpop.f32.mrf.mxu0
    %v1254 = vadd.f32 %v572, %v1253
    %1255 = vmatmul.bf16.gmra.mxu0 %v1226
    %v1256 = vpop.f32.mrf.mxu0
    %v1257 = vadd.f32 %v575, %v1256
    %v1258 = vpop.f32.mrf.mxu0
    %v1259 = vadd.f32 %v577, %v1258
    %1260 = vmatmul.bf16.gmra.mxu0 %v1228
    %v1261 = vpop.f32.mrf.mxu0
    %v1262 = vadd.f32 %v580, %v1261
    %v1263 = vpop.f32.mrf.mxu0
    %v1264 = vadd.f32 %v582, %v1263
    %1265 = vmatmul.bf16.gmra.mxu0 %v1230
    %v1266 = vpop.f32.mrf.mxu0
    %v1267 = vadd.f32 %v585, %v1266
    %v1268 = vpop.f32.mrf.mxu0
    %v1269 = vadd.f32 %v587, %v1268
    %1270 = vmatmul.bf16.gmra.mxu0 %v1232
    %v1271 = vpop.f32.mrf.mxu0
    %v1272 = vadd.f32 %v590, %v1271
    %v1273 = vpop.f32.mrf.mxu0
    %v1274 = vadd.f32 %v592, %v1273
    %1275 = vmatmul.bf16.gmra.mxu0 %v1234
    %v1276 = vpop.f32.mrf.mxu0
    %v1277 = vadd.f32 %v595, %v1276
    %v1278 = vpop.f32.mrf.mxu0
    %v1279 = vadd.f32 %v597, %v1278
    %1280 = vmatmul.bf16.gmra.mxu0 %v1236
    %v1281 = vpop.f32.mrf.mxu0
    %v1282 = vadd.f32 %v600, %v1281
    %v1283 = vpop.f32.mrf.mxu0
    %v1284 = vadd.f32 %v602, %v1283
    %1285 = vmatmul.bf16.gmra.mxu0 %v1238
    %v1286 = vpop.f32.mrf.mxu0
    %v1287 = vadd.f32 %v605, %v1286
    %v1288 = vpop.f32.mrf.mxu0
    %v1289 = vadd.f32 %v607, %v1288
    %1290 = vmatmul.bf16.gmra.mxu0 %v1240
    %v1291 = vpop.f32.mrf.mxu0
    %v1292 = vadd.f32 %v610, %v1291
    %v1293 = vpop.f32.mrf.mxu0
    %1294 = vdwg.mxu0
    %1295 = vmatpush.bf16.msra.mxu0 0
    %1296 = vmatpush.bf16.msra.mxu0 0
    %1297 = vmatpush.bf16.msra.mxu0 %v1169
    %1298 = vmatpush.bf16.msra.mxu0 %v1161
    %1299 = vmatpush.bf16.msra.mxu0 %v1153
    %1300 = vmatpush.bf16.msra.mxu0 %v1145
    %1301 = vmatpush.bf16.msra.mxu0 %v1137
    %1302 = vmatpush.bf16.msra.mxu0 %v1129
    %1303 = vmatmul.bf16.gmra.mxu0 %v1224
    %v1304 = vpop.f32.mrf.mxu0
    %v1305 = vadd.f32 %v623, %v1304
    %v1306 = vpop.f32.mrf.mxu0
    %v1307 = vadd.f32 %v625, %v1306
    %1308 = vmatmul.bf16.gmra.mxu0 %v1226
    %v1309 = vpop.f32.mrf.mxu0
    %v1310 = vadd.f32 %v628, %v1309
    %v1311 = vpop.f32.mrf.mxu0
    %v1312 = vadd.f32 %v630, %v1311
    %1313 = vmatmul.bf16.gmra.mxu0 %v1228
    %v1314 = vpop.f32.mrf.mxu0
    %v1315 = vadd.f32 %v633, %v1314
    %v1316 = vpop.f32.mrf.mxu0
    %v1317 = vadd.f32 %v635, %v1316
    %1318 = vmatmul.bf16.gmra.mxu0 %v1230
    %v1319 = vpop.f32.mrf.mxu0
    %v1320 = vadd.f32 %v638, %v1319
    %v1321 = vpop.f32.mrf.mxu0
    %v1322 = vadd.f32 %v640, %v1321
    %1323 = vmatmul.bf16.gmra.mxu0 %v1232
    %v1324 = vpop.f32.mrf.mxu0
    %v1325 = vadd.f32 %v643, %v1324
    %v1326 = vpop.f32.mrf.mxu0
    %v1327 = vadd.f32 %v645, %v1326
    %1328 = vmatmul.bf16.gmra.mxu0 %v1234
    %v1329 = vpop.f32.mrf.mxu0
    %v1330 = vadd.f32 %v648, %v1329
    %v1331 = vpop.f32.mrf.mxu0
    %v1332 = vadd.f32 %v650, %v1331
    %1333 = vmatmul.bf16.gmra.mxu0 %v1236
    %v1334 = vpop.f32.mrf.mxu0
    %v1335 = vadd.f32 %v653, %v1334
    %v1336 = vpop.f32.mrf.mxu0
    %v1337 = vadd.f32 %v655, %v1336
    %1338 = vmatmul.bf16.gmra.mxu0 %v1238
    %v1339 = vpop.f32.mrf.mxu0
    %v1340 = vadd.f32 %v658, %v1339
    %v1341 = vpop.f32.mrf.mxu0
    %v1342 = vadd.f32 %v660, %v1341
    %1343 = vmatmul.bf16.gmra.mxu0 %v1240
    %v1344 = vpop.f32.mrf.mxu0
    %v1345 = vadd.f32 %v663, %v1344
    %v1346 = vpop.f32.mrf.mxu0
    %1347 = vdwg.mxu0
    %1348 = vmatpush.bf16.msra.mxu0 0
    %1349 = vmatpush.bf16.msra.mxu0 0
    %1350 = vmatpush.bf16.msra.mxu0 %v1170
    %1351 = vmatpush.bf16.msra.mxu0 %v1162
    %1352 = vmatpush.bf16.msra.mxu0 %v1154
    %1353 = vmatpush.bf16.msra.mxu0 %v1146
    %1354 = vmatpush.bf16.msra.mxu0 %v1138
    %1355 = vmatpush.bf16.msra.mxu0 %v1130
    %1356 = vmatmul.bf16.gmra.mxu0 %v1224
    %v1357 = vpop.f32.mrf.mxu0
    %v1358 = vadd.f32 %v676, %v1357
    %v1359 = vpop.f32.mrf.mxu0
    %v1360 = vadd.f32 %v678, %v1359
    %1361 = vmatmul.bf16.gmra.mxu0 %v1226
    %v1362 = vpop.f32.mrf.mxu0
    %v1363 = vadd.f32 %v681, %v1362
    %v1364 = vpop.f32.mrf.mxu0
    %v1365 = vadd.f32 %v683, %v1364
    %1366 = vmatmul.bf16.gmra.mxu0 %v1228
    %v1367 = vpop.f32.mrf.mxu0
    %v1368 = vadd.f32 %v686, %v1367
    %v1369 = vpop.f32.mrf.mxu0
    %v1370 = vadd.f32 %v688, %v1369
    %1371 = vmatmul.bf16.gmra.mxu0 %v1230
    %v1372 = vpop.f32.mrf.mxu0
    %v1373 = vadd.f32 %v691, %v1372
    %v1374 = vpop.f32.mrf.mxu0
    %v1375 = vadd.f32 %v693, %v1374
    %1376 = vmatmul.bf16.gmra.mxu0 %v1232
    %v1377 = vpop.f32.mrf.mxu0
    %v1378 = vadd.f32 %v696, %v1377
    %v1379 = vpop.f32.mrf.mxu0
    %v1380 = vadd.f32 %v698, %v1379
    %1381 = vmatmul.bf16.gmra.mxu0 %v1234
    %v1382 = vpop.f32.mrf.mxu0
    %v1383 = vadd.f32 %v701, %v1382
    %v1384 = vpop.f32.mrf.mxu0
    %v1385 = vadd.f32 %v703, %v1384
    %1386 = vmatmul.bf16.gmra.mxu0 %v1236
    %v1387 = vpop.f32.mrf.mxu0
    %v1388 = vadd.f32 %v706, %v1387
    %v1389 = vpop.f32.mrf.mxu0
    %v1390 = vadd.f32 %v708, %v1389
    %1391 = vmatmul.bf16.gmra.mxu0 %v1238
    %v1392 = vpop.f32.mrf.mxu0
    %v1393 = vadd.f32 %v711, %v1392
    %v1394 = vpop.f32.mrf.mxu0
    %v1395 = vadd.f32 %v713, %v1394
    %1396 = vmatmul.bf16.gmra.mxu0 %v1240
    %v1397 = vpop.f32.mrf.mxu0
    %v1398 = vadd.f32 %v716, %v1397
    %v1399 = vpop.f32.mrf.mxu0
    %1400 = vdwg.mxu0
    %1401 = vmatpush.bf16.msra.mxu0 0
    %1402 = vmatpush.bf16.msra.mxu0 0
    %1403 = vmatpush.bf16.msra.mxu0 %v1171
    %1404 = vmatpush.bf16.msra.mxu0 %v1163
    %1405 = vmatpush.bf16.msra.mxu0 %v1155
    %1406 = vmatpush.bf16.msra.mxu0 %v1147
    %1407 = vmatpush.bf16.msra.mxu0 %v1139
    %1408 = vmatpush.bf16.msra.mxu0 %v1131
    %1409 = vmatmul.bf16.gmra.mxu0 %v1224
    %v1410 = vpop.f32.mrf.mxu0
    %v1411 = vadd.f32 %v729, %v1410
    %v1412 = vpop.f32.mrf.mxu0
    %v1413 = vadd.f32 %v731, %v1412
    %1414 = vmatmul.bf16.gmra.mxu0 %v1226
    %v1415 = vpop.f32.mrf.mxu0
    %v1416 = vadd.f32 %v734, %v1415
    %v1417 = vpop.f32.mrf.mxu0
    %v1418 = vadd.f32 %v736, %v1417
    %1419 = vmatmul.bf16.gmra.mxu0 %v1228
    %v1420 = vpop.f32.mrf.mxu0
    %v1421 = vadd.f32 %v739, %v1420
    %v1422 = vpop.f32.mrf.mxu0
    %v1423 = vadd.f32 %v741, %v1422
    %1424 = vmatmul.bf16.gmra.mxu0 %v1230
    %v1425 = vpop.f32.mrf.mxu0
    %v1426 = vadd.f32 %v744, %v1425
    %v1427 = vpop.f32.mrf.mxu0
    %v1428 = vadd.f32 %v746, %v1427
    %1429 = vmatmul.bf16.gmra.mxu0 %v1232
    %v1430 = vpop.f32.mrf.mxu0
    %v1431 = vadd.f32 %v749, %v1430
    %v1432 = vpop.f32.mrf.mxu0
    %v1433 = vadd.f32 %v751, %v1432
    %1434 = vmatmul.bf16.gmra.mxu0 %v1234
    %v1435 = vpop.f32.mrf.mxu0
    %v1436 = vadd.f32 %v754, %v1435
    %v1437 = vpop.f32.mrf.mxu0
    %v1438 = vadd.f32 %v756, %v1437
    %1439 = vmatmul.bf16.gmra.mxu0 %v1236
    %v1440 = vpop.f32.mrf.mxu0
    %v1441 = vadd.f32 %v759, %v1440
    %v1442 = vpop.f32.mrf.mxu0
    %v1443 = vadd.f32 %v761, %v1442
    %1444 = vmatmul.bf16.gmra.mxu0 %v1238
    %v1445 = vpop.f32.mrf.mxu0
    %v1446 = vadd.f32 %v764, %v1445
    %v1447 = vpop.f32.mrf.mxu0
    %v1448 = vadd.f32 %v766, %v1447
    %1449 = vmatmul.bf16.gmra.mxu0 %v1240
    %v1450 = vpop.f32.mrf.mxu0
    %v1451 = vadd.f32 %v769, %v1450
    %v1452 = vpop.f32.mrf.mxu0
    %1453 = vdwg.mxu0
    %1454 = vmatpush.bf16.msra.mxu0 0
    %1455 = vmatpush.bf16.msra.mxu0 0
    %1456 = vmatpush.bf16.msra.mxu0 %v1172
    %1457 = vmatpush.bf16.msra.mxu0 %v1164
    %1458 = vmatpush.bf16.msra.mxu0 %v1156
    %1459 = vmatpush.bf16.msra.mxu0 %v1148
    %1460 = vmatpush.bf16.msra.mxu0 %v1140
    %1461 = vmatpush.bf16.msra.mxu0 %v1132
    %1462 = vmatmul.bf16.gmra.mxu0 %v1224
    %v1463 = vpop.f32.mrf.mxu0
    %v1464 = vadd.f32 %v782, %v1463
    %v1465 = vpop.f32.mrf.mxu0
    %v1466 = vadd.f32 %v784, %v1465
    %1467 = vmatmul.bf16.gmra.mxu0 %v1226
    %v1468 = vpop.f32.mrf.mxu0
    %v1469 = vadd.f32 %v787, %v1468
    %v1470 = vpop.f32.mrf.mxu0
    %v1471 = vadd.f32 %v789, %v1470
    %1472 = vmatmul.bf16.gmra.mxu0 %v1228
    %v1473 = vpop.f32.mrf.mxu0
    %v1474 = vadd.f32 %v792, %v1473
    %v1475 = vpop.f32.mrf.mxu0
    %v1476 = vadd.f32 %v794, %v1475
    %1477 = vmatmul.bf16.gmra.mxu0 %v1230
    %v1478 = vpop.f32.mrf.mxu0
    %v1479 = vadd.f32 %v797, %v1478
    %v1480 = vpop.f32.mrf.mxu0
    %v1481 = vadd.f32 %v799, %v1480
    %1482 = vmatmul.bf16.gmra.mxu0 %v1232
    %v1483 = vpop.f32.mrf.mxu0
    %v1484 = vadd.f32 %v802, %v1483
    %v1485 = vpop.f32.mrf.mxu0
    %v1486 = vadd.f32 %v804, %v1485
    %1487 = vmatmul.bf16.gmra.mxu0 %v1234
    %v1488 = vpop.f32.mrf.mxu0
    %v1489 = vadd.f32 %v807, %v1488
    %v1490 = vpop.f32.mrf.mxu0
    %v1491 = vadd.f32 %v809, %v1490
    %1492 = vmatmul.bf16.gmra.mxu0 %v1236
    %v1493 = vpop.f32.mrf.mxu0
    %v1494 = vadd.f32 %v812, %v1493
    %v1495 = vpop.f32.mrf.mxu0
    %v1496 = vadd.f32 %v814, %v1495
    %1497 = vmatmul.bf16.gmra.mxu0 %v1238
    %v1498 = vpop.f32.mrf.mxu0
    %v1499 = vadd.f32 %v817, %v1498
    %v1500 = vpop.f32.mrf.mxu0
    %v1501 = vadd.f32 %v819, %v1500
    %1502 = vmatmul.bf16.gmra.mxu0 %v1240
    %v1503 = vpop.f32.mrf.mxu0
    %v1504 = vadd.f32 %v822, %v1503
    %v1505 = vpop.f32.mrf.mxu0
    %1506 = vdwg.mxu0
    %1507 = vmatpush.bf16.msra.mxu0 0
    %1508 = vmatpush.bf16.msra.mxu0 0
    %1509 = vmatpush.bf16.msra.mxu0 %v1173
    %1510 = vmatpush.bf16.msra.mxu0 %v1165
    %1511 = vmatpush.bf16.msra.mxu0 %v1157
    %1512 = vmatpush.bf16.msra.mxu0 %v1149
    %1513 = vmatpush.bf16.msra.mxu0 %v1141
    %1514 = vmatpush.bf16.msra.mxu0 %v1133
    %1515 = vmatmul.bf16.gmra.mxu0 %v1224
    %v1516 = vpop.f32.mrf.mxu0
    %v1517 = vadd.f32 %v835, %v1516
    %v1518 = vpop.f32.mrf.mxu0
    %v1519 = vadd.f32 %v837, %v1518
    %1520 = vmatmul.bf16.gmra.mxu0 %v1226
    %v1521 = vpop.f32.mrf.mxu0
    %v1522 = vadd.f32 %v840, %v1521
    %v1523 = vpop.f32.mrf.mxu0
    %v1524 = vadd.f32 %v842, %v1523
    %1525 = vmatmul.bf16.gmra.mxu0 %v1228
    %v1526 = vpop.f32.mrf.mxu0
    %v1527 = vadd.f32 %v845, %v1526
    %v1528 = vpop.f32.mrf.mxu0
    %v1529 = vadd.f32 %v847, %v1528
    %1530 = vmatmul.bf16.gmra.mxu0 %v1230
    %v1531 = vpop.f32.mrf.mxu0
    %v1532 = vadd.f32 %v850, %v1531
    %v1533 = vpop.f32.mrf.mxu0
    %v1534 = vadd.f32 %v852, %v1533
    %1535 = vmatmul.bf16.gmra.mxu0 %v1232
    %v1536 = vpop.f32.mrf.mxu0
    %v1537 = vadd.f32 %v855, %v1536
    %v1538 = vpop.f32.mrf.mxu0
    %v1539 = vadd.f32 %v857, %v1538
    %1540 = vmatmul.bf16.gmra.mxu0 %v1234
    %v1541 = vpop.f32.mrf.mxu0
    %v1542 = vadd.f32 %v860, %v1541
    %v1543 = vpop.f32.mrf.mxu0
    %v1544 = vadd.f32 %v862, %v1543
    %1545 = vmatmul.bf16.gmra.mxu0 %v1236
    %v1546 = vpop.f32.mrf.mxu0
    %v1547 = vadd.f32 %v865, %v1546
    %v1548 = vpop.f32.mrf.mxu0
    %v1549 = vadd.f32 %v867, %v1548
    %1550 = vmatmul.bf16.gmra.mxu0 %v1238
    %v1551 = vpop.f32.mrf.mxu0
    %v1552 = vadd.f32 %v870, %v1551
    %v1553 = vpop.f32.mrf.mxu0
    %v1554 = vadd.f32 %v872, %v1553
    %1555 = vmatmul.bf16.gmra.mxu0 %v1240
    %v1556 = vpop.f32.mrf.mxu0
    %v1557 = vadd.f32 %v875, %v1556
    %v1558 = vpop.f32.mrf.mxu0
    %1559 = vdwg.mxu0
    %1560 = vmatpush.bf16.msra.mxu0 0
    %1561 = vmatpush.bf16.msra.mxu0 0
    %1562 = vmatpush.bf16.msra.mxu0 %v1174
    %1563 = vmatpush.bf16.msra.mxu0 %v1166
    %1564 = vmatpush.bf16.msra.mxu0 %v1158
    %1565 = vmatpush.bf16.msra.mxu0 %v1150
    %1566 = vmatpush.bf16.msra.mxu0 %v1142
    %1567 = vmatpush.bf16.msra.mxu0 %v1134
    %1568 = vmatmul.bf16.gmra.mxu0 %v1224
    %v1569 = vpop.f32.mrf.mxu0
    %v1570 = vadd.f32 %v888, %v1569
    %v1571 = vpop.f32.mrf.mxu0
    %v1572 = vadd.f32 %v890, %v1571
    %1573 = vmatmul.bf16.gmra.mxu0 %v1226
    %v1574 = vpop.f32.mrf.mxu0
    %v1575 = vadd.f32 %v893, %v1574
    %v1576 = vpop.f32.mrf.mxu0
    %v1577 = vadd.f32 %v895, %v1576
    %1578 = vmatmul.bf16.gmra.mxu0 %v1228
    %v1579 = vpop.f32.mrf.mxu0
    %v1580 = vadd.f32 %v898, %v1579
    %v1581 = vpop.f32.mrf.mxu0
    %v1582 = vadd.f32 %v900, %v1581
    %1583 = vmatmul.bf16.gmra.mxu0 %v1230
    %v1584 = vpop.f32.mrf.mxu0
    %v1585 = vadd.f32 %v903, %v1584
    %v1586 = vpop.f32.mrf.mxu0
    %v1587 = vadd.f32 %v905, %v1586
    %1588 = vmatmul.bf16.gmra.mxu0 %v1232
    %v1589 = vpop.f32.mrf.mxu0
    %v1590 = vadd.f32 %v908, %v1589
    %v1591 = vpop.f32.mrf.mxu0
    %v1592 = vadd.f32 %v910, %v1591
    %1593 = vmatmul.bf16.gmra.mxu0 %v1234
    %v1594 = vpop.f32.mrf.mxu0
    %v1595 = vadd.f32 %v913, %v1594
    %v1596 = vpop.f32.mrf.mxu0
    %v1597 = vadd.f32 %v915, %v1596
    %1598 = vmatmul.bf16.gmra.mxu0 %v1236
    %v1599 = vpop.f32.mrf.mxu0
    %v1600 = vadd.f32 %v918, %v1599
    %v1601 = vpop.f32.mrf.mxu0
    %v1602 = vadd.f32 %v920, %v1601
    %1603 = vmatmul.bf16.gmra.mxu0 %v1238
    %v1604 = vpop.f32.mrf.mxu0
    %v1605 = vadd.f32 %v923, %v1604
    %v1606 = vpop.f32.mrf.mxu0
    %v1607 = vadd.f32 %v925, %v1606
    %1608 = vmatmul.bf16.gmra.mxu0 %v1240
    %v1609 = vpop.f32.mrf.mxu0
    %v1610 = vadd.f32 %v928, %v1609
    %v1611 = vpop.f32.mrf.mxu0
    %1612 = vdwg.mxu0
    %1613 = vmatpush.bf16.msra.mxu0 0
    %1614 = vmatpush.bf16.msra.mxu0 0
    %1615 = vmatpush.bf16.msra.mxu0 %v1175
    %1616 = vmatpush.bf16.msra.mxu0 %v1167
    %1617 = vmatpush.bf16.msra.mxu0 %v1159
    %1618 = vmatpush.bf16.msra.mxu0 %v1151
    %1619 = vmatpush.bf16.msra.mxu0 %v1143
    %1620 = vmatpush.bf16.msra.mxu0 %v1135
    %1621 = vmatmul.bf16.gmra.mxu0 %v1224
    %v1622 = vpop.f32.mrf.mxu0
    %v1623 = vadd.f32 %v941, %v1622
    %v1624 = vpop.f32.mrf.mxu0
    %v1625 = vadd.f32 %v943, %v1624
    %1626 = vmatmul.bf16.gmra.mxu0 %v1226
    %v1627 = vpop.f32.mrf.mxu0
    %v1628 = vadd.f32 %v946, %v1627
    %v1629 = vpop.f32.mrf.mxu0
    %v1630 = vadd.f32 %v948, %v1629
    %1631 = vmatmul.bf16.gmra.mxu0 %v1228
    %v1632 = vpop.f32.mrf.mxu0
    %v1633 = vadd.f32 %v951, %v1632
    %v1634 = vpop.f32.mrf.mxu0
    %v1635 = vadd.f32 %v953, %v1634
    %1636 = vmatmul.bf16.gmra.mxu0 %v1230
    %v1637 = vpop.f32.mrf.mxu0
    %v1638 = vadd.f32 %v956, %v1637
    %v1639 = vpop.f32.mrf.mxu0
    %v1640 = vadd.f32 %v958, %v1639
    %1641 = vmatmul.bf16.gmra.mxu0 %v1232
    %v1642 = vpop.f32.mrf.mxu0
    %v1643 = vadd.f32 %v961, %v1642
    %v1644 = vpop.f32.mrf.mxu0
    %v1645 = vadd.f32 %v963, %v1644
    %1646 = vmatmul.bf16.gmra.mxu0 %v1234
    %v1647 = vpop.f32.mrf.mxu0
    %v1648 = vadd.f32 %v966, %v1647
    %v1649 = vpop.f32.mrf.mxu0
    %v1650 = vadd.f32 %v968, %v1649
    %1651 = vmatmul.bf16.gmra.mxu0 %v1236
    %v1652 = vpop.f32.mrf.mxu0
    %v1653 = vadd.f32 %v971, %v1652
    %v1654 = vpop.f32.mrf.mxu0
    %v1655 = vadd.f32 %v973, %v1654
    %1656 = vmatmul.bf16.gmra.mxu0 %v1238
    %v1657 = vpop.f32.mrf.mxu0
    %v1658 = vadd.f32 %v976, %v1657
    %v1659 = vpop.f32.mrf.mxu0
    %v1660 = vadd.f32 %v978, %v1659
    %1661 = vmatmul.bf16.gmra.mxu0 %v1240
    %v1662 = vpop.f32.mrf.mxu0
    %v1663 = vadd.f32 %v981, %v1662
    %v1664 = vpop.f32.mrf.mxu0
    %1665 = vdwg.mxu0
    %s1666 = scalar_lea.vmem [#allocation2], 768
    %v1667 = vld [vmem:[%s1666] sm:$0xff]
    %v1668 = vld [vmem:[%s1666 + $0x8] sm:$0xff]
    %v1669 = vld [vmem:[%s1666 + $0x10] sm:$0xff]
    %v1670 = vld [vmem:[%s1666 + $0x18] sm:$0xff]
    %v1671 = vld [vmem:[%s1666 + $0x20] sm:$0xff]
    %v1672 = vld [vmem:[%s1666 + $0x28] sm:$0xff]
    %v1673 = vld [vmem:[%s1666 + $0x30] sm:$0xff]
    %v1674 = vld [vmem:[%s1666 + $0x38] sm:$0xff]
    %v1675 = vld [vmem:[%s1666 + $0x40] sm:$0xff]
    %v1676 = vld [vmem:[%s1666 + $0x48] sm:$0xff]
    %v1677 = vld [vmem:[%s1666 + $0x50] sm:$0xff]
    %v1678 = vld [vmem:[%s1666 + $0x58] sm:$0xff]
    %v1679 = vld [vmem:[%s1666 + $0x60] sm:$0xff]
    %v1680 = vld [vmem:[%s1666 + $0x68] sm:$0xff]
    %v1681 = vld [vmem:[%s1666 + $0x70] sm:$0xff]
    %v1682 = vld [vmem:[%s1666 + $0x78] sm:$0xff]
    %v1683 = vld [vmem:[%s1666 + $0x80] sm:$0xff]
    %v1684 = vld [vmem:[%s1666 + $0x88] sm:$0xff]
    %v1685 = vld [vmem:[%s1666 + $0x90] sm:$0xff]
    %v1686 = vld [vmem:[%s1666 + $0x98] sm:$0xff]
    %v1687 = vld [vmem:[%s1666 + $0xa0] sm:$0xff]
    %v1688 = vld [vmem:[%s1666 + $0xa8] sm:$0xff]
    %v1689 = vld [vmem:[%s1666 + $0xb0] sm:$0xff]
    %v1690 = vld [vmem:[%s1666 + $0xb8] sm:$0xff]
    %v1691 = vld [vmem:[%s1666 + $0xc0] sm:$0xff]
    %v1692 = vld [vmem:[%s1666 + $0xc8] sm:$0xff]
    %v1693 = vld [vmem:[%s1666 + $0xd0] sm:$0xff]
    %v1694 = vld [vmem:[%s1666 + $0xd8] sm:$0xff]
    %v1695 = vld [vmem:[%s1666 + $0xe0] sm:$0xff]
    %v1696 = vld [vmem:[%s1666 + $0xe8] sm:$0xff]
    %v1697 = vld [vmem:[%s1666 + $0xf0] sm:$0xff]
    %v1698 = vld [vmem:[%s1666 + $0xf8] sm:$0xff]
    %v1699 = vld [vmem:[%s1666 + $0x100] sm:$0xff]
    %v1700 = vld [vmem:[%s1666 + $0x108] sm:$0xff]
    %v1701 = vld [vmem:[%s1666 + $0x110] sm:$0xff]
    %v1702 = vld [vmem:[%s1666 + $0x118] sm:$0xff]
    %v1703 = vld [vmem:[%s1666 + $0x120] sm:$0xff]
    %v1704 = vld [vmem:[%s1666 + $0x128] sm:$0xff]
    %v1705 = vld [vmem:[%s1666 + $0x130] sm:$0xff]
    %v1706 = vld [vmem:[%s1666 + $0x138] sm:$0xff]
    %v1707 = vld [vmem:[%s1666 + $0x140] sm:$0xff]
    %v1708 = vld [vmem:[%s1666 + $0x148] sm:$0xff]
    %v1709 = vld [vmem:[%s1666 + $0x150] sm:$0xff]
    %v1710 = vld [vmem:[%s1666 + $0x158] sm:$0xff]
    %v1711 = vld [vmem:[%s1666 + $0x160] sm:$0xff]
    %v1712 = vld [vmem:[%s1666 + $0x168] sm:$0xff]
    %v1713 = vld [vmem:[%s1666 + $0x170] sm:$0xff]
    %v1714 = vld [vmem:[%s1666 + $0x178] sm:$0xff]
    %vm1715 = vcmask 1046528
    %v1716 = vrot.slane %v211, 1
    %v1717 = vrot.slane %v212, 1
    %v1718 = vsel %vm1715, %v1716, %v1717
    %v1719 = vrot.slane %v213, 1
    %v1720 = vsel %vm1715, %v1717, %v1719
    %v1721 = vrot.slane %v214, 1
    %v1722 = vsel %vm1715, %v1719, %v1721
    %v1723 = vrot.slane %v215, 1
    %v1724 = vsel %vm1715, %v1721, %v1723
    %v1725 = vrot.slane %v216, 1
    %v1726 = vsel %vm1715, %v1723, %v1725
    %v1727 = vrot.slane %v217, 1
    %v1728 = vsel %vm1715, %v1725, %v1727
    %v1729 = vrot.slane %v218, 1
    %v1730 = vsel %vm1715, %v1727, %v1729
    %v1731 = vrot.slane %v219, 1
    %v1732 = vsel %vm1715, %v1729, %v1731
    %v1781 = vunpack.c.l.b16 %v1667
    %v1782 = vunpack.c.h.b16 %v1667
    %v1783 = vunpack.c.l.b16 %v1668
    %v1784 = vunpack.c.h.b16 %v1668
    %v1785 = vunpack.c.l.b16 %v1669
    %v1786 = vunpack.c.h.b16 %v1669
    %v1787 = vunpack.c.l.b16 %v1670
    %v1788 = vunpack.c.h.b16 %v1670
    %v1789 = vunpack.c.l.b16 %v1671
    %v1790 = vunpack.c.h.b16 %v1671
    %v1791 = vunpack.c.l.b16 %v1672
    %v1792 = vunpack.c.h.b16 %v1672
    %v1793 = vunpack.c.l.b16 %v1673
    %v1794 = vunpack.c.h.b16 %v1673
    %v1795 = vunpack.c.l.b16 %v1674
    %v1796 = vunpack.c.h.b16 %v1674
    %v1797 = vunpack.c.l.b16 %v1675
    %v1798 = vunpack.c.h.b16 %v1675
    %v1799 = vunpack.c.l.b16 %v1676
    %v1800 = vunpack.c.h.b16 %v1676
    %v1801 = vunpack.c.l.b16 %v1677
    %v1802 = vunpack.c.h.b16 %v1677
    %v1803 = vunpack.c.l.b16 %v1678
    %v1804 = vunpack.c.h.b16 %v1678
    %v1805 = vunpack.c.l.b16 %v1679
    %v1806 = vunpack.c.h.b16 %v1679
    %v1807 = vunpack.c.l.b16 %v1680
    %v1808 = vunpack.c.h.b16 %v1680
    %v1809 = vunpack.c.l.b16 %v1681
    %v1810 = vunpack.c.h.b16 %v1681
    %v1811 = vunpack.c.l.b16 %v1682
    %v1812 = vunpack.c.h.b16 %v1682
    %v1813 = vunpack.c.l.b16 %v1683
    %v1814 = vunpack.c.h.b16 %v1683
    %v1815 = vunpack.c.l.b16 %v1684
    %v1816 = vunpack.c.h.b16 %v1684
    %v1817 = vunpack.c.l.b16 %v1685
    %v1818 = vunpack.c.h.b16 %v1685
    %v1819 = vunpack.c.l.b16 %v1686
    %v1820 = vunpack.c.h.b16 %v1686
    %v1821 = vunpack.c.l.b16 %v1687
    %v1822 = vunpack.c.h.b16 %v1687
    %v1823 = vunpack.c.l.b16 %v1688
    %v1824 = vunpack.c.h.b16 %v1688
    %v1825 = vunpack.c.l.b16 %v1689
    %v1826 = vunpack.c.h.b16 %v1689
    %v1827 = vunpack.c.l.b16 %v1690
    %v1828 = vunpack.c.h.b16 %v1690
    %v1829 = vunpack.c.l.b16 %v1691
    %v1830 = vunpack.c.h.b16 %v1691
    %v1831 = vunpack.c.l.b16 %v1692
    %v1832 = vunpack.c.h.b16 %v1692
    %v1833 = vunpack.c.l.b16 %v1693
    %v1834 = vunpack.c.h.b16 %v1693
    %v1835 = vunpack.c.l.b16 %v1694
    %v1836 = vunpack.c.h.b16 %v1694
    %v1837 = vunpack.c.l.b16 %v1695
    %v1838 = vunpack.c.h.b16 %v1695
    %v1839 = vunpack.c.l.b16 %v1696
    %v1840 = vunpack.c.h.b16 %v1696
    %v1841 = vunpack.c.l.b16 %v1697
    %v1842 = vunpack.c.h.b16 %v1697
    %v1843 = vunpack.c.l.b16 %v1698
    %v1844 = vunpack.c.h.b16 %v1698
    %v1845 = vunpack.c.l.b16 %v1699
    %v1846 = vunpack.c.h.b16 %v1699
    %v1847 = vunpack.c.l.b16 %v1700
    %v1848 = vunpack.c.h.b16 %v1700
    %v1849 = vunpack.c.l.b16 %v1701
    %v1850 = vunpack.c.h.b16 %v1701
    %v1851 = vunpack.c.l.b16 %v1702
    %v1852 = vunpack.c.h.b16 %v1702
    %v1853 = vunpack.c.l.b16 %v1703
    %v1854 = vunpack.c.h.b16 %v1703
    %v1855 = vunpack.c.l.b16 %v1704
    %v1856 = vunpack.c.h.b16 %v1704
    %v1857 = vunpack.c.l.b16 %v1705
    %v1858 = vunpack.c.h.b16 %v1705
    %v1859 = vunpack.c.l.b16 %v1706
    %v1860 = vunpack.c.h.b16 %v1706
    %v1861 = vunpack.c.l.b16 %v1707
    %v1862 = vunpack.c.h.b16 %v1707
    %v1863 = vunpack.c.l.b16 %v1708
    %v1864 = vunpack.c.h.b16 %v1708
    %v1865 = vunpack.c.l.b16 %v1709
    %v1866 = vunpack.c.h.b16 %v1709
    %v1867 = vunpack.c.l.b16 %v1710
    %v1868 = vunpack.c.h.b16 %v1710
    %v1869 = vunpack.c.l.b16 %v1711
    %v1870 = vunpack.c.h.b16 %v1711
    %v1871 = vunpack.c.l.b16 %v1712
    %v1872 = vunpack.c.h.b16 %v1712
    %v1873 = vunpack.c.l.b16 %v1713
    %v1874 = vunpack.c.h.b16 %v1713
    %v1875 = vunpack.c.l.b16 %v1714
    %v1876 = vunpack.c.h.b16 %v1714
    %v1877 = vpack.c.b16 %v1789, %v1781
    %v1878 = vpack.c.b16 %v1790, %v1782
    %v1879 = vpack.c.b16 %v1791, %v1783
    %v1880 = vpack.c.b16 %v1792, %v1784
    %v1881 = vpack.c.b16 %v1793, %v1785
    %v1882 = vpack.c.b16 %v1794, %v1786
    %v1883 = vpack.c.b16 %v1795, %v1787
    %v1884 = vpack.c.b16 %v1796, %v1788
    %v1885 = vpack.c.b16 %v1805, %v1797
    %v1886 = vpack.c.b16 %v1806, %v1798
    %v1887 = vpack.c.b16 %v1807, %v1799
    %v1888 = vpack.c.b16 %v1808, %v1800
    %v1889 = vpack.c.b16 %v1809, %v1801
    %v1890 = vpack.c.b16 %v1810, %v1802
    %v1891 = vpack.c.b16 %v1811, %v1803
    %v1892 = vpack.c.b16 %v1812, %v1804
    %v1893 = vpack.c.b16 %v1821, %v1813
    %v1894 = vpack.c.b16 %v1822, %v1814
    %v1895 = vpack.c.b16 %v1823, %v1815
    %v1896 = vpack.c.b16 %v1824, %v1816
    %v1897 = vpack.c.b16 %v1825, %v1817
    %v1898 = vpack.c.b16 %v1826, %v1818
    %v1899 = vpack.c.b16 %v1827, %v1819
    %v1900 = vpack.c.b16 %v1828, %v1820
    %v1901 = vpack.c.b16 %v1837, %v1829
    %v1902 = vpack.c.b16 %v1838, %v1830
    %v1903 = vpack.c.b16 %v1839, %v1831
    %v1904 = vpack.c.b16 %v1840, %v1832
    %v1905 = vpack.c.b16 %v1841, %v1833
    %v1906 = vpack.c.b16 %v1842, %v1834
    %v1907 = vpack.c.b16 %v1843, %v1835
    %v1908 = vpack.c.b16 %v1844, %v1836
    %v1909 = vpack.c.b16 %v1853, %v1845
    %v1910 = vpack.c.b16 %v1854, %v1846
    %v1911 = vpack.c.b16 %v1855, %v1847
    %v1912 = vpack.c.b16 %v1856, %v1848
    %v1913 = vpack.c.b16 %v1857, %v1849
    %v1914 = vpack.c.b16 %v1858, %v1850
    %v1915 = vpack.c.b16 %v1859, %v1851
    %v1916 = vpack.c.b16 %v1860, %v1852
    %v1917 = vpack.c.b16 %v1869, %v1861
    %v1918 = vpack.c.b16 %v1870, %v1862
    %v1919 = vpack.c.b16 %v1871, %v1863
    %v1920 = vpack.c.b16 %v1872, %v1864
    %v1921 = vpack.c.b16 %v1873, %v1865
    %v1922 = vpack.c.b16 %v1874, %v1866
    %v1923 = vpack.c.b16 %v1875, %v1867
    %v1924 = vpack.c.b16 %v1876, %v1868
    %v1974 = vsel %vm532, %v1718, 0
    %v1977 = vsel %vm532, %v1720, 0
    %v1980 = vsel %vm532, %v1722, 0
    %v1983 = vsel %vm532, %v1724, 0
    %v1986 = vsel %vm532, %v1726, 0
    %v1989 = vsel %vm532, %v1728, 0
    %v1992 = vsel %vm532, %v1730, 0
    %v1995 = vsel %vm532, %v1732, 0
    %v1998 = vsel %vm532, %v1731, 0
    %2000 = vmatpush.bf16.msra.mxu0 0
    %2001 = vmatpush.bf16.msra.mxu0 0
    %2002 = vmatpush.bf16.msra.mxu0 %v1917
    %2003 = vmatpush.bf16.msra.mxu0 %v1909
    %2004 = vmatpush.bf16.msra.mxu0 %v1901
    %2005 = vmatpush.bf16.msra.mxu0 %v1893
    %2006 = vmatpush.bf16.msra.mxu0 %v1885
    %2007 = vmatpush.bf16.msra.mxu0 %v1877
    %2008 = vmatmul.bf16.gmra.mxu0 %v1974
    %v2009 = vpop.f32.mrf.mxu0
    %v2010 = vadd.f32 0.0, %v2009
    %v2011 = vpop.f32.mrf.mxu0
    %v2012 = vadd.f32 0.0, %v2011
    %2013 = vmatmul.bf16.gmra.mxu0 %v1977
    %v2014 = vpop.f32.mrf.mxu0
    %v2015 = vadd.f32 0.0, %v2014
    %v2016 = vpop.f32.mrf.mxu0
    %v2017 = vadd.f32 0.0, %v2016
    %2018 = vmatmul.bf16.gmra.mxu0 %v1980
    %v2019 = vpop.f32.mrf.mxu0
    %v2020 = vadd.f32 0.0, %v2019
    %v2021 = vpop.f32.mrf.mxu0
    %v2022 = vadd.f32 0.0, %v2021
    %2023 = vmatmul.bf16.gmra.mxu0 %v1983
    %v2024 = vpop.f32.mrf.mxu0
    %v2025 = vadd.f32 0.0, %v2024
    %v2026 = vpop.f32.mrf.mxu0
    %v2027 = vadd.f32 0.0, %v2026
    %2028 = vmatmul.bf16.gmra.mxu0 %v1986
    %v2029 = vpop.f32.mrf.mxu0
    %v2030 = vadd.f32 0.0, %v2029
    %v2031 = vpop.f32.mrf.mxu0
    %v2032 = vadd.f32 0.0, %v2031
    %2033 = vmatmul.bf16.gmra.mxu0 %v1989
    %v2034 = vpop.f32.mrf.mxu0
    %v2035 = vadd.f32 0.0, %v2034
    %v2036 = vpop.f32.mrf.mxu0
    %v2037 = vadd.f32 0.0, %v2036
    %2038 = vmatmul.bf16.gmra.mxu0 %v1992
    %v2039 = vpop.f32.mrf.mxu0
    %v2040 = vadd.f32 0.0, %v2039
    %v2041 = vpop.f32.mrf.mxu0
    %v2042 = vadd.f32 0.0, %v2041
    %2043 = vmatmul.bf16.gmra.mxu0 %v1995
    %v2044 = vpop.f32.mrf.mxu0
    %v2045 = vadd.f32 0.0, %v2044
    %v2046 = vpop.f32.mrf.mxu0
    %v2047 = vadd.f32 0.0, %v2046
    %2048 = vmatmul.bf16.gmra.mxu0 %v1998
    %v2049 = vpop.f32.mrf.mxu0
    %v2050 = vadd.f32 0.0, %v2049
    %v2051 = vpop.f32.mrf.mxu0
    %2052 = vdwg.mxu0
    %2053 = vmatpush.bf16.msra.mxu0 0
    %2054 = vmatpush.bf16.msra.mxu0 0
    %2055 = vmatpush.bf16.msra.mxu0 %v1918
    %2056 = vmatpush.bf16.msra.mxu0 %v1910
    %2057 = vmatpush.bf16.msra.mxu0 %v1902
    %2058 = vmatpush.bf16.msra.mxu0 %v1894
    %2059 = vmatpush.bf16.msra.mxu0 %v1886
    %2060 = vmatpush.bf16.msra.mxu0 %v1878
    %2061 = vmatmul.bf16.gmra.mxu0 %v1974
    %v2062 = vpop.f32.mrf.mxu0
    %v2063 = vadd.f32 0.0, %v2062
    %v2064 = vpop.f32.mrf.mxu0
    %v2065 = vadd.f32 0.0, %v2064
    %2066 = vmatmul.bf16.gmra.mxu0 %v1977
    %v2067 = vpop.f32.mrf.mxu0
    %v2068 = vadd.f32 0.0, %v2067
    %v2069 = vpop.f32.mrf.mxu0
    %v2070 = vadd.f32 0.0, %v2069
    %2071 = vmatmul.bf16.gmra.mxu0 %v1980
    %v2072 = vpop.f32.mrf.mxu0
    %v2073 = vadd.f32 0.0, %v2072
    %v2074 = vpop.f32.mrf.mxu0
    %v2075 = vadd.f32 0.0, %v2074
    %2076 = vmatmul.bf16.gmra.mxu0 %v1983
    %v2077 = vpop.f32.mrf.mxu0
    %v2078 = vadd.f32 0.0, %v2077
    %v2079 = vpop.f32.mrf.mxu0
    %v2080 = vadd.f32 0.0, %v2079
    %2081 = vmatmul.bf16.gmra.mxu0 %v1986
    %v2082 = vpop.f32.mrf.mxu0
    %v2083 = vadd.f32 0.0, %v2082
    %v2084 = vpop.f32.mrf.mxu0
    %v2085 = vadd.f32 0.0, %v2084
    %2086 = vmatmul.bf16.gmra.mxu0 %v1989
    %v2087 = vpop.f32.mrf.mxu0
    %v2088 = vadd.f32 0.0, %v2087
    %v2089 = vpop.f32.mrf.mxu0
    %v2090 = vadd.f32 0.0, %v2089
    %2091 = vmatmul.bf16.gmra.mxu0 %v1992
    %v2092 = vpop.f32.mrf.mxu0
    %v2093 = vadd.f32 0.0, %v2092
    %v2094 = vpop.f32.mrf.mxu0
    %v2095 = vadd.f32 0.0, %v2094
    %2096 = vmatmul.bf16.gmra.mxu0 %v1995
    %v2097 = vpop.f32.mrf.mxu0
    %v2098 = vadd.f32 0.0, %v2097
    %v2099 = vpop.f32.mrf.mxu0
    %v2100 = vadd.f32 0.0, %v2099
    %2101 = vmatmul.bf16.gmra.mxu0 %v1998
    %v2102 = vpop.f32.mrf.mxu0
    %v2103 = vadd.f32 0.0, %v2102
    %v2104 = vpop.f32.mrf.mxu0
    %2105 = vdwg.mxu0
    %2106 = vmatpush.bf16.msra.mxu0 0
    %2107 = vmatpush.bf16.msra.mxu0 0
    %2108 = vmatpush.bf16.msra.mxu0 %v1919
    %2109 = vmatpush.bf16.msra.mxu0 %v1911
    %2110 = vmatpush.bf16.msra.mxu0 %v1903
    %2111 = vmatpush.bf16.msra.mxu0 %v1895
    %2112 = vmatpush.bf16.msra.mxu0 %v1887
    %2113 = vmatpush.bf16.msra.mxu0 %v1879
    %2114 = vmatmul.bf16.gmra.mxu0 %v1974
    %v2115 = vpop.f32.mrf.mxu0
    %v2116 = vadd.f32 0.0, %v2115
    %v2117 = vpop.f32.mrf.mxu0
    %v2118 = vadd.f32 0.0, %v2117
    %2119 = vmatmul.bf16.gmra.mxu0 %v1977
    %v2120 = vpop.f32.mrf.mxu0
    %v2121 = vadd.f32 0.0, %v2120
    %v2122 = vpop.f32.mrf.mxu0
    %v2123 = vadd.f32 0.0, %v2122
    %2124 = vmatmul.bf16.gmra.mxu0 %v1980
    %v2125 = vpop.f32.mrf.mxu0
    %v2126 = vadd.f32 0.0, %v2125
    %v2127 = vpop.f32.mrf.mxu0
    %v2128 = vadd.f32 0.0, %v2127
    %2129 = vmatmul.bf16.gmra.mxu0 %v1983
    %v2130 = vpop.f32.mrf.mxu0
    %v2131 = vadd.f32 0.0, %v2130
    %v2132 = vpop.f32.mrf.mxu0
    %v2133 = vadd.f32 0.0, %v2132
    %2134 = vmatmul.bf16.gmra.mxu0 %v1986
    %v2135 = vpop.f32.mrf.mxu0
    %v2136 = vadd.f32 0.0, %v2135
    %v2137 = vpop.f32.mrf.mxu0
    %v2138 = vadd.f32 0.0, %v2137
    %2139 = vmatmul.bf16.gmra.mxu0 %v1989
    %v2140 = vpop.f32.mrf.mxu0
    %v2141 = vadd.f32 0.0, %v2140
    %v2142 = vpop.f32.mrf.mxu0
    %v2143 = vadd.f32 0.0, %v2142
    %2144 = vmatmul.bf16.gmra.mxu0 %v1992
    %v2145 = vpop.f32.mrf.mxu0
    %v2146 = vadd.f32 0.0, %v2145
    %v2147 = vpop.f32.mrf.mxu0
    %v2148 = vadd.f32 0.0, %v2147
    %2149 = vmatmul.bf16.gmra.mxu0 %v1995
    %v2150 = vpop.f32.mrf.mxu0
    %v2151 = vadd.f32 0.0, %v2150
    %v2152 = vpop.f32.mrf.mxu0
    %v2153 = vadd.f32 0.0, %v2152
    %2154 = vmatmul.bf16.gmra.mxu0 %v1998
    %v2155 = vpop.f32.mrf.mxu0
    %v2156 = vadd.f32 0.0, %v2155
    %v2157 = vpop.f32.mrf.mxu0
    %2158 = vdwg.mxu0
    %2159 = vmatpush.bf16.msra.mxu0 0
    %2160 = vmatpush.bf16.msra.mxu0 0
    %2161 = vmatpush.bf16.msra.mxu0 %v1920
    %2162 = vmatpush.bf16.msra.mxu0 %v1912
    %2163 = vmatpush.bf16.msra.mxu0 %v1904
    %2164 = vmatpush.bf16.msra.mxu0 %v1896
    %2165 = vmatpush.bf16.msra.mxu0 %v1888
    %2166 = vmatpush.bf16.msra.mxu0 %v1880
    %2167 = vmatmul.bf16.gmra.mxu0 %v1974
    %v2168 = vpop.f32.mrf.mxu0
    %v2169 = vadd.f32 0.0, %v2168
    %v2170 = vpop.f32.mrf.mxu0
    %v2171 = vadd.f32 0.0, %v2170
    %2172 = vmatmul.bf16.gmra.mxu0 %v1977
    %v2173 = vpop.f32.mrf.mxu0
    %v2174 = vadd.f32 0.0, %v2173
    %v2175 = vpop.f32.mrf.mxu0
    %v2176 = vadd.f32 0.0, %v2175
    %2177 = vmatmul.bf16.gmra.mxu0 %v1980
    %v2178 = vpop.f32.mrf.mxu0
    %v2179 = vadd.f32 0.0, %v2178
    %v2180 = vpop.f32.mrf.mxu0
    %v2181 = vadd.f32 0.0, %v2180
    %2182 = vmatmul.bf16.gmra.mxu0 %v1983
    %v2183 = vpop.f32.mrf.mxu0
    %v2184 = vadd.f32 0.0, %v2183
    %v2185 = vpop.f32.mrf.mxu0
    %v2186 = vadd.f32 0.0, %v2185
    %2187 = vmatmul.bf16.gmra.mxu0 %v1986
    %v2188 = vpop.f32.mrf.mxu0
    %v2189 = vadd.f32 0.0, %v2188
    %v2190 = vpop.f32.mrf.mxu0
    %v2191 = vadd.f32 0.0, %v2190
    %2192 = vmatmul.bf16.gmra.mxu0 %v1989
    %v2193 = vpop.f32.mrf.mxu0
    %v2194 = vadd.f32 0.0, %v2193
    %v2195 = vpop.f32.mrf.mxu0
    %v2196 = vadd.f32 0.0, %v2195
    %2197 = vmatmul.bf16.gmra.mxu0 %v1992
    %v2198 = vpop.f32.mrf.mxu0
    %v2199 = vadd.f32 0.0, %v2198
    %v2200 = vpop.f32.mrf.mxu0
    %v2201 = vadd.f32 0.0, %v2200
    %2202 = vmatmul.bf16.gmra.mxu0 %v1995
    %v2203 = vpop.f32.mrf.mxu0
    %v2204 = vadd.f32 0.0, %v2203
    %v2205 = vpop.f32.mrf.mxu0
    %v2206 = vadd.f32 0.0, %v2205
    %2207 = vmatmul.bf16.gmra.mxu0 %v1998
    %v2208 = vpop.f32.mrf.mxu0
    %v2209 = vadd.f32 0.0, %v2208
    %v2210 = vpop.f32.mrf.mxu0
    %2211 = vdwg.mxu0
    %2212 = vmatpush.bf16.msra.mxu0 0
    %2213 = vmatpush.bf16.msra.mxu0 0
    %2214 = vmatpush.bf16.msra.mxu0 %v1921
    %2215 = vmatpush.bf16.msra.mxu0 %v1913
    %2216 = vmatpush.bf16.msra.mxu0 %v1905
    %2217 = vmatpush.bf16.msra.mxu0 %v1897
    %2218 = vmatpush.bf16.msra.mxu0 %v1889
    %2219 = vmatpush.bf16.msra.mxu0 %v1881
    %2220 = vmatmul.bf16.gmra.mxu0 %v1974
    %v2221 = vpop.f32.mrf.mxu0
    %v2222 = vadd.f32 0.0, %v2221
    %v2223 = vpop.f32.mrf.mxu0
    %v2224 = vadd.f32 0.0, %v2223
    %2225 = vmatmul.bf16.gmra.mxu0 %v1977
    %v2226 = vpop.f32.mrf.mxu0
    %v2227 = vadd.f32 0.0, %v2226
    %v2228 = vpop.f32.mrf.mxu0
    %v2229 = vadd.f32 0.0, %v2228
    %2230 = vmatmul.bf16.gmra.mxu0 %v1980
    %v2231 = vpop.f32.mrf.mxu0
    %v2232 = vadd.f32 0.0, %v2231
    %v2233 = vpop.f32.mrf.mxu0
    %v2234 = vadd.f32 0.0, %v2233
    %2235 = vmatmul.bf16.gmra.mxu0 %v1983
    %v2236 = vpop.f32.mrf.mxu0
    %v2237 = vadd.f32 0.0, %v2236
    %v2238 = vpop.f32.mrf.mxu0
    %v2239 = vadd.f32 0.0, %v2238
    %2240 = vmatmul.bf16.gmra.mxu0 %v1986
    %v2241 = vpop.f32.mrf.mxu0
    %v2242 = vadd.f32 0.0, %v2241
    %v2243 = vpop.f32.mrf.mxu0
    %v2244 = vadd.f32 0.0, %v2243
    %2245 = vmatmul.bf16.gmra.mxu0 %v1989
    %v2246 = vpop.f32.mrf.mxu0
    %v2247 = vadd.f32 0.0, %v2246
    %v2248 = vpop.f32.mrf.mxu0
    %v2249 = vadd.f32 0.0, %v2248
    %2250 = vmatmul.bf16.gmra.mxu0 %v1992
    %v2251 = vpop.f32.mrf.mxu0
    %v2252 = vadd.f32 0.0, %v2251
    %v2253 = vpop.f32.mrf.mxu0
    %v2254 = vadd.f32 0.0, %v2253
    %2255 = vmatmul.bf16.gmra.mxu0 %v1995
    %v2256 = vpop.f32.mrf.mxu0
    %v2257 = vadd.f32 0.0, %v2256
    %v2258 = vpop.f32.mrf.mxu0
    %v2259 = vadd.f32 0.0, %v2258
    %2260 = vmatmul.bf16.gmra.mxu0 %v1998
    %v2261 = vpop.f32.mrf.mxu0
    %v2262 = vadd.f32 0.0, %v2261
    %v2263 = vpop.f32.mrf.mxu0
    %2264 = vdwg.mxu0
    %2265 = vmatpush.bf16.msra.mxu0 0
    %2266 = vmatpush.bf16.msra.mxu0 0
    %2267 = vmatpush.bf16.msra.mxu0 %v1922
    %2268 = vmatpush.bf16.msra.mxu0 %v1914
    %2269 = vmatpush.bf16.msra.mxu0 %v1906
    %2270 = vmatpush.bf16.msra.mxu0 %v1898
    %2271 = vmatpush.bf16.msra.mxu0 %v1890
    %2272 = vmatpush.bf16.msra.mxu0 %v1882
    %2273 = vmatmul.bf16.gmra.mxu0 %v1974
    %v2274 = vpop.f32.mrf.mxu0
    %v2275 = vadd.f32 0.0, %v2274
    %v2276 = vpop.f32.mrf.mxu0
    %v2277 = vadd.f32 0.0, %v2276
    %2278 = vmatmul.bf16.gmra.mxu0 %v1977
    %v2279 = vpop.f32.mrf.mxu0
    %v2280 = vadd.f32 0.0, %v2279
    %v2281 = vpop.f32.mrf.mxu0
    %v2282 = vadd.f32 0.0, %v2281
    %2283 = vmatmul.bf16.gmra.mxu0 %v1980
    %v2284 = vpop.f32.mrf.mxu0
    %v2285 = vadd.f32 0.0, %v2284
    %v2286 = vpop.f32.mrf.mxu0
    %v2287 = vadd.f32 0.0, %v2286
    %2288 = vmatmul.bf16.gmra.mxu0 %v1983
    %v2289 = vpop.f32.mrf.mxu0
    %v2290 = vadd.f32 0.0, %v2289
    %v2291 = vpop.f32.mrf.mxu0
    %v2292 = vadd.f32 0.0, %v2291
    %2293 = vmatmul.bf16.gmra.mxu0 %v1986
    %v2294 = vpop.f32.mrf.mxu0
    %v2295 = vadd.f32 0.0, %v2294
    %v2296 = vpop.f32.mrf.mxu0
    %v2297 = vadd.f32 0.0, %v2296
    %2298 = vmatmul.bf16.gmra.mxu0 %v1989
    %v2299 = vpop.f32.mrf.mxu0
    %v2300 = vadd.f32 0.0, %v2299
    %v2301 = vpop.f32.mrf.mxu0
    %v2302 = vadd.f32 0.0, %v2301
    %2303 = vmatmul.bf16.gmra.mxu0 %v1992
    %v2304 = vpop.f32.mrf.mxu0
    %v2305 = vadd.f32 0.0, %v2304
    %v2306 = vpop.f32.mrf.mxu0
    %v2307 = vadd.f32 0.0, %v2306
    %2308 = vmatmul.bf16.gmra.mxu0 %v1995
    %v2309 = vpop.f32.mrf.mxu0
    %v2310 = vadd.f32 0.0, %v2309
    %v2311 = vpop.f32.mrf.mxu0
    %v2312 = vadd.f32 0.0, %v2311
    %2313 = vmatmul.bf16.gmra.mxu0 %v1998
    %v2314 = vpop.f32.mrf.mxu0
    %v2315 = vadd.f32 0.0, %v2314
    %v2316 = vpop.f32.mrf.mxu0
    %2317 = vdwg.mxu0
    %2318 = vmatpush.bf16.msra.mxu0 0
    %2319 = vmatpush.bf16.msra.mxu0 0
    %2320 = vmatpush.bf16.msra.mxu0 %v1923
    %2321 = vmatpush.bf16.msra.mxu0 %v1915
    %2322 = vmatpush.bf16.msra.mxu0 %v1907
    %2323 = vmatpush.bf16.msra.mxu0 %v1899
    %2324 = vmatpush.bf16.msra.mxu0 %v1891
    %2325 = vmatpush.bf16.msra.mxu0 %v1883
    %2326 = vmatmul.bf16.gmra.mxu0 %v1974
    %v2327 = vpop.f32.mrf.mxu0
    %v2328 = vadd.f32 0.0, %v2327
    %v2329 = vpop.f32.mrf.mxu0
    %v2330 = vadd.f32 0.0, %v2329
    %2331 = vmatmul.bf16.gmra.mxu0 %v1977
    %v2332 = vpop.f32.mrf.mxu0
    %v2333 = vadd.f32 0.0, %v2332
    %v2334 = vpop.f32.mrf.mxu0
    %v2335 = vadd.f32 0.0, %v2334
    %2336 = vmatmul.bf16.gmra.mxu0 %v1980
    %v2337 = vpop.f32.mrf.mxu0
    %v2338 = vadd.f32 0.0, %v2337
    %v2339 = vpop.f32.mrf.mxu0
    %v2340 = vadd.f32 0.0, %v2339
    %2341 = vmatmul.bf16.gmra.mxu0 %v1983
    %v2342 = vpop.f32.mrf.mxu0
    %v2343 = vadd.f32 0.0, %v2342
    %v2344 = vpop.f32.mrf.mxu0
    %v2345 = vadd.f32 0.0, %v2344
    %2346 = vmatmul.bf16.gmra.mxu0 %v1986
    %v2347 = vpop.f32.mrf.mxu0
    %v2348 = vadd.f32 0.0, %v2347
    %v2349 = vpop.f32.mrf.mxu0
    %v2350 = vadd.f32 0.0, %v2349
    %2351 = vmatmul.bf16.gmra.mxu0 %v1989
    %v2352 = vpop.f32.mrf.mxu0
    %v2353 = vadd.f32 0.0, %v2352
    %v2354 = vpop.f32.mrf.mxu0
    %v2355 = vadd.f32 0.0, %v2354
    %2356 = vmatmul.bf16.gmra.mxu0 %v1992
    %v2357 = vpop.f32.mrf.mxu0
    %v2358 = vadd.f32 0.0, %v2357
    %v2359 = vpop.f32.mrf.mxu0
    %v2360 = vadd.f32 0.0, %v2359
    %2361 = vmatmul.bf16.gmra.mxu0 %v1995
    %v2362 = vpop.f32.mrf.mxu0
    %v2363 = vadd.f32 0.0, %v2362
    %v2364 = vpop.f32.mrf.mxu0
    %v2365 = vadd.f32 0.0, %v2364
    %2366 = vmatmul.bf16.gmra.mxu0 %v1998
    %v2367 = vpop.f32.mrf.mxu0
    %v2368 = vadd.f32 0.0, %v2367
    %v2369 = vpop.f32.mrf.mxu0
    %2370 = vdwg.mxu0
    %2371 = vmatpush.bf16.msra.mxu0 0
    %2372 = vmatpush.bf16.msra.mxu0 0
    %2373 = vmatpush.bf16.msra.mxu0 %v1924
    %2374 = vmatpush.bf16.msra.mxu0 %v1916
    %2375 = vmatpush.bf16.msra.mxu0 %v1908
    %2376 = vmatpush.bf16.msra.mxu0 %v1900
    %2377 = vmatpush.bf16.msra.mxu0 %v1892
    %2378 = vmatpush.bf16.msra.mxu0 %v1884
    %2379 = vmatmul.bf16.gmra.mxu0 %v1974
    %v2380 = vpop.f32.mrf.mxu0
    %v2381 = vadd.f32 0.0, %v2380
    %v2382 = vpop.f32.mrf.mxu0
    %v2383 = vadd.f32 0.0, %v2382
    %2384 = vmatmul.bf16.gmra.mxu0 %v1977
    %v2385 = vpop.f32.mrf.mxu0
    %v2386 = vadd.f32 0.0, %v2385
    %v2387 = vpop.f32.mrf.mxu0
    %v2388 = vadd.f32 0.0, %v2387
    %2389 = vmatmul.bf16.gmra.mxu0 %v1980
    %v2390 = vpop.f32.mrf.mxu0
    %v2391 = vadd.f32 0.0, %v2390
    %v2392 = vpop.f32.mrf.mxu0
    %v2393 = vadd.f32 0.0, %v2392
    %2394 = vmatmul.bf16.gmra.mxu0 %v1983
    %v2395 = vpop.f32.mrf.mxu0
    %v2396 = vadd.f32 0.0, %v2395
    %v2397 = vpop.f32.mrf.mxu0
    %v2398 = vadd.f32 0.0, %v2397
    %2399 = vmatmul.bf16.gmra.mxu0 %v1986
    %v2400 = vpop.f32.mrf.mxu0
    %v2401 = vadd.f32 0.0, %v2400
    %v2402 = vpop.f32.mrf.mxu0
    %v2403 = vadd.f32 0.0, %v2402
    %2404 = vmatmul.bf16.gmra.mxu0 %v1989
    %v2405 = vpop.f32.mrf.mxu0
    %v2406 = vadd.f32 0.0, %v2405
    %v2407 = vpop.f32.mrf.mxu0
    %v2408 = vadd.f32 0.0, %v2407
    %2409 = vmatmul.bf16.gmra.mxu0 %v1992
    %v2410 = vpop.f32.mrf.mxu0
    %v2411 = vadd.f32 0.0, %v2410
    %v2412 = vpop.f32.mrf.mxu0
    %v2413 = vadd.f32 0.0, %v2412
    %2414 = vmatmul.bf16.gmra.mxu0 %v1995
    %v2415 = vpop.f32.mrf.mxu0
    %v2416 = vadd.f32 0.0, %v2415
    %v2417 = vpop.f32.mrf.mxu0
    %v2418 = vadd.f32 0.0, %v2417
    %2419 = vmatmul.bf16.gmra.mxu0 %v1998
    %v2420 = vpop.f32.mrf.mxu0
    %v2421 = vadd.f32 0.0, %v2420
    %v2422 = vpop.f32.mrf.mxu0
    %2423 = vdwg.mxu0
    %v2424 = vadd.f32 %v1252, %v2010
    %v2425 = vadd.f32 %v1305, %v2063
    %v2426 = vadd.f32 %v1358, %v2116
    %v2427 = vadd.f32 %v1411, %v2169
    %v2428 = vadd.f32 %v1464, %v2222
    %v2429 = vadd.f32 %v1517, %v2275
    %v2430 = vadd.f32 %v1570, %v2328
    %v2431 = vadd.f32 %v1623, %v2381
    %v2432 = vadd.f32 %v1254, %v2012
    %v2433 = vadd.f32 %v1307, %v2065
    %v2434 = vadd.f32 %v1360, %v2118
    %v2435 = vadd.f32 %v1413, %v2171
    %v2436 = vadd.f32 %v1466, %v2224
    %v2437 = vadd.f32 %v1519, %v2277
    %v2438 = vadd.f32 %v1572, %v2330
    %v2439 = vadd.f32 %v1625, %v2383
    %v2440 = vadd.f32 %v1257, %v2015
    %v2441 = vadd.f32 %v1310, %v2068
    %v2442 = vadd.f32 %v1363, %v2121
    %v2443 = vadd.f32 %v1416, %v2174
    %v2444 = vadd.f32 %v1469, %v2227
    %v2445 = vadd.f32 %v1522, %v2280
    %v2446 = vadd.f32 %v1575, %v2333
    %v2447 = vadd.f32 %v1628, %v2386
    %v2448 = vadd.f32 %v1259, %v2017
    %v2449 = vadd.f32 %v1312, %v2070
    %v2450 = vadd.f32 %v1365, %v2123
    %v2451 = vadd.f32 %v1418, %v2176
    %v2452 = vadd.f32 %v1471, %v2229
    %v2453 = vadd.f32 %v1524, %v2282
    %v2454 = vadd.f32 %v1577, %v2335
    %v2455 = vadd.f32 %v1630, %v2388
    %v2456 = vadd.f32 %v1262, %v2020
    %v2457 = vadd.f32 %v1315, %v2073
    %v2458 = vadd.f32 %v1368, %v2126
    %v2459 = vadd.f32 %v1421, %v2179
    %v2460 = vadd.f32 %v1474, %v2232
    %v2461 = vadd.f32 %v1527, %v2285
    %v2462 = vadd.f32 %v1580, %v2338
    %v2463 = vadd.f32 %v1633, %v2391
    %v2464 = vadd.f32 %v1264, %v2022
    %v2465 = vadd.f32 %v1317, %v2075
    %v2466 = vadd.f32 %v1370, %v2128
    %v2467 = vadd.f32 %v1423, %v2181
    %v2468 = vadd.f32 %v1476, %v2234
    %v2469 = vadd.f32 %v1529, %v2287
    %v2470 = vadd.f32 %v1582, %v2340
    %v2471 = vadd.f32 %v1635, %v2393
    %v2472 = vadd.f32 %v1267, %v2025
    %v2473 = vadd.f32 %v1320, %v2078
    %v2474 = vadd.f32 %v1373, %v2131
    %v2475 = vadd.f32 %v1426, %v2184
    %v2476 = vadd.f32 %v1479, %v2237
    %v2477 = vadd.f32 %v1532, %v2290
    %v2478 = vadd.f32 %v1585, %v2343
    %v2479 = vadd.f32 %v1638, %v2396
    %v2480 = vadd.f32 %v1269, %v2027
    %v2481 = vadd.f32 %v1322, %v2080
    %v2482 = vadd.f32 %v1375, %v2133
    %v2483 = vadd.f32 %v1428, %v2186
    %v2484 = vadd.f32 %v1481, %v2239
    %v2485 = vadd.f32 %v1534, %v2292
    %v2486 = vadd.f32 %v1587, %v2345
    %v2487 = vadd.f32 %v1640, %v2398
    %v2488 = vadd.f32 %v1272, %v2030
    %v2489 = vadd.f32 %v1325, %v2083
    %v2490 = vadd.f32 %v1378, %v2136
    %v2491 = vadd.f32 %v1431, %v2189
    %v2492 = vadd.f32 %v1484, %v2242
    %v2493 = vadd.f32 %v1537, %v2295
    %v2494 = vadd.f32 %v1590, %v2348
    %v2495 = vadd.f32 %v1643, %v2401
    %v2496 = vadd.f32 %v1274, %v2032
    %v2497 = vadd.f32 %v1327, %v2085
    %v2498 = vadd.f32 %v1380, %v2138
    %v2499 = vadd.f32 %v1433, %v2191
    %v2500 = vadd.f32 %v1486, %v2244
    %v2501 = vadd.f32 %v1539, %v2297
    %v2502 = vadd.f32 %v1592, %v2350
    %v2503 = vadd.f32 %v1645, %v2403
    %v2504 = vadd.f32 %v1277, %v2035
    %v2505 = vadd.f32 %v1330, %v2088
    %v2506 = vadd.f32 %v1383, %v2141
    %v2507 = vadd.f32 %v1436, %v2194
    %v2508 = vadd.f32 %v1489, %v2247
    %v2509 = vadd.f32 %v1542, %v2300
    %v2510 = vadd.f32 %v1595, %v2353
    %v2511 = vadd.f32 %v1648, %v2406
    %v2512 = vadd.f32 %v1279, %v2037
    %v2513 = vadd.f32 %v1332, %v2090
    %v2514 = vadd.f32 %v1385, %v2143
    %v2515 = vadd.f32 %v1438, %v2196
    %v2516 = vadd.f32 %v1491, %v2249
    %v2517 = vadd.f32 %v1544, %v2302
    %v2518 = vadd.f32 %v1597, %v2355
    %v2519 = vadd.f32 %v1650, %v2408
    %v2520 = vadd.f32 %v1282, %v2040
    %v2521 = vadd.f32 %v1335, %v2093
    %v2522 = vadd.f32 %v1388, %v2146
    %v2523 = vadd.f32 %v1441, %v2199
    %v2524 = vadd.f32 %v1494, %v2252
    %v2525 = vadd.f32 %v1547, %v2305
    %v2526 = vadd.f32 %v1600, %v2358
    %v2527 = vadd.f32 %v1653, %v2411
    %v2528 = vadd.f32 %v1284, %v2042
    %v2529 = vadd.f32 %v1337, %v2095
    %v2530 = vadd.f32 %v1390, %v2148
    %v2531 = vadd.f32 %v1443, %v2201
    %v2532 = vadd.f32 %v1496, %v2254
    %v2533 = vadd.f32 %v1549, %v2307
    %v2534 = vadd.f32 %v1602, %v2360
    %v2535 = vadd.f32 %v1655, %v2413
    %v2536 = vadd.f32 %v1287, %v2045
    %v2537 = vadd.f32 %v1340, %v2098
    %v2538 = vadd.f32 %v1393, %v2151
    %v2539 = vadd.f32 %v1446, %v2204
    %v2540 = vadd.f32 %v1499, %v2257
    %v2541 = vadd.f32 %v1552, %v2310
    %v2542 = vadd.f32 %v1605, %v2363
    %v2543 = vadd.f32 %v1658, %v2416
    %v2544 = vadd.f32 %v1289, %v2047
    %v2545 = vadd.f32 %v1342, %v2100
    %v2546 = vadd.f32 %v1395, %v2153
    %v2547 = vadd.f32 %v1448, %v2206
    %v2548 = vadd.f32 %v1501, %v2259
    %v2549 = vadd.f32 %v1554, %v2312
    %v2550 = vadd.f32 %v1607, %v2365
    %v2551 = vadd.f32 %v1660, %v2418
    %v2552 = vadd.f32 %v1292, %v2050
    %v2553 = vadd.f32 %v1345, %v2103
    %v2554 = vadd.f32 %v1398, %v2156
    %v2555 = vadd.f32 %v1451, %v2209
    %v2556 = vadd.f32 %v1504, %v2262
    %v2557 = vadd.f32 %v1557, %v2315
    %v2558 = vadd.f32 %v1610, %v2368
    %v2559 = vadd.f32 %v1663, %v2421
    %v2560 = vld [vmem:[#allocation4] sm:$0xff]
    %v2562 = vperm.slane %v2560, 0
    %v2563 = vperm.slane %v2560, 1
    %v2564 = vperm.slane %v2560, 2
    %v2565 = vperm.slane %v2560, 3
    %v2566 = vperm.slane %v2560, 4
    %v2567 = vperm.slane %v2560, 5
    %v2568 = vperm.slane %v2560, 6
    %v2569 = vperm.slane %v2560, 7
    %v2578 = vadd.f32 %v2424, %v2562
    %v2579 = vadd.f32 %v2425, %v2563
    %v2580 = vadd.f32 %v2426, %v2564
    %v2581 = vadd.f32 %v2427, %v2565
    %v2582 = vadd.f32 %v2428, %v2566
    %v2583 = vadd.f32 %v2429, %v2567
    %v2584 = vadd.f32 %v2430, %v2568
    %v2585 = vadd.f32 %v2431, %v2569
    %v2586 = vadd.f32 %v2432, %v2562
    %v2587 = vadd.f32 %v2433, %v2563
    %v2588 = vadd.f32 %v2434, %v2564
    %v2589 = vadd.f32 %v2435, %v2565
    %v2590 = vadd.f32 %v2436, %v2566
    %v2591 = vadd.f32 %v2437, %v2567
    %v2592 = vadd.f32 %v2438, %v2568
    %v2593 = vadd.f32 %v2439, %v2569
    %v2594 = vadd.f32 %v2440, %v2562
    %v2595 = vadd.f32 %v2441, %v2563
    %v2596 = vadd.f32 %v2442, %v2564
    %v2597 = vadd.f32 %v2443, %v2565
    %v2598 = vadd.f32 %v2444, %v2566
    %v2599 = vadd.f32 %v2445, %v2567
    %v2600 = vadd.f32 %v2446, %v2568
    %v2601 = vadd.f32 %v2447, %v2569
    %v2602 = vadd.f32 %v2448, %v2562
    %v2603 = vadd.f32 %v2449, %v2563
    %v2604 = vadd.f32 %v2450, %v2564
    %v2605 = vadd.f32 %v2451, %v2565
    %v2606 = vadd.f32 %v2452, %v2566
    %v2607 = vadd.f32 %v2453, %v2567
    %v2608 = vadd.f32 %v2454, %v2568
    %v2609 = vadd.f32 %v2455, %v2569
    %v2610 = vadd.f32 %v2456, %v2562
    %v2611 = vadd.f32 %v2457, %v2563
    %v2612 = vadd.f32 %v2458, %v2564
    %v2613 = vadd.f32 %v2459, %v2565
    %v2614 = vadd.f32 %v2460, %v2566
    %v2615 = vadd.f32 %v2461, %v2567
    %v2616 = vadd.f32 %v2462, %v2568
    %v2617 = vadd.f32 %v2463, %v2569
    %v2618 = vadd.f32 %v2464, %v2562
    %v2619 = vadd.f32 %v2465, %v2563
    %v2620 = vadd.f32 %v2466, %v2564
    %v2621 = vadd.f32 %v2467, %v2565
    %v2622 = vadd.f32 %v2468, %v2566
    %v2623 = vadd.f32 %v2469, %v2567
    %v2624 = vadd.f32 %v2470, %v2568
    %v2625 = vadd.f32 %v2471, %v2569
    %v2626 = vadd.f32 %v2472, %v2562
    %v2627 = vadd.f32 %v2473, %v2563
    %v2628 = vadd.f32 %v2474, %v2564
    %v2629 = vadd.f32 %v2475, %v2565
    %v2630 = vadd.f32 %v2476, %v2566
    %v2631 = vadd.f32 %v2477, %v2567
    %v2632 = vadd.f32 %v2478, %v2568
    %v2633 = vadd.f32 %v2479, %v2569
    %v2634 = vadd.f32 %v2480, %v2562
    %v2635 = vadd.f32 %v2481, %v2563
    %v2636 = vadd.f32 %v2482, %v2564
    %v2637 = vadd.f32 %v2483, %v2565
    %v2638 = vadd.f32 %v2484, %v2566
    %v2639 = vadd.f32 %v2485, %v2567
    %v2640 = vadd.f32 %v2486, %v2568
    %v2641 = vadd.f32 %v2487, %v2569
    %v2642 = vadd.f32 %v2488, %v2562
    %v2643 = vadd.f32 %v2489, %v2563
    %v2644 = vadd.f32 %v2490, %v2564
    %v2645 = vadd.f32 %v2491, %v2565
    %v2646 = vadd.f32 %v2492, %v2566
    %v2647 = vadd.f32 %v2493, %v2567
    %v2648 = vadd.f32 %v2494, %v2568
    %v2649 = vadd.f32 %v2495, %v2569
    %v2650 = vadd.f32 %v2496, %v2562
    %v2651 = vadd.f32 %v2497, %v2563
    %v2652 = vadd.f32 %v2498, %v2564
    %v2653 = vadd.f32 %v2499, %v2565
    %v2654 = vadd.f32 %v2500, %v2566
    %v2655 = vadd.f32 %v2501, %v2567
    %v2656 = vadd.f32 %v2502, %v2568
    %v2657 = vadd.f32 %v2503, %v2569
    %v2658 = vadd.f32 %v2504, %v2562
    %v2659 = vadd.f32 %v2505, %v2563
    %v2660 = vadd.f32 %v2506, %v2564
    %v2661 = vadd.f32 %v2507, %v2565
    %v2662 = vadd.f32 %v2508, %v2566
    %v2663 = vadd.f32 %v2509, %v2567
    %v2664 = vadd.f32 %v2510, %v2568
    %v2665 = vadd.f32 %v2511, %v2569
    %v2666 = vadd.f32 %v2512, %v2562
    %v2667 = vadd.f32 %v2513, %v2563
    %v2668 = vadd.f32 %v2514, %v2564
    %v2669 = vadd.f32 %v2515, %v2565
    %v2670 = vadd.f32 %v2516, %v2566
    %v2671 = vadd.f32 %v2517, %v2567
    %v2672 = vadd.f32 %v2518, %v2568
    %v2673 = vadd.f32 %v2519, %v2569
    %v2674 = vadd.f32 %v2520, %v2562
    %v2675 = vadd.f32 %v2521, %v2563
    %v2676 = vadd.f32 %v2522, %v2564
    %v2677 = vadd.f32 %v2523, %v2565
    %v2678 = vadd.f32 %v2524, %v2566
    %v2679 = vadd.f32 %v2525, %v2567
    %v2680 = vadd.f32 %v2526, %v2568
    %v2681 = vadd.f32 %v2527, %v2569
    %v2682 = vadd.f32 %v2528, %v2562
    %v2683 = vadd.f32 %v2529, %v2563
    %v2684 = vadd.f32 %v2530, %v2564
    %v2685 = vadd.f32 %v2531, %v2565
    %v2686 = vadd.f32 %v2532, %v2566
    %v2687 = vadd.f32 %v2533, %v2567
    %v2688 = vadd.f32 %v2534, %v2568
    %v2689 = vadd.f32 %v2535, %v2569
    %v2690 = vadd.f32 %v2536, %v2562
    %v2691 = vadd.f32 %v2537, %v2563
    %v2692 = vadd.f32 %v2538, %v2564
    %v2693 = vadd.f32 %v2539, %v2565
    %v2694 = vadd.f32 %v2540, %v2566
    %v2695 = vadd.f32 %v2541, %v2567
    %v2696 = vadd.f32 %v2542, %v2568
    %v2697 = vadd.f32 %v2543, %v2569
    %v2698 = vadd.f32 %v2544, %v2562
    %v2699 = vadd.f32 %v2545, %v2563
    %v2700 = vadd.f32 %v2546, %v2564
    %v2701 = vadd.f32 %v2547, %v2565
    %v2702 = vadd.f32 %v2548, %v2566
    %v2703 = vadd.f32 %v2549, %v2567
    %v2704 = vadd.f32 %v2550, %v2568
    %v2705 = vadd.f32 %v2551, %v2569
    %v2706 = vadd.f32 %v2552, %v2562
    %v2707 = vadd.f32 %v2553, %v2563
    %v2708 = vadd.f32 %v2554, %v2564
    %v2709 = vadd.f32 %v2555, %v2565
    %v2710 = vadd.f32 %v2556, %v2566
    %v2711 = vadd.f32 %v2557, %v2567
    %v2712 = vadd.f32 %v2558, %v2568
    %v2713 = vadd.f32 %v2559, %v2569
    %v2714 = vmax.f32 %v2578, 0.0
    %v2715 = vmax.f32 %v2579, 0.0
    %v2716 = vmax.f32 %v2580, 0.0
    %v2717 = vmax.f32 %v2581, 0.0
    %v2718 = vmax.f32 %v2582, 0.0
    %v2719 = vmax.f32 %v2583, 0.0
    %v2720 = vmax.f32 %v2584, 0.0
    %v2721 = vmax.f32 %v2585, 0.0
    %v2722 = vmax.f32 %v2586, 0.0
    %v2723 = vmax.f32 %v2587, 0.0
    %v2724 = vmax.f32 %v2588, 0.0
    %v2725 = vmax.f32 %v2589, 0.0
    %v2726 = vmax.f32 %v2590, 0.0
    %v2727 = vmax.f32 %v2591, 0.0
    %v2728 = vmax.f32 %v2592, 0.0
    %v2729 = vmax.f32 %v2593, 0.0
    %v2730 = vmax.f32 %v2594, 0.0
    %v2731 = vmax.f32 %v2595, 0.0
    %v2732 = vmax.f32 %v2596, 0.0
    %v2733 = vmax.f32 %v2597, 0.0
    %v2734 = vmax.f32 %v2598, 0.0
    %v2735 = vmax.f32 %v2599, 0.0
    %v2736 = vmax.f32 %v2600, 0.0
    %v2737 = vmax.f32 %v2601, 0.0
    %v2738 = vmax.f32 %v2602, 0.0
    %v2739 = vmax.f32 %v2603, 0.0
    %v2740 = vmax.f32 %v2604, 0.0
    %v2741 = vmax.f32 %v2605, 0.0
    %v2742 = vmax.f32 %v2606, 0.0
    %v2743 = vmax.f32 %v2607, 0.0
    %v2744 = vmax.f32 %v2608, 0.0
    %v2745 = vmax.f32 %v2609, 0.0
    %v2746 = vmax.f32 %v2610, 0.0
    %v2747 = vmax.f32 %v2611, 0.0
    %v2748 = vmax.f32 %v2612, 0.0
    %v2749 = vmax.f32 %v2613, 0.0
    %v2750 = vmax.f32 %v2614, 0.0
    %v2751 = vmax.f32 %v2615, 0.0
    %v2752 = vmax.f32 %v2616, 0.0
    %v2753 = vmax.f32 %v2617, 0.0
    %v2754 = vmax.f32 %v2618, 0.0
    %v2755 = vmax.f32 %v2619, 0.0
    %v2756 = vmax.f32 %v2620, 0.0
    %v2757 = vmax.f32 %v2621, 0.0
    %v2758 = vmax.f32 %v2622, 0.0
    %v2759 = vmax.f32 %v2623, 0.0
    %v2760 = vmax.f32 %v2624, 0.0
    %v2761 = vmax.f32 %v2625, 0.0
    %v2762 = vmax.f32 %v2626, 0.0
    %v2763 = vmax.f32 %v2627, 0.0
    %v2764 = vmax.f32 %v2628, 0.0
    %v2765 = vmax.f32 %v2629, 0.0
    %v2766 = vmax.f32 %v2630, 0.0
    %v2767 = vmax.f32 %v2631, 0.0
    %v2768 = vmax.f32 %v2632, 0.0
    %v2769 = vmax.f32 %v2633, 0.0
    %v2770 = vmax.f32 %v2634, 0.0
    %v2771 = vmax.f32 %v2635, 0.0
    %v2772 = vmax.f32 %v2636, 0.0
    %v2773 = vmax.f32 %v2637, 0.0
    %v2774 = vmax.f32 %v2638, 0.0
    %v2775 = vmax.f32 %v2639, 0.0
    %v2776 = vmax.f32 %v2640, 0.0
    %v2777 = vmax.f32 %v2641, 0.0
    %v2778 = vmax.f32 %v2642, 0.0
    %v2779 = vmax.f32 %v2643, 0.0
    %v2780 = vmax.f32 %v2644, 0.0
    %v2781 = vmax.f32 %v2645, 0.0
    %v2782 = vmax.f32 %v2646, 0.0
    %v2783 = vmax.f32 %v2647, 0.0
    %v2784 = vmax.f32 %v2648, 0.0
    %v2785 = vmax.f32 %v2649, 0.0
    %v2786 = vmax.f32 %v2650, 0.0
    %v2787 = vmax.f32 %v2651, 0.0
    %v2788 = vmax.f32 %v2652, 0.0
    %v2789 = vmax.f32 %v2653, 0.0
    %v2790 = vmax.f32 %v2654, 0.0
    %v2791 = vmax.f32 %v2655, 0.0
    %v2792 = vmax.f32 %v2656, 0.0
    %v2793 = vmax.f32 %v2657, 0.0
    %v2794 = vmax.f32 %v2658, 0.0
    %v2795 = vmax.f32 %v2659, 0.0
    %v2796 = vmax.f32 %v2660, 0.0
    %v2797 = vmax.f32 %v2661, 0.0
    %v2798 = vmax.f32 %v2662, 0.0
    %v2799 = vmax.f32 %v2663, 0.0
    %v2800 = vmax.f32 %v2664, 0.0
    %v2801 = vmax.f32 %v2665, 0.0
    %v2802 = vmax.f32 %v2666, 0.0
    %v2803 = vmax.f32 %v2667, 0.0
    %v2804 = vmax.f32 %v2668, 0.0
    %v2805 = vmax.f32 %v2669, 0.0
    %v2806 = vmax.f32 %v2670, 0.0
    %v2807 = vmax.f32 %v2671, 0.0
    %v2808 = vmax.f32 %v2672, 0.0
    %v2809 = vmax.f32 %v2673, 0.0
    %v2810 = vmax.f32 %v2674, 0.0
    %v2811 = vmax.f32 %v2675, 0.0
    %v2812 = vmax.f32 %v2676, 0.0
    %v2813 = vmax.f32 %v2677, 0.0
    %v2814 = vmax.f32 %v2678, 0.0
    %v2815 = vmax.f32 %v2679, 0.0
    %v2816 = vmax.f32 %v2680, 0.0
    %v2817 = vmax.f32 %v2681, 0.0
    %v2818 = vmax.f32 %v2682, 0.0
    %v2819 = vmax.f32 %v2683, 0.0
    %v2820 = vmax.f32 %v2684, 0.0
    %v2821 = vmax.f32 %v2685, 0.0
    %v2822 = vmax.f32 %v2686, 0.0
    %v2823 = vmax.f32 %v2687, 0.0
    %v2824 = vmax.f32 %v2688, 0.0
    %v2825 = vmax.f32 %v2689, 0.0
    %v2826 = vmax.f32 %v2690, 0.0
    %v2827 = vmax.f32 %v2691, 0.0
    %v2828 = vmax.f32 %v2692, 0.0
    %v2829 = vmax.f32 %v2693, 0.0
    %v2830 = vmax.f32 %v2694, 0.0
    %v2831 = vmax.f32 %v2695, 0.0
    %v2832 = vmax.f32 %v2696, 0.0
    %v2833 = vmax.f32 %v2697, 0.0
    %v2834 = vmax.f32 %v2698, 0.0
    %v2835 = vmax.f32 %v2699, 0.0
    %v2836 = vmax.f32 %v2700, 0.0
    %v2837 = vmax.f32 %v2701, 0.0
    %v2838 = vmax.f32 %v2702, 0.0
    %v2839 = vmax.f32 %v2703, 0.0
    %v2840 = vmax.f32 %v2704, 0.0
    %v2841 = vmax.f32 %v2705, 0.0
    %v2842 = vmax.f32 %v2706, 0.0
    %v2843 = vmax.f32 %v2707, 0.0
    %v2844 = vmax.f32 %v2708, 0.0
    %v2845 = vmax.f32 %v2709, 0.0
    %v2846 = vmax.f32 %v2710, 0.0
    %v2847 = vmax.f32 %v2711, 0.0
    %v2848 = vmax.f32 %v2712, 0.0
    %v2849 = vmax.f32 %v2713, 0.0
    %v2850 = vmax.f32 %v2714, %v2718
    %v2851 = vmax.f32 %v2715, %v2719
    %v2852 = vmax.f32 %v2716, %v2720
    %v2853 = vmax.f32 %v2717, %v2721
    %v2854 = vmax.f32 %v2722, %v2726
    %v2855 = vmax.f32 %v2723, %v2727
    %v2856 = vmax.f32 %v2724, %v2728
    %v2857 = vmax.f32 %v2725, %v2729
    %v2858 = vmax.f32 %v2730, %v2734
    %v2859 = vmax.f32 %v2731, %v2735
    %v2860 = vmax.f32 %v2732, %v2736
    %v2861 = vmax.f32 %v2733, %v2737
    %v2862 = vmax.f32 %v2738, %v2742
    %v2863 = vmax.f32 %v2739, %v2743
    %v2864 = vmax.f32 %v2740, %v2744
    %v2865 = vmax.f32 %v2741, %v2745
    %v2866 = vmax.f32 %v2746, %v2750
    %v2867 = vmax.f32 %v2747, %v2751
    %v2868 = vmax.f32 %v2748, %v2752
    %v2869 = vmax.f32 %v2749, %v2753
    %v2870 = vmax.f32 %v2754, %v2758
    %v2871 = vmax.f32 %v2755, %v2759
    %v2872 = vmax.f32 %v2756, %v2760
    %v2873 = vmax.f32 %v2757, %v2761
    %v2874 = vmax.f32 %v2762, %v2766
    %v2875 = vmax.f32 %v2763, %v2767
    %v2876 = vmax.f32 %v2764, %v2768
    %v2877 = vmax.f32 %v2765, %v2769
    %v2878 = vmax.f32 %v2770, %v2774
    %v2879 = vmax.f32 %v2771, %v2775
    %v2880 = vmax.f32 %v2772, %v2776
    %v2881 = vmax.f32 %v2773, %v2777
    %v2882 = vmax.f32 %v2778, %v2782
    %v2883 = vmax.f32 %v2779, %v2783
    %v2884 = vmax.f32 %v2780, %v2784
    %v2885 = vmax.f32 %v2781, %v2785
    %v2886 = vmax.f32 %v2786, %v2790
    %v2887 = vmax.f32 %v2787, %v2791
    %v2888 = vmax.f32 %v2788, %v2792
    %v2889 = vmax.f32 %v2789, %v2793
    %v2890 = vmax.f32 %v2794, %v2798
    %v2891 = vmax.f32 %v2795, %v2799
    %v2892 = vmax.f32 %v2796, %v2800
    %v2893 = vmax.f32 %v2797, %v2801
    %v2894 = vmax.f32 %v2802, %v2806
    %v2895 = vmax.f32 %v2803, %v2807
    %v2896 = vmax.f32 %v2804, %v2808
    %v2897 = vmax.f32 %v2805, %v2809
    %v2898 = vmax.f32 %v2810, %v2814
    %v2899 = vmax.f32 %v2811, %v2815
    %v2900 = vmax.f32 %v2812, %v2816
    %v2901 = vmax.f32 %v2813, %v2817
    %v2902 = vmax.f32 %v2818, %v2822
    %v2903 = vmax.f32 %v2819, %v2823
    %v2904 = vmax.f32 %v2820, %v2824
    %v2905 = vmax.f32 %v2821, %v2825
    %v2906 = vmax.f32 %v2826, %v2830
    %v2907 = vmax.f32 %v2827, %v2831
    %v2908 = vmax.f32 %v2828, %v2832
    %v2909 = vmax.f32 %v2829, %v2833
    %v2910 = vmax.f32 %v2834, %v2838
    %v2911 = vmax.f32 %v2835, %v2839
    %v2912 = vmax.f32 %v2836, %v2840
    %v2913 = vmax.f32 %v2837, %v2841
    %v2914 = vmax.f32 %v2842, %v2846
    %v2915 = vmax.f32 %v2843, %v2847
    %v2916 = vmax.f32 %v2844, %v2848
    %v2917 = vmax.f32 %v2845, %v2849
    %v2918 = vpack.c.bf16 %v2854, %v2850
    %v2919 = vpack.c.bf16 %v2855, %v2851
    %v2920 = vpack.c.bf16 %v2856, %v2852
    %v2921 = vpack.c.bf16 %v2857, %v2853
    %v2922 = vpack.c.bf16 %v2862, %v2858
    %v2923 = vpack.c.bf16 %v2863, %v2859
    %v2924 = vpack.c.bf16 %v2864, %v2860
    %v2925 = vpack.c.bf16 %v2865, %v2861
    %v2926 = vpack.c.bf16 %v2870, %v2866
    %v2927 = vpack.c.bf16 %v2871, %v2867
    %v2928 = vpack.c.bf16 %v2872, %v2868
    %v2929 = vpack.c.bf16 %v2873, %v2869
    %v2930 = vpack.c.bf16 %v2878, %v2874
    %v2931 = vpack.c.bf16 %v2879, %v2875
    %v2932 = vpack.c.bf16 %v2880, %v2876
    %v2933 = vpack.c.bf16 %v2881, %v2877
    %v2934 = vpack.c.bf16 %v2886, %v2882
    %v2935 = vpack.c.bf16 %v2887, %v2883
    %v2936 = vpack.c.bf16 %v2888, %v2884
    %v2937 = vpack.c.bf16 %v2889, %v2885
    %v2938 = vpack.c.bf16 %v2894, %v2890
    %v2939 = vpack.c.bf16 %v2895, %v2891
    %v2940 = vpack.c.bf16 %v2896, %v2892
    %v2941 = vpack.c.bf16 %v2897, %v2893
    %v2942 = vpack.c.bf16 %v2902, %v2898
    %v2943 = vpack.c.bf16 %v2903, %v2899
    %v2944 = vpack.c.bf16 %v2904, %v2900
    %v2945 = vpack.c.bf16 %v2905, %v2901
    %v2946 = vpack.c.bf16 %v2910, %v2906
    %v2947 = vpack.c.bf16 %v2911, %v2907
    %v2948 = vpack.c.bf16 %v2912, %v2908
    %v2949 = vpack.c.bf16 %v2913, %v2909
    %v2950 = vpack.c.bf16 %v2914, %v2914
    %v2951 = vpack.c.bf16 %v2915, %v2915
    %v2952 = vpack.c.bf16 %v2916, %v2916
    %v2953 = vpack.c.bf16 %v2917, %v2917
    %v2954 = vld [vmem:[#allocation6] sm:$0xff]
    %v2955 = vld [vmem:[#allocation6 + $0x8] sm:$0xff]
    %v2956 = vld [vmem:[#allocation6 + $0x10] sm:$0xff]
    %v2957 = vld [vmem:[#allocation6 + $0x18] sm:$0xff]
    %v2958 = vld [vmem:[#allocation6 + $0x20] sm:$0xff]
    %v2959 = vld [vmem:[#allocation6 + $0x28] sm:$0xff]
    %v2960 = vld [vmem:[#allocation6 + $0x30] sm:$0xff]
    %v2961 = vld [vmem:[#allocation6 + $0x38] sm:$0xff]
    %v2962 = vld [vmem:[#allocation6 + $0x40] sm:$0xff]
    %v2963 = vld [vmem:[#allocation6 + $0x48] sm:$0xff]
    %v2964 = vld [vmem:[#allocation6 + $0x50] sm:$0xff]
    %v2965 = vld [vmem:[#allocation6 + $0x58] sm:$0xff]
    %v2966 = vld [vmem:[#allocation6 + $0x60] sm:$0xff]
    %v2967 = vld [vmem:[#allocation6 + $0x68] sm:$0xff]
    %v2968 = vld [vmem:[#allocation6 + $0x70] sm:$0xff]
    %v2969 = vld [vmem:[#allocation6 + $0x78] sm:$0xff]
    %v2970 = vld [vmem:[#allocation6 + $0x80] sm:$0xff]
    %v2971 = vld [vmem:[#allocation6 + $0x88] sm:$0xff]
    %v2990 = vunpack.c.l.b16 %v2954
    %v2991 = vunpack.c.h.b16 %v2954
    %v2992 = vunpack.c.l.b16 %v2955
    %v2993 = vunpack.c.h.b16 %v2955
    %v2994 = vunpack.c.l.b16 %v2956
    %v2995 = vunpack.c.h.b16 %v2956
    %v2996 = vunpack.c.l.b16 %v2957
    %v2997 = vunpack.c.h.b16 %v2957
    %v2998 = vunpack.c.l.b16 %v2958
    %v2999 = vunpack.c.h.b16 %v2958
    %v3000 = vunpack.c.l.b16 %v2959
    %v3001 = vunpack.c.h.b16 %v2959
    %v3002 = vunpack.c.l.b16 %v2960
    %v3003 = vunpack.c.h.b16 %v2960
    %v3004 = vunpack.c.l.b16 %v2961
    %v3005 = vunpack.c.h.b16 %v2961
    %v3006 = vunpack.c.l.b16 %v2962
    %v3007 = vunpack.c.h.b16 %v2962
    %v3008 = vunpack.c.l.b16 %v2963
    %v3009 = vunpack.c.h.b16 %v2963
    %v3010 = vunpack.c.l.b16 %v2964
    %v3011 = vunpack.c.h.b16 %v2964
    %v3012 = vunpack.c.l.b16 %v2965
    %v3013 = vunpack.c.h.b16 %v2965
    %v3014 = vunpack.c.l.b16 %v2966
    %v3015 = vunpack.c.h.b16 %v2966
    %v3016 = vunpack.c.l.b16 %v2967
    %v3017 = vunpack.c.h.b16 %v2967
    %v3018 = vunpack.c.l.b16 %v2968
    %v3019 = vunpack.c.h.b16 %v2968
    %v3020 = vunpack.c.l.b16 %v2969
    %v3021 = vunpack.c.h.b16 %v2969
    %v3022 = vunpack.c.l.b16 %v2970
    %v3023 = vunpack.c.h.b16 %v2970
    %v3024 = vunpack.c.l.b16 %v2971
    %v3025 = vunpack.c.h.b16 %v2971
    %v3026 = vpack.c.b16 %v2992, %v2990
    %v3027 = vpack.c.b16 %v2993, %v2991
    %v3028 = vpack.c.b16 %v2996, %v2994
    %v3029 = vpack.c.b16 %v2997, %v2995
    %v3030 = vpack.c.b16 %v3000, %v2998
    %v3031 = vpack.c.b16 %v3001, %v2999
    %v3032 = vpack.c.b16 %v3004, %v3002
    %v3033 = vpack.c.b16 %v3005, %v3003
    %v3034 = vpack.c.b16 %v3008, %v3006
    %v3035 = vpack.c.b16 %v3009, %v3007
    %v3036 = vpack.c.b16 %v3012, %v3010
    %v3037 = vpack.c.b16 %v3013, %v3011
    %v3038 = vpack.c.b16 %v3016, %v3014
    %v3039 = vpack.c.b16 %v3017, %v3015
    %v3040 = vpack.c.b16 %v3020, %v3018
    %v3041 = vpack.c.b16 %v3021, %v3019
    %v3042 = vpack.c.b16 %v3024, %v3022
    %v3043 = vpack.c.b16 %v3025, %v3023
    %vm3053 = vcmask 48128
    %v3055 = vsel %vm3053, %v3027, 0
    %v3058 = vsel %vm3053, %v3029, 0
    %v3061 = vsel %vm3053, %v3031, 0
    %v3064 = vsel %vm3053, %v3033, 0
    %v3067 = vsel %vm3053, %v3035, 0
    %v3070 = vsel %vm3053, %v3037, 0
    %v3073 = vsel %vm3053, %v3039, 0
    %v3076 = vsel %vm3053, %v3041, 0
    %v3079 = vsel %vm3053, %v3043, 0
    %vm3081 = vcmask 1042432
    %v3083 = vsel %vm3081, %v2950, 0
    %v3086 = vsel %vm3081, %v2951, 0
    %v3089 = vsel %vm3081, %v2952, 0
    %v3092 = vsel %vm3081, %v2953, 0
    %3094 = vmatpush.bf16.msra.mxu0 %v2946
    %3095 = vmatpush.bf16.msra.mxu0 %v2942
    %3096 = vmatpush.bf16.msra.mxu0 %v2938
    %3097 = vmatpush.bf16.msra.mxu0 %v2934
    %3098 = vmatpush.bf16.msra.mxu0 %v2930
    %3099 = vmatpush.bf16.msra.mxu0 %v2926
    %3100 = vmatpush.bf16.msra.mxu0 %v2922
    %3101 = vmatpush.bf16.msra.mxu0 %v2918
    %3102 = vmatmul.bf16.gmra.mxu0 %v3026
    %v3103 = vpop.f32.mrf.mxu0
    %v3104 = vadd.f32 0.0, %v3103
    %v3105 = vpop.f32.mrf.mxu0
    %v3106 = vadd.f32 0.0, %v3105
    %3107 = vmatmul.bf16.gmra.mxu0 %v3028
    %v3108 = vpop.f32.mrf.mxu0
    %v3109 = vadd.f32 0.0, %v3108
    %v3110 = vpop.f32.mrf.mxu0
    %v3111 = vadd.f32 0.0, %v3110
    %3112 = vmatmul.bf16.gmra.mxu0 %v3030
    %v3113 = vpop.f32.mrf.mxu0
    %v3114 = vadd.f32 0.0, %v3113
    %v3115 = vpop.f32.mrf.mxu0
    %v3116 = vadd.f32 0.0, %v3115
    %3117 = vmatmul.bf16.gmra.mxu0 %v3032
    %v3118 = vpop.f32.mrf.mxu0
    %v3119 = vadd.f32 0.0, %v3118
    %v3120 = vpop.f32.mrf.mxu0
    %v3121 = vadd.f32 0.0, %v3120
    %3122 = vmatmul.bf16.gmra.mxu0 %v3034
    %v3123 = vpop.f32.mrf.mxu0
    %v3124 = vadd.f32 0.0, %v3123
    %v3125 = vpop.f32.mrf.mxu0
    %v3126 = vadd.f32 0.0, %v3125
    %3127 = vmatmul.bf16.gmra.mxu0 %v3036
    %v3128 = vpop.f32.mrf.mxu0
    %v3129 = vadd.f32 0.0, %v3128
    %v3130 = vpop.f32.mrf.mxu0
    %v3131 = vadd.f32 0.0, %v3130
    %3132 = vmatmul.bf16.gmra.mxu0 %v3038
    %v3133 = vpop.f32.mrf.mxu0
    %v3134 = vadd.f32 0.0, %v3133
    %v3135 = vpop.f32.mrf.mxu0
    %v3136 = vadd.f32 0.0, %v3135
    %3137 = vmatmul.bf16.gmra.mxu0 %v3040
    %v3138 = vpop.f32.mrf.mxu0
    %v3139 = vadd.f32 0.0, %v3138
    %v3140 = vpop.f32.mrf.mxu0
    %v3141 = vadd.f32 0.0, %v3140
    %3142 = vmatmul.bf16.gmra.mxu0 %v3042
    %v3143 = vpop.f32.mrf.mxu0
    %v3144 = vadd.f32 0.0, %v3143
    %v3145 = vpop.f32.mrf.mxu0
    %v3146 = vadd.f32 0.0, %v3145
    %3147 = vdwg.mxu0
    %3148 = vmatpush.bf16.msra.mxu0 0
    %3149 = vmatpush.bf16.msra.mxu0 0
    %3150 = vmatpush.bf16.msra.mxu0 0
    %3151 = vmatpush.bf16.msra.mxu0 0
    %3152 = vmatpush.bf16.msra.mxu0 0
    %3153 = vmatpush.bf16.msra.mxu0 0
    %3154 = vmatpush.bf16.msra.mxu0 0
    %3155 = vmatpush.bf16.msra.mxu0 %v3083
    %3156 = vmatmul.bf16.gmra.mxu0 %v3055
    %v3157 = vpop.f32.mrf.mxu0
    %v3158 = vadd.f32 %v3104, %v3157
    %v3159 = vpop.f32.mrf.mxu0
    %v3160 = vadd.f32 %v3106, %v3159
    %3161 = vmatmul.bf16.gmra.mxu0 %v3058
    %v3162 = vpop.f32.mrf.mxu0
    %v3163 = vadd.f32 %v3109, %v3162
    %v3164 = vpop.f32.mrf.mxu0
    %v3165 = vadd.f32 %v3111, %v3164
    %3166 = vmatmul.bf16.gmra.mxu0 %v3061
    %v3167 = vpop.f32.mrf.mxu0
    %v3168 = vadd.f32 %v3114, %v3167
    %v3169 = vpop.f32.mrf.mxu0
    %v3170 = vadd.f32 %v3116, %v3169
    %3171 = vmatmul.bf16.gmra.mxu0 %v3064
    %v3172 = vpop.f32.mrf.mxu0
    %v3173 = vadd.f32 %v3119, %v3172
    %v3174 = vpop.f32.mrf.mxu0
    %v3175 = vadd.f32 %v3121, %v3174
    %3176 = vmatmul.bf16.gmra.mxu0 %v3067
    %v3177 = vpop.f32.mrf.mxu0
    %v3178 = vadd.f32 %v3124, %v3177
    %v3179 = vpop.f32.mrf.mxu0
    %v3180 = vadd.f32 %v3126, %v3179
    %3181 = vmatmul.bf16.gmra.mxu0 %v3070
    %v3182 = vpop.f32.mrf.mxu0
    %v3183 = vadd.f32 %v3129, %v3182
    %v3184 = vpop.f32.mrf.mxu0
    %v3185 = vadd.f32 %v3131, %v3184
    %3186 = vmatmul.bf16.gmra.mxu0 %v3073
    %v3187 = vpop.f32.mrf.mxu0
    %v3188 = vadd.f32 %v3134, %v3187
    %v3189 = vpop.f32.mrf.mxu0
    %v3190 = vadd.f32 %v3136, %v3189
    %3191 = vmatmul.bf16.gmra.mxu0 %v3076
    %v3192 = vpop.f32.mrf.mxu0
    %v3193 = vadd.f32 %v3139, %v3192
    %v3194 = vpop.f32.mrf.mxu0
    %v3195 = vadd.f32 %v3141, %v3194
    %3196 = vmatmul.bf16.gmra.mxu0 %v3079
    %v3197 = vpop.f32.mrf.mxu0
    %v3198 = vadd.f32 %v3144, %v3197
    %v3199 = vpop.f32.mrf.mxu0
    %v3200 = vadd.f32 %v3146, %v3199
    %3201 = vdwg.mxu0
    %3202 = vmatpush.bf16.msra.mxu0 %v2947
    %3203 = vmatpush.bf16.msra.mxu0 %v2943
    %3204 = vmatpush.bf16.msra.mxu0 %v2939
    %3205 = vmatpush.bf16.msra.mxu0 %v2935
    %3206 = vmatpush.bf16.msra.mxu0 %v2931
    %3207 = vmatpush.bf16.msra.mxu0 %v2927
    %3208 = vmatpush.bf16.msra.mxu0 %v2923
    %3209 = vmatpush.bf16.msra.mxu0 %v2919
    %3210 = vmatmul.bf16.gmra.mxu0 %v3026
    %v3211 = vpop.f32.mrf.mxu0
    %v3212 = vadd.f32 0.0, %v3211
    %v3213 = vpop.f32.mrf.mxu0
    %v3214 = vadd.f32 0.0, %v3213
    %3215 = vmatmul.bf16.gmra.mxu0 %v3028
    %v3216 = vpop.f32.mrf.mxu0
    %v3217 = vadd.f32 0.0, %v3216
    %v3218 = vpop.f32.mrf.mxu0
    %v3219 = vadd.f32 0.0, %v3218
    %3220 = vmatmul.bf16.gmra.mxu0 %v3030
    %v3221 = vpop.f32.mrf.mxu0
    %v3222 = vadd.f32 0.0, %v3221
    %v3223 = vpop.f32.mrf.mxu0
    %v3224 = vadd.f32 0.0, %v3223
    %3225 = vmatmul.bf16.gmra.mxu0 %v3032
    %v3226 = vpop.f32.mrf.mxu0
    %v3227 = vadd.f32 0.0, %v3226
    %v3228 = vpop.f32.mrf.mxu0
    %v3229 = vadd.f32 0.0, %v3228
    %3230 = vmatmul.bf16.gmra.mxu0 %v3034
    %v3231 = vpop.f32.mrf.mxu0
    %v3232 = vadd.f32 0.0, %v3231
    %v3233 = vpop.f32.mrf.mxu0
    %v3234 = vadd.f32 0.0, %v3233
    %3235 = vmatmul.bf16.gmra.mxu0 %v3036
    %v3236 = vpop.f32.mrf.mxu0
    %v3237 = vadd.f32 0.0, %v3236
    %v3238 = vpop.f32.mrf.mxu0
    %v3239 = vadd.f32 0.0, %v3238
    %3240 = vmatmul.bf16.gmra.mxu0 %v3038
    %v3241 = vpop.f32.mrf.mxu0
    %v3242 = vadd.f32 0.0, %v3241
    %v3243 = vpop.f32.mrf.mxu0
    %v3244 = vadd.f32 0.0, %v3243
    %3245 = vmatmul.bf16.gmra.mxu0 %v3040
    %v3246 = vpop.f32.mrf.mxu0
    %v3247 = vadd.f32 0.0, %v3246
    %v3248 = vpop.f32.mrf.mxu0
    %v3249 = vadd.f32 0.0, %v3248
    %3250 = vmatmul.bf16.gmra.mxu0 %v3042
    %v3251 = vpop.f32.mrf.mxu0
    %v3252 = vadd.f32 0.0, %v3251
    %v3253 = vpop.f32.mrf.mxu0
    %v3254 = vadd.f32 0.0, %v3253
    %3255 = vdwg.mxu0
    %3256 = vmatpush.bf16.msra.mxu0 0
    %3257 = vmatpush.bf16.msra.mxu0 0
    %3258 = vmatpush.bf16.msra.mxu0 0
    %3259 = vmatpush.bf16.msra.mxu0 0
    %3260 = vmatpush.bf16.msra.mxu0 0
    %3261 = vmatpush.bf16.msra.mxu0 0
    %3262 = vmatpush.bf16.msra.mxu0 0
    %3263 = vmatpush.bf16.msra.mxu0 %v3086
    %3264 = vmatmul.bf16.gmra.mxu0 %v3055
    %v3265 = vpop.f32.mrf.mxu0
    %v3266 = vadd.f32 %v3212, %v3265
    %v3267 = vpop.f32.mrf.mxu0
    %v3268 = vadd.f32 %v3214, %v3267
    %3269 = vmatmul.bf16.gmra.mxu0 %v3058
    %v3270 = vpop.f32.mrf.mxu0
    %v3271 = vadd.f32 %v3217, %v3270
    %v3272 = vpop.f32.mrf.mxu0
    %v3273 = vadd.f32 %v3219, %v3272
    %3274 = vmatmul.bf16.gmra.mxu0 %v3061
    %v3275 = vpop.f32.mrf.mxu0
    %v3276 = vadd.f32 %v3222, %v3275
    %v3277 = vpop.f32.mrf.mxu0
    %v3278 = vadd.f32 %v3224, %v3277
    %3279 = vmatmul.bf16.gmra.mxu0 %v3064
    %v3280 = vpop.f32.mrf.mxu0
    %v3281 = vadd.f32 %v3227, %v3280
    %v3282 = vpop.f32.mrf.mxu0
    %v3283 = vadd.f32 %v3229, %v3282
    %3284 = vmatmul.bf16.gmra.mxu0 %v3067
    %v3285 = vpop.f32.mrf.mxu0
    %v3286 = vadd.f32 %v3232, %v3285
    %v3287 = vpop.f32.mrf.mxu0
    %v3288 = vadd.f32 %v3234, %v3287
    %3289 = vmatmul.bf16.gmra.mxu0 %v3070
    %v3290 = vpop.f32.mrf.mxu0
    %v3291 = vadd.f32 %v3237, %v3290
    %v3292 = vpop.f32.mrf.mxu0
    %v3293 = vadd.f32 %v3239, %v3292
    %3294 = vmatmul.bf16.gmra.mxu0 %v3073
    %v3295 = vpop.f32.mrf.mxu0
    %v3296 = vadd.f32 %v3242, %v3295
    %v3297 = vpop.f32.mrf.mxu0
    %v3298 = vadd.f32 %v3244, %v3297
    %3299 = vmatmul.bf16.gmra.mxu0 %v3076
    %v3300 = vpop.f32.mrf.mxu0
    %v3301 = vadd.f32 %v3247, %v3300
    %v3302 = vpop.f32.mrf.mxu0
    %v3303 = vadd.f32 %v3249, %v3302
    %3304 = vmatmul.bf16.gmra.mxu0 %v3079
    %v3305 = vpop.f32.mrf.mxu0
    %v3306 = vadd.f32 %v3252, %v3305
    %v3307 = vpop.f32.mrf.mxu0
    %v3308 = vadd.f32 %v3254, %v3307
    %3309 = vdwg.mxu0
    %3310 = vmatpush.bf16.msra.mxu0 %v2948
    %3311 = vmatpush.bf16.msra.mxu0 %v2944
    %3312 = vmatpush.bf16.msra.mxu0 %v2940
    %3313 = vmatpush.bf16.msra.mxu0 %v2936
    %3314 = vmatpush.bf16.msra.mxu0 %v2932
    %3315 = vmatpush.bf16.msra.mxu0 %v2928
    %3316 = vmatpush.bf16.msra.mxu0 %v2924
    %3317 = vmatpush.bf16.msra.mxu0 %v2920
    %3318 = vmatmul.bf16.gmra.mxu0 %v3026
    %v3319 = vpop.f32.mrf.mxu0
    %v3320 = vadd.f32 0.0, %v3319
    %v3321 = vpop.f32.mrf.mxu0
    %v3322 = vadd.f32 0.0, %v3321
    %3323 = vmatmul.bf16.gmra.mxu0 %v3028
    %v3324 = vpop.f32.mrf.mxu0
    %v3325 = vadd.f32 0.0, %v3324
    %v3326 = vpop.f32.mrf.mxu0
    %v3327 = vadd.f32 0.0, %v3326
    %3328 = vmatmul.bf16.gmra.mxu0 %v3030
    %v3329 = vpop.f32.mrf.mxu0
    %v3330 = vadd.f32 0.0, %v3329
    %v3331 = vpop.f32.mrf.mxu0
    %v3332 = vadd.f32 0.0, %v3331
    %3333 = vmatmul.bf16.gmra.mxu0 %v3032
    %v3334 = vpop.f32.mrf.mxu0
    %v3335 = vadd.f32 0.0, %v3334
    %v3336 = vpop.f32.mrf.mxu0
    %v3337 = vadd.f32 0.0, %v3336
    %3338 = vmatmul.bf16.gmra.mxu0 %v3034
    %v3339 = vpop.f32.mrf.mxu0
    %v3340 = vadd.f32 0.0, %v3339
    %v3341 = vpop.f32.mrf.mxu0
    %v3342 = vadd.f32 0.0, %v3341
    %3343 = vmatmul.bf16.gmra.mxu0 %v3036
    %v3344 = vpop.f32.mrf.mxu0
    %v3345 = vadd.f32 0.0, %v3344
    %v3346 = vpop.f32.mrf.mxu0
    %v3347 = vadd.f32 0.0, %v3346
    %3348 = vmatmul.bf16.gmra.mxu0 %v3038
    %v3349 = vpop.f32.mrf.mxu0
    %v3350 = vadd.f32 0.0, %v3349
    %v3351 = vpop.f32.mrf.mxu0
    %v3352 = vadd.f32 0.0, %v3351
    %3353 = vmatmul.bf16.gmra.mxu0 %v3040
    %v3354 = vpop.f32.mrf.mxu0
    %v3355 = vadd.f32 0.0, %v3354
    %v3356 = vpop.f32.mrf.mxu0
    %v3357 = vadd.f32 0.0, %v3356
    %3358 = vmatmul.bf16.gmra.mxu0 %v3042
    %v3359 = vpop.f32.mrf.mxu0
    %v3360 = vadd.f32 0.0, %v3359
    %v3361 = vpop.f32.mrf.mxu0
    %v3362 = vadd.f32 0.0, %v3361
    %3363 = vdwg.mxu0
    %3364 = vmatpush.bf16.msra.mxu0 0
    %3365 = vmatpush.bf16.msra.mxu0 0
    %3366 = vmatpush.bf16.msra.mxu0 0
    %3367 = vmatpush.bf16.msra.mxu0 0
    %3368 = vmatpush.bf16.msra.mxu0 0
    %3369 = vmatpush.bf16.msra.mxu0 0
    %3370 = vmatpush.bf16.msra.mxu0 0
    %3371 = vmatpush.bf16.msra.mxu0 %v3089
    %3372 = vmatmul.bf16.gmra.mxu0 %v3055
    %v3373 = vpop.f32.mrf.mxu0
    %v3374 = vadd.f32 %v3320, %v3373
    %v3375 = vpop.f32.mrf.mxu0
    %v3376 = vadd.f32 %v3322, %v3375
    %3377 = vmatmul.bf16.gmra.mxu0 %v3058
    %v3378 = vpop.f32.mrf.mxu0
    %v3379 = vadd.f32 %v3325, %v3378
    %v3380 = vpop.f32.mrf.mxu0
    %v3381 = vadd.f32 %v3327, %v3380
    %3382 = vmatmul.bf16.gmra.mxu0 %v3061
    %v3383 = vpop.f32.mrf.mxu0
    %v3384 = vadd.f32 %v3330, %v3383
    %v3385 = vpop.f32.mrf.mxu0
    %v3386 = vadd.f32 %v3332, %v3385
    %3387 = vmatmul.bf16.gmra.mxu0 %v3064
    %v3388 = vpop.f32.mrf.mxu0
    %v3389 = vadd.f32 %v3335, %v3388
    %v3390 = vpop.f32.mrf.mxu0
    %v3391 = vadd.f32 %v3337, %v3390
    %3392 = vmatmul.bf16.gmra.mxu0 %v3067
    %v3393 = vpop.f32.mrf.mxu0
    %v3394 = vadd.f32 %v3340, %v3393
    %v3395 = vpop.f32.mrf.mxu0
    %v3396 = vadd.f32 %v3342, %v3395
    %3397 = vmatmul.bf16.gmra.mxu0 %v3070
    %v3398 = vpop.f32.mrf.mxu0
    %v3399 = vadd.f32 %v3345, %v3398
    %v3400 = vpop.f32.mrf.mxu0
    %v3401 = vadd.f32 %v3347, %v3400
    %3402 = vmatmul.bf16.gmra.mxu0 %v3073
    %v3403 = vpop.f32.mrf.mxu0
    %v3404 = vadd.f32 %v3350, %v3403
    %v3405 = vpop.f32.mrf.mxu0
    %v3406 = vadd.f32 %v3352, %v3405
    %3407 = vmatmul.bf16.gmra.mxu0 %v3076
    %v3408 = vpop.f32.mrf.mxu0
    %v3409 = vadd.f32 %v3355, %v3408
    %v3410 = vpop.f32.mrf.mxu0
    %v3411 = vadd.f32 %v3357, %v3410
    %3412 = vmatmul.bf16.gmra.mxu0 %v3079
    %v3413 = vpop.f32.mrf.mxu0
    %v3414 = vadd.f32 %v3360, %v3413
    %v3415 = vpop.f32.mrf.mxu0
    %v3416 = vadd.f32 %v3362, %v3415
    %3417 = vdwg.mxu0
    %3418 = vmatpush.bf16.msra.mxu0 %v2949
    %3419 = vmatpush.bf16.msra.mxu0 %v2945
    %3420 = vmatpush.bf16.msra.mxu0 %v2941
    %3421 = vmatpush.bf16.msra.mxu0 %v2937
    %3422 = vmatpush.bf16.msra.mxu0 %v2933
    %3423 = vmatpush.bf16.msra.mxu0 %v2929
    %3424 = vmatpush.bf16.msra.mxu0 %v2925
    %3425 = vmatpush.bf16.msra.mxu0 %v2921
    %3426 = vmatmul.bf16.gmra.mxu0 %v3026
    %v3427 = vpop.f32.mrf.mxu0
    %v3428 = vadd.f32 0.0, %v3427
    %v3429 = vpop.f32.mrf.mxu0
    %v3430 = vadd.f32 0.0, %v3429
    %3431 = vmatmul.bf16.gmra.mxu0 %v3028
    %v3432 = vpop.f32.mrf.mxu0
    %v3433 = vadd.f32 0.0, %v3432
    %v3434 = vpop.f32.mrf.mxu0
    %v3435 = vadd.f32 0.0, %v3434
    %3436 = vmatmul.bf16.gmra.mxu0 %v3030
    %v3437 = vpop.f32.mrf.mxu0
    %v3438 = vadd.f32 0.0, %v3437
    %v3439 = vpop.f32.mrf.mxu0
    %v3440 = vadd.f32 0.0, %v3439
    %3441 = vmatmul.bf16.gmra.mxu0 %v3032
    %v3442 = vpop.f32.mrf.mxu0
    %v3443 = vadd.f32 0.0, %v3442
    %v3444 = vpop.f32.mrf.mxu0
    %v3445 = vadd.f32 0.0, %v3444
    %3446 = vmatmul.bf16.gmra.mxu0 %v3034
    %v3447 = vpop.f32.mrf.mxu0
    %v3448 = vadd.f32 0.0, %v3447
    %v3449 = vpop.f32.mrf.mxu0
    %v3450 = vadd.f32 0.0, %v3449
    %3451 = vmatmul.bf16.gmra.mxu0 %v3036
    %v3452 = vpop.f32.mrf.mxu0
    %v3453 = vadd.f32 0.0, %v3452
    %v3454 = vpop.f32.mrf.mxu0
    %v3455 = vadd.f32 0.0, %v3454
    %3456 = vmatmul.bf16.gmra.mxu0 %v3038
    %v3457 = vpop.f32.mrf.mxu0
    %v3458 = vadd.f32 0.0, %v3457
    %v3459 = vpop.f32.mrf.mxu0
    %v3460 = vadd.f32 0.0, %v3459
    %3461 = vmatmul.bf16.gmra.mxu0 %v3040
    %v3462 = vpop.f32.mrf.mxu0
    %v3463 = vadd.f32 0.0, %v3462
    %v3464 = vpop.f32.mrf.mxu0
    %v3465 = vadd.f32 0.0, %v3464
    %3466 = vmatmul.bf16.gmra.mxu0 %v3042
    %v3467 = vpop.f32.mrf.mxu0
    %v3468 = vadd.f32 0.0, %v3467
    %v3469 = vpop.f32.mrf.mxu0
    %v3470 = vadd.f32 0.0, %v3469
    %3471 = vdwg.mxu0
    %3472 = vmatpush.bf16.msra.mxu0 0
    %3473 = vmatpush.bf16.msra.mxu0 0
    %3474 = vmatpush.bf16.msra.mxu0 0
    %3475 = vmatpush.bf16.msra.mxu0 0
    %3476 = vmatpush.bf16.msra.mxu0 0
    %3477 = vmatpush.bf16.msra.mxu0 0
    %3478 = vmatpush.bf16.msra.mxu0 0
    %3479 = vmatpush.bf16.msra.mxu0 %v3092
    %3480 = vmatmul.bf16.gmra.mxu0 %v3055
    %v3481 = vpop.f32.mrf.mxu0
    %v3482 = vadd.f32 %v3428, %v3481
    %v3483 = vpop.f32.mrf.mxu0
    %v3484 = vadd.f32 %v3430, %v3483
    %3485 = vmatmul.bf16.gmra.mxu0 %v3058
    %v3486 = vpop.f32.mrf.mxu0
    %v3487 = vadd.f32 %v3433, %v3486
    %v3488 = vpop.f32.mrf.mxu0
    %v3489 = vadd.f32 %v3435, %v3488
    %3490 = vmatmul.bf16.gmra.mxu0 %v3061
    %v3491 = vpop.f32.mrf.mxu0
    %v3492 = vadd.f32 %v3438, %v3491
    %v3493 = vpop.f32.mrf.mxu0
    %v3494 = vadd.f32 %v3440, %v3493
    %3495 = vmatmul.bf16.gmra.mxu0 %v3064
    %v3496 = vpop.f32.mrf.mxu0
    %v3497 = vadd.f32 %v3443, %v3496
    %v3498 = vpop.f32.mrf.mxu0
    %v3499 = vadd.f32 %v3445, %v3498
    %3500 = vmatmul.bf16.gmra.mxu0 %v3067
    %v3501 = vpop.f32.mrf.mxu0
    %v3502 = vadd.f32 %v3448, %v3501
    %v3503 = vpop.f32.mrf.mxu0
    %v3504 = vadd.f32 %v3450, %v3503
    %3505 = vmatmul.bf16.gmra.mxu0 %v3070
    %v3506 = vpop.f32.mrf.mxu0
    %v3507 = vadd.f32 %v3453, %v3506
    %v3508 = vpop.f32.mrf.mxu0
    %v3509 = vadd.f32 %v3455, %v3508
    %3510 = vmatmul.bf16.gmra.mxu0 %v3073
    %v3511 = vpop.f32.mrf.mxu0
    %v3512 = vadd.f32 %v3458, %v3511
    %v3513 = vpop.f32.mrf.mxu0
    %v3514 = vadd.f32 %v3460, %v3513
    %3515 = vmatmul.bf16.gmra.mxu0 %v3076
    %v3516 = vpop.f32.mrf.mxu0
    %v3517 = vadd.f32 %v3463, %v3516
    %v3518 = vpop.f32.mrf.mxu0
    %v3519 = vadd.f32 %v3465, %v3518
    %3520 = vmatmul.bf16.gmra.mxu0 %v3079
    %v3521 = vpop.f32.mrf.mxu0
    %v3522 = vadd.f32 %v3468, %v3521
    %v3523 = vpop.f32.mrf.mxu0
    %v3524 = vadd.f32 %v3470, %v3523
    %3525 = vdwg.mxu0
    %v3526 = vmax.f32 %v3158, %v3180
    %v3527 = vmax.f32 %v3266, %v3288
    %v3528 = vmax.f32 %v3374, %v3396
    %v3529 = vmax.f32 %v3482, %v3504
    %v3530 = vmax.f32 %v3160, %v3183
    %v3531 = vmax.f32 %v3268, %v3291
    %v3532 = vmax.f32 %v3376, %v3399
    %v3533 = vmax.f32 %v3484, %v3507
    %v3534 = vmax.f32 %v3163, %v3185
    %v3535 = vmax.f32 %v3271, %v3293
    %v3536 = vmax.f32 %v3379, %v3401
    %v3537 = vmax.f32 %v3487, %v3509
    %v3538 = vmax.f32 %v3165, %v3188
    %v3539 = vmax.f32 %v3273, %v3296
    %v3540 = vmax.f32 %v3381, %v3404
    %v3541 = vmax.f32 %v3489, %v3512
    %v3542 = vmax.f32 %v3168, %v3190
    %v3543 = vmax.f32 %v3276, %v3298
    %v3544 = vmax.f32 %v3384, %v3406
    %v3545 = vmax.f32 %v3492, %v3514
    %v3546 = vmax.f32 %v3170, %v3193
    %v3547 = vmax.f32 %v3278, %v3301
    %v3548 = vmax.f32 %v3386, %v3409
    %v3549 = vmax.f32 %v3494, %v3517
    %v3550 = vmax.f32 %v3173, %v3195
    %v3551 = vmax.f32 %v3281, %v3303
    %v3552 = vmax.f32 %v3389, %v3411
    %v3553 = vmax.f32 %v3497, %v3519
    %v3554 = vmax.f32 %v3175, %v3198
    %v3555 = vmax.f32 %v3283, %v3306
    %v3556 = vmax.f32 %v3391, %v3414
    %v3557 = vmax.f32 %v3499, %v3522
    %v3558 = vmax.f32 %v3178, %v3200
    %v3559 = vmax.f32 %v3286, %v3308
    %v3560 = vmax.f32 %v3394, %v3416
    %v3561 = vmax.f32 %v3502, %v3524
    %v3562 = vpack.c.bf16 %v3527, %v3526
    %v3563 = vpack.c.bf16 %v3529, %v3528
    %v3564 = vpack.c.bf16 %v3531, %v3530
    %v3565 = vpack.c.bf16 %v3533, %v3532
    %v3566 = vpack.c.bf16 %v3535, %v3534
    %v3567 = vpack.c.bf16 %v3537, %v3536
    %v3568 = vpack.c.bf16 %v3539, %v3538
    %v3569 = vpack.c.bf16 %v3541, %v3540
    %v3570 = vpack.c.bf16 %v3543, %v3542
    %v3571 = vpack.c.bf16 %v3545, %v3544
    %v3572 = vpack.c.bf16 %v3547, %v3546
    %v3573 = vpack.c.bf16 %v3549, %v3548
    %v3574 = vpack.c.bf16 %v3551, %v3550
    %v3575 = vpack.c.bf16 %v3553, %v3552
    %v3576 = vpack.c.bf16 %v3555, %v3554
    %v3577 = vpack.c.bf16 %v3557, %v3556
    %v3578 = vpack.c.bf16 %v3559, %v3558
    %v3579 = vpack.c.bf16 %v3561, %v3560
    %3580 = vst [vmem:[%s4] sm:$0xff] %v3562
    %3581 = vst [vmem:[%s4 + $0x8] sm:$0xff] %v3563
    %3582 = vst [vmem:[%s4 + $0x10] sm:$0xff] %v3564
    %3583 = vst [vmem:[%s4 + $0x18] sm:$0xff] %v3565
    %3584 = vst [vmem:[%s4 + $0x20] sm:$0xff] %v3566
    %3585 = vst [vmem:[%s4 + $0x28] sm:$0xff] %v3567
    %3586 = vst [vmem:[%s4 + $0x30] sm:$0xff] %v3568
    %3587 = vst [vmem:[%s4 + $0x38] sm:$0xff] %v3569
    %3588 = vst [vmem:[%s4 + $0x40] sm:$0xff] %v3570
    %3589 = vst [vmem:[%s4 + $0x48] sm:$0xff] %v3571
    %3590 = vst [vmem:[%s4 + $0x50] sm:$0xff] %v3572
    %3591 = vst [vmem:[%s4 + $0x58] sm:$0xff] %v3573
    %3592 = vst [vmem:[%s4 + $0x60] sm:$0xff] %v3574
    %3593 = vst [vmem:[%s4 + $0x68] sm:$0xff] %v3575
    %3594 = vst [vmem:[%s4 + $0x70] sm:$0xff] %v3576
    %3595 = vst [vmem:[%s4 + $0x78] sm:$0xff] %v3577
    %3596 = vst [vmem:[%s4 + $0x80] sm:$0xff] %v3578
    %3597 = vst [vmem:[%s4 + $0x88] sm:$0xff] %v3579
    // Predicated region
    $region30: #{forward.3} parent=1 // pred_check
      _
    $region31: #{forward.3} parent=1 // pred_check_branch
      %3599 = sbr.rel (0) target = $region33
    $region32: #{forward.3} parent=1 // pred_region
      _
    $region33: #{forward.3} parent=1 // pred_fallthru
      _
    // Predicated region
    $region34: #{forward.3} parent=1 // pred_check
      _
    $region35: #{forward.3} parent=1 // pred_check_branch
      %3601 = sbr.rel (0) target = $region37
    $region36: #{forward.3} parent=1 // pred_region
      _
    $region37: #{forward.3} parent=1 // pred_fallthru
      _
    %3602 = vsyncpa [#allocation3], 1
    %3603 = vsyncpa [#allocation5], 1

// kernel: forward.4
$region0: #{forward.4}
  #allocation0 [shape = 'u32[]', space=smem, size = 0x4, offset = 0x4, fixed_abs, tag = 'smem constant byte address 0x4 - core index']
  #allocation1 [shape = 'u32[72,128]{1,0:T(1,128)}', space=vmem, size = 0x9000, scoped, tag = 'internal scratch']
  %s0 = inlined_call_operand.vmem [shape: bf16[72,512], index: 0, kind: input, shape index: {}]
  %s1 = inlined_call_operand.hbm [shape: bf16[3,512,512], index: 1, kind: input, shape index: {}]
  %s2 = inlined_call_operand.hbm [shape: f32[1,512], index: 2, kind: input, shape index: {}]
  %s3 = inlined_call_operand.hbm [shape: bf16[64,70], index: 3, kind: input, shape index: {}]
  %s4 = inlined_call_operand.vmem [shape: bf16[32,256], index: 4, kind: output, shape index: {}]
  %s5 = sld [smem:[#allocation0]]
  $region38: #{forward.4} parent=0
    _
  %s7 = ssub.s32 1, %s5
  %s8 = scalar_select 0, %s7, %s5
  $region1: #{forward.4} parent=0
    #allocation2 [shape = 'u8[1572864]{0}', space=vmem, size = 0x180000, scoped, tag = 'input window, operand 1, single buffered']
    #allocation3 [shape = 's32[1]{0}', space=sflag, size = 0x4, scoped, tag = 'scoped memory for forward.4']
    #allocation4 [shape = 'u8[2048]{0}', space=vmem, size = 0x800, scoped, tag = 'input window, operand 2, single buffered']
    #allocation5 [shape = 's32[1]{0}', space=sflag, size = 0x4, scoped, tag = 'scoped memory for forward.4']
    #allocation6 [shape = 'u8[16384]{0}', space=vmem, size = 0x4000, scoped, tag = 'input window, operand 3, single buffered']
    %9 = vsyncpa [#allocation3], 0
    %10 = vsyncpa [#allocation5], 0
    // Predicated region
    $region2: #{forward.4} parent=1 // pred_check
      _
    $region3: #{forward.4} parent=1 // pred_check_branch
      %12 = sbr.rel (0) target = $region5
    $region4: #{forward.4} parent=1 // pred_region
      _
    $region5: #{forward.4} parent=1 // pred_fallthru
      _
    // Predicated region
    $region6: #{forward.4} parent=1 // pred_check
      _
    $region7: #{forward.4} parent=1 // pred_check_branch
      %14 = sbr.rel (0) target = $region9
    $region8: #{forward.4} parent=1 // pred_region
      %16 = vsyncadd [#allocation3], 0
      %s17 = sshll.u32 %s1, 4
      %s18 = int_to_ptr.hbm [resolvable:$true] %s17
      %s19 = sshll.u32 [#allocation2], 4
      %s20 = int_to_ptr.vmem [resolvable:$true] %s19
      %25 = dma.hbm_to_vmem [thread:$0]  %s18, 49152, %s20, [#allocation3], 256, 256, 16
    $region9: #{forward.4} parent=1 // pred_fallthru
      _
    // Predicated region
    $region10: #{forward.4} parent=1 // pred_check
      _
    $region11: #{forward.4} parent=1 // pred_check_branch
      %27 = sbr.rel (0) target = $region13
    $region12: #{forward.4} parent=1 // pred_region
      %29 = vsyncadd [#allocation5], 0
      %s31 = sshll.u32 %s2, 4
      %s32 = int_to_ptr.hbm [resolvable:$true] %s31
      %s33 = sshll.u32 [#allocation4], 4
      %s34 = int_to_ptr.vmem [resolvable:$true] %s33
      %36 = dma.hbm_to_vmem [thread:$0]  %s32, 64, %s34, [#allocation5]
    $region13: #{forward.4} parent=1 // pred_fallthru
      _
    // Predicated region
    $region14: #{forward.4} parent=1 // pred_check
      _
    $region15: #{forward.4} parent=1 // pred_check_branch
      %38 = sbr.rel (0) target = $region17
    $region16: #{forward.4} parent=1 // pred_region
      %40 = vsyncadd [#allocation5], 0
      %s41 = sshll.u32 %s3, 4
      %s42 = int_to_ptr.hbm [resolvable:$true] %s41
      %s43 = sshll.u32 [#allocation6], 4
      %s44 = int_to_ptr.vmem [resolvable:$true] %s43
      %49 = dma.hbm_to_vmem [thread:$0]  %s42, 512, %s44, [#allocation5], 64, 64, 4
    $region17: #{forward.4} parent=1 // pred_fallthru
      _
    // Predicated region
    $region18: #{forward.4} parent=1 // pred_check
      _
    $region19: #{forward.4} parent=1 // pred_check_branch
      %51 = sbr.rel (0) target = $region21
    $region20: #{forward.4} parent=1 // pred_region
      %53 = dma.done [#allocation3], 49152
    $region21: #{forward.4} parent=1 // pred_fallthru
      _
    // Predicated region
    $region22: #{forward.4} parent=1 // pred_check
      _
    $region23: #{forward.4} parent=1 // pred_check_branch
      %55 = sbr.rel (0) target = $region25
    $region24: #{forward.4} parent=1 // pred_region
      %57 = dma.done [#allocation5], 64
    $region25: #{forward.4} parent=1 // pred_fallthru
      _
    // Predicated region
    $region26: #{forward.4} parent=1 // pred_check
      _
    $region27: #{forward.4} parent=1 // pred_check_branch
      %59 = sbr.rel (0) target = $region29
    $region28: #{forward.4} parent=1 // pred_region
      %61 = dma.done [#allocation5], 512
    $region29: #{forward.4} parent=1 // pred_fallthru
      _
    %v63 = vld [vmem:[%s0] sm:$0xff]
    %v64 = vld [vmem:[%s0 + $0x8] sm:$0xff]
    %v65 = vld [vmem:[%s0 + $0x10] sm:$0xff]
    %v66 = vld [vmem:[%s0 + $0x18] sm:$0xff]
    %v67 = vld [vmem:[%s0 + $0x20] sm:$0xff]
    %v68 = vld [vmem:[%s0 + $0x28] sm:$0xff]
    %v69 = vld [vmem:[%s0 + $0x30] sm:$0xff]
    %v70 = vld [vmem:[%s0 + $0x38] sm:$0xff]
    %v71 = vld [vmem:[%s0 + $0x40] sm:$0xff]
    %v72 = vld [vmem:[%s0 + $0x48] sm:$0xff]
    %v73 = vld [vmem:[%s0 + $0x50] sm:$0xff]
    %v74 = vld [vmem:[%s0 + $0x58] sm:$0xff]
    %v75 = vld [vmem:[%s0 + $0x60] sm:$0xff]
    %v76 = vld [vmem:[%s0 + $0x68] sm:$0xff]
    %v77 = vld [vmem:[%s0 + $0x70] sm:$0xff]
    %v78 = vld [vmem:[%s0 + $0x78] sm:$0xff]
    %v79 = vld [vmem:[%s0 + $0x80] sm:$0xff]
    %v80 = vld [vmem:[%s0 + $0x88] sm:$0xff]
    %v81 = vld [vmem:[#allocation2] sm:$0xff]
    %v82 = vld [vmem:[#allocation2 + $0x8] sm:$0xff]
    %v83 = vld [vmem:[#allocation2 + $0x10] sm:$0xff]
    %v84 = vld [vmem:[#allocation2 + $0x18] sm:$0xff]
    %v85 = vld [vmem:[#allocation2 + $0x20] sm:$0xff]
    %v86 = vld [vmem:[#allocation2 + $0x28] sm:$0xff]
    %v87 = vld [vmem:[#allocation2 + $0x30] sm:$0xff]
    %v88 = vld [vmem:[#allocation2 + $0x38] sm:$0xff]
    %v89 = vld [vmem:[#allocation2 + $0x40] sm:$0xff]
    %v90 = vld [vmem:[#allocation2 + $0x48] sm:$0xff]
    %v91 = vld [vmem:[#allocation2 + $0x50] sm:$0xff]
    %v92 = vld [vmem:[#allocation2 + $0x58] sm:$0xff]
    %v93 = vld [vmem:[#allocation2 + $0x60] sm:$0xff]
    %v94 = vld [vmem:[#allocation2 + $0x68] sm:$0xff]
    %v95 = vld [vmem:[#allocation2 + $0x70] sm:$0xff]
    %v96 = vld [vmem:[#allocation2 + $0x78] sm:$0xff]
    %v97 = vld [vmem:[#allocation2 + $0x80] sm:$0xff]
    %v98 = vld [vmem:[#allocation2 + $0x88] sm:$0xff]
    %v99 = vld [vmem:[#allocation2 + $0x90] sm:$0xff]
    %v100 = vld [vmem:[#allocation2 + $0x98] sm:$0xff]
    %v101 = vld [vmem:[#allocation2 + $0xa0] sm:$0xff]
    %v102 = vld [vmem:[#allocation2 + $0xa8] sm:$0xff]
    %v103 = vld [vmem:[#allocation2 + $0xb0] sm:$0xff]
    %v104 = vld [vmem:[#allocation2 + $0xb8] sm:$0xff]
    %v105 = vld [vmem:[#allocation2 + $0xc0] sm:$0xff]
    %v106 = vld [vmem:[#allocation2 + $0xc8] sm:$0xff]
    %v107 = vld [vmem:[#allocation2 + $0xd0] sm:$0xff]
    %v108 = vld [vmem:[#allocation2 + $0xd8] sm:$0xff]
    %v109 = vld [vmem:[#allocation2 + $0xe0] sm:$0xff]
    %v110 = vld [vmem:[#allocation2 + $0xe8] sm:$0xff]
    %v111 = vld [vmem:[#allocation2 + $0xf0] sm:$0xff]
    %v112 = vld [vmem:[#allocation2 + $0xf8] sm:$0xff]
    %v113 = vld [vmem:[#allocation2 + $0x100] sm:$0xff]
    %v114 = vld [vmem:[#allocation2 + $0x108] sm:$0xff]
    %v115 = vld [vmem:[#allocation2 + $0x110] sm:$0xff]
    %v116 = vld [vmem:[#allocation2 + $0x118] sm:$0xff]
    %v117 = vld [vmem:[#allocation2 + $0x120] sm:$0xff]
    %v118 = vld [vmem:[#allocation2 + $0x128] sm:$0xff]
    %v119 = vld [vmem:[#allocation2 + $0x130] sm:$0xff]
    %v120 = vld [vmem:[#allocation2 + $0x138] sm:$0xff]
    %v121 = vld [vmem:[#allocation2 + $0x140] sm:$0xff]
    %v122 = vld [vmem:[#allocation2 + $0x148] sm:$0xff]
    %v123 = vld [vmem:[#allocation2 + $0x150] sm:$0xff]
    %v124 = vld [vmem:[#allocation2 + $0x158] sm:$0xff]
    %v125 = vld [vmem:[#allocation2 + $0x160] sm:$0xff]
    %v126 = vld [vmem:[#allocation2 + $0x168] sm:$0xff]
    %v127 = vld [vmem:[#allocation2 + $0x170] sm:$0xff]
    %v128 = vld [vmem:[#allocation2 + $0x178] sm:$0xff]
    %v129 = vld [vmem:[#allocation2 + $0x180] sm:$0xff]
    %v130 = vld [vmem:[#allocation2 + $0x188] sm:$0xff]
    %v131 = vld [vmem:[#allocation2 + $0x190] sm:$0xff]
    %v132 = vld [vmem:[#allocation2 + $0x198] sm:$0xff]
    %v133 = vld [vmem:[#allocation2 + $0x1a0] sm:$0xff]
    %v134 = vld [vmem:[#allocation2 + $0x1a8] sm:$0xff]
    %v135 = vld [vmem:[#allocation2 + $0x1b0] sm:$0xff]
    %v136 = vld [vmem:[#allocation2 + $0x1b8] sm:$0xff]
    %v137 = vld [vmem:[#allocation2 + $0x1c0] sm:$0xff]
    %v138 = vld [vmem:[#allocation2 + $0x1c8] sm:$0xff]
    %v139 = vld [vmem:[#allocation2 + $0x1d0] sm:$0xff]
    %v140 = vld [vmem:[#allocation2 + $0x1d8] sm:$0xff]
    %v141 = vld [vmem:[#allocation2 + $0x1e0] sm:$0xff]
    %v142 = vld [vmem:[#allocation2 + $0x1e8] sm:$0xff]
    %v143 = vld [vmem:[#allocation2 + $0x1f0] sm:$0xff]
    %v144 = vld [vmem:[#allocation2 + $0x1f8] sm:$0xff]
    %v145 = vld [vmem:[#allocation2 + $0x200] sm:$0xff]
    %v146 = vld [vmem:[#allocation2 + $0x208] sm:$0xff]
    %v147 = vld [vmem:[#allocation2 + $0x210] sm:$0xff]
    %v148 = vld [vmem:[#allocation2 + $0x218] sm:$0xff]
    %v149 = vld [vmem:[#allocation2 + $0x220] sm:$0xff]
    %v150 = vld [vmem:[#allocation2 + $0x228] sm:$0xff]
    %v151 = vld [vmem:[#allocation2 + $0x230] sm:$0xff]
    %v152 = vld [vmem:[#allocation2 + $0x238] sm:$0xff]
    %v153 = vld [vmem:[#allocation2 + $0x240] sm:$0xff]
    %v154 = vld [vmem:[#allocation2 + $0x248] sm:$0xff]
    %v155 = vld [vmem:[#allocation2 + $0x250] sm:$0xff]
    %v156 = vld [vmem:[#allocation2 + $0x258] sm:$0xff]
    %v157 = vld [vmem:[#allocation2 + $0x260] sm:$0xff]
    %v158 = vld [vmem:[#allocation2 + $0x268] sm:$0xff]
    %v159 = vld [vmem:[#allocation2 + $0x270] sm:$0xff]
    %v160 = vld [vmem:[#allocation2 + $0x278] sm:$0xff]
    %v161 = vld [vmem:[#allocation2 + $0x280] sm:$0xff]
    %v162 = vld [vmem:[#allocation2 + $0x288] sm:$0xff]
    %v163 = vld [vmem:[#allocation2 + $0x290] sm:$0xff]
    %v164 = vld [vmem:[#allocation2 + $0x298] sm:$0xff]
    %v165 = vld [vmem:[#allocation2 + $0x2a0] sm:$0xff]
    %v166 = vld [vmem:[#allocation2 + $0x2a8] sm:$0xff]
    %v167 = vld [vmem:[#allocation2 + $0x2b0] sm:$0xff]
    %v168 = vld [vmem:[#allocation2 + $0x2b8] sm:$0xff]
    %v169 = vld [vmem:[#allocation2 + $0x2c0] sm:$0xff]
    %v170 = vld [vmem:[#allocation2 + $0x2c8] sm:$0xff]
    %v171 = vld [vmem:[#allocation2 + $0x2d0] sm:$0xff]
    %v172 = vld [vmem:[#allocation2 + $0x2d8] sm:$0xff]
    %v173 = vld [vmem:[#allocation2 + $0x2e0] sm:$0xff]
    %v174 = vld [vmem:[#allocation2 + $0x2e8] sm:$0xff]
    %v175 = vld [vmem:[#allocation2 + $0x2f0] sm:$0xff]
    %v176 = vld [vmem:[#allocation2 + $0x2f8] sm:$0xff]
    %v177 = vld [vmem:[#allocation2 + $0x300] sm:$0xff]
    %v178 = vld [vmem:[#allocation2 + $0x308] sm:$0xff]
    %v179 = vld [vmem:[#allocation2 + $0x310] sm:$0xff]
    %v180 = vld [vmem:[#allocation2 + $0x318] sm:$0xff]
    %v181 = vld [vmem:[#allocation2 + $0x320] sm:$0xff]
    %v182 = vld [vmem:[#allocation2 + $0x328] sm:$0xff]
    %v183 = vld [vmem:[#allocation2 + $0x330] sm:$0xff]
    %v184 = vld [vmem:[#allocation2 + $0x338] sm:$0xff]
    %v185 = vld [vmem:[#allocation2 + $0x340] sm:$0xff]
    %v186 = vld [vmem:[#allocation2 + $0x348] sm:$0xff]
    %v187 = vld [vmem:[#allocation2 + $0x350] sm:$0xff]
    %v188 = vld [vmem:[#allocation2 + $0x358] sm:$0xff]
    %v189 = vld [vmem:[#allocation2 + $0x360] sm:$0xff]
    %v190 = vld [vmem:[#allocation2 + $0x368] sm:$0xff]
    %v191 = vld [vmem:[#allocation2 + $0x370] sm:$0xff]
    %v192 = vld [vmem:[#allocation2 + $0x378] sm:$0xff]
    %v193 = vld [vmem:[#allocation2 + $0x380] sm:$0xff]
    %v194 = vld [vmem:[#allocation2 + $0x388] sm:$0xff]
    %v195 = vld [vmem:[#allocation2 + $0x390] sm:$0xff]
    %v196 = vld [vmem:[#allocation2 + $0x398] sm:$0xff]
    %v197 = vld [vmem:[#allocation2 + $0x3a0] sm:$0xff]
    %v198 = vld [vmem:[#allocation2 + $0x3a8] sm:$0xff]
    %v199 = vld [vmem:[#allocation2 + $0x3b0] sm:$0xff]
    %v200 = vld [vmem:[#allocation2 + $0x3b8] sm:$0xff]
    %v201 = vld [vmem:[#allocation2 + $0x3c0] sm:$0xff]
    %v202 = vld [vmem:[#allocation2 + $0x3c8] sm:$0xff]
    %v203 = vld [vmem:[#allocation2 + $0x3d0] sm:$0xff]
    %v204 = vld [vmem:[#allocation2 + $0x3d8] sm:$0xff]
    %v205 = vld [vmem:[#allocation2 + $0x3e0] sm:$0xff]
    %v206 = vld [vmem:[#allocation2 + $0x3e8] sm:$0xff]
    %v207 = vld [vmem:[#allocation2 + $0x3f0] sm:$0xff]
    %v208 = vld [vmem:[#allocation2 + $0x3f8] sm:$0xff]
    %s209 = scalar_lea.vmem [#allocation2], 1024
    %v210 = vld [vmem:[%s209] sm:$0xff]
    %v211 = vld [vmem:[%s209 + $0x8] sm:$0xff]
    %v212 = vld [vmem:[%s209 + $0x10] sm:$0xff]
    %v213 = vld [vmem:[%s209 + $0x18] sm:$0xff]
    %v214 = vld [vmem:[%s209 + $0x20] sm:$0xff]
    %v215 = vld [vmem:[%s209 + $0x28] sm:$0xff]
    %v216 = vld [vmem:[%s209 + $0x30] sm:$0xff]
    %v217 = vld [vmem:[%s209 + $0x38] sm:$0xff]
    %v218 = vld [vmem:[%s209 + $0x40] sm:$0xff]
    %v219 = vld [vmem:[%s209 + $0x48] sm:$0xff]
    %v220 = vld [vmem:[%s209 + $0x50] sm:$0xff]
    %v221 = vld [vmem:[%s209 + $0x58] sm:$0xff]
    %v222 = vld [vmem:[%s209 + $0x60] sm:$0xff]
    %v223 = vld [vmem:[%s209 + $0x68] sm:$0xff]
    %v224 = vld [vmem:[%s209 + $0x70] sm:$0xff]
    %v225 = vld [vmem:[%s209 + $0x78] sm:$0xff]
    %v226 = vld [vmem:[%s209 + $0x80] sm:$0xff]
    %v227 = vld [vmem:[%s209 + $0x88] sm:$0xff]
    %v228 = vld [vmem:[%s209 + $0x90] sm:$0xff]
    %v229 = vld [vmem:[%s209 + $0x98] sm:$0xff]
    %v230 = vld [vmem:[%s209 + $0xa0] sm:$0xff]
    %v231 = vld [vmem:[%s209 + $0xa8] sm:$0xff]
    %v232 = vld [vmem:[%s209 + $0xb0] sm:$0xff]
    %v233 = vld [vmem:[%s209 + $0xb8] sm:$0xff]
    %v234 = vld [vmem:[%s209 + $0xc0] sm:$0xff]
    %v235 = vld [vmem:[%s209 + $0xc8] sm:$0xff]
    %v236 = vld [vmem:[%s209 + $0xd0] sm:$0xff]
    %v237 = vld [vmem:[%s209 + $0xd8] sm:$0xff]
    %v238 = vld [vmem:[%s209 + $0xe0] sm:$0xff]
    %v239 = vld [vmem:[%s209 + $0xe8] sm:$0xff]
    %v240 = vld [vmem:[%s209 + $0xf0] sm:$0xff]
    %v241 = vld [vmem:[%s209 + $0xf8] sm:$0xff]
    %v242 = vld [vmem:[%s209 + $0x100] sm:$0xff]
    %v243 = vld [vmem:[%s209 + $0x108] sm:$0xff]
    %v244 = vld [vmem:[%s209 + $0x110] sm:$0xff]
    %v245 = vld [vmem:[%s209 + $0x118] sm:$0xff]
    %v246 = vld [vmem:[%s209 + $0x120] sm:$0xff]
    %v247 = vld [vmem:[%s209 + $0x128] sm:$0xff]
    %v248 = vld [vmem:[%s209 + $0x130] sm:$0xff]
    %v249 = vld [vmem:[%s209 + $0x138] sm:$0xff]
    %v250 = vld [vmem:[%s209 + $0x140] sm:$0xff]
    %v251 = vld [vmem:[%s209 + $0x148] sm:$0xff]
    %v252 = vld [vmem:[%s209 + $0x150] sm:$0xff]
    %v253 = vld [vmem:[%s209 + $0x158] sm:$0xff]
    %v254 = vld [vmem:[%s209 + $0x160] sm:$0xff]
    %v255 = vld [vmem:[%s209 + $0x168] sm:$0xff]
    %v256 = vld [vmem:[%s209 + $0x170] sm:$0xff]
    %v257 = vld [vmem:[%s209 + $0x178] sm:$0xff]
    %v258 = vld [vmem:[%s209 + $0x180] sm:$0xff]
    %v259 = vld [vmem:[%s209 + $0x188] sm:$0xff]
    %v260 = vld [vmem:[%s209 + $0x190] sm:$0xff]
    %v261 = vld [vmem:[%s209 + $0x198] sm:$0xff]
    %v262 = vld [vmem:[%s209 + $0x1a0] sm:$0xff]
    %v263 = vld [vmem:[%s209 + $0x1a8] sm:$0xff]
    %v264 = vld [vmem:[%s209 + $0x1b0] sm:$0xff]
    %v265 = vld [vmem:[%s209 + $0x1b8] sm:$0xff]
    %v266 = vld [vmem:[%s209 + $0x1c0] sm:$0xff]
    %v267 = vld [vmem:[%s209 + $0x1c8] sm:$0xff]
    %v268 = vld [vmem:[%s209 + $0x1d0] sm:$0xff]
    %v269 = vld [vmem:[%s209 + $0x1d8] sm:$0xff]
    %v270 = vld [vmem:[%s209 + $0x1e0] sm:$0xff]
    %v271 = vld [vmem:[%s209 + $0x1e8] sm:$0xff]
    %v272 = vld [vmem:[%s209 + $0x1f0] sm:$0xff]
    %v273 = vld [vmem:[%s209 + $0x1f8] sm:$0xff]
    %v274 = vld [vmem:[%s209 + $0x200] sm:$0xff]
    %v275 = vld [vmem:[%s209 + $0x208] sm:$0xff]
    %v276 = vld [vmem:[%s209 + $0x210] sm:$0xff]
    %v277 = vld [vmem:[%s209 + $0x218] sm:$0xff]
    %v278 = vld [vmem:[%s209 + $0x220] sm:$0xff]
    %v279 = vld [vmem:[%s209 + $0x228] sm:$0xff]
    %v280 = vld [vmem:[%s209 + $0x230] sm:$0xff]
    %v281 = vld [vmem:[%s209 + $0x238] sm:$0xff]
    %v282 = vld [vmem:[%s209 + $0x240] sm:$0xff]
    %v283 = vld [vmem:[%s209 + $0x248] sm:$0xff]
    %v284 = vld [vmem:[%s209 + $0x250] sm:$0xff]
    %v285 = vld [vmem:[%s209 + $0x258] sm:$0xff]
    %v286 = vld [vmem:[%s209 + $0x260] sm:$0xff]
    %v287 = vld [vmem:[%s209 + $0x268] sm:$0xff]
    %v288 = vld [vmem:[%s209 + $0x270] sm:$0xff]
    %v289 = vld [vmem:[%s209 + $0x278] sm:$0xff]
    %v290 = vld [vmem:[%s209 + $0x280] sm:$0xff]
    %v291 = vld [vmem:[%s209 + $0x288] sm:$0xff]
    %v292 = vld [vmem:[%s209 + $0x290] sm:$0xff]
    %v293 = vld [vmem:[%s209 + $0x298] sm:$0xff]
    %v294 = vld [vmem:[%s209 + $0x2a0] sm:$0xff]
    %v295 = vld [vmem:[%s209 + $0x2a8] sm:$0xff]
    %v296 = vld [vmem:[%s209 + $0x2b0] sm:$0xff]
    %v297 = vld [vmem:[%s209 + $0x2b8] sm:$0xff]
    %v298 = vld [vmem:[%s209 + $0x2c0] sm:$0xff]
    %v299 = vld [vmem:[%s209 + $0x2c8] sm:$0xff]
    %v300 = vld [vmem:[%s209 + $0x2d0] sm:$0xff]
    %v301 = vld [vmem:[%s209 + $0x2d8] sm:$0xff]
    %v302 = vld [vmem:[%s209 + $0x2e0] sm:$0xff]
    %v303 = vld [vmem:[%s209 + $0x2e8] sm:$0xff]
    %v304 = vld [vmem:[%s209 + $0x2f0] sm:$0xff]
    %v305 = vld [vmem:[%s209 + $0x2f8] sm:$0xff]
    %v306 = vld [vmem:[%s209 + $0x300] sm:$0xff]
    %v307 = vld [vmem:[%s209 + $0x308] sm:$0xff]
    %v308 = vld [vmem:[%s209 + $0x310] sm:$0xff]
    %v309 = vld [vmem:[%s209 + $0x318] sm:$0xff]
    %v310 = vld [vmem:[%s209 + $0x320] sm:$0xff]
    %v311 = vld [vmem:[%s209 + $0x328] sm:$0xff]
    %v312 = vld [vmem:[%s209 + $0x330] sm:$0xff]
    %v313 = vld [vmem:[%s209 + $0x338] sm:$0xff]
    %v314 = vld [vmem:[%s209 + $0x340] sm:$0xff]
    %v315 = vld [vmem:[%s209 + $0x348] sm:$0xff]
    %v316 = vld [vmem:[%s209 + $0x350] sm:$0xff]
    %v317 = vld [vmem:[%s209 + $0x358] sm:$0xff]
    %v318 = vld [vmem:[%s209 + $0x360] sm:$0xff]
    %v319 = vld [vmem:[%s209 + $0x368] sm:$0xff]
    %v320 = vld [vmem:[%s209 + $0x370] sm:$0xff]
    %v321 = vld [vmem:[%s209 + $0x378] sm:$0xff]
    %v322 = vld [vmem:[%s209 + $0x380] sm:$0xff]
    %v323 = vld [vmem:[%s209 + $0x388] sm:$0xff]
    %v324 = vld [vmem:[%s209 + $0x390] sm:$0xff]
    %v325 = vld [vmem:[%s209 + $0x398] sm:$0xff]
    %v326 = vld [vmem:[%s209 + $0x3a0] sm:$0xff]
    %v327 = vld [vmem:[%s209 + $0x3a8] sm:$0xff]
    %v328 = vld [vmem:[%s209 + $0x3b0] sm:$0xff]
    %v329 = vld [vmem:[%s209 + $0x3b8] sm:$0xff]
    %v330 = vld [vmem:[%s209 + $0x3c0] sm:$0xff]
    %v331 = vld [vmem:[%s209 + $0x3c8] sm:$0xff]
    %v332 = vld [vmem:[%s209 + $0x3d0] sm:$0xff]
    %v333 = vld [vmem:[%s209 + $0x3d8] sm:$0xff]
    %v334 = vld [vmem:[%s209 + $0x3e0] sm:$0xff]
    %v335 = vld [vmem:[%s209 + $0x3e8] sm:$0xff]
    %v336 = vld [vmem:[%s209 + $0x3f0] sm:$0xff]
    %v337 = vld [vmem:[%s209 + $0x3f8] sm:$0xff]
    %v356 = vunpack.c.l.b16 %v63
    %v357 = vunpack.c.h.b16 %v63
    %v358 = vunpack.c.l.b16 %v64
    %v359 = vunpack.c.h.b16 %v64
    %v360 = vunpack.c.l.b16 %v65
    %v361 = vunpack.c.h.b16 %v65
    %v362 = vunpack.c.l.b16 %v66
    %v363 = vunpack.c.h.b16 %v66
    %v364 = vunpack.c.l.b16 %v67
    %v365 = vunpack.c.h.b16 %v67
    %v366 = vunpack.c.l.b16 %v68
    %v367 = vunpack.c.h.b16 %v68
    %v368 = vunpack.c.l.b16 %v69
    %v369 = vunpack.c.h.b16 %v69
    %v370 = vunpack.c.l.b16 %v70
    %v371 = vunpack.c.h.b16 %v70
    %v372 = vunpack.c.l.b16 %v71
    %v373 = vunpack.c.h.b16 %v71
    %v374 = vunpack.c.l.b16 %v72
    %v375 = vunpack.c.h.b16 %v72
    %v376 = vunpack.c.l.b16 %v73
    %v377 = vunpack.c.h.b16 %v73
    %v378 = vunpack.c.l.b16 %v74
    %v379 = vunpack.c.h.b16 %v74
    %v380 = vunpack.c.l.b16 %v75
    %v381 = vunpack.c.h.b16 %v75
    %v382 = vunpack.c.l.b16 %v76
    %v383 = vunpack.c.h.b16 %v76
    %v384 = vunpack.c.l.b16 %v77
    %v385 = vunpack.c.h.b16 %v77
    %v386 = vunpack.c.l.b16 %v78
    %v387 = vunpack.c.h.b16 %v78
    %v388 = vunpack.c.l.b16 %v79
    %v389 = vunpack.c.h.b16 %v79
    %v390 = vunpack.c.l.b16 %v80
    %v391 = vunpack.c.h.b16 %v80
    %v392 = vpack.c.b16 %v360, %v356
    %v393 = vpack.c.b16 %v361, %v357
    %v394 = vpack.c.b16 %v362, %v358
    %v395 = vpack.c.b16 %v363, %v359
    %v396 = vpack.c.b16 %v368, %v364
    %v397 = vpack.c.b16 %v369, %v365
    %v398 = vpack.c.b16 %v370, %v366
    %v399 = vpack.c.b16 %v371, %v367
    %v400 = vpack.c.b16 %v376, %v372
    %v401 = vpack.c.b16 %v377, %v373
    %v402 = vpack.c.b16 %v378, %v374
    %v403 = vpack.c.b16 %v379, %v375
    %v404 = vpack.c.b16 %v384, %v380
    %v405 = vpack.c.b16 %v385, %v381
    %v406 = vpack.c.b16 %v386, %v382
    %v407 = vpack.c.b16 %v387, %v383
    %v408 = vpack.c.b16 %v388, %v388
    %v409 = vpack.c.b16 %v389, %v389
    %v410 = vpack.c.b16 %v390, %v390
    %v411 = vpack.c.b16 %v391, %v391
    %vm412 = vsmask.f32 7424
    %v414 = vshrl.u32 %v392, 16
    %v416 = vshll.u32 %v392, 16
    %v418 = vrot.slane %v416, 1
    %v419 = vor.u32 %v414, %v418
    %v421 = vshll.u32 %v396, 16
    %v423 = vrot.slane %v421, 1
    %v424 = vsel %vm412, %v419, %v423
    %v426 = vshrl.u32 %v393, 16
    %v428 = vshll.u32 %v393, 16
    %v430 = vrot.slane %v428, 1
    %v431 = vor.u32 %v426, %v430
    %v433 = vshll.u32 %v397, 16
    %v435 = vrot.slane %v433, 1
    %v436 = vsel %vm412, %v431, %v435
    %v438 = vshrl.u32 %v394, 16
    %v440 = vshll.u32 %v394, 16
    %v442 = vrot.slane %v440, 1
    %v443 = vor.u32 %v438, %v442
    %v445 = vshll.u32 %v398, 16
    %v447 = vrot.slane %v445, 1
    %v448 = vsel %vm412, %v443, %v447
    %v450 = vshrl.u32 %v395, 16
    %v452 = vshll.u32 %v395, 16
    %v454 = vrot.slane %v452, 1
    %v455 = vor.u32 %v450, %v454
    %v457 = vshll.u32 %v399, 16
    %v459 = vrot.slane %v457, 1
    %v460 = vsel %vm412, %v455, %v459
    %v461 = vshrl.u32 %v396, 16
    %v463 = vor.u32 %v461, %v423
    %v465 = vshll.u32 %v400, 16
    %v467 = vrot.slane %v465, 1
    %v468 = vsel %vm412, %v463, %v467
    %v469 = vshrl.u32 %v397, 16
    %v471 = vor.u32 %v469, %v435
    %v473 = vshll.u32 %v401, 16
    %v475 = vrot.slane %v473, 1
    %v476 = vsel %vm412, %v471, %v475
    %v477 = vshrl.u32 %v398, 16
    %v479 = vor.u32 %v477, %v447
    %v481 = vshll.u32 %v402, 16
    %v483 = vrot.slane %v481, 1
    %v484 = vsel %vm412, %v479, %v483
    %v485 = vshrl.u32 %v399, 16
    %v487 = vor.u32 %v485, %v459
    %v489 = vshll.u32 %v403, 16
    %v491 = vrot.slane %v489, 1
    %v492 = vsel %vm412, %v487, %v491
    %v493 = vshrl.u32 %v400, 16
    %v495 = vor.u32 %v493, %v467
    %v497 = vshll.u32 %v404, 16
    %v499 = vrot.slane %v497, 1
    %v500 = vsel %vm412, %v495, %v499
    %v501 = vshrl.u32 %v401, 16
    %v503 = vor.u32 %v501, %v475
    %v505 = vshll.u32 %v405, 16
    %v507 = vrot.slane %v505, 1
    %v508 = vsel %vm412, %v503, %v507
    %v509 = vshrl.u32 %v402, 16
    %v511 = vor.u32 %v509, %v483
    %v513 = vshll.u32 %v406, 16
    %v515 = vrot.slane %v513, 1
    %v516 = vsel %vm412, %v511, %v515
    %v517 = vshrl.u32 %v403, 16
    %v519 = vor.u32 %v517, %v491
    %v521 = vshll.u32 %v407, 16
    %v523 = vrot.slane %v521, 1
    %v524 = vsel %vm412, %v519, %v523
    %v525 = vshrl.u32 %v404, 16
    %v527 = vor.u32 %v525, %v499
    %v529 = vshll.u32 %v408, 16
    %v531 = vrot.slane %v529, 1
    %v532 = vsel %vm412, %v527, %v531
    %v533 = vshrl.u32 %v405, 16
    %v535 = vor.u32 %v533, %v507
    %v537 = vshll.u32 %v409, 16
    %v539 = vrot.slane %v537, 1
    %v540 = vsel %vm412, %v535, %v539
    %v541 = vshrl.u32 %v406, 16
    %v543 = vor.u32 %v541, %v515
    %v545 = vshll.u32 %v410, 16
    %v547 = vrot.slane %v545, 1
    %v548 = vsel %vm412, %v543, %v547
    %v549 = vshrl.u32 %v407, 16
    %v551 = vor.u32 %v549, %v523
    %v553 = vshll.u32 %v411, 16
    %v555 = vrot.slane %v553, 1
    %v556 = vsel %vm412, %v551, %v555
    %v557 = vshrl.u32 %v408, 16
    %v559 = vor.u32 %v557, %v531
    %v560 = vshrl.u32 %v409, 16
    %v562 = vor.u32 %v560, %v539
    %v563 = vshrl.u32 %v410, 16
    %v565 = vor.u32 %v563, %v547
    %v566 = vshrl.u32 %v411, 16
    %v568 = vor.u32 %v566, %v555
    %v717 = vunpack.c.l.b16 %v210
    %v718 = vunpack.c.h.b16 %v210
    %v719 = vunpack.c.l.b16 %v211
    %v720 = vunpack.c.h.b16 %v211
    %v721 = vunpack.c.l.b16 %v212
    %v722 = vunpack.c.h.b16 %v212
    %v723 = vunpack.c.l.b16 %v213
    %v724 = vunpack.c.h.b16 %v213
    %v725 = vunpack.c.l.b16 %v214
    %v726 = vunpack.c.h.b16 %v214
    %v727 = vunpack.c.l.b16 %v215
    %v728 = vunpack.c.h.b16 %v215
    %v729 = vunpack.c.l.b16 %v216
    %v730 = vunpack.c.h.b16 %v216
    %v731 = vunpack.c.l.b16 %v217
    %v732 = vunpack.c.h.b16 %v217
    %v733 = vunpack.c.l.b16 %v218
    %v734 = vunpack.c.h.b16 %v218
    %v735 = vunpack.c.l.b16 %v219
    %v736 = vunpack.c.h.b16 %v219
    %v737 = vunpack.c.l.b16 %v220
    %v738 = vunpack.c.h.b16 %v220
    %v739 = vunpack.c.l.b16 %v221
    %v740 = vunpack.c.h.b16 %v221
    %v741 = vunpack.c.l.b16 %v222
    %v742 = vunpack.c.h.b16 %v222
    %v743 = vunpack.c.l.b16 %v223
    %v744 = vunpack.c.h.b16 %v223
    %v745 = vunpack.c.l.b16 %v224
    %v746 = vunpack.c.h.b16 %v224
    %v747 = vunpack.c.l.b16 %v225
    %v748 = vunpack.c.h.b16 %v225
    %v749 = vunpack.c.l.b16 %v226
    %v750 = vunpack.c.h.b16 %v226
    %v751 = vunpack.c.l.b16 %v227
    %v752 = vunpack.c.h.b16 %v227
    %v753 = vunpack.c.l.b16 %v228
    %v754 = vunpack.c.h.b16 %v228
    %v755 = vunpack.c.l.b16 %v229
    %v756 = vunpack.c.h.b16 %v229
    %v757 = vunpack.c.l.b16 %v230
    %v758 = vunpack.c.h.b16 %v230
    %v759 = vunpack.c.l.b16 %v231
    %v760 = vunpack.c.h.b16 %v231
    %v761 = vunpack.c.l.b16 %v232
    %v762 = vunpack.c.h.b16 %v232
    %v763 = vunpack.c.l.b16 %v233
    %v764 = vunpack.c.h.b16 %v233
    %v765 = vunpack.c.l.b16 %v234
    %v766 = vunpack.c.h.b16 %v234
    %v767 = vunpack.c.l.b16 %v235
    %v768 = vunpack.c.h.b16 %v235
    %v769 = vunpack.c.l.b16 %v236
    %v770 = vunpack.c.h.b16 %v236
    %v771 = vunpack.c.l.b16 %v237
    %v772 = vunpack.c.h.b16 %v237
    %v773 = vunpack.c.l.b16 %v238
    %v774 = vunpack.c.h.b16 %v238
    %v775 = vunpack.c.l.b16 %v239
    %v776 = vunpack.c.h.b16 %v239
    %v777 = vunpack.c.l.b16 %v240
    %v778 = vunpack.c.h.b16 %v240
    %v779 = vunpack.c.l.b16 %v241
    %v780 = vunpack.c.h.b16 %v241
    %v781 = vunpack.c.l.b16 %v242
    %v782 = vunpack.c.h.b16 %v242
    %v783 = vunpack.c.l.b16 %v243
    %v784 = vunpack.c.h.b16 %v243
    %v785 = vunpack.c.l.b16 %v244
    %v786 = vunpack.c.h.b16 %v244
    %v787 = vunpack.c.l.b16 %v245
    %v788 = vunpack.c.h.b16 %v245
    %v789 = vunpack.c.l.b16 %v246
    %v790 = vunpack.c.h.b16 %v246
    %v791 = vunpack.c.l.b16 %v247
    %v792 = vunpack.c.h.b16 %v247
    %v793 = vunpack.c.l.b16 %v248
    %v794 = vunpack.c.h.b16 %v248
    %v795 = vunpack.c.l.b16 %v249
    %v796 = vunpack.c.h.b16 %v249
    %v797 = vunpack.c.l.b16 %v250
    %v798 = vunpack.c.h.b16 %v250
    %v799 = vunpack.c.l.b16 %v251
    %v800 = vunpack.c.h.b16 %v251
    %v801 = vunpack.c.l.b16 %v252
    %v802 = vunpack.c.h.b16 %v252
    %v803 = vunpack.c.l.b16 %v253
    %v804 = vunpack.c.h.b16 %v253
    %v805 = vunpack.c.l.b16 %v254
    %v806 = vunpack.c.h.b16 %v254
    %v807 = vunpack.c.l.b16 %v255
    %v808 = vunpack.c.h.b16 %v255
    %v809 = vunpack.c.l.b16 %v256
    %v810 = vunpack.c.h.b16 %v256
    %v811 = vunpack.c.l.b16 %v257
    %v812 = vunpack.c.h.b16 %v257
    %v813 = vunpack.c.l.b16 %v258
    %v814 = vunpack.c.h.b16 %v258
    %v815 = vunpack.c.l.b16 %v259
    %v816 = vunpack.c.h.b16 %v259
    %v817 = vunpack.c.l.b16 %v260
    %v818 = vunpack.c.h.b16 %v260
    %v819 = vunpack.c.l.b16 %v261
    %v820 = vunpack.c.h.b16 %v261
    %v821 = vunpack.c.l.b16 %v262
    %v822 = vunpack.c.h.b16 %v262
    %v823 = vunpack.c.l.b16 %v263
    %v824 = vunpack.c.h.b16 %v263
    %v825 = vunpack.c.l.b16 %v264
    %v826 = vunpack.c.h.b16 %v264
    %v827 = vunpack.c.l.b16 %v265
    %v828 = vunpack.c.h.b16 %v265
    %v829 = vunpack.c.l.b16 %v266
    %v830 = vunpack.c.h.b16 %v266
    %v831 = vunpack.c.l.b16 %v267
    %v832 = vunpack.c.h.b16 %v267
    %v833 = vunpack.c.l.b16 %v268
    %v834 = vunpack.c.h.b16 %v268
    %v835 = vunpack.c.l.b16 %v269
    %v836 = vunpack.c.h.b16 %v269
    %v837 = vunpack.c.l.b16 %v270
    %v838 = vunpack.c.h.b16 %v270
    %v839 = vunpack.c.l.b16 %v271
    %v840 = vunpack.c.h.b16 %v271
    %v841 = vunpack.c.l.b16 %v272
    %v842 = vunpack.c.h.b16 %v272
    %v843 = vunpack.c.l.b16 %v273
    %v844 = vunpack.c.h.b16 %v273
    %v845 = vunpack.c.l.b16 %v274
    %v846 = vunpack.c.h.b16 %v274
    %v847 = vunpack.c.l.b16 %v275
    %v848 = vunpack.c.h.b16 %v275
    %v849 = vunpack.c.l.b16 %v276
    %v850 = vunpack.c.h.b16 %v276
    %v851 = vunpack.c.l.b16 %v277
    %v852 = vunpack.c.h.b16 %v277
    %v853 = vunpack.c.l.b16 %v278
    %v854 = vunpack.c.h.b16 %v278
    %v855 = vunpack.c.l.b16 %v279
    %v856 = vunpack.c.h.b16 %v279
    %v857 = vunpack.c.l.b16 %v280
    %v858 = vunpack.c.h.b16 %v280
    %v859 = vunpack.c.l.b16 %v281
    %v860 = vunpack.c.h.b16 %v281
    %v861 = vunpack.c.l.b16 %v282
    %v862 = vunpack.c.h.b16 %v282
    %v863 = vunpack.c.l.b16 %v283
    %v864 = vunpack.c.h.b16 %v283
    %v865 = vunpack.c.l.b16 %v284
    %v866 = vunpack.c.h.b16 %v284
    %v867 = vunpack.c.l.b16 %v285
    %v868 = vunpack.c.h.b16 %v285
    %v869 = vunpack.c.l.b16 %v286
    %v870 = vunpack.c.h.b16 %v286
    %v871 = vunpack.c.l.b16 %v287
    %v872 = vunpack.c.h.b16 %v287
    %v873 = vunpack.c.l.b16 %v288
    %v874 = vunpack.c.h.b16 %v288
    %v875 = vunpack.c.l.b16 %v289
    %v876 = vunpack.c.h.b16 %v289
    %v877 = vunpack.c.l.b16 %v290
    %v878 = vunpack.c.h.b16 %v290
    %v879 = vunpack.c.l.b16 %v291
    %v880 = vunpack.c.h.b16 %v291
    %v881 = vunpack.c.l.b16 %v292
    %v882 = vunpack.c.h.b16 %v292
    %v883 = vunpack.c.l.b16 %v293
    %v884 = vunpack.c.h.b16 %v293
    %v885 = vunpack.c.l.b16 %v294
    %v886 = vunpack.c.h.b16 %v294
    %v887 = vunpack.c.l.b16 %v295
    %v888 = vunpack.c.h.b16 %v295
    %v889 = vunpack.c.l.b16 %v296
    %v890 = vunpack.c.h.b16 %v296
    %v891 = vunpack.c.l.b16 %v297
    %v892 = vunpack.c.h.b16 %v297
    %v893 = vunpack.c.l.b16 %v298
    %v894 = vunpack.c.h.b16 %v298
    %v895 = vunpack.c.l.b16 %v299
    %v896 = vunpack.c.h.b16 %v299
    %v897 = vunpack.c.l.b16 %v300
    %v898 = vunpack.c.h.b16 %v300
    %v899 = vunpack.c.l.b16 %v301
    %v900 = vunpack.c.h.b16 %v301
    %v901 = vunpack.c.l.b16 %v302
    %v902 = vunpack.c.h.b16 %v302
    %v903 = vunpack.c.l.b16 %v303
    %v904 = vunpack.c.h.b16 %v303
    %v905 = vunpack.c.l.b16 %v304
    %v906 = vunpack.c.h.b16 %v304
    %v907 = vunpack.c.l.b16 %v305
    %v908 = vunpack.c.h.b16 %v305
    %v909 = vunpack.c.l.b16 %v306
    %v910 = vunpack.c.h.b16 %v306
    %v911 = vunpack.c.l.b16 %v307
    %v912 = vunpack.c.h.b16 %v307
    %v913 = vunpack.c.l.b16 %v308
    %v914 = vunpack.c.h.b16 %v308
    %v915 = vunpack.c.l.b16 %v309
    %v916 = vunpack.c.h.b16 %v309
    %v917 = vunpack.c.l.b16 %v310
    %v918 = vunpack.c.h.b16 %v310
    %v919 = vunpack.c.l.b16 %v311
    %v920 = vunpack.c.h.b16 %v311
    %v921 = vunpack.c.l.b16 %v312
    %v922 = vunpack.c.h.b16 %v312
    %v923 = vunpack.c.l.b16 %v313
    %v924 = vunpack.c.h.b16 %v313
    %v925 = vunpack.c.l.b16 %v314
    %v926 = vunpack.c.h.b16 %v314
    %v927 = vunpack.c.l.b16 %v315
    %v928 = vunpack.c.h.b16 %v315
    %v929 = vunpack.c.l.b16 %v316
    %v930 = vunpack.c.h.b16 %v316
    %v931 = vunpack.c.l.b16 %v317
    %v932 = vunpack.c.h.b16 %v317
    %v933 = vunpack.c.l.b16 %v318
    %v934 = vunpack.c.h.b16 %v318
    %v935 = vunpack.c.l.b16 %v319
    %v936 = vunpack.c.h.b16 %v319
    %v937 = vunpack.c.l.b16 %v320
    %v938 = vunpack.c.h.b16 %v320
    %v939 = vunpack.c.l.b16 %v321
    %v940 = vunpack.c.h.b16 %v321
    %v941 = vunpack.c.l.b16 %v322
    %v942 = vunpack.c.h.b16 %v322
    %v943 = vunpack.c.l.b16 %v323
    %v944 = vunpack.c.h.b16 %v323
    %v945 = vunpack.c.l.b16 %v324
    %v946 = vunpack.c.h.b16 %v324
    %v947 = vunpack.c.l.b16 %v325
    %v948 = vunpack.c.h.b16 %v325
    %v949 = vunpack.c.l.b16 %v326
    %v950 = vunpack.c.h.b16 %v326
    %v951 = vunpack.c.l.b16 %v327
    %v952 = vunpack.c.h.b16 %v327
    %v953 = vunpack.c.l.b16 %v328
    %v954 = vunpack.c.h.b16 %v328
    %v955 = vunpack.c.l.b16 %v329
    %v956 = vunpack.c.h.b16 %v329
    %v957 = vunpack.c.l.b16 %v330
    %v958 = vunpack.c.h.b16 %v330
    %v959 = vunpack.c.l.b16 %v331
    %v960 = vunpack.c.h.b16 %v331
    %v961 = vunpack.c.l.b16 %v332
    %v962 = vunpack.c.h.b16 %v332
    %v963 = vunpack.c.l.b16 %v333
    %v964 = vunpack.c.h.b16 %v333
    %v965 = vunpack.c.l.b16 %v334
    %v966 = vunpack.c.h.b16 %v334
    %v967 = vunpack.c.l.b16 %v335
    %v968 = vunpack.c.h.b16 %v335
    %v969 = vunpack.c.l.b16 %v336
    %v970 = vunpack.c.h.b16 %v336
    %v971 = vunpack.c.l.b16 %v337
    %v972 = vunpack.c.h.b16 %v337
    %v973 = vpack.c.b16 %v721, %v717
    %v974 = vpack.c.b16 %v722, %v718
    %v975 = vpack.c.b16 %v723, %v719
    %v976 = vpack.c.b16 %v724, %v720
    %v977 = vpack.c.b16 %v729, %v725
    %v978 = vpack.c.b16 %v730, %v726
    %v979 = vpack.c.b16 %v731, %v727
    %v980 = vpack.c.b16 %v732, %v728
    %v981 = vpack.c.b16 %v737, %v733
    %v982 = vpack.c.b16 %v738, %v734
    %v983 = vpack.c.b16 %v739, %v735
    %v984 = vpack.c.b16 %v740, %v736
    %v985 = vpack.c.b16 %v745, %v741
    %v986 = vpack.c.b16 %v746, %v742
    %v987 = vpack.c.b16 %v747, %v743
    %v988 = vpack.c.b16 %v748, %v744
    %v989 = vpack.c.b16 %v753, %v749
    %v990 = vpack.c.b16 %v754, %v750
    %v991 = vpack.c.b16 %v755, %v751
    %v992 = vpack.c.b16 %v756, %v752
    %v993 = vpack.c.b16 %v761, %v757
    %v994 = vpack.c.b16 %v762, %v758
    %v995 = vpack.c.b16 %v763, %v759
    %v996 = vpack.c.b16 %v764, %v760
    %v997 = vpack.c.b16 %v769, %v765
    %v998 = vpack.c.b16 %v770, %v766
    %v999 = vpack.c.b16 %v771, %v767
    %v1000 = vpack.c.b16 %v772, %v768
    %v1001 = vpack.c.b16 %v777, %v773
    %v1002 = vpack.c.b16 %v778, %v774
    %v1003 = vpack.c.b16 %v779, %v775
    %v1004 = vpack.c.b16 %v780, %v776
    %v1005 = vpack.c.b16 %v785, %v781
    %v1006 = vpack.c.b16 %v786, %v782
    %v1007 = vpack.c.b16 %v787, %v783
    %v1008 = vpack.c.b16 %v788, %v784
    %v1009 = vpack.c.b16 %v793, %v789
    %v1010 = vpack.c.b16 %v794, %v790
    %v1011 = vpack.c.b16 %v795, %v791
    %v1012 = vpack.c.b16 %v796, %v792
    %v1013 = vpack.c.b16 %v801, %v797
    %v1014 = vpack.c.b16 %v802, %v798
    %v1015 = vpack.c.b16 %v803, %v799
    %v1016 = vpack.c.b16 %v804, %v800
    %v1017 = vpack.c.b16 %v809, %v805
    %v1018 = vpack.c.b16 %v810, %v806
    %v1019 = vpack.c.b16 %v811, %v807
    %v1020 = vpack.c.b16 %v812, %v808
    %v1021 = vpack.c.b16 %v817, %v813
    %v1022 = vpack.c.b16 %v818, %v814
    %v1023 = vpack.c.b16 %v819, %v815
    %v1024 = vpack.c.b16 %v820, %v816
    %v1025 = vpack.c.b16 %v825, %v821
    %v1026 = vpack.c.b16 %v826, %v822
    %v1027 = vpack.c.b16 %v827, %v823
    %v1028 = vpack.c.b16 %v828, %v824
    %v1029 = vpack.c.b16 %v833, %v829
    %v1030 = vpack.c.b16 %v834, %v830
    %v1031 = vpack.c.b16 %v835, %v831
    %v1032 = vpack.c.b16 %v836, %v832
    %v1033 = vpack.c.b16 %v841, %v837
    %v1034 = vpack.c.b16 %v842, %v838
    %v1035 = vpack.c.b16 %v843, %v839
    %v1036 = vpack.c.b16 %v844, %v840
    %v1037 = vpack.c.b16 %v849, %v845
    %v1038 = vpack.c.b16 %v850, %v846
    %v1039 = vpack.c.b16 %v851, %v847
    %v1040 = vpack.c.b16 %v852, %v848
    %v1041 = vpack.c.b16 %v857, %v853
    %v1042 = vpack.c.b16 %v858, %v854
    %v1043 = vpack.c.b16 %v859, %v855
    %v1044 = vpack.c.b16 %v860, %v856
    %v1045 = vpack.c.b16 %v865, %v861
    %v1046 = vpack.c.b16 %v866, %v862
    %v1047 = vpack.c.b16 %v867, %v863
    %v1048 = vpack.c.b16 %v868, %v864
    %v1049 = vpack.c.b16 %v873, %v869
    %v1050 = vpack.c.b16 %v874, %v870
    %v1051 = vpack.c.b16 %v875, %v871
    %v1052 = vpack.c.b16 %v876, %v872
    %v1053 = vpack.c.b16 %v881, %v877
    %v1054 = vpack.c.b16 %v882, %v878
    %v1055 = vpack.c.b16 %v883, %v879
    %v1056 = vpack.c.b16 %v884, %v880
    %v1057 = vpack.c.b16 %v889, %v885
    %v1058 = vpack.c.b16 %v890, %v886
    %v1059 = vpack.c.b16 %v891, %v887
    %v1060 = vpack.c.b16 %v892, %v888
    %v1061 = vpack.c.b16 %v897, %v893
    %v1062 = vpack.c.b16 %v898, %v894
    %v1063 = vpack.c.b16 %v899, %v895
    %v1064 = vpack.c.b16 %v900, %v896
    %v1065 = vpack.c.b16 %v905, %v901
    %v1066 = vpack.c.b16 %v906, %v902
    %v1067 = vpack.c.b16 %v907, %v903
    %v1068 = vpack.c.b16 %v908, %v904
    %v1069 = vpack.c.b16 %v913, %v909
    %v1070 = vpack.c.b16 %v914, %v910
    %v1071 = vpack.c.b16 %v915, %v911
    %v1072 = vpack.c.b16 %v916, %v912
    %v1073 = vpack.c.b16 %v921, %v917
    %v1074 = vpack.c.b16 %v922, %v918
    %v1075 = vpack.c.b16 %v923, %v919
    %v1076 = vpack.c.b16 %v924, %v920
    %v1077 = vpack.c.b16 %v929, %v925
    %v1078 = vpack.c.b16 %v930, %v926
    %v1079 = vpack.c.b16 %v931, %v927
    %v1080 = vpack.c.b16 %v932, %v928
    %v1081 = vpack.c.b16 %v937, %v933
    %v1082 = vpack.c.b16 %v938, %v934
    %v1083 = vpack.c.b16 %v939, %v935
    %v1084 = vpack.c.b16 %v940, %v936
    %v1085 = vpack.c.b16 %v945, %v941
    %v1086 = vpack.c.b16 %v946, %v942
    %v1087 = vpack.c.b16 %v947, %v943
    %v1088 = vpack.c.b16 %v948, %v944
    %v1089 = vpack.c.b16 %v953, %v949
    %v1090 = vpack.c.b16 %v954, %v950
    %v1091 = vpack.c.b16 %v955, %v951
    %v1092 = vpack.c.b16 %v956, %v952
    %v1093 = vpack.c.b16 %v961, %v957
    %v1094 = vpack.c.b16 %v962, %v958
    %v1095 = vpack.c.b16 %v963, %v959
    %v1096 = vpack.c.b16 %v964, %v960
    %v1097 = vpack.c.b16 %v969, %v965
    %v1098 = vpack.c.b16 %v970, %v966
    %v1099 = vpack.c.b16 %v971, %v967
    %v1100 = vpack.c.b16 %v972, %v968
    %1229 = vmatpush.bf16.msra.mxu0 %v1001
    %1230 = vmatpush.bf16.msra.mxu0 %v997
    %1231 = vmatpush.bf16.msra.mxu0 %v993
    %1232 = vmatpush.bf16.msra.mxu0 %v989
    %1233 = vmatpush.bf16.msra.mxu0 %v985
    %1234 = vmatpush.bf16.msra.mxu0 %v981
    %1235 = vmatpush.bf16.msra.mxu0 %v977
    %1236 = vmatpush.bf16.msra.mxu0 %v973
    %1237 = vmatmul.bf16.gmra.mxu0 %v424
    %v1238 = vpop.f32.mrf.mxu0
    %v1239 = vadd.f32 0.0, %v1238
    %v1240 = vpop.f32.mrf.mxu0
    %v1241 = vadd.f32 0.0, %v1240
    %1242 = vmatmul.bf16.gmra.mxu0 %v468
    %v1243 = vpop.f32.mrf.mxu0
    %v1244 = vadd.f32 0.0, %v1243
    %v1245 = vpop.f32.mrf.mxu0
    %v1246 = vadd.f32 0.0, %v1245
    %1247 = vmatmul.bf16.gmra.mxu0 %v500
    %v1248 = vpop.f32.mrf.mxu0
    %v1249 = vadd.f32 0.0, %v1248
    %v1250 = vpop.f32.mrf.mxu0
    %v1251 = vadd.f32 0.0, %v1250
    %1252 = vmatmul.bf16.gmra.mxu0 %v532
    %v1253 = vpop.f32.mrf.mxu0
    %v1254 = vadd.f32 0.0, %v1253
    %v1255 = vpop.f32.mrf.mxu0
    %v1256 = vadd.f32 0.0, %v1255
    %1257 = vmatmul.bf16.gmra.mxu0 %v559
    %v1258 = vpop.f32.mrf.mxu0
    %v1259 = vadd.f32 0.0, %v1258
    %v1260 = vpop.f32.mrf.mxu0
    %1261 = vdwg.mxu0
    %1262 = vmatpush.bf16.msra.mxu0 %v1033
    %1263 = vmatpush.bf16.msra.mxu0 %v1029
    %1264 = vmatpush.bf16.msra.mxu0 %v1025
    %1265 = vmatpush.bf16.msra.mxu0 %v1021
    %1266 = vmatpush.bf16.msra.mxu0 %v1017
    %1267 = vmatpush.bf16.msra.mxu0 %v1013
    %1268 = vmatpush.bf16.msra.mxu0 %v1009
    %1269 = vmatpush.bf16.msra.mxu0 %v1005
    %1270 = vmatmul.bf16.gmra.mxu0 %v436
    %v1271 = vpop.f32.mrf.mxu0
    %v1272 = vadd.f32 %v1239, %v1271
    %v1273 = vpop.f32.mrf.mxu0
    %v1274 = vadd.f32 %v1241, %v1273
    %1275 = vmatmul.bf16.gmra.mxu0 %v476
    %v1276 = vpop.f32.mrf.mxu0
    %v1277 = vadd.f32 %v1244, %v1276
    %v1278 = vpop.f32.mrf.mxu0
    %v1279 = vadd.f32 %v1246, %v1278
    %1280 = vmatmul.bf16.gmra.mxu0 %v508
    %v1281 = vpop.f32.mrf.mxu0
    %v1282 = vadd.f32 %v1249, %v1281
    %v1283 = vpop.f32.mrf.mxu0
    %v1284 = vadd.f32 %v1251, %v1283
    %1285 = vmatmul.bf16.gmra.mxu0 %v540
    %v1286 = vpop.f32.mrf.mxu0
    %v1287 = vadd.f32 %v1254, %v1286
    %v1288 = vpop.f32.mrf.mxu0
    %v1289 = vadd.f32 %v1256, %v1288
    %1290 = vmatmul.bf16.gmra.mxu0 %v562
    %v1291 = vpop.f32.mrf.mxu0
    %v1292 = vadd.f32 %v1259, %v1291
    %v1293 = vpop.f32.mrf.mxu0
    %1294 = vdwg.mxu0
    %1295 = vmatpush.bf16.msra.mxu0 %v1065
    %1296 = vmatpush.bf16.msra.mxu0 %v1061
    %1297 = vmatpush.bf16.msra.mxu0 %v1057
    %1298 = vmatpush.bf16.msra.mxu0 %v1053
    %1299 = vmatpush.bf16.msra.mxu0 %v1049
    %1300 = vmatpush.bf16.msra.mxu0 %v1045
    %1301 = vmatpush.bf16.msra.mxu0 %v1041
    %1302 = vmatpush.bf16.msra.mxu0 %v1037
    %1303 = vmatmul.bf16.gmra.mxu0 %v448
    %v1304 = vpop.f32.mrf.mxu0
    %v1305 = vadd.f32 %v1272, %v1304
    %v1306 = vpop.f32.mrf.mxu0
    %v1307 = vadd.f32 %v1274, %v1306
    %1308 = vmatmul.bf16.gmra.mxu0 %v484
    %v1309 = vpop.f32.mrf.mxu0
    %v1310 = vadd.f32 %v1277, %v1309
    %v1311 = vpop.f32.mrf.mxu0
    %v1312 = vadd.f32 %v1279, %v1311
    %1313 = vmatmul.bf16.gmra.mxu0 %v516
    %v1314 = vpop.f32.mrf.mxu0
    %v1315 = vadd.f32 %v1282, %v1314
    %v1316 = vpop.f32.mrf.mxu0
    %v1317 = vadd.f32 %v1284, %v1316
    %1318 = vmatmul.bf16.gmra.mxu0 %v548
    %v1319 = vpop.f32.mrf.mxu0
    %v1320 = vadd.f32 %v1287, %v1319
    %v1321 = vpop.f32.mrf.mxu0
    %v1322 = vadd.f32 %v1289, %v1321
    %1323 = vmatmul.bf16.gmra.mxu0 %v565
    %v1324 = vpop.f32.mrf.mxu0
    %v1325 = vadd.f32 %v1292, %v1324
    %v1326 = vpop.f32.mrf.mxu0
    %1327 = vdwg.mxu0
    %1328 = vmatpush.bf16.msra.mxu0 %v1097
    %1329 = vmatpush.bf16.msra.mxu0 %v1093
    %1330 = vmatpush.bf16.msra.mxu0 %v1089
    %1331 = vmatpush.bf16.msra.mxu0 %v1085
    %1332 = vmatpush.bf16.msra.mxu0 %v1081
    %1333 = vmatpush.bf16.msra.mxu0 %v1077
    %1334 = vmatpush.bf16.msra.mxu0 %v1073
    %1335 = vmatpush.bf16.msra.mxu0 %v1069
    %1336 = vmatmul.bf16.gmra.mxu0 %v460
    %v1337 = vpop.f32.mrf.mxu0
    %v1338 = vadd.f32 %v1305, %v1337
    %v1339 = vpop.f32.mrf.mxu0
    %v1340 = vadd.f32 %v1307, %v1339
    %1341 = vmatmul.bf16.gmra.mxu0 %v492
    %v1342 = vpop.f32.mrf.mxu0
    %v1343 = vadd.f32 %v1310, %v1342
    %v1344 = vpop.f32.mrf.mxu0
    %v1345 = vadd.f32 %v1312, %v1344
    %1346 = vmatmul.bf16.gmra.mxu0 %v524
    %v1347 = vpop.f32.mrf.mxu0
    %v1348 = vadd.f32 %v1315, %v1347
    %v1349 = vpop.f32.mrf.mxu0
    %v1350 = vadd.f32 %v1317, %v1349
    %1351 = vmatmul.bf16.gmra.mxu0 %v556
    %v1352 = vpop.f32.mrf.mxu0
    %v1353 = vadd.f32 %v1320, %v1352
    %v1354 = vpop.f32.mrf.mxu0
    %v1355 = vadd.f32 %v1322, %v1354
    %1356 = vmatmul.bf16.gmra.mxu0 %v568
    %v1357 = vpop.f32.mrf.mxu0
    %v1358 = vadd.f32 %v1325, %v1357
    %v1359 = vpop.f32.mrf.mxu0
    %1360 = vdwg.mxu0
    %1361 = vmatpush.bf16.msra.mxu0 %v1002
    %1362 = vmatpush.bf16.msra.mxu0 %v998
    %1363 = vmatpush.bf16.msra.mxu0 %v994
    %1364 = vmatpush.bf16.msra.mxu0 %v990
    %1365 = vmatpush.bf16.msra.mxu0 %v986
    %1366 = vmatpush.bf16.msra.mxu0 %v982
    %1367 = vmatpush.bf16.msra.mxu0 %v978
    %1368 = vmatpush.bf16.msra.mxu0 %v974
    %1369 = vmatmul.bf16.gmra.mxu0 %v424
    %v1370 = vpop.f32.mrf.mxu0
    %v1371 = vadd.f32 0.0, %v1370
    %v1372 = vpop.f32.mrf.mxu0
    %v1373 = vadd.f32 0.0, %v1372
    %1374 = vmatmul.bf16.gmra.mxu0 %v468
    %v1375 = vpop.f32.mrf.mxu0
    %v1376 = vadd.f32 0.0, %v1375
    %v1377 = vpop.f32.mrf.mxu0
    %v1378 = vadd.f32 0.0, %v1377
    %1379 = vmatmul.bf16.gmra.mxu0 %v500
    %v1380 = vpop.f32.mrf.mxu0
    %v1381 = vadd.f32 0.0, %v1380
    %v1382 = vpop.f32.mrf.mxu0
    %v1383 = vadd.f32 0.0, %v1382
    %1384 = vmatmul.bf16.gmra.mxu0 %v532
    %v1385 = vpop.f32.mrf.mxu0
    %v1386 = vadd.f32 0.0, %v1385
    %v1387 = vpop.f32.mrf.mxu0
    %v1388 = vadd.f32 0.0, %v1387
    %1389 = vmatmul.bf16.gmra.mxu0 %v559
    %v1390 = vpop.f32.mrf.mxu0
    %v1391 = vadd.f32 0.0, %v1390
    %v1392 = vpop.f32.mrf.mxu0
    %1393 = vdwg.mxu0
    %1394 = vmatpush.bf16.msra.mxu0 %v1034
    %1395 = vmatpush.bf16.msra.mxu0 %v1030
    %1396 = vmatpush.bf16.msra.mxu0 %v1026
    %1397 = vmatpush.bf16.msra.mxu0 %v1022
    %1398 = vmatpush.bf16.msra.mxu0 %v1018
    %1399 = vmatpush.bf16.msra.mxu0 %v1014
    %1400 = vmatpush.bf16.msra.mxu0 %v1010
    %1401 = vmatpush.bf16.msra.mxu0 %v1006
    %1402 = vmatmul.bf16.gmra.mxu0 %v436
    %v1403 = vpop.f32.mrf.mxu0
    %v1404 = vadd.f32 %v1371, %v1403
    %v1405 = vpop.f32.mrf.mxu0
    %v1406 = vadd.f32 %v1373, %v1405
    %1407 = vmatmul.bf16.gmra.mxu0 %v476
    %v1408 = vpop.f32.mrf.mxu0
    %v1409 = vadd.f32 %v1376, %v1408
    %v1410 = vpop.f32.mrf.mxu0
    %v1411 = vadd.f32 %v1378, %v1410
    %1412 = vmatmul.bf16.gmra.mxu0 %v508
    %v1413 = vpop.f32.mrf.mxu0
    %v1414 = vadd.f32 %v1381, %v1413
    %v1415 = vpop.f32.mrf.mxu0
    %v1416 = vadd.f32 %v1383, %v1415
    %1417 = vmatmul.bf16.gmra.mxu0 %v540
    %v1418 = vpop.f32.mrf.mxu0
    %v1419 = vadd.f32 %v1386, %v1418
    %v1420 = vpop.f32.mrf.mxu0
    %v1421 = vadd.f32 %v1388, %v1420
    %1422 = vmatmul.bf16.gmra.mxu0 %v562
    %v1423 = vpop.f32.mrf.mxu0
    %v1424 = vadd.f32 %v1391, %v1423
    %v1425 = vpop.f32.mrf.mxu0
    %1426 = vdwg.mxu0
    %1427 = vmatpush.bf16.msra.mxu0 %v1066
    %1428 = vmatpush.bf16.msra.mxu0 %v1062
    %1429 = vmatpush.bf16.msra.mxu0 %v1058
    %1430 = vmatpush.bf16.msra.mxu0 %v1054
    %1431 = vmatpush.bf16.msra.mxu0 %v1050
    %1432 = vmatpush.bf16.msra.mxu0 %v1046
    %1433 = vmatpush.bf16.msra.mxu0 %v1042
    %1434 = vmatpush.bf16.msra.mxu0 %v1038
    %1435 = vmatmul.bf16.gmra.mxu0 %v448
    %v1436 = vpop.f32.mrf.mxu0
    %v1437 = vadd.f32 %v1404, %v1436
    %v1438 = vpop.f32.mrf.mxu0
    %v1439 = vadd.f32 %v1406, %v1438
    %1440 = vmatmul.bf16.gmra.mxu0 %v484
    %v1441 = vpop.f32.mrf.mxu0
    %v1442 = vadd.f32 %v1409, %v1441
    %v1443 = vpop.f32.mrf.mxu0
    %v1444 = vadd.f32 %v1411, %v1443
    %1445 = vmatmul.bf16.gmra.mxu0 %v516
    %v1446 = vpop.f32.mrf.mxu0
    %v1447 = vadd.f32 %v1414, %v1446
    %v1448 = vpop.f32.mrf.mxu0
    %v1449 = vadd.f32 %v1416, %v1448
    %1450 = vmatmul.bf16.gmra.mxu0 %v548
    %v1451 = vpop.f32.mrf.mxu0
    %v1452 = vadd.f32 %v1419, %v1451
    %v1453 = vpop.f32.mrf.mxu0
    %v1454 = vadd.f32 %v1421, %v1453
    %1455 = vmatmul.bf16.gmra.mxu0 %v565
    %v1456 = vpop.f32.mrf.mxu0
    %v1457 = vadd.f32 %v1424, %v1456
    %v1458 = vpop.f32.mrf.mxu0
    %1459 = vdwg.mxu0
    %1460 = vmatpush.bf16.msra.mxu0 %v1098
    %1461 = vmatpush.bf16.msra.mxu0 %v1094
    %1462 = vmatpush.bf16.msra.mxu0 %v1090
    %1463 = vmatpush.bf16.msra.mxu0 %v1086
    %1464 = vmatpush.bf16.msra.mxu0 %v1082
    %1465 = vmatpush.bf16.msra.mxu0 %v1078
    %1466 = vmatpush.bf16.msra.mxu0 %v1074
    %1467 = vmatpush.bf16.msra.mxu0 %v1070
    %1468 = vmatmul.bf16.gmra.mxu0 %v460
    %v1469 = vpop.f32.mrf.mxu0
    %v1470 = vadd.f32 %v1437, %v1469
    %v1471 = vpop.f32.mrf.mxu0
    %v1472 = vadd.f32 %v1439, %v1471
    %1473 = vmatmul.bf16.gmra.mxu0 %v492
    %v1474 = vpop.f32.mrf.mxu0
    %v1475 = vadd.f32 %v1442, %v1474
    %v1476 = vpop.f32.mrf.mxu0
    %v1477 = vadd.f32 %v1444, %v1476
    %1478 = vmatmul.bf16.gmra.mxu0 %v524
    %v1479 = vpop.f32.mrf.mxu0
    %v1480 = vadd.f32 %v1447, %v1479
    %v1481 = vpop.f32.mrf.mxu0
    %v1482 = vadd.f32 %v1449, %v1481
    %1483 = vmatmul.bf16.gmra.mxu0 %v556
    %v1484 = vpop.f32.mrf.mxu0
    %v1485 = vadd.f32 %v1452, %v1484
    %v1486 = vpop.f32.mrf.mxu0
    %v1487 = vadd.f32 %v1454, %v1486
    %1488 = vmatmul.bf16.gmra.mxu0 %v568
    %v1489 = vpop.f32.mrf.mxu0
    %v1490 = vadd.f32 %v1457, %v1489
    %v1491 = vpop.f32.mrf.mxu0
    %1492 = vdwg.mxu0
    %1493 = vmatpush.bf16.msra.mxu0 %v1003
    %1494 = vmatpush.bf16.msra.mxu0 %v999
    %1495 = vmatpush.bf16.msra.mxu0 %v995
    %1496 = vmatpush.bf16.msra.mxu0 %v991
    %1497 = vmatpush.bf16.msra.mxu0 %v987
    %1498 = vmatpush.bf16.msra.mxu0 %v983
    %1499 = vmatpush.bf16.msra.mxu0 %v979
    %1500 = vmatpush.bf16.msra.mxu0 %v975
    %1501 = vmatmul.bf16.gmra.mxu0 %v424
    %v1502 = vpop.f32.mrf.mxu0
    %v1503 = vadd.f32 0.0, %v1502
    %v1504 = vpop.f32.mrf.mxu0
    %v1505 = vadd.f32 0.0, %v1504
    %1506 = vmatmul.bf16.gmra.mxu0 %v468
    %v1507 = vpop.f32.mrf.mxu0
    %v1508 = vadd.f32 0.0, %v1507
    %v1509 = vpop.f32.mrf.mxu0
    %v1510 = vadd.f32 0.0, %v1509
    %1511 = vmatmul.bf16.gmra.mxu0 %v500
    %v1512 = vpop.f32.mrf.mxu0
    %v1513 = vadd.f32 0.0, %v1512
    %v1514 = vpop.f32.mrf.mxu0
    %v1515 = vadd.f32 0.0, %v1514
    %1516 = vmatmul.bf16.gmra.mxu0 %v532
    %v1517 = vpop.f32.mrf.mxu0
    %v1518 = vadd.f32 0.0, %v1517
    %v1519 = vpop.f32.mrf.mxu0
    %v1520 = vadd.f32 0.0, %v1519
    %1521 = vmatmul.bf16.gmra.mxu0 %v559
    %v1522 = vpop.f32.mrf.mxu0
    %v1523 = vadd.f32 0.0, %v1522
    %v1524 = vpop.f32.mrf.mxu0
    %1525 = vdwg.mxu0
    %1526 = vmatpush.bf16.msra.mxu0 %v1035
    %1527 = vmatpush.bf16.msra.mxu0 %v1031
    %1528 = vmatpush.bf16.msra.mxu0 %v1027
    %1529 = vmatpush.bf16.msra.mxu0 %v1023
    %1530 = vmatpush.bf16.msra.mxu0 %v1019
    %1531 = vmatpush.bf16.msra.mxu0 %v1015
    %1532 = vmatpush.bf16.msra.mxu0 %v1011
    %1533 = vmatpush.bf16.msra.mxu0 %v1007
    %1534 = vmatmul.bf16.gmra.mxu0 %v436
    %v1535 = vpop.f32.mrf.mxu0
    %v1536 = vadd.f32 %v1503, %v1535
    %v1537 = vpop.f32.mrf.mxu0
    %v1538 = vadd.f32 %v1505, %v1537
    %1539 = vmatmul.bf16.gmra.mxu0 %v476
    %v1540 = vpop.f32.mrf.mxu0
    %v1541 = vadd.f32 %v1508, %v1540
    %v1542 = vpop.f32.mrf.mxu0
    %v1543 = vadd.f32 %v1510, %v1542
    %1544 = vmatmul.bf16.gmra.mxu0 %v508
    %v1545 = vpop.f32.mrf.mxu0
    %v1546 = vadd.f32 %v1513, %v1545
    %v1547 = vpop.f32.mrf.mxu0
    %v1548 = vadd.f32 %v1515, %v1547
    %1549 = vmatmul.bf16.gmra.mxu0 %v540
    %v1550 = vpop.f32.mrf.mxu0
    %v1551 = vadd.f32 %v1518, %v1550
    %v1552 = vpop.f32.mrf.mxu0
    %v1553 = vadd.f32 %v1520, %v1552
    %1554 = vmatmul.bf16.gmra.mxu0 %v562
    %v1555 = vpop.f32.mrf.mxu0
    %v1556 = vadd.f32 %v1523, %v1555
    %v1557 = vpop.f32.mrf.mxu0
    %1558 = vdwg.mxu0
    %1559 = vmatpush.bf16.msra.mxu0 %v1067
    %1560 = vmatpush.bf16.msra.mxu0 %v1063
    %1561 = vmatpush.bf16.msra.mxu0 %v1059
    %1562 = vmatpush.bf16.msra.mxu0 %v1055
    %1563 = vmatpush.bf16.msra.mxu0 %v1051
    %1564 = vmatpush.bf16.msra.mxu0 %v1047
    %1565 = vmatpush.bf16.msra.mxu0 %v1043
    %1566 = vmatpush.bf16.msra.mxu0 %v1039
    %1567 = vmatmul.bf16.gmra.mxu0 %v448
    %v1568 = vpop.f32.mrf.mxu0
    %v1569 = vadd.f32 %v1536, %v1568
    %v1570 = vpop.f32.mrf.mxu0
    %v1571 = vadd.f32 %v1538, %v1570
    %1572 = vmatmul.bf16.gmra.mxu0 %v484
    %v1573 = vpop.f32.mrf.mxu0
    %v1574 = vadd.f32 %v1541, %v1573
    %v1575 = vpop.f32.mrf.mxu0
    %v1576 = vadd.f32 %v1543, %v1575
    %1577 = vmatmul.bf16.gmra.mxu0 %v516
    %v1578 = vpop.f32.mrf.mxu0
    %v1579 = vadd.f32 %v1546, %v1578
    %v1580 = vpop.f32.mrf.mxu0
    %v1581 = vadd.f32 %v1548, %v1580
    %1582 = vmatmul.bf16.gmra.mxu0 %v548
    %v1583 = vpop.f32.mrf.mxu0
    %v1584 = vadd.f32 %v1551, %v1583
    %v1585 = vpop.f32.mrf.mxu0
    %v1586 = vadd.f32 %v1553, %v1585
    %1587 = vmatmul.bf16.gmra.mxu0 %v565
    %v1588 = vpop.f32.mrf.mxu0
    %v1589 = vadd.f32 %v1556, %v1588
    %v1590 = vpop.f32.mrf.mxu0
    %1591 = vdwg.mxu0
    %1592 = vmatpush.bf16.msra.mxu0 %v1099
    %1593 = vmatpush.bf16.msra.mxu0 %v1095
    %1594 = vmatpush.bf16.msra.mxu0 %v1091
    %1595 = vmatpush.bf16.msra.mxu0 %v1087
    %1596 = vmatpush.bf16.msra.mxu0 %v1083
    %1597 = vmatpush.bf16.msra.mxu0 %v1079
    %1598 = vmatpush.bf16.msra.mxu0 %v1075
    %1599 = vmatpush.bf16.msra.mxu0 %v1071
    %1600 = vmatmul.bf16.gmra.mxu0 %v460
    %v1601 = vpop.f32.mrf.mxu0
    %v1602 = vadd.f32 %v1569, %v1601
    %v1603 = vpop.f32.mrf.mxu0
    %v1604 = vadd.f32 %v1571, %v1603
    %1605 = vmatmul.bf16.gmra.mxu0 %v492
    %v1606 = vpop.f32.mrf.mxu0
    %v1607 = vadd.f32 %v1574, %v1606
    %v1608 = vpop.f32.mrf.mxu0
    %v1609 = vadd.f32 %v1576, %v1608
    %1610 = vmatmul.bf16.gmra.mxu0 %v524
    %v1611 = vpop.f32.mrf.mxu0
    %v1612 = vadd.f32 %v1579, %v1611
    %v1613 = vpop.f32.mrf.mxu0
    %v1614 = vadd.f32 %v1581, %v1613
    %1615 = vmatmul.bf16.gmra.mxu0 %v556
    %v1616 = vpop.f32.mrf.mxu0
    %v1617 = vadd.f32 %v1584, %v1616
    %v1618 = vpop.f32.mrf.mxu0
    %v1619 = vadd.f32 %v1586, %v1618
    %1620 = vmatmul.bf16.gmra.mxu0 %v568
    %v1621 = vpop.f32.mrf.mxu0
    %v1622 = vadd.f32 %v1589, %v1621
    %v1623 = vpop.f32.mrf.mxu0
    %1624 = vdwg.mxu0
    %1625 = vmatpush.bf16.msra.mxu0 %v1004
    %1626 = vmatpush.bf16.msra.mxu0 %v1000
    %1627 = vmatpush.bf16.msra.mxu0 %v996
    %1628 = vmatpush.bf16.msra.mxu0 %v992
    %1629 = vmatpush.bf16.msra.mxu0 %v988
    %1630 = vmatpush.bf16.msra.mxu0 %v984
    %1631 = vmatpush.bf16.msra.mxu0 %v980
    %1632 = vmatpush.bf16.msra.mxu0 %v976
    %1633 = vmatmul.bf16.gmra.mxu0 %v424
    %v1634 = vpop.f32.mrf.mxu0
    %v1635 = vadd.f32 0.0, %v1634
    %v1636 = vpop.f32.mrf.mxu0
    %v1637 = vadd.f32 0.0, %v1636
    %1638 = vmatmul.bf16.gmra.mxu0 %v468
    %v1639 = vpop.f32.mrf.mxu0
    %v1640 = vadd.f32 0.0, %v1639
    %v1641 = vpop.f32.mrf.mxu0
    %v1642 = vadd.f32 0.0, %v1641
    %1643 = vmatmul.bf16.gmra.mxu0 %v500
    %v1644 = vpop.f32.mrf.mxu0
    %v1645 = vadd.f32 0.0, %v1644
    %v1646 = vpop.f32.mrf.mxu0
    %v1647 = vadd.f32 0.0, %v1646
    %1648 = vmatmul.bf16.gmra.mxu0 %v532
    %v1649 = vpop.f32.mrf.mxu0
    %v1650 = vadd.f32 0.0, %v1649
    %v1651 = vpop.f32.mrf.mxu0
    %v1652 = vadd.f32 0.0, %v1651
    %1653 = vmatmul.bf16.gmra.mxu0 %v559
    %v1654 = vpop.f32.mrf.mxu0
    %v1655 = vadd.f32 0.0, %v1654
    %v1656 = vpop.f32.mrf.mxu0
    %1657 = vdwg.mxu0
    %1658 = vmatpush.bf16.msra.mxu0 %v1036
    %1659 = vmatpush.bf16.msra.mxu0 %v1032
    %1660 = vmatpush.bf16.msra.mxu0 %v1028
    %1661 = vmatpush.bf16.msra.mxu0 %v1024
    %1662 = vmatpush.bf16.msra.mxu0 %v1020
    %1663 = vmatpush.bf16.msra.mxu0 %v1016
    %1664 = vmatpush.bf16.msra.mxu0 %v1012
    %1665 = vmatpush.bf16.msra.mxu0 %v1008
    %1666 = vmatmul.bf16.gmra.mxu0 %v436
    %v1667 = vpop.f32.mrf.mxu0
    %v1668 = vadd.f32 %v1635, %v1667
    %v1669 = vpop.f32.mrf.mxu0
    %v1670 = vadd.f32 %v1637, %v1669
    %1671 = vmatmul.bf16.gmra.mxu0 %v476
    %v1672 = vpop.f32.mrf.mxu0
    %v1673 = vadd.f32 %v1640, %v1672
    %v1674 = vpop.f32.mrf.mxu0
    %v1675 = vadd.f32 %v1642, %v1674
    %1676 = vmatmul.bf16.gmra.mxu0 %v508
    %v1677 = vpop.f32.mrf.mxu0
    %v1678 = vadd.f32 %v1645, %v1677
    %v1679 = vpop.f32.mrf.mxu0
    %v1680 = vadd.f32 %v1647, %v1679
    %1681 = vmatmul.bf16.gmra.mxu0 %v540
    %v1682 = vpop.f32.mrf.mxu0
    %v1683 = vadd.f32 %v1650, %v1682
    %v1684 = vpop.f32.mrf.mxu0
    %v1685 = vadd.f32 %v1652, %v1684
    %1686 = vmatmul.bf16.gmra.mxu0 %v562
    %v1687 = vpop.f32.mrf.mxu0
    %v1688 = vadd.f32 %v1655, %v1687
    %v1689 = vpop.f32.mrf.mxu0
    %1690 = vdwg.mxu0
    %1691 = vmatpush.bf16.msra.mxu0 %v1068
    %1692 = vmatpush.bf16.msra.mxu0 %v1064
    %1693 = vmatpush.bf16.msra.mxu0 %v1060
    %1694 = vmatpush.bf16.msra.mxu0 %v1056
    %1695 = vmatpush.bf16.msra.mxu0 %v1052
    %1696 = vmatpush.bf16.msra.mxu0 %v1048
    %1697 = vmatpush.bf16.msra.mxu0 %v1044
    %1698 = vmatpush.bf16.msra.mxu0 %v1040
    %1699 = vmatmul.bf16.gmra.mxu0 %v448
    %v1700 = vpop.f32.mrf.mxu0
    %v1701 = vadd.f32 %v1668, %v1700
    %v1702 = vpop.f32.mrf.mxu0
    %v1703 = vadd.f32 %v1670, %v1702
    %1704 = vmatmul.bf16.gmra.mxu0 %v484
    %v1705 = vpop.f32.mrf.mxu0
    %v1706 = vadd.f32 %v1673, %v1705
    %v1707 = vpop.f32.mrf.mxu0
    %v1708 = vadd.f32 %v1675, %v1707
    %1709 = vmatmul.bf16.gmra.mxu0 %v516
    %v1710 = vpop.f32.mrf.mxu0
    %v1711 = vadd.f32 %v1678, %v1710
    %v1712 = vpop.f32.mrf.mxu0
    %v1713 = vadd.f32 %v1680, %v1712
    %1714 = vmatmul.bf16.gmra.mxu0 %v548
    %v1715 = vpop.f32.mrf.mxu0
    %v1716 = vadd.f32 %v1683, %v1715
    %v1717 = vpop.f32.mrf.mxu0
    %v1718 = vadd.f32 %v1685, %v1717
    %1719 = vmatmul.bf16.gmra.mxu0 %v565
    %v1720 = vpop.f32.mrf.mxu0
    %v1721 = vadd.f32 %v1688, %v1720
    %v1722 = vpop.f32.mrf.mxu0
    %1723 = vdwg.mxu0
    %1724 = vmatpush.bf16.msra.mxu0 %v1100
    %1725 = vmatpush.bf16.msra.mxu0 %v1096
    %1726 = vmatpush.bf16.msra.mxu0 %v1092
    %1727 = vmatpush.bf16.msra.mxu0 %v1088
    %1728 = vmatpush.bf16.msra.mxu0 %v1084
    %1729 = vmatpush.bf16.msra.mxu0 %v1080
    %1730 = vmatpush.bf16.msra.mxu0 %v1076
    %1731 = vmatpush.bf16.msra.mxu0 %v1072
    %1732 = vmatmul.bf16.gmra.mxu0 %v460
    %v1733 = vpop.f32.mrf.mxu0
    %v1734 = vadd.f32 %v1701, %v1733
    %v1735 = vpop.f32.mrf.mxu0
    %v1736 = vadd.f32 %v1703, %v1735
    %1737 = vmatmul.bf16.gmra.mxu0 %v492
    %v1738 = vpop.f32.mrf.mxu0
    %v1739 = vadd.f32 %v1706, %v1738
    %v1740 = vpop.f32.mrf.mxu0
    %v1741 = vadd.f32 %v1708, %v1740
    %1742 = vmatmul.bf16.gmra.mxu0 %v524
    %v1743 = vpop.f32.mrf.mxu0
    %v1744 = vadd.f32 %v1711, %v1743
    %v1745 = vpop.f32.mrf.mxu0
    %v1746 = vadd.f32 %v1713, %v1745
    %1747 = vmatmul.bf16.gmra.mxu0 %v556
    %v1748 = vpop.f32.mrf.mxu0
    %v1749 = vadd.f32 %v1716, %v1748
    %v1750 = vpop.f32.mrf.mxu0
    %v1751 = vadd.f32 %v1718, %v1750
    %1752 = vmatmul.bf16.gmra.mxu0 %v568
    %v1753 = vpop.f32.mrf.mxu0
    %v1754 = vadd.f32 %v1721, %v1753
    %v1755 = vpop.f32.mrf.mxu0
    %1756 = vdwg.mxu0
    %v1905 = vunpack.c.l.b16 %v81
    %v1906 = vunpack.c.h.b16 %v81
    %v1907 = vunpack.c.l.b16 %v82
    %v1908 = vunpack.c.h.b16 %v82
    %v1909 = vunpack.c.l.b16 %v83
    %v1910 = vunpack.c.h.b16 %v83
    %v1911 = vunpack.c.l.b16 %v84
    %v1912 = vunpack.c.h.b16 %v84
    %v1913 = vunpack.c.l.b16 %v85
    %v1914 = vunpack.c.h.b16 %v85
    %v1915 = vunpack.c.l.b16 %v86
    %v1916 = vunpack.c.h.b16 %v86
    %v1917 = vunpack.c.l.b16 %v87
    %v1918 = vunpack.c.h.b16 %v87
    %v1919 = vunpack.c.l.b16 %v88
    %v1920 = vunpack.c.h.b16 %v88
    %v1921 = vunpack.c.l.b16 %v89
    %v1922 = vunpack.c.h.b16 %v89
    %v1923 = vunpack.c.l.b16 %v90
    %v1924 = vunpack.c.h.b16 %v90
    %v1925 = vunpack.c.l.b16 %v91
    %v1926 = vunpack.c.h.b16 %v91
    %v1927 = vunpack.c.l.b16 %v92
    %v1928 = vunpack.c.h.b16 %v92
    %v1929 = vunpack.c.l.b16 %v93
    %v1930 = vunpack.c.h.b16 %v93
    %v1931 = vunpack.c.l.b16 %v94
    %v1932 = vunpack.c.h.b16 %v94
    %v1933 = vunpack.c.l.b16 %v95
    %v1934 = vunpack.c.h.b16 %v95
    %v1935 = vunpack.c.l.b16 %v96
    %v1936 = vunpack.c.h.b16 %v96
    %v1937 = vunpack.c.l.b16 %v97
    %v1938 = vunpack.c.h.b16 %v97
    %v1939 = vunpack.c.l.b16 %v98
    %v1940 = vunpack.c.h.b16 %v98
    %v1941 = vunpack.c.l.b16 %v99
    %v1942 = vunpack.c.h.b16 %v99
    %v1943 = vunpack.c.l.b16 %v100
    %v1944 = vunpack.c.h.b16 %v100
    %v1945 = vunpack.c.l.b16 %v101
    %v1946 = vunpack.c.h.b16 %v101
    %v1947 = vunpack.c.l.b16 %v102
    %v1948 = vunpack.c.h.b16 %v102
    %v1949 = vunpack.c.l.b16 %v103
    %v1950 = vunpack.c.h.b16 %v103
    %v1951 = vunpack.c.l.b16 %v104
    %v1952 = vunpack.c.h.b16 %v104
    %v1953 = vunpack.c.l.b16 %v105
    %v1954 = vunpack.c.h.b16 %v105
    %v1955 = vunpack.c.l.b16 %v106
    %v1956 = vunpack.c.h.b16 %v106
    %v1957 = vunpack.c.l.b16 %v107
    %v1958 = vunpack.c.h.b16 %v107
    %v1959 = vunpack.c.l.b16 %v108
    %v1960 = vunpack.c.h.b16 %v108
    %v1961 = vunpack.c.l.b16 %v109
    %v1962 = vunpack.c.h.b16 %v109
    %v1963 = vunpack.c.l.b16 %v110
    %v1964 = vunpack.c.h.b16 %v110
    %v1965 = vunpack.c.l.b16 %v111
    %v1966 = vunpack.c.h.b16 %v111
    %v1967 = vunpack.c.l.b16 %v112
    %v1968 = vunpack.c.h.b16 %v112
    %v1969 = vunpack.c.l.b16 %v113
    %v1970 = vunpack.c.h.b16 %v113
    %v1971 = vunpack.c.l.b16 %v114
    %v1972 = vunpack.c.h.b16 %v114
    %v1973 = vunpack.c.l.b16 %v115
    %v1974 = vunpack.c.h.b16 %v115
    %v1975 = vunpack.c.l.b16 %v116
    %v1976 = vunpack.c.h.b16 %v116
    %v1977 = vunpack.c.l.b16 %v117
    %v1978 = vunpack.c.h.b16 %v117
    %v1979 = vunpack.c.l.b16 %v118
    %v1980 = vunpack.c.h.b16 %v118
    %v1981 = vunpack.c.l.b16 %v119
    %v1982 = vunpack.c.h.b16 %v119
    %v1983 = vunpack.c.l.b16 %v120
    %v1984 = vunpack.c.h.b16 %v120
    %v1985 = vunpack.c.l.b16 %v121
    %v1986 = vunpack.c.h.b16 %v121
    %v1987 = vunpack.c.l.b16 %v122
    %v1988 = vunpack.c.h.b16 %v122
    %v1989 = vunpack.c.l.b16 %v123
    %v1990 = vunpack.c.h.b16 %v123
    %v1991 = vunpack.c.l.b16 %v124
    %v1992 = vunpack.c.h.b16 %v124
    %v1993 = vunpack.c.l.b16 %v125
    %v1994 = vunpack.c.h.b16 %v125
    %v1995 = vunpack.c.l.b16 %v126
    %v1996 = vunpack.c.h.b16 %v126
    %v1997 = vunpack.c.l.b16 %v127
    %v1998 = vunpack.c.h.b16 %v127
    %v1999 = vunpack.c.l.b16 %v128
    %v2000 = vunpack.c.h.b16 %v128
    %v2001 = vunpack.c.l.b16 %v129
    %v2002 = vunpack.c.h.b16 %v129
    %v2003 = vunpack.c.l.b16 %v130
    %v2004 = vunpack.c.h.b16 %v130
    %v2005 = vunpack.c.l.b16 %v131
    %v2006 = vunpack.c.h.b16 %v131
    %v2007 = vunpack.c.l.b16 %v132
    %v2008 = vunpack.c.h.b16 %v132
    %v2009 = vunpack.c.l.b16 %v133
    %v2010 = vunpack.c.h.b16 %v133
    %v2011 = vunpack.c.l.b16 %v134
    %v2012 = vunpack.c.h.b16 %v134
    %v2013 = vunpack.c.l.b16 %v135
    %v2014 = vunpack.c.h.b16 %v135
    %v2015 = vunpack.c.l.b16 %v136
    %v2016 = vunpack.c.h.b16 %v136
    %v2017 = vunpack.c.l.b16 %v137
    %v2018 = vunpack.c.h.b16 %v137
    %v2019 = vunpack.c.l.b16 %v138
    %v2020 = vunpack.c.h.b16 %v138
    %v2021 = vunpack.c.l.b16 %v139
    %v2022 = vunpack.c.h.b16 %v139
    %v2023 = vunpack.c.l.b16 %v140
    %v2024 = vunpack.c.h.b16 %v140
    %v2025 = vunpack.c.l.b16 %v141
    %v2026 = vunpack.c.h.b16 %v141
    %v2027 = vunpack.c.l.b16 %v142
    %v2028 = vunpack.c.h.b16 %v142
    %v2029 = vunpack.c.l.b16 %v143
    %v2030 = vunpack.c.h.b16 %v143
    %v2031 = vunpack.c.l.b16 %v144
    %v2032 = vunpack.c.h.b16 %v144
    %v2033 = vunpack.c.l.b16 %v145
    %v2034 = vunpack.c.h.b16 %v145
    %v2035 = vunpack.c.l.b16 %v146
    %v2036 = vunpack.c.h.b16 %v146
    %v2037 = vunpack.c.l.b16 %v147
    %v2038 = vunpack.c.h.b16 %v147
    %v2039 = vunpack.c.l.b16 %v148
    %v2040 = vunpack.c.h.b16 %v148
    %v2041 = vunpack.c.l.b16 %v149
    %v2042 = vunpack.c.h.b16 %v149
    %v2043 = vunpack.c.l.b16 %v150
    %v2044 = vunpack.c.h.b16 %v150
    %v2045 = vunpack.c.l.b16 %v151
    %v2046 = vunpack.c.h.b16 %v151
    %v2047 = vunpack.c.l.b16 %v152
    %v2048 = vunpack.c.h.b16 %v152
    %v2049 = vunpack.c.l.b16 %v153
    %v2050 = vunpack.c.h.b16 %v153
    %v2051 = vunpack.c.l.b16 %v154
    %v2052 = vunpack.c.h.b16 %v154
    %v2053 = vunpack.c.l.b16 %v155
    %v2054 = vunpack.c.h.b16 %v155
    %v2055 = vunpack.c.l.b16 %v156
    %v2056 = vunpack.c.h.b16 %v156
    %v2057 = vunpack.c.l.b16 %v157
    %v2058 = vunpack.c.h.b16 %v157
    %v2059 = vunpack.c.l.b16 %v158
    %v2060 = vunpack.c.h.b16 %v158
    %v2061 = vunpack.c.l.b16 %v159
    %v2062 = vunpack.c.h.b16 %v159
    %v2063 = vunpack.c.l.b16 %v160
    %v2064 = vunpack.c.h.b16 %v160
    %v2065 = vunpack.c.l.b16 %v161
    %v2066 = vunpack.c.h.b16 %v161
    %v2067 = vunpack.c.l.b16 %v162
    %v2068 = vunpack.c.h.b16 %v162
    %v2069 = vunpack.c.l.b16 %v163
    %v2070 = vunpack.c.h.b16 %v163
    %v2071 = vunpack.c.l.b16 %v164
    %v2072 = vunpack.c.h.b16 %v164
    %v2073 = vunpack.c.l.b16 %v165
    %v2074 = vunpack.c.h.b16 %v165
    %v2075 = vunpack.c.l.b16 %v166
    %v2076 = vunpack.c.h.b16 %v166
    %v2077 = vunpack.c.l.b16 %v167
    %v2078 = vunpack.c.h.b16 %v167
    %v2079 = vunpack.c.l.b16 %v168
    %v2080 = vunpack.c.h.b16 %v168
    %v2081 = vunpack.c.l.b16 %v169
    %v2082 = vunpack.c.h.b16 %v169
    %v2083 = vunpack.c.l.b16 %v170
    %v2084 = vunpack.c.h.b16 %v170
    %v2085 = vunpack.c.l.b16 %v171
    %v2086 = vunpack.c.h.b16 %v171
    %v2087 = vunpack.c.l.b16 %v172
    %v2088 = vunpack.c.h.b16 %v172
    %v2089 = vunpack.c.l.b16 %v173
    %v2090 = vunpack.c.h.b16 %v173
    %v2091 = vunpack.c.l.b16 %v174
    %v2092 = vunpack.c.h.b16 %v174
    %v2093 = vunpack.c.l.b16 %v175
    %v2094 = vunpack.c.h.b16 %v175
    %v2095 = vunpack.c.l.b16 %v176
    %v2096 = vunpack.c.h.b16 %v176
    %v2097 = vunpack.c.l.b16 %v177
    %v2098 = vunpack.c.h.b16 %v177
    %v2099 = vunpack.c.l.b16 %v178
    %v2100 = vunpack.c.h.b16 %v178
    %v2101 = vunpack.c.l.b16 %v179
    %v2102 = vunpack.c.h.b16 %v179
    %v2103 = vunpack.c.l.b16 %v180
    %v2104 = vunpack.c.h.b16 %v180
    %v2105 = vunpack.c.l.b16 %v181
    %v2106 = vunpack.c.h.b16 %v181
    %v2107 = vunpack.c.l.b16 %v182
    %v2108 = vunpack.c.h.b16 %v182
    %v2109 = vunpack.c.l.b16 %v183
    %v2110 = vunpack.c.h.b16 %v183
    %v2111 = vunpack.c.l.b16 %v184
    %v2112 = vunpack.c.h.b16 %v184
    %v2113 = vunpack.c.l.b16 %v185
    %v2114 = vunpack.c.h.b16 %v185
    %v2115 = vunpack.c.l.b16 %v186
    %v2116 = vunpack.c.h.b16 %v186
    %v2117 = vunpack.c.l.b16 %v187
    %v2118 = vunpack.c.h.b16 %v187
    %v2119 = vunpack.c.l.b16 %v188
    %v2120 = vunpack.c.h.b16 %v188
    %v2121 = vunpack.c.l.b16 %v189
    %v2122 = vunpack.c.h.b16 %v189
    %v2123 = vunpack.c.l.b16 %v190
    %v2124 = vunpack.c.h.b16 %v190
    %v2125 = vunpack.c.l.b16 %v191
    %v2126 = vunpack.c.h.b16 %v191
    %v2127 = vunpack.c.l.b16 %v192
    %v2128 = vunpack.c.h.b16 %v192
    %v2129 = vunpack.c.l.b16 %v193
    %v2130 = vunpack.c.h.b16 %v193
    %v2131 = vunpack.c.l.b16 %v194
    %v2132 = vunpack.c.h.b16 %v194
    %v2133 = vunpack.c.l.b16 %v195
    %v2134 = vunpack.c.h.b16 %v195
    %v2135 = vunpack.c.l.b16 %v196
    %v2136 = vunpack.c.h.b16 %v196
    %v2137 = vunpack.c.l.b16 %v197
    %v2138 = vunpack.c.h.b16 %v197
    %v2139 = vunpack.c.l.b16 %v198
    %v2140 = vunpack.c.h.b16 %v198
    %v2141 = vunpack.c.l.b16 %v199
    %v2142 = vunpack.c.h.b16 %v199
    %v2143 = vunpack.c.l.b16 %v200
    %v2144 = vunpack.c.h.b16 %v200
    %v2145 = vunpack.c.l.b16 %v201
    %v2146 = vunpack.c.h.b16 %v201
    %v2147 = vunpack.c.l.b16 %v202
    %v2148 = vunpack.c.h.b16 %v202
    %v2149 = vunpack.c.l.b16 %v203
    %v2150 = vunpack.c.h.b16 %v203
    %v2151 = vunpack.c.l.b16 %v204
    %v2152 = vunpack.c.h.b16 %v204
    %v2153 = vunpack.c.l.b16 %v205
    %v2154 = vunpack.c.h.b16 %v205
    %v2155 = vunpack.c.l.b16 %v206
    %v2156 = vunpack.c.h.b16 %v206
    %v2157 = vunpack.c.l.b16 %v207
    %v2158 = vunpack.c.h.b16 %v207
    %v2159 = vunpack.c.l.b16 %v208
    %v2160 = vunpack.c.h.b16 %v208
    %v2161 = vpack.c.b16 %v1909, %v1905
    %v2162 = vpack.c.b16 %v1910, %v1906
    %v2163 = vpack.c.b16 %v1911, %v1907
    %v2164 = vpack.c.b16 %v1912, %v1908
    %v2165 = vpack.c.b16 %v1917, %v1913
    %v2166 = vpack.c.b16 %v1918, %v1914
    %v2167 = vpack.c.b16 %v1919, %v1915
    %v2168 = vpack.c.b16 %v1920, %v1916
    %v2169 = vpack.c.b16 %v1925, %v1921
    %v2170 = vpack.c.b16 %v1926, %v1922
    %v2171 = vpack.c.b16 %v1927, %v1923
    %v2172 = vpack.c.b16 %v1928, %v1924
    %v2173 = vpack.c.b16 %v1933, %v1929
    %v2174 = vpack.c.b16 %v1934, %v1930
    %v2175 = vpack.c.b16 %v1935, %v1931
    %v2176 = vpack.c.b16 %v1936, %v1932
    %v2177 = vpack.c.b16 %v1941, %v1937
    %v2178 = vpack.c.b16 %v1942, %v1938
    %v2179 = vpack.c.b16 %v1943, %v1939
    %v2180 = vpack.c.b16 %v1944, %v1940
    %v2181 = vpack.c.b16 %v1949, %v1945
    %v2182 = vpack.c.b16 %v1950, %v1946
    %v2183 = vpack.c.b16 %v1951, %v1947
    %v2184 = vpack.c.b16 %v1952, %v1948
    %v2185 = vpack.c.b16 %v1957, %v1953
    %v2186 = vpack.c.b16 %v1958, %v1954
    %v2187 = vpack.c.b16 %v1959, %v1955
    %v2188 = vpack.c.b16 %v1960, %v1956
    %v2189 = vpack.c.b16 %v1965, %v1961
    %v2190 = vpack.c.b16 %v1966, %v1962
    %v2191 = vpack.c.b16 %v1967, %v1963
    %v2192 = vpack.c.b16 %v1968, %v1964
    %v2193 = vpack.c.b16 %v1973, %v1969
    %v2194 = vpack.c.b16 %v1974, %v1970
    %v2195 = vpack.c.b16 %v1975, %v1971
    %v2196 = vpack.c.b16 %v1976, %v1972
    %v2197 = vpack.c.b16 %v1981, %v1977
    %v2198 = vpack.c.b16 %v1982, %v1978
    %v2199 = vpack.c.b16 %v1983, %v1979
    %v2200 = vpack.c.b16 %v1984, %v1980
    %v2201 = vpack.c.b16 %v1989, %v1985
    %v2202 = vpack.c.b16 %v1990, %v1986
    %v2203 = vpack.c.b16 %v1991, %v1987
    %v2204 = vpack.c.b16 %v1992, %v1988
    %v2205 = vpack.c.b16 %v1997, %v1993
    %v2206 = vpack.c.b16 %v1998, %v1994
    %v2207 = vpack.c.b16 %v1999, %v1995
    %v2208 = vpack.c.b16 %v2000, %v1996
    %v2209 = vpack.c.b16 %v2005, %v2001
    %v2210 = vpack.c.b16 %v2006, %v2002
    %v2211 = vpack.c.b16 %v2007, %v2003
    %v2212 = vpack.c.b16 %v2008, %v2004
    %v2213 = vpack.c.b16 %v2013, %v2009
    %v2214 = vpack.c.b16 %v2014, %v2010
    %v2215 = vpack.c.b16 %v2015, %v2011
    %v2216 = vpack.c.b16 %v2016, %v2012
    %v2217 = vpack.c.b16 %v2021, %v2017
    %v2218 = vpack.c.b16 %v2022, %v2018
    %v2219 = vpack.c.b16 %v2023, %v2019
    %v2220 = vpack.c.b16 %v2024, %v2020
    %v2221 = vpack.c.b16 %v2029, %v2025
    %v2222 = vpack.c.b16 %v2030, %v2026
    %v2223 = vpack.c.b16 %v2031, %v2027
    %v2224 = vpack.c.b16 %v2032, %v2028
    %v2225 = vpack.c.b16 %v2037, %v2033
    %v2226 = vpack.c.b16 %v2038, %v2034
    %v2227 = vpack.c.b16 %v2039, %v2035
    %v2228 = vpack.c.b16 %v2040, %v2036
    %v2229 = vpack.c.b16 %v2045, %v2041
    %v2230 = vpack.c.b16 %v2046, %v2042
    %v2231 = vpack.c.b16 %v2047, %v2043
    %v2232 = vpack.c.b16 %v2048, %v2044
    %v2233 = vpack.c.b16 %v2053, %v2049
    %v2234 = vpack.c.b16 %v2054, %v2050
    %v2235 = vpack.c.b16 %v2055, %v2051
    %v2236 = vpack.c.b16 %v2056, %v2052
    %v2237 = vpack.c.b16 %v2061, %v2057
    %v2238 = vpack.c.b16 %v2062, %v2058
    %v2239 = vpack.c.b16 %v2063, %v2059
    %v2240 = vpack.c.b16 %v2064, %v2060
    %v2241 = vpack.c.b16 %v2069, %v2065
    %v2242 = vpack.c.b16 %v2070, %v2066
    %v2243 = vpack.c.b16 %v2071, %v2067
    %v2244 = vpack.c.b16 %v2072, %v2068
    %v2245 = vpack.c.b16 %v2077, %v2073
    %v2246 = vpack.c.b16 %v2078, %v2074
    %v2247 = vpack.c.b16 %v2079, %v2075
    %v2248 = vpack.c.b16 %v2080, %v2076
    %v2249 = vpack.c.b16 %v2085, %v2081
    %v2250 = vpack.c.b16 %v2086, %v2082
    %v2251 = vpack.c.b16 %v2087, %v2083
    %v2252 = vpack.c.b16 %v2088, %v2084
    %v2253 = vpack.c.b16 %v2093, %v2089
    %v2254 = vpack.c.b16 %v2094, %v2090
    %v2255 = vpack.c.b16 %v2095, %v2091
    %v2256 = vpack.c.b16 %v2096, %v2092
    %v2257 = vpack.c.b16 %v2101, %v2097
    %v2258 = vpack.c.b16 %v2102, %v2098
    %v2259 = vpack.c.b16 %v2103, %v2099
    %v2260 = vpack.c.b16 %v2104, %v2100
    %v2261 = vpack.c.b16 %v2109, %v2105
    %v2262 = vpack.c.b16 %v2110, %v2106
    %v2263 = vpack.c.b16 %v2111, %v2107
    %v2264 = vpack.c.b16 %v2112, %v2108
    %v2265 = vpack.c.b16 %v2117, %v2113
    %v2266 = vpack.c.b16 %v2118, %v2114
    %v2267 = vpack.c.b16 %v2119, %v2115
    %v2268 = vpack.c.b16 %v2120, %v2116
    %v2269 = vpack.c.b16 %v2125, %v2121
    %v2270 = vpack.c.b16 %v2126, %v2122
    %v2271 = vpack.c.b16 %v2127, %v2123
    %v2272 = vpack.c.b16 %v2128, %v2124
    %v2273 = vpack.c.b16 %v2133, %v2129
    %v2274 = vpack.c.b16 %v2134, %v2130
    %v2275 = vpack.c.b16 %v2135, %v2131
    %v2276 = vpack.c.b16 %v2136, %v2132
    %v2277 = vpack.c.b16 %v2141, %v2137
    %v2278 = vpack.c.b16 %v2142, %v2138
    %v2279 = vpack.c.b16 %v2143, %v2139
    %v2280 = vpack.c.b16 %v2144, %v2140
    %v2281 = vpack.c.b16 %v2149, %v2145
    %v2282 = vpack.c.b16 %v2150, %v2146
    %v2283 = vpack.c.b16 %v2151, %v2147
    %v2284 = vpack.c.b16 %v2152, %v2148
    %v2285 = vpack.c.b16 %v2157, %v2153
    %v2286 = vpack.c.b16 %v2158, %v2154
    %v2287 = vpack.c.b16 %v2159, %v2155
    %v2288 = vpack.c.b16 %v2160, %v2156
    %2417 = vmatpush.bf16.msra.mxu0 %v2189
    %2418 = vmatpush.bf16.msra.mxu0 %v2185
    %2419 = vmatpush.bf16.msra.mxu0 %v2181
    %2420 = vmatpush.bf16.msra.mxu0 %v2177
    %2421 = vmatpush.bf16.msra.mxu0 %v2173
    %2422 = vmatpush.bf16.msra.mxu0 %v2169
    %2423 = vmatpush.bf16.msra.mxu0 %v2165
    %2424 = vmatpush.bf16.msra.mxu0 %v2161
    %2425 = vmatmul.bf16.gmra.mxu0 %v392
    %v2426 = vpop.f32.mrf.mxu0
    %v2427 = vadd.f32 %v1338, %v2426
    %v2428 = vpop.f32.mrf.mxu0
    %v2429 = vadd.f32 %v1340, %v2428
    %2430 = vmatmul.bf16.gmra.mxu0 %v396
    %v2431 = vpop.f32.mrf.mxu0
    %v2432 = vadd.f32 %v1343, %v2431
    %v2433 = vpop.f32.mrf.mxu0
    %v2434 = vadd.f32 %v1345, %v2433
    %2435 = vmatmul.bf16.gmra.mxu0 %v400
    %v2436 = vpop.f32.mrf.mxu0
    %v2437 = vadd.f32 %v1348, %v2436
    %v2438 = vpop.f32.mrf.mxu0
    %v2439 = vadd.f32 %v1350, %v2438
    %2440 = vmatmul.bf16.gmra.mxu0 %v404
    %v2441 = vpop.f32.mrf.mxu0
    %v2442 = vadd.f32 %v1353, %v2441
    %v2443 = vpop.f32.mrf.mxu0
    %v2444 = vadd.f32 %v1355, %v2443
    %2445 = vmatmul.bf16.gmra.mxu0 %v408
    %v2446 = vpop.f32.mrf.mxu0
    %v2447 = vadd.f32 %v1358, %v2446
    %v2448 = vpop.f32.mrf.mxu0
    %2449 = vdwg.mxu0
    %2450 = vmatpush.bf16.msra.mxu0 %v2221
    %2451 = vmatpush.bf16.msra.mxu0 %v2217
    %2452 = vmatpush.bf16.msra.mxu0 %v2213
    %2453 = vmatpush.bf16.msra.mxu0 %v2209
    %2454 = vmatpush.bf16.msra.mxu0 %v2205
    %2455 = vmatpush.bf16.msra.mxu0 %v2201
    %2456 = vmatpush.bf16.msra.mxu0 %v2197
    %2457 = vmatpush.bf16.msra.mxu0 %v2193
    %2458 = vmatmul.bf16.gmra.mxu0 %v393
    %v2459 = vpop.f32.mrf.mxu0
    %v2460 = vadd.f32 %v2427, %v2459
    %v2461 = vpop.f32.mrf.mxu0
    %v2462 = vadd.f32 %v2429, %v2461
    %2463 = vmatmul.bf16.gmra.mxu0 %v397
    %v2464 = vpop.f32.mrf.mxu0
    %v2465 = vadd.f32 %v2432, %v2464
    %v2466 = vpop.f32.mrf.mxu0
    %v2467 = vadd.f32 %v2434, %v2466
    %2468 = vmatmul.bf16.gmra.mxu0 %v401
    %v2469 = vpop.f32.mrf.mxu0
    %v2470 = vadd.f32 %v2437, %v2469
    %v2471 = vpop.f32.mrf.mxu0
    %v2472 = vadd.f32 %v2439, %v2471
    %2473 = vmatmul.bf16.gmra.mxu0 %v405
    %v2474 = vpop.f32.mrf.mxu0
    %v2475 = vadd.f32 %v2442, %v2474
    %v2476 = vpop.f32.mrf.mxu0
    %v2477 = vadd.f32 %v2444, %v2476
    %2478 = vmatmul.bf16.gmra.mxu0 %v409
    %v2479 = vpop.f32.mrf.mxu0
    %v2480 = vadd.f32 %v2447, %v2479
    %v2481 = vpop.f32.mrf.mxu0
    %2482 = vdwg.mxu0
    %2483 = vmatpush.bf16.msra.mxu0 %v2253
    %2484 = vmatpush.bf16.msra.mxu0 %v2249
    %2485 = vmatpush.bf16.msra.mxu0 %v2245
    %2486 = vmatpush.bf16.msra.mxu0 %v2241
    %2487 = vmatpush.bf16.msra.mxu0 %v2237
    %2488 = vmatpush.bf16.msra.mxu0 %v2233
    %2489 = vmatpush.bf16.msra.mxu0 %v2229
    %2490 = vmatpush.bf16.msra.mxu0 %v2225
    %2491 = vmatmul.bf16.gmra.mxu0 %v394
    %v2492 = vpop.f32.mrf.mxu0
    %v2493 = vadd.f32 %v2460, %v2492
    %v2494 = vpop.f32.mrf.mxu0
    %v2495 = vadd.f32 %v2462, %v2494
    %2496 = vmatmul.bf16.gmra.mxu0 %v398
    %v2497 = vpop.f32.mrf.mxu0
    %v2498 = vadd.f32 %v2465, %v2497
    %v2499 = vpop.f32.mrf.mxu0
    %v2500 = vadd.f32 %v2467, %v2499
    %2501 = vmatmul.bf16.gmra.mxu0 %v402
    %v2502 = vpop.f32.mrf.mxu0
    %v2503 = vadd.f32 %v2470, %v2502
    %v2504 = vpop.f32.mrf.mxu0
    %v2505 = vadd.f32 %v2472, %v2504
    %2506 = vmatmul.bf16.gmra.mxu0 %v406
    %v2507 = vpop.f32.mrf.mxu0
    %v2508 = vadd.f32 %v2475, %v2507
    %v2509 = vpop.f32.mrf.mxu0
    %v2510 = vadd.f32 %v2477, %v2509
    %2511 = vmatmul.bf16.gmra.mxu0 %v410
    %v2512 = vpop.f32.mrf.mxu0
    %v2513 = vadd.f32 %v2480, %v2512
    %v2514 = vpop.f32.mrf.mxu0
    %2515 = vdwg.mxu0
    %2516 = vmatpush.bf16.msra.mxu0 %v2285
    %2517 = vmatpush.bf16.msra.mxu0 %v2281
    %2518 = vmatpush.bf16.msra.mxu0 %v2277
    %2519 = vmatpush.bf16.msra.mxu0 %v2273
    %2520 = vmatpush.bf16.msra.mxu0 %v2269
    %2521 = vmatpush.bf16.msra.mxu0 %v2265
    %2522 = vmatpush.bf16.msra.mxu0 %v2261
    %2523 = vmatpush.bf16.msra.mxu0 %v2257
    %2524 = vmatmul.bf16.gmra.mxu0 %v395
    %v2525 = vpop.f32.mrf.mxu0
    %v2526 = vadd.f32 %v2493, %v2525
    %v2527 = vpop.f32.mrf.mxu0
    %v2528 = vadd.f32 %v2495, %v2527
    %2529 = vmatmul.bf16.gmra.mxu0 %v399
    %v2530 = vpop.f32.mrf.mxu0
    %v2531 = vadd.f32 %v2498, %v2530
    %v2532 = vpop.f32.mrf.mxu0
    %v2533 = vadd.f32 %v2500, %v2532
    %2534 = vmatmul.bf16.gmra.mxu0 %v403
    %v2535 = vpop.f32.mrf.mxu0
    %v2536 = vadd.f32 %v2503, %v2535
    %v2537 = vpop.f32.mrf.mxu0
    %v2538 = vadd.f32 %v2505, %v2537
    %2539 = vmatmul.bf16.gmra.mxu0 %v407
    %v2540 = vpop.f32.mrf.mxu0
    %v2541 = vadd.f32 %v2508, %v2540
    %v2542 = vpop.f32.mrf.mxu0
    %v2543 = vadd.f32 %v2510, %v2542
    %2544 = vmatmul.bf16.gmra.mxu0 %v411
    %v2545 = vpop.f32.mrf.mxu0
    %v2546 = vadd.f32 %v2513, %v2545
    %v2547 = vpop.f32.mrf.mxu0
    %2548 = vdwg.mxu0
    %2549 = vmatpush.bf16.msra.mxu0 %v2190
    %2550 = vmatpush.bf16.msra.mxu0 %v2186
    %2551 = vmatpush.bf16.msra.mxu0 %v2182
    %2552 = vmatpush.bf16.msra.mxu0 %v2178
    %2553 = vmatpush.bf16.msra.mxu0 %v2174
    %2554 = vmatpush.bf16.msra.mxu0 %v2170
    %2555 = vmatpush.bf16.msra.mxu0 %v2166
    %2556 = vmatpush.bf16.msra.mxu0 %v2162
    %2557 = vmatmul.bf16.gmra.mxu0 %v392
    %v2558 = vpop.f32.mrf.mxu0
    %v2559 = vadd.f32 %v1470, %v2558
    %v2560 = vpop.f32.mrf.mxu0
    %v2561 = vadd.f32 %v1472, %v2560
    %2562 = vmatmul.bf16.gmra.mxu0 %v396
    %v2563 = vpop.f32.mrf.mxu0
    %v2564 = vadd.f32 %v1475, %v2563
    %v2565 = vpop.f32.mrf.mxu0
    %v2566 = vadd.f32 %v1477, %v2565
    %2567 = vmatmul.bf16.gmra.mxu0 %v400
    %v2568 = vpop.f32.mrf.mxu0
    %v2569 = vadd.f32 %v1480, %v2568
    %v2570 = vpop.f32.mrf.mxu0
    %v2571 = vadd.f32 %v1482, %v2570
    %2572 = vmatmul.bf16.gmra.mxu0 %v404
    %v2573 = vpop.f32.mrf.mxu0
    %v2574 = vadd.f32 %v1485, %v2573
    %v2575 = vpop.f32.mrf.mxu0
    %v2576 = vadd.f32 %v1487, %v2575
    %2577 = vmatmul.bf16.gmra.mxu0 %v408
    %v2578 = vpop.f32.mrf.mxu0
    %v2579 = vadd.f32 %v1490, %v2578
    %v2580 = vpop.f32.mrf.mxu0
    %2581 = vdwg.mxu0
    %2582 = vmatpush.bf16.msra.mxu0 %v2222
    %2583 = vmatpush.bf16.msra.mxu0 %v2218
    %2584 = vmatpush.bf16.msra.mxu0 %v2214
    %2585 = vmatpush.bf16.msra.mxu0 %v2210
    %2586 = vmatpush.bf16.msra.mxu0 %v2206
    %2587 = vmatpush.bf16.msra.mxu0 %v2202
    %2588 = vmatpush.bf16.msra.mxu0 %v2198
    %2589 = vmatpush.bf16.msra.mxu0 %v2194
    %2590 = vmatmul.bf16.gmra.mxu0 %v393
    %v2591 = vpop.f32.mrf.mxu0
    %v2592 = vadd.f32 %v2559, %v2591
    %v2593 = vpop.f32.mrf.mxu0
    %v2594 = vadd.f32 %v2561, %v2593
    %2595 = vmatmul.bf16.gmra.mxu0 %v397
    %v2596 = vpop.f32.mrf.mxu0
    %v2597 = vadd.f32 %v2564, %v2596
    %v2598 = vpop.f32.mrf.mxu0
    %v2599 = vadd.f32 %v2566, %v2598
    %2600 = vmatmul.bf16.gmra.mxu0 %v401
    %v2601 = vpop.f32.mrf.mxu0
    %v2602 = vadd.f32 %v2569, %v2601
    %v2603 = vpop.f32.mrf.mxu0
    %v2604 = vadd.f32 %v2571, %v2603
    %2605 = vmatmul.bf16.gmra.mxu0 %v405
    %v2606 = vpop.f32.mrf.mxu0
    %v2607 = vadd.f32 %v2574, %v2606
    %v2608 = vpop.f32.mrf.mxu0
    %v2609 = vadd.f32 %v2576, %v2608
    %2610 = vmatmul.bf16.gmra.mxu0 %v409
    %v2611 = vpop.f32.mrf.mxu0
    %v2612 = vadd.f32 %v2579, %v2611
    %v2613 = vpop.f32.mrf.mxu0
    %2614 = vdwg.mxu0
    %2615 = vmatpush.bf16.msra.mxu0 %v2254
    %2616 = vmatpush.bf16.msra.mxu0 %v2250
    %2617 = vmatpush.bf16.msra.mxu0 %v2246
    %2618 = vmatpush.bf16.msra.mxu0 %v2242
    %2619 = vmatpush.bf16.msra.mxu0 %v2238
    %2620 = vmatpush.bf16.msra.mxu0 %v2234
    %2621 = vmatpush.bf16.msra.mxu0 %v2230
    %2622 = vmatpush.bf16.msra.mxu0 %v2226
    %2623 = vmatmul.bf16.gmra.mxu0 %v394
    %v2624 = vpop.f32.mrf.mxu0
    %v2625 = vadd.f32 %v2592, %v2624
    %v2626 = vpop.f32.mrf.mxu0
    %v2627 = vadd.f32 %v2594, %v2626
    %2628 = vmatmul.bf16.gmra.mxu0 %v398
    %v2629 = vpop.f32.mrf.mxu0
    %v2630 = vadd.f32 %v2597, %v2629
    %v2631 = vpop.f32.mrf.mxu0
    %v2632 = vadd.f32 %v2599, %v2631
    %2633 = vmatmul.bf16.gmra.mxu0 %v402
    %v2634 = vpop.f32.mrf.mxu0
    %v2635 = vadd.f32 %v2602, %v2634
    %v2636 = vpop.f32.mrf.mxu0
    %v2637 = vadd.f32 %v2604, %v2636
    %2638 = vmatmul.bf16.gmra.mxu0 %v406
    %v2639 = vpop.f32.mrf.mxu0
    %v2640 = vadd.f32 %v2607, %v2639
    %v2641 = vpop.f32.mrf.mxu0
    %v2642 = vadd.f32 %v2609, %v2641
    %2643 = vmatmul.bf16.gmra.mxu0 %v410
    %v2644 = vpop.f32.mrf.mxu0
    %v2645 = vadd.f32 %v2612, %v2644
    %v2646 = vpop.f32.mrf.mxu0
    %2647 = vdwg.mxu0
    %2648 = vmatpush.bf16.msra.mxu0 %v2286
    %2649 = vmatpush.bf16.msra.mxu0 %v2282
    %2650 = vmatpush.bf16.msra.mxu0 %v2278
    %2651 = vmatpush.bf16.msra.mxu0 %v2274
    %2652 = vmatpush.bf16.msra.mxu0 %v2270
    %2653 = vmatpush.bf16.msra.mxu0 %v2266
    %2654 = vmatpush.bf16.msra.mxu0 %v2262
    %2655 = vmatpush.bf16.msra.mxu0 %v2258
    %2656 = vmatmul.bf16.gmra.mxu0 %v395
    %v2657 = vpop.f32.mrf.mxu0
    %v2658 = vadd.f32 %v2625, %v2657
    %v2659 = vpop.f32.mrf.mxu0
    %v2660 = vadd.f32 %v2627, %v2659
    %2661 = vmatmul.bf16.gmra.mxu0 %v399
    %v2662 = vpop.f32.mrf.mxu0
    %v2663 = vadd.f32 %v2630, %v2662
    %v2664 = vpop.f32.mrf.mxu0
    %v2665 = vadd.f32 %v2632, %v2664
    %2666 = vmatmul.bf16.gmra.mxu0 %v403
    %v2667 = vpop.f32.mrf.mxu0
    %v2668 = vadd.f32 %v2635, %v2667
    %v2669 = vpop.f32.mrf.mxu0
    %v2670 = vadd.f32 %v2637, %v2669
    %2671 = vmatmul.bf16.gmra.mxu0 %v407
    %v2672 = vpop.f32.mrf.mxu0
    %v2673 = vadd.f32 %v2640, %v2672
    %v2674 = vpop.f32.mrf.mxu0
    %v2675 = vadd.f32 %v2642, %v2674
    %2676 = vmatmul.bf16.gmra.mxu0 %v411
    %v2677 = vpop.f32.mrf.mxu0
    %v2678 = vadd.f32 %v2645, %v2677
    %v2679 = vpop.f32.mrf.mxu0
    %2680 = vdwg.mxu0
    %2681 = vmatpush.bf16.msra.mxu0 %v2191
    %2682 = vmatpush.bf16.msra.mxu0 %v2187
    %2683 = vmatpush.bf16.msra.mxu0 %v2183
    %2684 = vmatpush.bf16.msra.mxu0 %v2179
    %2685 = vmatpush.bf16.msra.mxu0 %v2175
    %2686 = vmatpush.bf16.msra.mxu0 %v2171
    %2687 = vmatpush.bf16.msra.mxu0 %v2167
    %2688 = vmatpush.bf16.msra.mxu0 %v2163
    %2689 = vmatmul.bf16.gmra.mxu0 %v392
    %v2690 = vpop.f32.mrf.mxu0
    %v2691 = vadd.f32 %v1602, %v2690
    %v2692 = vpop.f32.mrf.mxu0
    %v2693 = vadd.f32 %v1604, %v2692
    %2694 = vmatmul.bf16.gmra.mxu0 %v396
    %v2695 = vpop.f32.mrf.mxu0
    %v2696 = vadd.f32 %v1607, %v2695
    %v2697 = vpop.f32.mrf.mxu0
    %v2698 = vadd.f32 %v1609, %v2697
    %2699 = vmatmul.bf16.gmra.mxu0 %v400
    %v2700 = vpop.f32.mrf.mxu0
    %v2701 = vadd.f32 %v1612, %v2700
    %v2702 = vpop.f32.mrf.mxu0
    %v2703 = vadd.f32 %v1614, %v2702
    %2704 = vmatmul.bf16.gmra.mxu0 %v404
    %v2705 = vpop.f32.mrf.mxu0
    %v2706 = vadd.f32 %v1617, %v2705
    %v2707 = vpop.f32.mrf.mxu0
    %v2708 = vadd.f32 %v1619, %v2707
    %2709 = vmatmul.bf16.gmra.mxu0 %v408
    %v2710 = vpop.f32.mrf.mxu0
    %v2711 = vadd.f32 %v1622, %v2710
    %v2712 = vpop.f32.mrf.mxu0
    %2713 = vdwg.mxu0
    %2714 = vmatpush.bf16.msra.mxu0 %v2223
    %2715 = vmatpush.bf16.msra.mxu0 %v2219
    %2716 = vmatpush.bf16.msra.mxu0 %v2215
    %2717 = vmatpush.bf16.msra.mxu0 %v2211
    %2718 = vmatpush.bf16.msra.mxu0 %v2207
    %2719 = vmatpush.bf16.msra.mxu0 %v2203
    %2720 = vmatpush.bf16.msra.mxu0 %v2199
    %2721 = vmatpush.bf16.msra.mxu0 %v2195
    %2722 = vmatmul.bf16.gmra.mxu0 %v393
    %v2723 = vpop.f32.mrf.mxu0
    %v2724 = vadd.f32 %v2691, %v2723
    %v2725 = vpop.f32.mrf.mxu0
    %v2726 = vadd.f32 %v2693, %v2725
    %2727 = vmatmul.bf16.gmra.mxu0 %v397
    %v2728 = vpop.f32.mrf.mxu0
    %v2729 = vadd.f32 %v2696, %v2728
    %v2730 = vpop.f32.mrf.mxu0
    %v2731 = vadd.f32 %v2698, %v2730
    %2732 = vmatmul.bf16.gmra.mxu0 %v401
    %v2733 = vpop.f32.mrf.mxu0
    %v2734 = vadd.f32 %v2701, %v2733
    %v2735 = vpop.f32.mrf.mxu0
    %v2736 = vadd.f32 %v2703, %v2735
    %2737 = vmatmul.bf16.gmra.mxu0 %v405
    %v2738 = vpop.f32.mrf.mxu0
    %v2739 = vadd.f32 %v2706, %v2738
    %v2740 = vpop.f32.mrf.mxu0
    %v2741 = vadd.f32 %v2708, %v2740
    %2742 = vmatmul.bf16.gmra.mxu0 %v409
    %v2743 = vpop.f32.mrf.mxu0
    %v2744 = vadd.f32 %v2711, %v2743
    %v2745 = vpop.f32.mrf.mxu0
    %2746 = vdwg.mxu0
    %2747 = vmatpush.bf16.msra.mxu0 %v2255
    %2748 = vmatpush.bf16.msra.mxu0 %v2251
    %2749 = vmatpush.bf16.msra.mxu0 %v2247
    %2750 = vmatpush.bf16.msra.mxu0 %v2243
    %2751 = vmatpush.bf16.msra.mxu0 %v2239
    %2752 = vmatpush.bf16.msra.mxu0 %v2235
    %2753 = vmatpush.bf16.msra.mxu0 %v2231
    %2754 = vmatpush.bf16.msra.mxu0 %v2227
    %2755 = vmatmul.bf16.gmra.mxu0 %v394
    %v2756 = vpop.f32.mrf.mxu0
    %v2757 = vadd.f32 %v2724, %v2756
    %v2758 = vpop.f32.mrf.mxu0
    %v2759 = vadd.f32 %v2726, %v2758
    %2760 = vmatmul.bf16.gmra.mxu0 %v398
    %v2761 = vpop.f32.mrf.mxu0
    %v2762 = vadd.f32 %v2729, %v2761
    %v2763 = vpop.f32.mrf.mxu0
    %v2764 = vadd.f32 %v2731, %v2763
    %2765 = vmatmul.bf16.gmra.mxu0 %v402
    %v2766 = vpop.f32.mrf.mxu0
    %v2767 = vadd.f32 %v2734, %v2766
    %v2768 = vpop.f32.mrf.mxu0
    %v2769 = vadd.f32 %v2736, %v2768
    %2770 = vmatmul.bf16.gmra.mxu0 %v406
    %v2771 = vpop.f32.mrf.mxu0
    %v2772 = vadd.f32 %v2739, %v2771
    %v2773 = vpop.f32.mrf.mxu0
    %v2774 = vadd.f32 %v2741, %v2773
    %2775 = vmatmul.bf16.gmra.mxu0 %v410
    %v2776 = vpop.f32.mrf.mxu0
    %v2777 = vadd.f32 %v2744, %v2776
    %v2778 = vpop.f32.mrf.mxu0
    %2779 = vdwg.mxu0
    %2780 = vmatpush.bf16.msra.mxu0 %v2287
    %2781 = vmatpush.bf16.msra.mxu0 %v2283
    %2782 = vmatpush.bf16.msra.mxu0 %v2279
    %2783 = vmatpush.bf16.msra.mxu0 %v2275
    %2784 = vmatpush.bf16.msra.mxu0 %v2271
    %2785 = vmatpush.bf16.msra.mxu0 %v2267
    %2786 = vmatpush.bf16.msra.mxu0 %v2263
    %2787 = vmatpush.bf16.msra.mxu0 %v2259
    %2788 = vmatmul.bf16.gmra.mxu0 %v395
    %v2789 = vpop.f32.mrf.mxu0
    %v2790 = vadd.f32 %v2757, %v2789
    %v2791 = vpop.f32.mrf.mxu0
    %v2792 = vadd.f32 %v2759, %v2791
    %2793 = vmatmul.bf16.gmra.mxu0 %v399
    %v2794 = vpop.f32.mrf.mxu0
    %v2795 = vadd.f32 %v2762, %v2794
    %v2796 = vpop.f32.mrf.mxu0
    %v2797 = vadd.f32 %v2764, %v2796
    %2798 = vmatmul.bf16.gmra.mxu0 %v403
    %v2799 = vpop.f32.mrf.mxu0
    %v2800 = vadd.f32 %v2767, %v2799
    %v2801 = vpop.f32.mrf.mxu0
    %v2802 = vadd.f32 %v2769, %v2801
    %2803 = vmatmul.bf16.gmra.mxu0 %v407
    %v2804 = vpop.f32.mrf.mxu0
    %v2805 = vadd.f32 %v2772, %v2804
    %v2806 = vpop.f32.mrf.mxu0
    %v2807 = vadd.f32 %v2774, %v2806
    %2808 = vmatmul.bf16.gmra.mxu0 %v411
    %v2809 = vpop.f32.mrf.mxu0
    %v2810 = vadd.f32 %v2777, %v2809
    %v2811 = vpop.f32.mrf.mxu0
    %2812 = vdwg.mxu0
    %2813 = vmatpush.bf16.msra.mxu0 %v2192
    %2814 = vmatpush.bf16.msra.mxu0 %v2188
    %2815 = vmatpush.bf16.msra.mxu0 %v2184
    %2816 = vmatpush.bf16.msra.mxu0 %v2180
    %2817 = vmatpush.bf16.msra.mxu0 %v2176
    %2818 = vmatpush.bf16.msra.mxu0 %v2172
    %2819 = vmatpush.bf16.msra.mxu0 %v2168
    %2820 = vmatpush.bf16.msra.mxu0 %v2164
    %2821 = vmatmul.bf16.gmra.mxu0 %v392
    %v2822 = vpop.f32.mrf.mxu0
    %v2823 = vadd.f32 %v1734, %v2822
    %v2824 = vpop.f32.mrf.mxu0
    %v2825 = vadd.f32 %v1736, %v2824
    %2826 = vmatmul.bf16.gmra.mxu0 %v396
    %v2827 = vpop.f32.mrf.mxu0
    %v2828 = vadd.f32 %v1739, %v2827
    %v2829 = vpop.f32.mrf.mxu0
    %v2830 = vadd.f32 %v1741, %v2829
    %2831 = vmatmul.bf16.gmra.mxu0 %v400
    %v2832 = vpop.f32.mrf.mxu0
    %v2833 = vadd.f32 %v1744, %v2832
    %v2834 = vpop.f32.mrf.mxu0
    %v2835 = vadd.f32 %v1746, %v2834
    %2836 = vmatmul.bf16.gmra.mxu0 %v404
    %v2837 = vpop.f32.mrf.mxu0
    %v2838 = vadd.f32 %v1749, %v2837
    %v2839 = vpop.f32.mrf.mxu0
    %v2840 = vadd.f32 %v1751, %v2839
    %2841 = vmatmul.bf16.gmra.mxu0 %v408
    %v2842 = vpop.f32.mrf.mxu0
    %v2843 = vadd.f32 %v1754, %v2842
    %v2844 = vpop.f32.mrf.mxu0
    %2845 = vdwg.mxu0
    %2846 = vmatpush.bf16.msra.mxu0 %v2224
    %2847 = vmatpush.bf16.msra.mxu0 %v2220
    %2848 = vmatpush.bf16.msra.mxu0 %v2216
    %2849 = vmatpush.bf16.msra.mxu0 %v2212
    %2850 = vmatpush.bf16.msra.mxu0 %v2208
    %2851 = vmatpush.bf16.msra.mxu0 %v2204
    %2852 = vmatpush.bf16.msra.mxu0 %v2200
    %2853 = vmatpush.bf16.msra.mxu0 %v2196
    %2854 = vmatmul.bf16.gmra.mxu0 %v393
    %v2855 = vpop.f32.mrf.mxu0
    %v2856 = vadd.f32 %v2823, %v2855
    %v2857 = vpop.f32.mrf.mxu0
    %v2858 = vadd.f32 %v2825, %v2857
    %2859 = vmatmul.bf16.gmra.mxu0 %v397
    %v2860 = vpop.f32.mrf.mxu0
    %v2861 = vadd.f32 %v2828, %v2860
    %v2862 = vpop.f32.mrf.mxu0
    %v2863 = vadd.f32 %v2830, %v2862
    %2864 = vmatmul.bf16.gmra.mxu0 %v401
    %v2865 = vpop.f32.mrf.mxu0
    %v2866 = vadd.f32 %v2833, %v2865
    %v2867 = vpop.f32.mrf.mxu0
    %v2868 = vadd.f32 %v2835, %v2867
    %2869 = vmatmul.bf16.gmra.mxu0 %v405
    %v2870 = vpop.f32.mrf.mxu0
    %v2871 = vadd.f32 %v2838, %v2870
    %v2872 = vpop.f32.mrf.mxu0
    %v2873 = vadd.f32 %v2840, %v2872
    %2874 = vmatmul.bf16.gmra.mxu0 %v409
    %v2875 = vpop.f32.mrf.mxu0
    %v2876 = vadd.f32 %v2843, %v2875
    %v2877 = vpop.f32.mrf.mxu0
    %2878 = vdwg.mxu0
    %2879 = vmatpush.bf16.msra.mxu0 %v2256
    %2880 = vmatpush.bf16.msra.mxu0 %v2252
    %2881 = vmatpush.bf16.msra.mxu0 %v2248
    %2882 = vmatpush.bf16.msra.mxu0 %v2244
    %2883 = vmatpush.bf16.msra.mxu0 %v2240
    %2884 = vmatpush.bf16.msra.mxu0 %v2236
    %2885 = vmatpush.bf16.msra.mxu0 %v2232
    %2886 = vmatpush.bf16.msra.mxu0 %v2228
    %2887 = vmatmul.bf16.gmra.mxu0 %v394
    %v2888 = vpop.f32.mrf.mxu0
    %v2889 = vadd.f32 %v2856, %v2888
    %v2890 = vpop.f32.mrf.mxu0
    %v2891 = vadd.f32 %v2858, %v2890
    %2892 = vmatmul.bf16.gmra.mxu0 %v398
    %v2893 = vpop.f32.mrf.mxu0
    %v2894 = vadd.f32 %v2861, %v2893
    %v2895 = vpop.f32.mrf.mxu0
    %v2896 = vadd.f32 %v2863, %v2895
    %2897 = vmatmul.bf16.gmra.mxu0 %v402
    %v2898 = vpop.f32.mrf.mxu0
    %v2899 = vadd.f32 %v2866, %v2898
    %v2900 = vpop.f32.mrf.mxu0
    %v2901 = vadd.f32 %v2868, %v2900
    %2902 = vmatmul.bf16.gmra.mxu0 %v406
    %v2903 = vpop.f32.mrf.mxu0
    %v2904 = vadd.f32 %v2871, %v2903
    %v2905 = vpop.f32.mrf.mxu0
    %v2906 = vadd.f32 %v2873, %v2905
    %2907 = vmatmul.bf16.gmra.mxu0 %v410
    %v2908 = vpop.f32.mrf.mxu0
    %v2909 = vadd.f32 %v2876, %v2908
    %v2910 = vpop.f32.mrf.mxu0
    %2911 = vdwg.mxu0
    %2912 = vmatpush.bf16.msra.mxu0 %v2288
    %2913 = vmatpush.bf16.msra.mxu0 %v2284
    %2914 = vmatpush.bf16.msra.mxu0 %v2280
    %2915 = vmatpush.bf16.msra.mxu0 %v2276
    %2916 = vmatpush.bf16.msra.mxu0 %v2272
    %2917 = vmatpush.bf16.msra.mxu0 %v2268
    %2918 = vmatpush.bf16.msra.mxu0 %v2264
    %2919 = vmatpush.bf16.msra.mxu0 %v2260
    %2920 = vmatmul.bf16.gmra.mxu0 %v395
    %v2921 = vpop.f32.mrf.mxu0
    %v2922 = vadd.f32 %v2889, %v2921
    %v2923 = vpop.f32.mrf.mxu0
    %v2924 = vadd.f32 %v2891, %v2923
    %2925 = vmatmul.bf16.gmra.mxu0 %v399
    %v2926 = vpop.f32.mrf.mxu0
    %v2927 = vadd.f32 %v2894, %v2926
    %v2928 = vpop.f32.mrf.mxu0
    %v2929 = vadd.f32 %v2896, %v2928
    %2930 = vmatmul.bf16.gmra.mxu0 %v403
    %v2931 = vpop.f32.mrf.mxu0
    %v2932 = vadd.f32 %v2899, %v2931
    %v2933 = vpop.f32.mrf.mxu0
    %v2934 = vadd.f32 %v2901, %v2933
    %2935 = vmatmul.bf16.gmra.mxu0 %v407
    %v2936 = vpop.f32.mrf.mxu0
    %v2937 = vadd.f32 %v2904, %v2936
    %v2938 = vpop.f32.mrf.mxu0
    %v2939 = vadd.f32 %v2906, %v2938
    %2940 = vmatmul.bf16.gmra.mxu0 %v411
    %v2941 = vpop.f32.mrf.mxu0
    %v2942 = vadd.f32 %v2909, %v2941
    %v2943 = vpop.f32.mrf.mxu0
    %2944 = vdwg.mxu0
    %s2945 = scalar_lea.vmem [#allocation2], 2048
    %v2946 = vld [vmem:[%s2945] sm:$0xff]
    %v2947 = vld [vmem:[%s2945 + $0x8] sm:$0xff]
    %v2948 = vld [vmem:[%s2945 + $0x10] sm:$0xff]
    %v2949 = vld [vmem:[%s2945 + $0x18] sm:$0xff]
    %v2950 = vld [vmem:[%s2945 + $0x20] sm:$0xff]
    %v2951 = vld [vmem:[%s2945 + $0x28] sm:$0xff]
    %v2952 = vld [vmem:[%s2945 + $0x30] sm:$0xff]
    %v2953 = vld [vmem:[%s2945 + $0x38] sm:$0xff]
    %v2954 = vld [vmem:[%s2945 + $0x40] sm:$0xff]
    %v2955 = vld [vmem:[%s2945 + $0x48] sm:$0xff]
    %v2956 = vld [vmem:[%s2945 + $0x50] sm:$0xff]
    %v2957 = vld [vmem:[%s2945 + $0x58] sm:$0xff]
    %v2958 = vld [vmem:[%s2945 + $0x60] sm:$0xff]
    %v2959 = vld [vmem:[%s2945 + $0x68] sm:$0xff]
    %v2960 = vld [vmem:[%s2945 + $0x70] sm:$0xff]
    %v2961 = vld [vmem:[%s2945 + $0x78] sm:$0xff]
    %v2962 = vld [vmem:[%s2945 + $0x80] sm:$0xff]
    %v2963 = vld [vmem:[%s2945 + $0x88] sm:$0xff]
    %v2964 = vld [vmem:[%s2945 + $0x90] sm:$0xff]
    %v2965 = vld [vmem:[%s2945 + $0x98] sm:$0xff]
    %v2966 = vld [vmem:[%s2945 + $0xa0] sm:$0xff]
    %v2967 = vld [vmem:[%s2945 + $0xa8] sm:$0xff]
    %v2968 = vld [vmem:[%s2945 + $0xb0] sm:$0xff]
    %v2969 = vld [vmem:[%s2945 + $0xb8] sm:$0xff]
    %v2970 = vld [vmem:[%s2945 + $0xc0] sm:$0xff]
    %v2971 = vld [vmem:[%s2945 + $0xc8] sm:$0xff]
    %v2972 = vld [vmem:[%s2945 + $0xd0] sm:$0xff]
    %v2973 = vld [vmem:[%s2945 + $0xd8] sm:$0xff]
    %v2974 = vld [vmem:[%s2945 + $0xe0] sm:$0xff]
    %v2975 = vld [vmem:[%s2945 + $0xe8] sm:$0xff]
    %v2976 = vld [vmem:[%s2945 + $0xf0] sm:$0xff]
    %v2977 = vld [vmem:[%s2945 + $0xf8] sm:$0xff]
    %v2978 = vld [vmem:[%s2945 + $0x100] sm:$0xff]
    %v2979 = vld [vmem:[%s2945 + $0x108] sm:$0xff]
    %v2980 = vld [vmem:[%s2945 + $0x110] sm:$0xff]
    %v2981 = vld [vmem:[%s2945 + $0x118] sm:$0xff]
    %v2982 = vld [vmem:[%s2945 + $0x120] sm:$0xff]
    %v2983 = vld [vmem:[%s2945 + $0x128] sm:$0xff]
    %v2984 = vld [vmem:[%s2945 + $0x130] sm:$0xff]
    %v2985 = vld [vmem:[%s2945 + $0x138] sm:$0xff]
    %v2986 = vld [vmem:[%s2945 + $0x140] sm:$0xff]
    %v2987 = vld [vmem:[%s2945 + $0x148] sm:$0xff]
    %v2988 = vld [vmem:[%s2945 + $0x150] sm:$0xff]
    %v2989 = vld [vmem:[%s2945 + $0x158] sm:$0xff]
    %v2990 = vld [vmem:[%s2945 + $0x160] sm:$0xff]
    %v2991 = vld [vmem:[%s2945 + $0x168] sm:$0xff]
    %v2992 = vld [vmem:[%s2945 + $0x170] sm:$0xff]
    %v2993 = vld [vmem:[%s2945 + $0x178] sm:$0xff]
    %v2994 = vld [vmem:[%s2945 + $0x180] sm:$0xff]
    %v2995 = vld [vmem:[%s2945 + $0x188] sm:$0xff]
    %v2996 = vld [vmem:[%s2945 + $0x190] sm:$0xff]
    %v2997 = vld [vmem:[%s2945 + $0x198] sm:$0xff]
    %v2998 = vld [vmem:[%s2945 + $0x1a0] sm:$0xff]
    %v2999 = vld [vmem:[%s2945 + $0x1a8] sm:$0xff]
    %v3000 = vld [vmem:[%s2945 + $0x1b0] sm:$0xff]
    %v3001 = vld [vmem:[%s2945 + $0x1b8] sm:$0xff]
    %v3002 = vld [vmem:[%s2945 + $0x1c0] sm:$0xff]
    %v3003 = vld [vmem:[%s2945 + $0x1c8] sm:$0xff]
    %v3004 = vld [vmem:[%s2945 + $0x1d0] sm:$0xff]
    %v3005 = vld [vmem:[%s2945 + $0x1d8] sm:$0xff]
    %v3006 = vld [vmem:[%s2945 + $0x1e0] sm:$0xff]
    %v3007 = vld [vmem:[%s2945 + $0x1e8] sm:$0xff]
    %v3008 = vld [vmem:[%s2945 + $0x1f0] sm:$0xff]
    %v3009 = vld [vmem:[%s2945 + $0x1f8] sm:$0xff]
    %v3010 = vld [vmem:[%s2945 + $0x200] sm:$0xff]
    %v3011 = vld [vmem:[%s2945 + $0x208] sm:$0xff]
    %v3012 = vld [vmem:[%s2945 + $0x210] sm:$0xff]
    %v3013 = vld [vmem:[%s2945 + $0x218] sm:$0xff]
    %v3014 = vld [vmem:[%s2945 + $0x220] sm:$0xff]
    %v3015 = vld [vmem:[%s2945 + $0x228] sm:$0xff]
    %v3016 = vld [vmem:[%s2945 + $0x230] sm:$0xff]
    %v3017 = vld [vmem:[%s2945 + $0x238] sm:$0xff]
    %v3018 = vld [vmem:[%s2945 + $0x240] sm:$0xff]
    %v3019 = vld [vmem:[%s2945 + $0x248] sm:$0xff]
    %v3020 = vld [vmem:[%s2945 + $0x250] sm:$0xff]
    %v3021 = vld [vmem:[%s2945 + $0x258] sm:$0xff]
    %v3022 = vld [vmem:[%s2945 + $0x260] sm:$0xff]
    %v3023 = vld [vmem:[%s2945 + $0x268] sm:$0xff]
    %v3024 = vld [vmem:[%s2945 + $0x270] sm:$0xff]
    %v3025 = vld [vmem:[%s2945 + $0x278] sm:$0xff]
    %v3026 = vld [vmem:[%s2945 + $0x280] sm:$0xff]
    %v3027 = vld [vmem:[%s2945 + $0x288] sm:$0xff]
    %v3028 = vld [vmem:[%s2945 + $0x290] sm:$0xff]
    %v3029 = vld [vmem:[%s2945 + $0x298] sm:$0xff]
    %v3030 = vld [vmem:[%s2945 + $0x2a0] sm:$0xff]
    %v3031 = vld [vmem:[%s2945 + $0x2a8] sm:$0xff]
    %v3032 = vld [vmem:[%s2945 + $0x2b0] sm:$0xff]
    %v3033 = vld [vmem:[%s2945 + $0x2b8] sm:$0xff]
    %v3034 = vld [vmem:[%s2945 + $0x2c0] sm:$0xff]
    %v3035 = vld [vmem:[%s2945 + $0x2c8] sm:$0xff]
    %v3036 = vld [vmem:[%s2945 + $0x2d0] sm:$0xff]
    %v3037 = vld [vmem:[%s2945 + $0x2d8] sm:$0xff]
    %v3038 = vld [vmem:[%s2945 + $0x2e0] sm:$0xff]
    %v3039 = vld [vmem:[%s2945 + $0x2e8] sm:$0xff]
    %v3040 = vld [vmem:[%s2945 + $0x2f0] sm:$0xff]
    %v3041 = vld [vmem:[%s2945 + $0x2f8] sm:$0xff]
    %v3042 = vld [vmem:[%s2945 + $0x300] sm:$0xff]
    %v3043 = vld [vmem:[%s2945 + $0x308] sm:$0xff]
    %v3044 = vld [vmem:[%s2945 + $0x310] sm:$0xff]
    %v3045 = vld [vmem:[%s2945 + $0x318] sm:$0xff]
    %v3046 = vld [vmem:[%s2945 + $0x320] sm:$0xff]
    %v3047 = vld [vmem:[%s2945 + $0x328] sm:$0xff]
    %v3048 = vld [vmem:[%s2945 + $0x330] sm:$0xff]
    %v3049 = vld [vmem:[%s2945 + $0x338] sm:$0xff]
    %v3050 = vld [vmem:[%s2945 + $0x340] sm:$0xff]
    %v3051 = vld [vmem:[%s2945 + $0x348] sm:$0xff]
    %v3052 = vld [vmem:[%s2945 + $0x350] sm:$0xff]
    %v3053 = vld [vmem:[%s2945 + $0x358] sm:$0xff]
    %v3054 = vld [vmem:[%s2945 + $0x360] sm:$0xff]
    %v3055 = vld [vmem:[%s2945 + $0x368] sm:$0xff]
    %v3056 = vld [vmem:[%s2945 + $0x370] sm:$0xff]
    %v3057 = vld [vmem:[%s2945 + $0x378] sm:$0xff]
    %v3058 = vld [vmem:[%s2945 + $0x380] sm:$0xff]
    %v3059 = vld [vmem:[%s2945 + $0x388] sm:$0xff]
    %v3060 = vld [vmem:[%s2945 + $0x390] sm:$0xff]
    %v3061 = vld [vmem:[%s2945 + $0x398] sm:$0xff]
    %v3062 = vld [vmem:[%s2945 + $0x3a0] sm:$0xff]
    %v3063 = vld [vmem:[%s2945 + $0x3a8] sm:$0xff]
    %v3064 = vld [vmem:[%s2945 + $0x3b0] sm:$0xff]
    %v3065 = vld [vmem:[%s2945 + $0x3b8] sm:$0xff]
    %v3066 = vld [vmem:[%s2945 + $0x3c0] sm:$0xff]
    %v3067 = vld [vmem:[%s2945 + $0x3c8] sm:$0xff]
    %v3068 = vld [vmem:[%s2945 + $0x3d0] sm:$0xff]
    %v3069 = vld [vmem:[%s2945 + $0x3d8] sm:$0xff]
    %v3070 = vld [vmem:[%s2945 + $0x3e0] sm:$0xff]
    %v3071 = vld [vmem:[%s2945 + $0x3e8] sm:$0xff]
    %v3072 = vld [vmem:[%s2945 + $0x3f0] sm:$0xff]
    %v3073 = vld [vmem:[%s2945 + $0x3f8] sm:$0xff]
    %vm3074 = vcmask 1046528
    %v3075 = vrot.slane %v392, 1
    %v3076 = vrot.slane %v396, 1
    %v3077 = vsel %vm3074, %v3075, %v3076
    %v3078 = vrot.slane %v393, 1
    %v3079 = vrot.slane %v397, 1
    %v3080 = vsel %vm3074, %v3078, %v3079
    %v3081 = vrot.slane %v394, 1
    %v3082 = vrot.slane %v398, 1
    %v3083 = vsel %vm3074, %v3081, %v3082
    %v3084 = vrot.slane %v395, 1
    %v3085 = vrot.slane %v399, 1
    %v3086 = vsel %vm3074, %v3084, %v3085
    %v3087 = vrot.slane %v400, 1
    %v3088 = vsel %vm3074, %v3076, %v3087
    %v3089 = vrot.slane %v401, 1
    %v3090 = vsel %vm3074, %v3079, %v3089
    %v3091 = vrot.slane %v402, 1
    %v3092 = vsel %vm3074, %v3082, %v3091
    %v3093 = vrot.slane %v403, 1
    %v3094 = vsel %vm3074, %v3085, %v3093
    %v3095 = vrot.slane %v404, 1
    %v3096 = vsel %vm3074, %v3087, %v3095
    %v3097 = vrot.slane %v405, 1
    %v3098 = vsel %vm3074, %v3089, %v3097
    %v3099 = vrot.slane %v406, 1
    %v3100 = vsel %vm3074, %v3091, %v3099
    %v3101 = vrot.slane %v407, 1
    %v3102 = vsel %vm3074, %v3093, %v3101
    %v3103 = vrot.slane %v408, 1
    %v3104 = vsel %vm3074, %v3095, %v3103
    %v3105 = vrot.slane %v409, 1
    %v3106 = vsel %vm3074, %v3097, %v3105
    %v3107 = vrot.slane %v410, 1
    %v3108 = vsel %vm3074, %v3099, %v3107
    %v3109 = vrot.slane %v411, 1
    %v3110 = vsel %vm3074, %v3101, %v3109
    %v3259 = vunpack.c.l.b16 %v2946
    %v3260 = vunpack.c.h.b16 %v2946
    %v3261 = vunpack.c.l.b16 %v2947
    %v3262 = vunpack.c.h.b16 %v2947
    %v3263 = vunpack.c.l.b16 %v2948
    %v3264 = vunpack.c.h.b16 %v2948
    %v3265 = vunpack.c.l.b16 %v2949
    %v3266 = vunpack.c.h.b16 %v2949
    %v3267 = vunpack.c.l.b16 %v2950
    %v3268 = vunpack.c.h.b16 %v2950
    %v3269 = vunpack.c.l.b16 %v2951
    %v3270 = vunpack.c.h.b16 %v2951
    %v3271 = vunpack.c.l.b16 %v2952
    %v3272 = vunpack.c.h.b16 %v2952
    %v3273 = vunpack.c.l.b16 %v2953
    %v3274 = vunpack.c.h.b16 %v2953
    %v3275 = vunpack.c.l.b16 %v2954
    %v3276 = vunpack.c.h.b16 %v2954
    %v3277 = vunpack.c.l.b16 %v2955
    %v3278 = vunpack.c.h.b16 %v2955
    %v3279 = vunpack.c.l.b16 %v2956
    %v3280 = vunpack.c.h.b16 %v2956
    %v3281 = vunpack.c.l.b16 %v2957
    %v3282 = vunpack.c.h.b16 %v2957
    %v3283 = vunpack.c.l.b16 %v2958
    %v3284 = vunpack.c.h.b16 %v2958
    %v3285 = vunpack.c.l.b16 %v2959
    %v3286 = vunpack.c.h.b16 %v2959
    %v3287 = vunpack.c.l.b16 %v2960
    %v3288 = vunpack.c.h.b16 %v2960
    %v3289 = vunpack.c.l.b16 %v2961
    %v3290 = vunpack.c.h.b16 %v2961
    %v3291 = vunpack.c.l.b16 %v2962
    %v3292 = vunpack.c.h.b16 %v2962
    %v3293 = vunpack.c.l.b16 %v2963
    %v3294 = vunpack.c.h.b16 %v2963
    %v3295 = vunpack.c.l.b16 %v2964
    %v3296 = vunpack.c.h.b16 %v2964
    %v3297 = vunpack.c.l.b16 %v2965
    %v3298 = vunpack.c.h.b16 %v2965
    %v3299 = vunpack.c.l.b16 %v2966
    %v3300 = vunpack.c.h.b16 %v2966
    %v3301 = vunpack.c.l.b16 %v2967
    %v3302 = vunpack.c.h.b16 %v2967
    %v3303 = vunpack.c.l.b16 %v2968
    %v3304 = vunpack.c.h.b16 %v2968
    %v3305 = vunpack.c.l.b16 %v2969
    %v3306 = vunpack.c.h.b16 %v2969
    %v3307 = vunpack.c.l.b16 %v2970
    %v3308 = vunpack.c.h.b16 %v2970
    %v3309 = vunpack.c.l.b16 %v2971
    %v3310 = vunpack.c.h.b16 %v2971
    %v3311 = vunpack.c.l.b16 %v2972
    %v3312 = vunpack.c.h.b16 %v2972
    %v3313 = vunpack.c.l.b16 %v2973
    %v3314 = vunpack.c.h.b16 %v2973
    %v3315 = vunpack.c.l.b16 %v2974
    %v3316 = vunpack.c.h.b16 %v2974
    %v3317 = vunpack.c.l.b16 %v2975
    %v3318 = vunpack.c.h.b16 %v2975
    %v3319 = vunpack.c.l.b16 %v2976
    %v3320 = vunpack.c.h.b16 %v2976
    %v3321 = vunpack.c.l.b16 %v2977
    %v3322 = vunpack.c.h.b16 %v2977
    %v3323 = vunpack.c.l.b16 %v2978
    %v3324 = vunpack.c.h.b16 %v2978
    %v3325 = vunpack.c.l.b16 %v2979
    %v3326 = vunpack.c.h.b16 %v2979
    %v3327 = vunpack.c.l.b16 %v2980
    %v3328 = vunpack.c.h.b16 %v2980
    %v3329 = vunpack.c.l.b16 %v2981
    %v3330 = vunpack.c.h.b16 %v2981
    %v3331 = vunpack.c.l.b16 %v2982
    %v3332 = vunpack.c.h.b16 %v2982
    %v3333 = vunpack.c.l.b16 %v2983
    %v3334 = vunpack.c.h.b16 %v2983
    %v3335 = vunpack.c.l.b16 %v2984
    %v3336 = vunpack.c.h.b16 %v2984
    %v3337 = vunpack.c.l.b16 %v2985
    %v3338 = vunpack.c.h.b16 %v2985
    %v3339 = vunpack.c.l.b16 %v2986
    %v3340 = vunpack.c.h.b16 %v2986
    %v3341 = vunpack.c.l.b16 %v2987
    %v3342 = vunpack.c.h.b16 %v2987
    %v3343 = vunpack.c.l.b16 %v2988
    %v3344 = vunpack.c.h.b16 %v2988
    %v3345 = vunpack.c.l.b16 %v2989
    %v3346 = vunpack.c.h.b16 %v2989
    %v3347 = vunpack.c.l.b16 %v2990
    %v3348 = vunpack.c.h.b16 %v2990
    %v3349 = vunpack.c.l.b16 %v2991
    %v3350 = vunpack.c.h.b16 %v2991
    %v3351 = vunpack.c.l.b16 %v2992
    %v3352 = vunpack.c.h.b16 %v2992
    %v3353 = vunpack.c.l.b16 %v2993
    %v3354 = vunpack.c.h.b16 %v2993
    %v3355 = vunpack.c.l.b16 %v2994
    %v3356 = vunpack.c.h.b16 %v2994
    %v3357 = vunpack.c.l.b16 %v2995
    %v3358 = vunpack.c.h.b16 %v2995
    %v3359 = vunpack.c.l.b16 %v2996
    %v3360 = vunpack.c.h.b16 %v2996
    %v3361 = vunpack.c.l.b16 %v2997
    %v3362 = vunpack.c.h.b16 %v2997
    %v3363 = vunpack.c.l.b16 %v2998
    %v3364 = vunpack.c.h.b16 %v2998
    %v3365 = vunpack.c.l.b16 %v2999
    %v3366 = vunpack.c.h.b16 %v2999
    %v3367 = vunpack.c.l.b16 %v3000
    %v3368 = vunpack.c.h.b16 %v3000
    %v3369 = vunpack.c.l.b16 %v3001
    %v3370 = vunpack.c.h.b16 %v3001
    %v3371 = vunpack.c.l.b16 %v3002
    %v3372 = vunpack.c.h.b16 %v3002
    %v3373 = vunpack.c.l.b16 %v3003
    %v3374 = vunpack.c.h.b16 %v3003
    %v3375 = vunpack.c.l.b16 %v3004
    %v3376 = vunpack.c.h.b16 %v3004
    %v3377 = vunpack.c.l.b16 %v3005
    %v3378 = vunpack.c.h.b16 %v3005
    %v3379 = vunpack.c.l.b16 %v3006
    %v3380 = vunpack.c.h.b16 %v3006
    %v3381 = vunpack.c.l.b16 %v3007
    %v3382 = vunpack.c.h.b16 %v3007
    %v3383 = vunpack.c.l.b16 %v3008
    %v3384 = vunpack.c.h.b16 %v3008
    %v3385 = vunpack.c.l.b16 %v3009
    %v3386 = vunpack.c.h.b16 %v3009
    %v3387 = vunpack.c.l.b16 %v3010
    %v3388 = vunpack.c.h.b16 %v3010
    %v3389 = vunpack.c.l.b16 %v3011
    %v3390 = vunpack.c.h.b16 %v3011
    %v3391 = vunpack.c.l.b16 %v3012
    %v3392 = vunpack.c.h.b16 %v3012
    %v3393 = vunpack.c.l.b16 %v3013
    %v3394 = vunpack.c.h.b16 %v3013
    %v3395 = vunpack.c.l.b16 %v3014
    %v3396 = vunpack.c.h.b16 %v3014
    %v3397 = vunpack.c.l.b16 %v3015
    %v3398 = vunpack.c.h.b16 %v3015
    %v3399 = vunpack.c.l.b16 %v3016
    %v3400 = vunpack.c.h.b16 %v3016
    %v3401 = vunpack.c.l.b16 %v3017
    %v3402 = vunpack.c.h.b16 %v3017
    %v3403 = vunpack.c.l.b16 %v3018
    %v3404 = vunpack.c.h.b16 %v3018
    %v3405 = vunpack.c.l.b16 %v3019
    %v3406 = vunpack.c.h.b16 %v3019
    %v3407 = vunpack.c.l.b16 %v3020
    %v3408 = vunpack.c.h.b16 %v3020
    %v3409 = vunpack.c.l.b16 %v3021
    %v3410 = vunpack.c.h.b16 %v3021
    %v3411 = vunpack.c.l.b16 %v3022
    %v3412 = vunpack.c.h.b16 %v3022
    %v3413 = vunpack.c.l.b16 %v3023
    %v3414 = vunpack.c.h.b16 %v3023
    %v3415 = vunpack.c.l.b16 %v3024
    %v3416 = vunpack.c.h.b16 %v3024
    %v3417 = vunpack.c.l.b16 %v3025
    %v3418 = vunpack.c.h.b16 %v3025
    %v3419 = vunpack.c.l.b16 %v3026
    %v3420 = vunpack.c.h.b16 %v3026
    %v3421 = vunpack.c.l.b16 %v3027
    %v3422 = vunpack.c.h.b16 %v3027
    %v3423 = vunpack.c.l.b16 %v3028
    %v3424 = vunpack.c.h.b16 %v3028
    %v3425 = vunpack.c.l.b16 %v3029
    %v3426 = vunpack.c.h.b16 %v3029
    %v3427 = vunpack.c.l.b16 %v3030
    %v3428 = vunpack.c.h.b16 %v3030
    %v3429 = vunpack.c.l.b16 %v3031
    %v3430 = vunpack.c.h.b16 %v3031
    %v3431 = vunpack.c.l.b16 %v3032
    %v3432 = vunpack.c.h.b16 %v3032
    %v3433 = vunpack.c.l.b16 %v3033
    %v3434 = vunpack.c.h.b16 %v3033
    %v3435 = vunpack.c.l.b16 %v3034
    %v3436 = vunpack.c.h.b16 %v3034
    %v3437 = vunpack.c.l.b16 %v3035
    %v3438 = vunpack.c.h.b16 %v3035
    %v3439 = vunpack.c.l.b16 %v3036
    %v3440 = vunpack.c.h.b16 %v3036
    %v3441 = vunpack.c.l.b16 %v3037
    %v3442 = vunpack.c.h.b16 %v3037
    %v3443 = vunpack.c.l.b16 %v3038
    %v3444 = vunpack.c.h.b16 %v3038
    %v3445 = vunpack.c.l.b16 %v3039
    %v3446 = vunpack.c.h.b16 %v3039
    %v3447 = vunpack.c.l.b16 %v3040
    %v3448 = vunpack.c.h.b16 %v3040
    %v3449 = vunpack.c.l.b16 %v3041
    %v3450 = vunpack.c.h.b16 %v3041
    %v3451 = vunpack.c.l.b16 %v3042
    %v3452 = vunpack.c.h.b16 %v3042
    %v3453 = vunpack.c.l.b16 %v3043
    %v3454 = vunpack.c.h.b16 %v3043
    %v3455 = vunpack.c.l.b16 %v3044
    %v3456 = vunpack.c.h.b16 %v3044
    %v3457 = vunpack.c.l.b16 %v3045
    %v3458 = vunpack.c.h.b16 %v3045
    %v3459 = vunpack.c.l.b16 %v3046
    %v3460 = vunpack.c.h.b16 %v3046
    %v3461 = vunpack.c.l.b16 %v3047
    %v3462 = vunpack.c.h.b16 %v3047
    %v3463 = vunpack.c.l.b16 %v3048
    %v3464 = vunpack.c.h.b16 %v3048
    %v3465 = vunpack.c.l.b16 %v3049
    %v3466 = vunpack.c.h.b16 %v3049
    %v3467 = vunpack.c.l.b16 %v3050
    %v3468 = vunpack.c.h.b16 %v3050
    %v3469 = vunpack.c.l.b16 %v3051
    %v3470 = vunpack.c.h.b16 %v3051
    %v3471 = vunpack.c.l.b16 %v3052
    %v3472 = vunpack.c.h.b16 %v3052
    %v3473 = vunpack.c.l.b16 %v3053
    %v3474 = vunpack.c.h.b16 %v3053
    %v3475 = vunpack.c.l.b16 %v3054
    %v3476 = vunpack.c.h.b16 %v3054
    %v3477 = vunpack.c.l.b16 %v3055
    %v3478 = vunpack.c.h.b16 %v3055
    %v3479 = vunpack.c.l.b16 %v3056
    %v3480 = vunpack.c.h.b16 %v3056
    %v3481 = vunpack.c.l.b16 %v3057
    %v3482 = vunpack.c.h.b16 %v3057
    %v3483 = vunpack.c.l.b16 %v3058
    %v3484 = vunpack.c.h.b16 %v3058
    %v3485 = vunpack.c.l.b16 %v3059
    %v3486 = vunpack.c.h.b16 %v3059
    %v3487 = vunpack.c.l.b16 %v3060
    %v3488 = vunpack.c.h.b16 %v3060
    %v3489 = vunpack.c.l.b16 %v3061
    %v3490 = vunpack.c.h.b16 %v3061
    %v3491 = vunpack.c.l.b16 %v3062
    %v3492 = vunpack.c.h.b16 %v3062
    %v3493 = vunpack.c.l.b16 %v3063
    %v3494 = vunpack.c.h.b16 %v3063
    %v3495 = vunpack.c.l.b16 %v3064
    %v3496 = vunpack.c.h.b16 %v3064
    %v3497 = vunpack.c.l.b16 %v3065
    %v3498 = vunpack.c.h.b16 %v3065
    %v3499 = vunpack.c.l.b16 %v3066
    %v3500 = vunpack.c.h.b16 %v3066
    %v3501 = vunpack.c.l.b16 %v3067
    %v3502 = vunpack.c.h.b16 %v3067
    %v3503 = vunpack.c.l.b16 %v3068
    %v3504 = vunpack.c.h.b16 %v3068
    %v3505 = vunpack.c.l.b16 %v3069
    %v3506 = vunpack.c.h.b16 %v3069
    %v3507 = vunpack.c.l.b16 %v3070
    %v3508 = vunpack.c.h.b16 %v3070
    %v3509 = vunpack.c.l.b16 %v3071
    %v3510 = vunpack.c.h.b16 %v3071
    %v3511 = vunpack.c.l.b16 %v3072
    %v3512 = vunpack.c.h.b16 %v3072
    %v3513 = vunpack.c.l.b16 %v3073
    %v3514 = vunpack.c.h.b16 %v3073
    %v3515 = vpack.c.b16 %v3263, %v3259
    %v3516 = vpack.c.b16 %v3264, %v3260
    %v3517 = vpack.c.b16 %v3265, %v3261
    %v3518 = vpack.c.b16 %v3266, %v3262
    %v3519 = vpack.c.b16 %v3271, %v3267
    %v3520 = vpack.c.b16 %v3272, %v3268
    %v3521 = vpack.c.b16 %v3273, %v3269
    %v3522 = vpack.c.b16 %v3274, %v3270
    %v3523 = vpack.c.b16 %v3279, %v3275
    %v3524 = vpack.c.b16 %v3280, %v3276
    %v3525 = vpack.c.b16 %v3281, %v3277
    %v3526 = vpack.c.b16 %v3282, %v3278
    %v3527 = vpack.c.b16 %v3287, %v3283
    %v3528 = vpack.c.b16 %v3288, %v3284
    %v3529 = vpack.c.b16 %v3289, %v3285
    %v3530 = vpack.c.b16 %v3290, %v3286
    %v3531 = vpack.c.b16 %v3295, %v3291
    %v3532 = vpack.c.b16 %v3296, %v3292
    %v3533 = vpack.c.b16 %v3297, %v3293
    %v3534 = vpack.c.b16 %v3298, %v3294
    %v3535 = vpack.c.b16 %v3303, %v3299
    %v3536 = vpack.c.b16 %v3304, %v3300
    %v3537 = vpack.c.b16 %v3305, %v3301
    %v3538 = vpack.c.b16 %v3306, %v3302
    %v3539 = vpack.c.b16 %v3311, %v3307
    %v3540 = vpack.c.b16 %v3312, %v3308
    %v3541 = vpack.c.b16 %v3313, %v3309
    %v3542 = vpack.c.b16 %v3314, %v3310
    %v3543 = vpack.c.b16 %v3319, %v3315
    %v3544 = vpack.c.b16 %v3320, %v3316
    %v3545 = vpack.c.b16 %v3321, %v3317
    %v3546 = vpack.c.b16 %v3322, %v3318
    %v3547 = vpack.c.b16 %v3327, %v3323
    %v3548 = vpack.c.b16 %v3328, %v3324
    %v3549 = vpack.c.b16 %v3329, %v3325
    %v3550 = vpack.c.b16 %v3330, %v3326
    %v3551 = vpack.c.b16 %v3335, %v3331
    %v3552 = vpack.c.b16 %v3336, %v3332
    %v3553 = vpack.c.b16 %v3337, %v3333
    %v3554 = vpack.c.b16 %v3338, %v3334
    %v3555 = vpack.c.b16 %v3343, %v3339
    %v3556 = vpack.c.b16 %v3344, %v3340
    %v3557 = vpack.c.b16 %v3345, %v3341
    %v3558 = vpack.c.b16 %v3346, %v3342
    %v3559 = vpack.c.b16 %v3351, %v3347
    %v3560 = vpack.c.b16 %v3352, %v3348
    %v3561 = vpack.c.b16 %v3353, %v3349
    %v3562 = vpack.c.b16 %v3354, %v3350
    %v3563 = vpack.c.b16 %v3359, %v3355
    %v3564 = vpack.c.b16 %v3360, %v3356
    %v3565 = vpack.c.b16 %v3361, %v3357
    %v3566 = vpack.c.b16 %v3362, %v3358
    %v3567 = vpack.c.b16 %v3367, %v3363
    %v3568 = vpack.c.b16 %v3368, %v3364
    %v3569 = vpack.c.b16 %v3369, %v3365
    %v3570 = vpack.c.b16 %v3370, %v3366
    %v3571 = vpack.c.b16 %v3375, %v3371
    %v3572 = vpack.c.b16 %v3376, %v3372
    %v3573 = vpack.c.b16 %v3377, %v3373
    %v3574 = vpack.c.b16 %v3378, %v3374
    %v3575 = vpack.c.b16 %v3383, %v3379
    %v3576 = vpack.c.b16 %v3384, %v3380
    %v3577 = vpack.c.b16 %v3385, %v3381
    %v3578 = vpack.c.b16 %v3386, %v3382
    %v3579 = vpack.c.b16 %v3391, %v3387
    %v3580 = vpack.c.b16 %v3392, %v3388
    %v3581 = vpack.c.b16 %v3393, %v3389
    %v3582 = vpack.c.b16 %v3394, %v3390
    %v3583 = vpack.c.b16 %v3399, %v3395
    %v3584 = vpack.c.b16 %v3400, %v3396
    %v3585 = vpack.c.b16 %v3401, %v3397
    %v3586 = vpack.c.b16 %v3402, %v3398
    %v3587 = vpack.c.b16 %v3407, %v3403
    %v3588 = vpack.c.b16 %v3408, %v3404
    %v3589 = vpack.c.b16 %v3409, %v3405
    %v3590 = vpack.c.b16 %v3410, %v3406
    %v3591 = vpack.c.b16 %v3415, %v3411
    %v3592 = vpack.c.b16 %v3416, %v3412
    %v3593 = vpack.c.b16 %v3417, %v3413
    %v3594 = vpack.c.b16 %v3418, %v3414
    %v3595 = vpack.c.b16 %v3423, %v3419
    %v3596 = vpack.c.b16 %v3424, %v3420
    %v3597 = vpack.c.b16 %v3425, %v3421
    %v3598 = vpack.c.b16 %v3426, %v3422
    %v3599 = vpack.c.b16 %v3431, %v3427
    %v3600 = vpack.c.b16 %v3432, %v3428
    %v3601 = vpack.c.b16 %v3433, %v3429
    %v3602 = vpack.c.b16 %v3434, %v3430
    %v3603 = vpack.c.b16 %v3439, %v3435
    %v3604 = vpack.c.b16 %v3440, %v3436
    %v3605 = vpack.c.b16 %v3441, %v3437
    %v3606 = vpack.c.b16 %v3442, %v3438
    %v3607 = vpack.c.b16 %v3447, %v3443
    %v3608 = vpack.c.b16 %v3448, %v3444
    %v3609 = vpack.c.b16 %v3449, %v3445
    %v3610 = vpack.c.b16 %v3450, %v3446
    %v3611 = vpack.c.b16 %v3455, %v3451
    %v3612 = vpack.c.b16 %v3456, %v3452
    %v3613 = vpack.c.b16 %v3457, %v3453
    %v3614 = vpack.c.b16 %v3458, %v3454
    %v3615 = vpack.c.b16 %v3463, %v3459
    %v3616 = vpack.c.b16 %v3464, %v3460
    %v3617 = vpack.c.b16 %v3465, %v3461
    %v3618 = vpack.c.b16 %v3466, %v3462
    %v3619 = vpack.c.b16 %v3471, %v3467
    %v3620 = vpack.c.b16 %v3472, %v3468
    %v3621 = vpack.c.b16 %v3473, %v3469
    %v3622 = vpack.c.b16 %v3474, %v3470
    %v3623 = vpack.c.b16 %v3479, %v3475
    %v3624 = vpack.c.b16 %v3480, %v3476
    %v3625 = vpack.c.b16 %v3481, %v3477
    %v3626 = vpack.c.b16 %v3482, %v3478
    %v3627 = vpack.c.b16 %v3487, %v3483
    %v3628 = vpack.c.b16 %v3488, %v3484
    %v3629 = vpack.c.b16 %v3489, %v3485
    %v3630 = vpack.c.b16 %v3490, %v3486
    %v3631 = vpack.c.b16 %v3495, %v3491
    %v3632 = vpack.c.b16 %v3496, %v3492
    %v3633 = vpack.c.b16 %v3497, %v3493
    %v3634 = vpack.c.b16 %v3498, %v3494
    %v3635 = vpack.c.b16 %v3503, %v3499
    %v3636 = vpack.c.b16 %v3504, %v3500
    %v3637 = vpack.c.b16 %v3505, %v3501
    %v3638 = vpack.c.b16 %v3506, %v3502
    %v3639 = vpack.c.b16 %v3511, %v3507
    %v3640 = vpack.c.b16 %v3512, %v3508
    %v3641 = vpack.c.b16 %v3513, %v3509
    %v3642 = vpack.c.b16 %v3514, %v3510
    %3771 = vmatpush.bf16.msra.mxu0 %v3543
    %3772 = vmatpush.bf16.msra.mxu0 %v3539
    %3773 = vmatpush.bf16.msra.mxu0 %v3535
    %3774 = vmatpush.bf16.msra.mxu0 %v3531
    %3775 = vmatpush.bf16.msra.mxu0 %v3527
    %3776 = vmatpush.bf16.msra.mxu0 %v3523
    %3777 = vmatpush.bf16.msra.mxu0 %v3519
    %3778 = vmatpush.bf16.msra.mxu0 %v3515
    %3779 = vmatmul.bf16.gmra.mxu0 %v3077
    %v3780 = vpop.f32.mrf.mxu0
    %v3781 = vadd.f32 0.0, %v3780
    %v3782 = vpop.f32.mrf.mxu0
    %v3783 = vadd.f32 0.0, %v3782
    %3784 = vmatmul.bf16.gmra.mxu0 %v3088
    %v3785 = vpop.f32.mrf.mxu0
    %v3786 = vadd.f32 0.0, %v3785
    %v3787 = vpop.f32.mrf.mxu0
    %v3788 = vadd.f32 0.0, %v3787
    %3789 = vmatmul.bf16.gmra.mxu0 %v3096
    %v3790 = vpop.f32.mrf.mxu0
    %v3791 = vadd.f32 0.0, %v3790
    %v3792 = vpop.f32.mrf.mxu0
    %v3793 = vadd.f32 0.0, %v3792
    %3794 = vmatmul.bf16.gmra.mxu0 %v3104
    %v3795 = vpop.f32.mrf.mxu0
    %v3796 = vadd.f32 0.0, %v3795
    %v3797 = vpop.f32.mrf.mxu0
    %v3798 = vadd.f32 0.0, %v3797
    %3799 = vmatmul.bf16.gmra.mxu0 %v3103
    %v3800 = vpop.f32.mrf.mxu0
    %v3801 = vadd.f32 0.0, %v3800
    %v3802 = vpop.f32.mrf.mxu0
    %3803 = vdwg.mxu0
    %3804 = vmatpush.bf16.msra.mxu0 %v3575
    %3805 = vmatpush.bf16.msra.mxu0 %v3571
    %3806 = vmatpush.bf16.msra.mxu0 %v3567
    %3807 = vmatpush.bf16.msra.mxu0 %v3563
    %3808 = vmatpush.bf16.msra.mxu0 %v3559
    %3809 = vmatpush.bf16.msra.mxu0 %v3555
    %3810 = vmatpush.bf16.msra.mxu0 %v3551
    %3811 = vmatpush.bf16.msra.mxu0 %v3547
    %3812 = vmatmul.bf16.gmra.mxu0 %v3080
    %v3813 = vpop.f32.mrf.mxu0
    %v3814 = vadd.f32 %v3781, %v3813
    %v3815 = vpop.f32.mrf.mxu0
    %v3816 = vadd.f32 %v3783, %v3815
    %3817 = vmatmul.bf16.gmra.mxu0 %v3090
    %v3818 = vpop.f32.mrf.mxu0
    %v3819 = vadd.f32 %v3786, %v3818
    %v3820 = vpop.f32.mrf.mxu0
    %v3821 = vadd.f32 %v3788, %v3820
    %3822 = vmatmul.bf16.gmra.mxu0 %v3098
    %v3823 = vpop.f32.mrf.mxu0
    %v3824 = vadd.f32 %v3791, %v3823
    %v3825 = vpop.f32.mrf.mxu0
    %v3826 = vadd.f32 %v3793, %v3825
    %3827 = vmatmul.bf16.gmra.mxu0 %v3106
    %v3828 = vpop.f32.mrf.mxu0
    %v3829 = vadd.f32 %v3796, %v3828
    %v3830 = vpop.f32.mrf.mxu0
    %v3831 = vadd.f32 %v3798, %v3830
    %3832 = vmatmul.bf16.gmra.mxu0 %v3105
    %v3833 = vpop.f32.mrf.mxu0
    %v3834 = vadd.f32 %v3801, %v3833
    %v3835 = vpop.f32.mrf.mxu0
    %3836 = vdwg.mxu0
    %3837 = vmatpush.bf16.msra.mxu0 %v3607
    %3838 = vmatpush.bf16.msra.mxu0 %v3603
    %3839 = vmatpush.bf16.msra.mxu0 %v3599
    %3840 = vmatpush.bf16.msra.mxu0 %v3595
    %3841 = vmatpush.bf16.msra.mxu0 %v3591
    %3842 = vmatpush.bf16.msra.mxu0 %v3587
    %3843 = vmatpush.bf16.msra.mxu0 %v3583
    %3844 = vmatpush.bf16.msra.mxu0 %v3579
    %3845 = vmatmul.bf16.gmra.mxu0 %v3083
    %v3846 = vpop.f32.mrf.mxu0
    %v3847 = vadd.f32 %v3814, %v3846
    %v3848 = vpop.f32.mrf.mxu0
    %v3849 = vadd.f32 %v3816, %v3848
    %3850 = vmatmul.bf16.gmra.mxu0 %v3092
    %v3851 = vpop.f32.mrf.mxu0
    %v3852 = vadd.f32 %v3819, %v3851
    %v3853 = vpop.f32.mrf.mxu0
    %v3854 = vadd.f32 %v3821, %v3853
    %3855 = vmatmul.bf16.gmra.mxu0 %v3100
    %v3856 = vpop.f32.mrf.mxu0
    %v3857 = vadd.f32 %v3824, %v3856
    %v3858 = vpop.f32.mrf.mxu0
    %v3859 = vadd.f32 %v3826, %v3858
    %3860 = vmatmul.bf16.gmra.mxu0 %v3108
    %v3861 = vpop.f32.mrf.mxu0
    %v3862 = vadd.f32 %v3829, %v3861
    %v3863 = vpop.f32.mrf.mxu0
    %v3864 = vadd.f32 %v3831, %v3863
    %3865 = vmatmul.bf16.gmra.mxu0 %v3107
    %v3866 = vpop.f32.mrf.mxu0
    %v3867 = vadd.f32 %v3834, %v3866
    %v3868 = vpop.f32.mrf.mxu0
    %3869 = vdwg.mxu0
    %3870 = vmatpush.bf16.msra.mxu0 %v3639
    %3871 = vmatpush.bf16.msra.mxu0 %v3635
    %3872 = vmatpush.bf16.msra.mxu0 %v3631
    %3873 = vmatpush.bf16.msra.mxu0 %v3627
    %3874 = vmatpush.bf16.msra.mxu0 %v3623
    %3875 = vmatpush.bf16.msra.mxu0 %v3619
    %3876 = vmatpush.bf16.msra.mxu0 %v3615
    %3877 = vmatpush.bf16.msra.mxu0 %v3611
    %3878 = vmatmul.bf16.gmra.mxu0 %v3086
    %v3879 = vpop.f32.mrf.mxu0
    %v3880 = vadd.f32 %v3847, %v3879
    %v3881 = vpop.f32.mrf.mxu0
    %v3882 = vadd.f32 %v3849, %v3881
    %3883 = vmatmul.bf16.gmra.mxu0 %v3094
    %v3884 = vpop.f32.mrf.mxu0
    %v3885 = vadd.f32 %v3852, %v3884
    %v3886 = vpop.f32.mrf.mxu0
    %v3887 = vadd.f32 %v3854, %v3886
    %3888 = vmatmul.bf16.gmra.mxu0 %v3102
    %v3889 = vpop.f32.mrf.mxu0
    %v3890 = vadd.f32 %v3857, %v3889
    %v3891 = vpop.f32.mrf.mxu0
    %v3892 = vadd.f32 %v3859, %v3891
    %3893 = vmatmul.bf16.gmra.mxu0 %v3110
    %v3894 = vpop.f32.mrf.mxu0
    %v3895 = vadd.f32 %v3862, %v3894
    %v3896 = vpop.f32.mrf.mxu0
    %v3897 = vadd.f32 %v3864, %v3896
    %3898 = vmatmul.bf16.gmra.mxu0 %v3109
    %v3899 = vpop.f32.mrf.mxu0
    %v3900 = vadd.f32 %v3867, %v3899
    %v3901 = vpop.f32.mrf.mxu0
    %3902 = vdwg.mxu0
    %3903 = vmatpush.bf16.msra.mxu0 %v3544
    %3904 = vmatpush.bf16.msra.mxu0 %v3540
    %3905 = vmatpush.bf16.msra.mxu0 %v3536
    %3906 = vmatpush.bf16.msra.mxu0 %v3532
    %3907 = vmatpush.bf16.msra.mxu0 %v3528
    %3908 = vmatpush.bf16.msra.mxu0 %v3524
    %3909 = vmatpush.bf16.msra.mxu0 %v3520
    %3910 = vmatpush.bf16.msra.mxu0 %v3516
    %3911 = vmatmul.bf16.gmra.mxu0 %v3077
    %v3912 = vpop.f32.mrf.mxu0
    %v3913 = vadd.f32 0.0, %v3912
    %v3914 = vpop.f32.mrf.mxu0
    %v3915 = vadd.f32 0.0, %v3914
    %3916 = vmatmul.bf16.gmra.mxu0 %v3088
    %v3917 = vpop.f32.mrf.mxu0
    %v3918 = vadd.f32 0.0, %v3917
    %v3919 = vpop.f32.mrf.mxu0
    %v3920 = vadd.f32 0.0, %v3919
    %3921 = vmatmul.bf16.gmra.mxu0 %v3096
    %v3922 = vpop.f32.mrf.mxu0
    %v3923 = vadd.f32 0.0, %v3922
    %v3924 = vpop.f32.mrf.mxu0
    %v3925 = vadd.f32 0.0, %v3924
    %3926 = vmatmul.bf16.gmra.mxu0 %v3104
    %v3927 = vpop.f32.mrf.mxu0
    %v3928 = vadd.f32 0.0, %v3927
    %v3929 = vpop.f32.mrf.mxu0
    %v3930 = vadd.f32 0.0, %v3929
    %3931 = vmatmul.bf16.gmra.mxu0 %v3103
    %v3932 = vpop.f32.mrf.mxu0
    %v3933 = vadd.f32 0.0, %v3932
    %v3934 = vpop.f32.mrf.mxu0
    %3935 = vdwg.mxu0
    %3936 = vmatpush.bf16.msra.mxu0 %v3576
    %3937 = vmatpush.bf16.msra.mxu0 %v3572
    %3938 = vmatpush.bf16.msra.mxu0 %v3568
    %3939 = vmatpush.bf16.msra.mxu0 %v3564
    %3940 = vmatpush.bf16.msra.mxu0 %v3560
    %3941 = vmatpush.bf16.msra.mxu0 %v3556
    %3942 = vmatpush.bf16.msra.mxu0 %v3552
    %3943 = vmatpush.bf16.msra.mxu0 %v3548
    %3944 = vmatmul.bf16.gmra.mxu0 %v3080
    %v3945 = vpop.f32.mrf.mxu0
    %v3946 = vadd.f32 %v3913, %v3945
    %v3947 = vpop.f32.mrf.mxu0
    %v3948 = vadd.f32 %v3915, %v3947
    %3949 = vmatmul.bf16.gmra.mxu0 %v3090
    %v3950 = vpop.f32.mrf.mxu0
    %v3951 = vadd.f32 %v3918, %v3950
    %v3952 = vpop.f32.mrf.mxu0
    %v3953 = vadd.f32 %v3920, %v3952
    %3954 = vmatmul.bf16.gmra.mxu0 %v3098
    %v3955 = vpop.f32.mrf.mxu0
    %v3956 = vadd.f32 %v3923, %v3955
    %v3957 = vpop.f32.mrf.mxu0
    %v3958 = vadd.f32 %v3925, %v3957
    %3959 = vmatmul.bf16.gmra.mxu0 %v3106
    %v3960 = vpop.f32.mrf.mxu0
    %v3961 = vadd.f32 %v3928, %v3960
    %v3962 = vpop.f32.mrf.mxu0
    %v3963 = vadd.f32 %v3930, %v3962
    %3964 = vmatmul.bf16.gmra.mxu0 %v3105
    %v3965 = vpop.f32.mrf.mxu0
    %v3966 = vadd.f32 %v3933, %v3965
    %v3967 = vpop.f32.mrf.mxu0
    %3968 = vdwg.mxu0
    %3969 = vmatpush.bf16.msra.mxu0 %v3608
    %3970 = vmatpush.bf16.msra.mxu0 %v3604
    %3971 = vmatpush.bf16.msra.mxu0 %v3600
    %3972 = vmatpush.bf16.msra.mxu0 %v3596
    %3973 = vmatpush.bf16.msra.mxu0 %v3592
    %3974 = vmatpush.bf16.msra.mxu0 %v3588
    %3975 = vmatpush.bf16.msra.mxu0 %v3584
    %3976 = vmatpush.bf16.msra.mxu0 %v3580
    %3977 = vmatmul.bf16.gmra.mxu0 %v3083
    %v3978 = vpop.f32.mrf.mxu0
    %v3979 = vadd.f32 %v3946, %v3978
    %v3980 = vpop.f32.mrf.mxu0
    %v3981 = vadd.f32 %v3948, %v3980
    %3982 = vmatmul.bf16.gmra.mxu0 %v3092
    %v3983 = vpop.f32.mrf.mxu0
    %v3984 = vadd.f32 %v3951, %v3983
    %v3985 = vpop.f32.mrf.mxu0
    %v3986 = vadd.f32 %v3953, %v3985
    %3987 = vmatmul.bf16.gmra.mxu0 %v3100
    %v3988 = vpop.f32.mrf.mxu0
    %v3989 = vadd.f32 %v3956, %v3988
    %v3990 = vpop.f32.mrf.mxu0
    %v3991 = vadd.f32 %v3958, %v3990
    %3992 = vmatmul.bf16.gmra.mxu0 %v3108
    %v3993 = vpop.f32.mrf.mxu0
    %v3994 = vadd.f32 %v3961, %v3993
    %v3995 = vpop.f32.mrf.mxu0
    %v3996 = vadd.f32 %v3963, %v3995
    %3997 = vmatmul.bf16.gmra.mxu0 %v3107
    %v3998 = vpop.f32.mrf.mxu0
    %v3999 = vadd.f32 %v3966, %v3998
    %v4000 = vpop.f32.mrf.mxu0
    %4001 = vdwg.mxu0
    %4002 = vmatpush.bf16.msra.mxu0 %v3640
    %4003 = vmatpush.bf16.msra.mxu0 %v3636
    %4004 = vmatpush.bf16.msra.mxu0 %v3632
    %4005 = vmatpush.bf16.msra.mxu0 %v3628
    %4006 = vmatpush.bf16.msra.mxu0 %v3624
    %4007 = vmatpush.bf16.msra.mxu0 %v3620
    %4008 = vmatpush.bf16.msra.mxu0 %v3616
    %4009 = vmatpush.bf16.msra.mxu0 %v3612
    %4010 = vmatmul.bf16.gmra.mxu0 %v3086
    %v4011 = vpop.f32.mrf.mxu0
    %v4012 = vadd.f32 %v3979, %v4011
    %v4013 = vpop.f32.mrf.mxu0
    %v4014 = vadd.f32 %v3981, %v4013
    %4015 = vmatmul.bf16.gmra.mxu0 %v3094
    %v4016 = vpop.f32.mrf.mxu0
    %v4017 = vadd.f32 %v3984, %v4016
    %v4018 = vpop.f32.mrf.mxu0
    %v4019 = vadd.f32 %v3986, %v4018
    %4020 = vmatmul.bf16.gmra.mxu0 %v3102
    %v4021 = vpop.f32.mrf.mxu0
    %v4022 = vadd.f32 %v3989, %v4021
    %v4023 = vpop.f32.mrf.mxu0
    %v4024 = vadd.f32 %v3991, %v4023
    %4025 = vmatmul.bf16.gmra.mxu0 %v3110
    %v4026 = vpop.f32.mrf.mxu0
    %v4027 = vadd.f32 %v3994, %v4026
    %v4028 = vpop.f32.mrf.mxu0
    %v4029 = vadd.f32 %v3996, %v4028
    %4030 = vmatmul.bf16.gmra.mxu0 %v3109
    %v4031 = vpop.f32.mrf.mxu0
    %v4032 = vadd.f32 %v3999, %v4031
    %v4033 = vpop.f32.mrf.mxu0
    %4034 = vdwg.mxu0
    %4035 = vmatpush.bf16.msra.mxu0 %v3545
    %4036 = vmatpush.bf16.msra.mxu0 %v3541
    %4037 = vmatpush.bf16.msra.mxu0 %v3537
    %4038 = vmatpush.bf16.msra.mxu0 %v3533
    %4039 = vmatpush.bf16.msra.mxu0 %v3529
    %4040 = vmatpush.bf16.msra.mxu0 %v3525
    %4041 = vmatpush.bf16.msra.mxu0 %v3521
    %4042 = vmatpush.bf16.msra.mxu0 %v3517
    %4043 = vmatmul.bf16.gmra.mxu0 %v3077
    %v4044 = vpop.f32.mrf.mxu0
    %v4045 = vadd.f32 0.0, %v4044
    %v4046 = vpop.f32.mrf.mxu0
    %v4047 = vadd.f32 0.0, %v4046
    %4048 = vmatmul.bf16.gmra.mxu0 %v3088
    %v4049 = vpop.f32.mrf.mxu0
    %v4050 = vadd.f32 0.0, %v4049
    %v4051 = vpop.f32.mrf.mxu0
    %v4052 = vadd.f32 0.0, %v4051
    %4053 = vmatmul.bf16.gmra.mxu0 %v3096
    %v4054 = vpop.f32.mrf.mxu0
    %v4055 = vadd.f32 0.0, %v4054
    %v4056 = vpop.f32.mrf.mxu0
    %v4057 = vadd.f32 0.0, %v4056
    %4058 = vmatmul.bf16.gmra.mxu0 %v3104
    %v4059 = vpop.f32.mrf.mxu0
    %v4060 = vadd.f32 0.0, %v4059
    %v4061 = vpop.f32.mrf.mxu0
    %v4062 = vadd.f32 0.0, %v4061
    %4063 = vmatmul.bf16.gmra.mxu0 %v3103
    %v4064 = vpop.f32.mrf.mxu0
    %v4065 = vadd.f32 0.0, %v4064
    %v4066 = vpop.f32.mrf.mxu0
    %4067 = vdwg.mxu0
    %4068 = vmatpush.bf16.msra.mxu0 %v3577
    %4069 = vmatpush.bf16.msra.mxu0 %v3573
    %4070 = vmatpush.bf16.msra.mxu0 %v3569
    %4071 = vmatpush.bf16.msra.mxu0 %v3565
    %4072 = vmatpush.bf16.msra.mxu0 %v3561
    %4073 = vmatpush.bf16.msra.mxu0 %v3557
    %4074 = vmatpush.bf16.msra.mxu0 %v3553
    %4075 = vmatpush.bf16.msra.mxu0 %v3549
    %4076 = vmatmul.bf16.gmra.mxu0 %v3080
    %v4077 = vpop.f32.mrf.mxu0
    %v4078 = vadd.f32 %v4045, %v4077
    %v4079 = vpop.f32.mrf.mxu0
    %v4080 = vadd.f32 %v4047, %v4079
    %4081 = vmatmul.bf16.gmra.mxu0 %v3090
    %v4082 = vpop.f32.mrf.mxu0
    %v4083 = vadd.f32 %v4050, %v4082
    %v4084 = vpop.f32.mrf.mxu0
    %v4085 = vadd.f32 %v4052, %v4084
    %4086 = vmatmul.bf16.gmra.mxu0 %v3098
    %v4087 = vpop.f32.mrf.mxu0
    %v4088 = vadd.f32 %v4055, %v4087
    %v4089 = vpop.f32.mrf.mxu0
    %v4090 = vadd.f32 %v4057, %v4089
    %4091 = vmatmul.bf16.gmra.mxu0 %v3106
    %v4092 = vpop.f32.mrf.mxu0
    %v4093 = vadd.f32 %v4060, %v4092
    %v4094 = vpop.f32.mrf.mxu0
    %v4095 = vadd.f32 %v4062, %v4094
    %4096 = vmatmul.bf16.gmra.mxu0 %v3105
    %v4097 = vpop.f32.mrf.mxu0
    %v4098 = vadd.f32 %v4065, %v4097
    %v4099 = vpop.f32.mrf.mxu0
    %4100 = vdwg.mxu0
    %4101 = vmatpush.bf16.msra.mxu0 %v3609
    %4102 = vmatpush.bf16.msra.mxu0 %v3605
    %4103 = vmatpush.bf16.msra.mxu0 %v3601
    %4104 = vmatpush.bf16.msra.mxu0 %v3597
    %4105 = vmatpush.bf16.msra.mxu0 %v3593
    %4106 = vmatpush.bf16.msra.mxu0 %v3589
    %4107 = vmatpush.bf16.msra.mxu0 %v3585
    %4108 = vmatpush.bf16.msra.mxu0 %v3581
    %4109 = vmatmul.bf16.gmra.mxu0 %v3083
    %v4110 = vpop.f32.mrf.mxu0
    %v4111 = vadd.f32 %v4078, %v4110
    %v4112 = vpop.f32.mrf.mxu0
    %v4113 = vadd.f32 %v4080, %v4112
    %4114 = vmatmul.bf16.gmra.mxu0 %v3092
    %v4115 = vpop.f32.mrf.mxu0
    %v4116 = vadd.f32 %v4083, %v4115
    %v4117 = vpop.f32.mrf.mxu0
    %v4118 = vadd.f32 %v4085, %v4117
    %4119 = vmatmul.bf16.gmra.mxu0 %v3100
    %v4120 = vpop.f32.mrf.mxu0
    %v4121 = vadd.f32 %v4088, %v4120
    %v4122 = vpop.f32.mrf.mxu0
    %v4123 = vadd.f32 %v4090, %v4122
    %4124 = vmatmul.bf16.gmra.mxu0 %v3108
    %v4125 = vpop.f32.mrf.mxu0
    %v4126 = vadd.f32 %v4093, %v4125
    %v4127 = vpop.f32.mrf.mxu0
    %v4128 = vadd.f32 %v4095, %v4127
    %4129 = vmatmul.bf16.gmra.mxu0 %v3107
    %v4130 = vpop.f32.mrf.mxu0
    %v4131 = vadd.f32 %v4098, %v4130
    %v4132 = vpop.f32.mrf.mxu0
    %4133 = vdwg.mxu0
    %4134 = vmatpush.bf16.msra.mxu0 %v3641
    %4135 = vmatpush.bf16.msra.mxu0 %v3637
    %4136 = vmatpush.bf16.msra.mxu0 %v3633
    %4137 = vmatpush.bf16.msra.mxu0 %v3629
    %4138 = vmatpush.bf16.msra.mxu0 %v3625
    %4139 = vmatpush.bf16.msra.mxu0 %v3621
    %4140 = vmatpush.bf16.msra.mxu0 %v3617
    %4141 = vmatpush.bf16.msra.mxu0 %v3613
    %4142 = vmatmul.bf16.gmra.mxu0 %v3086
    %v4143 = vpop.f32.mrf.mxu0
    %v4144 = vadd.f32 %v4111, %v4143
    %v4145 = vpop.f32.mrf.mxu0
    %v4146 = vadd.f32 %v4113, %v4145
    %4147 = vmatmul.bf16.gmra.mxu0 %v3094
    %v4148 = vpop.f32.mrf.mxu0
    %v4149 = vadd.f32 %v4116, %v4148
    %v4150 = vpop.f32.mrf.mxu0
    %v4151 = vadd.f32 %v4118, %v4150
    %4152 = vmatmul.bf16.gmra.mxu0 %v3102
    %v4153 = vpop.f32.mrf.mxu0
    %v4154 = vadd.f32 %v4121, %v4153
    %v4155 = vpop.f32.mrf.mxu0
    %v4156 = vadd.f32 %v4123, %v4155
    %4157 = vmatmul.bf16.gmra.mxu0 %v3110
    %v4158 = vpop.f32.mrf.mxu0
    %v4159 = vadd.f32 %v4126, %v4158
    %v4160 = vpop.f32.mrf.mxu0
    %v4161 = vadd.f32 %v4128, %v4160
    %4162 = vmatmul.bf16.gmra.mxu0 %v3109
    %v4163 = vpop.f32.mrf.mxu0
    %v4164 = vadd.f32 %v4131, %v4163
    %v4165 = vpop.f32.mrf.mxu0
    %4166 = vdwg.mxu0
    %4167 = vmatpush.bf16.msra.mxu0 %v3546
    %4168 = vmatpush.bf16.msra.mxu0 %v3542
    %4169 = vmatpush.bf16.msra.mxu0 %v3538
    %4170 = vmatpush.bf16.msra.mxu0 %v3534
    %4171 = vmatpush.bf16.msra.mxu0 %v3530
    %4172 = vmatpush.bf16.msra.mxu0 %v3526
    %4173 = vmatpush.bf16.msra.mxu0 %v3522
    %4174 = vmatpush.bf16.msra.mxu0 %v3518
    %4175 = vmatmul.bf16.gmra.mxu0 %v3077
    %v4176 = vpop.f32.mrf.mxu0
    %v4177 = vadd.f32 0.0, %v4176
    %v4178 = vpop.f32.mrf.mxu0
    %v4179 = vadd.f32 0.0, %v4178
    %4180 = vmatmul.bf16.gmra.mxu0 %v3088
    %v4181 = vpop.f32.mrf.mxu0
    %v4182 = vadd.f32 0.0, %v4181
    %v4183 = vpop.f32.mrf.mxu0
    %v4184 = vadd.f32 0.0, %v4183
    %4185 = vmatmul.bf16.gmra.mxu0 %v3096
    %v4186 = vpop.f32.mrf.mxu0
    %v4187 = vadd.f32 0.0, %v4186
    %v4188 = vpop.f32.mrf.mxu0
    %v4189 = vadd.f32 0.0, %v4188
    %4190 = vmatmul.bf16.gmra.mxu0 %v3104
    %v4191 = vpop.f32.mrf.mxu0
    %v4192 = vadd.f32 0.0, %v4191
    %v4193 = vpop.f32.mrf.mxu0
    %v4194 = vadd.f32 0.0, %v4193
    %4195 = vmatmul.bf16.gmra.mxu0 %v3103
    %v4196 = vpop.f32.mrf.mxu0
    %v4197 = vadd.f32 0.0, %v4196
    %v4198 = vpop.f32.mrf.mxu0
    %4199 = vdwg.mxu0
    %4200 = vmatpush.bf16.msra.mxu0 %v3578
    %4201 = vmatpush.bf16.msra.mxu0 %v3574
    %4202 = vmatpush.bf16.msra.mxu0 %v3570
    %4203 = vmatpush.bf16.msra.mxu0 %v3566
    %4204 = vmatpush.bf16.msra.mxu0 %v3562
    %4205 = vmatpush.bf16.msra.mxu0 %v3558
    %4206 = vmatpush.bf16.msra.mxu0 %v3554
    %4207 = vmatpush.bf16.msra.mxu0 %v3550
    %4208 = vmatmul.bf16.gmra.mxu0 %v3080
    %v4209 = vpop.f32.mrf.mxu0
    %v4210 = vadd.f32 %v4177, %v4209
    %v4211 = vpop.f32.mrf.mxu0
    %v4212 = vadd.f32 %v4179, %v4211
    %4213 = vmatmul.bf16.gmra.mxu0 %v3090
    %v4214 = vpop.f32.mrf.mxu0
    %v4215 = vadd.f32 %v4182, %v4214
    %v4216 = vpop.f32.mrf.mxu0
    %v4217 = vadd.f32 %v4184, %v4216
    %4218 = vmatmul.bf16.gmra.mxu0 %v3098
    %v4219 = vpop.f32.mrf.mxu0
    %v4220 = vadd.f32 %v4187, %v4219
    %v4221 = vpop.f32.mrf.mxu0
    %v4222 = vadd.f32 %v4189, %v4221
    %4223 = vmatmul.bf16.gmra.mxu0 %v3106
    %v4224 = vpop.f32.mrf.mxu0
    %v4225 = vadd.f32 %v4192, %v4224
    %v4226 = vpop.f32.mrf.mxu0
    %v4227 = vadd.f32 %v4194, %v4226
    %4228 = vmatmul.bf16.gmra.mxu0 %v3105
    %v4229 = vpop.f32.mrf.mxu0
    %v4230 = vadd.f32 %v4197, %v4229
    %v4231 = vpop.f32.mrf.mxu0
    %4232 = vdwg.mxu0
    %4233 = vmatpush.bf16.msra.mxu0 %v3610
    %4234 = vmatpush.bf16.msra.mxu0 %v3606
    %4235 = vmatpush.bf16.msra.mxu0 %v3602
    %4236 = vmatpush.bf16.msra.mxu0 %v3598
    %4237 = vmatpush.bf16.msra.mxu0 %v3594
    %4238 = vmatpush.bf16.msra.mxu0 %v3590
    %4239 = vmatpush.bf16.msra.mxu0 %v3586
    %4240 = vmatpush.bf16.msra.mxu0 %v3582
    %4241 = vmatmul.bf16.gmra.mxu0 %v3083
    %v4242 = vpop.f32.mrf.mxu0
    %v4243 = vadd.f32 %v4210, %v4242
    %v4244 = vpop.f32.mrf.mxu0
    %v4245 = vadd.f32 %v4212, %v4244
    %4246 = vmatmul.bf16.gmra.mxu0 %v3092
    %v4247 = vpop.f32.mrf.mxu0
    %v4248 = vadd.f32 %v4215, %v4247
    %v4249 = vpop.f32.mrf.mxu0
    %v4250 = vadd.f32 %v4217, %v4249
    %4251 = vmatmul.bf16.gmra.mxu0 %v3100
    %v4252 = vpop.f32.mrf.mxu0
    %v4253 = vadd.f32 %v4220, %v4252
    %v4254 = vpop.f32.mrf.mxu0
    %v4255 = vadd.f32 %v4222, %v4254
    %4256 = vmatmul.bf16.gmra.mxu0 %v3108
    %v4257 = vpop.f32.mrf.mxu0
    %v4258 = vadd.f32 %v4225, %v4257
    %v4259 = vpop.f32.mrf.mxu0
    %v4260 = vadd.f32 %v4227, %v4259
    %4261 = vmatmul.bf16.gmra.mxu0 %v3107
    %v4262 = vpop.f32.mrf.mxu0
    %v4263 = vadd.f32 %v4230, %v4262
    %v4264 = vpop.f32.mrf.mxu0
    %4265 = vdwg.mxu0
    %4266 = vmatpush.bf16.msra.mxu0 %v3642
    %4267 = vmatpush.bf16.msra.mxu0 %v3638
    %4268 = vmatpush.bf16.msra.mxu0 %v3634
    %4269 = vmatpush.bf16.msra.mxu0 %v3630
    %4270 = vmatpush.bf16.msra.mxu0 %v3626
    %4271 = vmatpush.bf16.msra.mxu0 %v3622
    %4272 = vmatpush.bf16.msra.mxu0 %v3618
    %4273 = vmatpush.bf16.msra.mxu0 %v3614
    %4274 = vmatmul.bf16.gmra.mxu0 %v3086
    %v4275 = vpop.f32.mrf.mxu0
    %v4276 = vadd.f32 %v4243, %v4275
    %v4277 = vpop.f32.mrf.mxu0
    %v4278 = vadd.f32 %v4245, %v4277
    %4279 = vmatmul.bf16.gmra.mxu0 %v3094
    %v4280 = vpop.f32.mrf.mxu0
    %v4281 = vadd.f32 %v4248, %v4280
    %v4282 = vpop.f32.mrf.mxu0
    %v4283 = vadd.f32 %v4250, %v4282
    %4284 = vmatmul.bf16.gmra.mxu0 %v3102
    %v4285 = vpop.f32.mrf.mxu0
    %v4286 = vadd.f32 %v4253, %v4285
    %v4287 = vpop.f32.mrf.mxu0
    %v4288 = vadd.f32 %v4255, %v4287
    %4289 = vmatmul.bf16.gmra.mxu0 %v3110
    %v4290 = vpop.f32.mrf.mxu0
    %v4291 = vadd.f32 %v4258, %v4290
    %v4292 = vpop.f32.mrf.mxu0
    %v4293 = vadd.f32 %v4260, %v4292
    %4294 = vmatmul.bf16.gmra.mxu0 %v3109
    %v4295 = vpop.f32.mrf.mxu0
    %v4296 = vadd.f32 %v4263, %v4295
    %v4297 = vpop.f32.mrf.mxu0
    %4298 = vdwg.mxu0
    %v4299 = vadd.f32 %v2526, %v3880
    %v4300 = vadd.f32 %v2658, %v4012
    %v4301 = vadd.f32 %v2790, %v4144
    %v4302 = vadd.f32 %v2922, %v4276
    %v4303 = vadd.f32 %v2528, %v3882
    %v4304 = vadd.f32 %v2660, %v4014
    %v4305 = vadd.f32 %v2792, %v4146
    %v4306 = vadd.f32 %v2924, %v4278
    %v4307 = vadd.f32 %v2531, %v3885
    %v4308 = vadd.f32 %v2663, %v4017
    %v4309 = vadd.f32 %v2795, %v4149
    %v4310 = vadd.f32 %v2927, %v4281
    %v4311 = vadd.f32 %v2533, %v3887
    %v4312 = vadd.f32 %v2665, %v4019
    %v4313 = vadd.f32 %v2797, %v4151
    %v4314 = vadd.f32 %v2929, %v4283
    %v4315 = vadd.f32 %v2536, %v3890
    %v4316 = vadd.f32 %v2668, %v4022
    %v4317 = vadd.f32 %v2800, %v4154
    %v4318 = vadd.f32 %v2932, %v4286
    %v4319 = vadd.f32 %v2538, %v3892
    %v4320 = vadd.f32 %v2670, %v4024
    %v4321 = vadd.f32 %v2802, %v4156
    %v4322 = vadd.f32 %v2934, %v4288
    %v4323 = vadd.f32 %v2541, %v3895
    %v4324 = vadd.f32 %v2673, %v4027
    %v4325 = vadd.f32 %v2805, %v4159
    %v4326 = vadd.f32 %v2937, %v4291
    %v4327 = vadd.f32 %v2543, %v3897
    %v4328 = vadd.f32 %v2675, %v4029
    %v4329 = vadd.f32 %v2807, %v4161
    %v4330 = vadd.f32 %v2939, %v4293
    %v4331 = vadd.f32 %v2546, %v3900
    %v4332 = vadd.f32 %v2678, %v4032
    %v4333 = vadd.f32 %v2810, %v4164
    %v4334 = vadd.f32 %v2942, %v4296
    %v4335 = vld [vmem:[#allocation4] sm:$0xf]
    %v4337 = vperm.slane %v4335, 0
    %v4338 = vperm.slane %v4335, 1
    %v4339 = vperm.slane %v4335, 2
    %v4340 = vperm.slane %v4335, 3
    %v4345 = vadd.f32 %v4299, %v4337
    %v4346 = vadd.f32 %v4300, %v4338
    %v4347 = vadd.f32 %v4301, %v4339
    %v4348 = vadd.f32 %v4302, %v4340
    %v4349 = vadd.f32 %v4303, %v4337
    %v4350 = vadd.f32 %v4304, %v4338
    %v4351 = vadd.f32 %v4305, %v4339
    %v4352 = vadd.f32 %v4306, %v4340
    %v4353 = vadd.f32 %v4307, %v4337
    %v4354 = vadd.f32 %v4308, %v4338
    %v4355 = vadd.f32 %v4309, %v4339
    %v4356 = vadd.f32 %v4310, %v4340
    %v4357 = vadd.f32 %v4311, %v4337
    %v4358 = vadd.f32 %v4312, %v4338
    %v4359 = vadd.f32 %v4313, %v4339
    %v4360 = vadd.f32 %v4314, %v4340
    %v4361 = vadd.f32 %v4315, %v4337
    %v4362 = vadd.f32 %v4316, %v4338
    %v4363 = vadd.f32 %v4317, %v4339
    %v4364 = vadd.f32 %v4318, %v4340
    %v4365 = vadd.f32 %v4319, %v4337
    %v4366 = vadd.f32 %v4320, %v4338
    %v4367 = vadd.f32 %v4321, %v4339
    %v4368 = vadd.f32 %v4322, %v4340
    %v4369 = vadd.f32 %v4323, %v4337
    %v4370 = vadd.f32 %v4324, %v4338
    %v4371 = vadd.f32 %v4325, %v4339
    %v4372 = vadd.f32 %v4326, %v4340
    %v4373 = vadd.f32 %v4327, %v4337
    %v4374 = vadd.f32 %v4328, %v4338
    %v4375 = vadd.f32 %v4329, %v4339
    %v4376 = vadd.f32 %v4330, %v4340
    %v4377 = vadd.f32 %v4331, %v4337
    %v4378 = vadd.f32 %v4332, %v4338
    %v4379 = vadd.f32 %v4333, %v4339
    %v4380 = vadd.f32 %v4334, %v4340
    %v4381 = vmax.f32 %v4345, 0.0
    %v4382 = vmax.f32 %v4346, 0.0
    %v4383 = vmax.f32 %v4347, 0.0
    %v4384 = vmax.f32 %v4348, 0.0
    %v4385 = vmax.f32 %v4349, 0.0
    %v4386 = vmax.f32 %v4350, 0.0
    %v4387 = vmax.f32 %v4351, 0.0
    %v4388 = vmax.f32 %v4352, 0.0
    %v4389 = vmax.f32 %v4353, 0.0
    %v4390 = vmax.f32 %v4354, 0.0
    %v4391 = vmax.f32 %v4355, 0.0
    %v4392 = vmax.f32 %v4356, 0.0
    %v4393 = vmax.f32 %v4357, 0.0
    %v4394 = vmax.f32 %v4358, 0.0
    %v4395 = vmax.f32 %v4359, 0.0
    %v4396 = vmax.f32 %v4360, 0.0
    %v4397 = vmax.f32 %v4361, 0.0
    %v4398 = vmax.f32 %v4362, 0.0
    %v4399 = vmax.f32 %v4363, 0.0
    %v4400 = vmax.f32 %v4364, 0.0
    %v4401 = vmax.f32 %v4365, 0.0
    %v4402 = vmax.f32 %v4366, 0.0
    %v4403 = vmax.f32 %v4367, 0.0
    %v4404 = vmax.f32 %v4368, 0.0
    %v4405 = vmax.f32 %v4369, 0.0
    %v4406 = vmax.f32 %v4370, 0.0
    %v4407 = vmax.f32 %v4371, 0.0
    %v4408 = vmax.f32 %v4372, 0.0
    %v4409 = vmax.f32 %v4373, 0.0
    %v4410 = vmax.f32 %v4374, 0.0
    %v4411 = vmax.f32 %v4375, 0.0
    %v4412 = vmax.f32 %v4376, 0.0
    %v4413 = vmax.f32 %v4377, 0.0
    %v4414 = vmax.f32 %v4378, 0.0
    %v4415 = vmax.f32 %v4379, 0.0
    %v4416 = vmax.f32 %v4380, 0.0
    %v4417 = vmax.f32 %v4381, %v4383
    %v4418 = vmax.f32 %v4382, %v4384
    %v4419 = vmax.f32 %v4385, %v4387
    %v4420 = vmax.f32 %v4386, %v4388
    %v4421 = vmax.f32 %v4389, %v4391
    %v4422 = vmax.f32 %v4390, %v4392
    %v4423 = vmax.f32 %v4393, %v4395
    %v4424 = vmax.f32 %v4394, %v4396
    %v4425 = vmax.f32 %v4397, %v4399
    %v4426 = vmax.f32 %v4398, %v4400
    %v4427 = vmax.f32 %v4401, %v4403
    %v4428 = vmax.f32 %v4402, %v4404
    %v4429 = vmax.f32 %v4405, %v4407
    %v4430 = vmax.f32 %v4406, %v4408
    %v4431 = vmax.f32 %v4409, %v4411
    %v4432 = vmax.f32 %v4410, %v4412
    %v4433 = vmax.f32 %v4413, %v4415
    %v4434 = vmax.f32 %v4414, %v4416
    %v4435 = vpack.c.bf16 %v4419, %v4417
    %v4436 = vpack.c.bf16 %v4420, %v4418
    %v4437 = vpack.c.bf16 %v4423, %v4421
    %v4438 = vpack.c.bf16 %v4424, %v4422
    %v4439 = vpack.c.bf16 %v4427, %v4425
    %v4440 = vpack.c.bf16 %v4428, %v4426
    %v4441 = vpack.c.bf16 %v4431, %v4429
    %v4442 = vpack.c.bf16 %v4432, %v4430
    %v4443 = vpack.c.bf16 %v4433, %v4433
    %v4444 = vpack.c.bf16 %v4434, %v4434
    %v4445 = vld [vmem:[#allocation6] sm:$0xf]
    %v4446 = vld [vmem:[#allocation6 + $0x4] sm:$0xf]
    %v4447 = vld [vmem:[#allocation6 + $0x8] sm:$0xf]
    %v4448 = vld [vmem:[#allocation6 + $0xc] sm:$0xf]
    %v4449 = vld [vmem:[#allocation6 + $0x10] sm:$0xf]
    %v4450 = vld [vmem:[#allocation6 + $0x14] sm:$0xf]
    %v4451 = vld [vmem:[#allocation6 + $0x18] sm:$0xf]
    %v4452 = vld [vmem:[#allocation6 + $0x1c] sm:$0xf]
    %v4461 = vunpack.c.l.b16 %v4445
    %v4462 = vunpack.c.l.b16 %v4446
    %v4463 = vunpack.c.l.b16 %v4447
    %v4464 = vunpack.c.l.b16 %v4448
    %v4465 = vunpack.c.l.b16 %v4449
    %v4466 = vunpack.c.l.b16 %v4450
    %v4467 = vunpack.c.l.b16 %v4451
    %v4468 = vunpack.c.l.b16 %v4452
    %v4469 = vpack.c.b16 %v4462, %v4461
    %v4470 = vpack.c.b16 %v4464, %v4463
    %v4471 = vpack.c.b16 %v4466, %v4465
    %v4472 = vpack.c.b16 %v4468, %v4467
    %vm4473 = vcmask 572416
    %v4475 = vsel %vm4473, %v4469, 0
    %v4478 = vsel %vm4473, %v4470, 0
    %v4481 = vsel %vm4473, %v4471, 0
    %v4484 = vsel %vm4473, %v4472, 0
    %vm4486 = vcmask 1042432
    %v4488 = vsel %vm4486, %v4443, 0
    %v4491 = vsel %vm4486, %v4444, 0
    %4493 = vmatpush.bf16.msra.mxu0 0
    %4494 = vmatpush.bf16.msra.mxu0 0
    %4495 = vmatpush.bf16.msra.mxu0 0
    %4496 = vmatpush.bf16.msra.mxu0 %v4488
    %4497 = vmatpush.bf16.msra.mxu0 %v4441
    %4498 = vmatpush.bf16.msra.mxu0 %v4439
    %4499 = vmatpush.bf16.msra.mxu0 %v4437
    %4500 = vmatpush.bf16.msra.mxu0 %v4435
    %4501 = vmatmul.bf16.gmra.mxu0 %v4475
    %v4502 = vpop.f32.mrf.mxu0
    %v4503 = vadd.f32 0.0, %v4502
    %v4504 = vpop.f32.mrf.mxu0
    %v4505 = vadd.f32 0.0, %v4504
    %4506 = vmatmul.bf16.gmra.mxu0 %v4478
    %v4507 = vpop.f32.mrf.mxu0
    %v4508 = vadd.f32 0.0, %v4507
    %v4509 = vpop.f32.mrf.mxu0
    %v4510 = vadd.f32 0.0, %v4509
    %4511 = vmatmul.bf16.gmra.mxu0 %v4481
    %v4512 = vpop.f32.mrf.mxu0
    %v4513 = vadd.f32 0.0, %v4512
    %v4514 = vpop.f32.mrf.mxu0
    %v4515 = vadd.f32 0.0, %v4514
    %4516 = vmatmul.bf16.gmra.mxu0 %v4484
    %v4517 = vpop.f32.mrf.mxu0
    %v4518 = vadd.f32 0.0, %v4517
    %v4519 = vpop.f32.mrf.mxu0
    %v4520 = vadd.f32 0.0, %v4519
    %4521 = vdwg.mxu0
    %4522 = vmatpush.bf16.msra.mxu0 0
    %4523 = vmatpush.bf16.msra.mxu0 0
    %4524 = vmatpush.bf16.msra.mxu0 0
    %4525 = vmatpush.bf16.msra.mxu0 %v4491
    %4526 = vmatpush.bf16.msra.mxu0 %v4442
    %4527 = vmatpush.bf16.msra.mxu0 %v4440
    %4528 = vmatpush.bf16.msra.mxu0 %v4438
    %4529 = vmatpush.bf16.msra.mxu0 %v4436
    %4530 = vmatmul.bf16.gmra.mxu0 %v4475
    %v4531 = vpop.f32.mrf.mxu0
    %v4532 = vadd.f32 0.0, %v4531
    %v4533 = vpop.f32.mrf.mxu0
    %v4534 = vadd.f32 0.0, %v4533
    %4535 = vmatmul.bf16.gmra.mxu0 %v4478
    %v4536 = vpop.f32.mrf.mxu0
    %v4537 = vadd.f32 0.0, %v4536
    %v4538 = vpop.f32.mrf.mxu0
    %v4539 = vadd.f32 0.0, %v4538
    %4540 = vmatmul.bf16.gmra.mxu0 %v4481
    %v4541 = vpop.f32.mrf.mxu0
    %v4542 = vadd.f32 0.0, %v4541
    %v4543 = vpop.f32.mrf.mxu0
    %v4544 = vadd.f32 0.0, %v4543
    %4545 = vmatmul.bf16.gmra.mxu0 %v4484
    %v4546 = vpop.f32.mrf.mxu0
    %v4547 = vadd.f32 0.0, %v4546
    %v4548 = vpop.f32.mrf.mxu0
    %v4549 = vadd.f32 0.0, %v4548
    %4550 = vdwg.mxu0
    %v4551 = vmax.f32 %v4503, %v4513
    %v4552 = vmax.f32 %v4532, %v4542
    %v4553 = vmax.f32 %v4505, %v4515
    %v4554 = vmax.f32 %v4534, %v4544
    %v4555 = vmax.f32 %v4508, %v4518
    %v4556 = vmax.f32 %v4537, %v4547
    %v4557 = vmax.f32 %v4510, %v4520
    %v4558 = vmax.f32 %v4539, %v4549
    %v4559 = vpack.c.bf16 %v4552, %v4551
    %v4560 = vpack.c.bf16 %v4554, %v4553
    %v4561 = vpack.c.bf16 %v4556, %v4555
    %v4562 = vpack.c.bf16 %v4558, %v4557
    %4563 = vst [vmem:[%s4] sm:$0xff] %v4559
    %4564 = vst [vmem:[%s4 + $0x8] sm:$0xff] %v4560
    %4565 = vst [vmem:[%s4 + $0x10] sm:$0xff] %v4561
    %4566 = vst [vmem:[%s4 + $0x18] sm:$0xff] %v4562
    // Predicated region
    $region30: #{forward.4} parent=1 // pred_check
      _
    $region31: #{forward.4} parent=1 // pred_check_branch
      %4568 = sbr.rel (0) target = $region33
    $region32: #{forward.4} parent=1 // pred_region
      _
    $region33: #{forward.4} parent=1 // pred_fallthru
      _
    // Predicated region
    $region34: #{forward.4} parent=1 // pred_check
      _
    $region35: #{forward.4} parent=1 // pred_check_branch
      %4570 = sbr.rel (0) target = $region37
    $region36: #{forward.4} parent=1 // pred_region
      _
    $region37: #{forward.4} parent=1 // pred_fallthru
      _
    %4571 = vsyncpa [#allocation3], 1
    %4572 = vsyncpa [#allocation5], 1

// kernel: forward.5
$region0: #{forward.5}
  #allocation0 [shape = 'u32[]', space=smem, size = 0x4, offset = 0x4, fixed_abs, tag = 'smem constant byte address 0x4 - core index']
  #allocation1 [shape = 'u32[72,128]{1,0:T(1,128)}', space=vmem, size = 0x9000, scoped, tag = 'internal scratch']
  %s0 = inlined_call_operand.vmem [shape: bf16[4,2048], index: 0, kind: input, shape index: {}]
  %s1 = inlined_call_operand.vmem [shape: bf16[2048,512], index: 1, kind: input, shape index: {}]
  %s2 = inlined_call_operand.vmem [shape: f32[1,512], index: 2, kind: input, shape index: {}]
  %s3 = inlined_call_operand.vmem [shape: bf16[512,256], index: 3, kind: input, shape index: {}]
  %s4 = inlined_call_operand.vmem [shape: f32[1,256], index: 4, kind: input, shape index: {}]
  %s5 = inlined_call_operand.vmem [shape: bf16[256,128], index: 5, kind: input, shape index: {}]
  %s6 = inlined_call_operand.vmem [shape: f32[1,128], index: 6, kind: input, shape index: {}]
  %s7 = inlined_call_operand.vmem [shape: f32[4,128], index: 7, kind: output, shape index: {}]
  %s8 = sld [smem:[#allocation0]]
  $region38: #{forward.5} parent=0
    _
  %s10 = ssub.s32 1, %s8
  %s11 = scalar_select 0, %s10, %s8
  // Predicated region
  $region2: #{forward.5} parent=0 // pred_check
    _
  $region3: #{forward.5} parent=0 // pred_check_branch
    %13 = sbr.rel (0) target = $region5
  $region4: #{forward.5} parent=0 // pred_region
    _
  $region5: #{forward.5} parent=0 // pred_fallthru
    _
  // Predicated region
  $region6: #{forward.5} parent=0 // pred_check
    _
  $region7: #{forward.5} parent=0 // pred_check_branch
    %15 = sbr.rel (0) target = $region9
  $region8: #{forward.5} parent=0 // pred_region
    _
  $region9: #{forward.5} parent=0 // pred_fallthru
    _
  // Predicated region
  $region10: #{forward.5} parent=0 // pred_check
    _
  $region11: #{forward.5} parent=0 // pred_check_branch
    %17 = sbr.rel (0) target = $region13
  $region12: #{forward.5} parent=0 // pred_region
    _
  $region13: #{forward.5} parent=0 // pred_fallthru
    _
  // Predicated region
  $region14: #{forward.5} parent=0 // pred_check
    _
  $region15: #{forward.5} parent=0 // pred_check_branch
    %19 = sbr.rel (0) target = $region17
  $region16: #{forward.5} parent=0 // pred_region
    _
  $region17: #{forward.5} parent=0 // pred_fallthru
    _
  // Predicated region
  $region18: #{forward.5} parent=0 // pred_check
    _
  $region19: #{forward.5} parent=0 // pred_check_branch
    %21 = sbr.rel (0) target = $region21
  $region20: #{forward.5} parent=0 // pred_region
    _
  $region21: #{forward.5} parent=0 // pred_fallthru
    _
  // Predicated region
  $region22: #{forward.5} parent=0 // pred_check
    _
  $region23: #{forward.5} parent=0 // pred_check_branch
    %23 = sbr.rel (0) target = $region25
  $region24: #{forward.5} parent=0 // pred_region
    _
  $region25: #{forward.5} parent=0 // pred_fallthru
    _
  // Predicated region
  $region26: #{forward.5} parent=0 // pred_check
    _
  $region27: #{forward.5} parent=0 // pred_check_branch
    %25 = sbr.rel (0) target = $region29
  $region28: #{forward.5} parent=0 // pred_region
    _
  $region29: #{forward.5} parent=0 // pred_fallthru
    _
  %v26 = vld [vmem:[%s0] sm:$0xff]
  %v27 = vld [vmem:[%s0 + $0x8] sm:$0xff]
  %v28 = vld [vmem:[%s0 + $0x10] sm:$0xff]
  %v29 = vld [vmem:[%s0 + $0x18] sm:$0xff]
  %v30 = vld [vmem:[%s1] sm:$0xff]
  %v31 = vld [vmem:[%s1 + $0x8] sm:$0xff]
  %v32 = vld [vmem:[%s1 + $0x10] sm:$0xff]
  %v33 = vld [vmem:[%s1 + $0x18] sm:$0xff]
  %v34 = vld [vmem:[%s1 + $0x20] sm:$0xff]
  %v35 = vld [vmem:[%s1 + $0x28] sm:$0xff]
  %v36 = vld [vmem:[%s1 + $0x30] sm:$0xff]
  %v37 = vld [vmem:[%s1 + $0x38] sm:$0xff]
  %v38 = vld [vmem:[%s1 + $0x40] sm:$0xff]
  %v39 = vld [vmem:[%s1 + $0x48] sm:$0xff]
  %v40 = vld [vmem:[%s1 + $0x50] sm:$0xff]
  %v41 = vld [vmem:[%s1 + $0x58] sm:$0xff]
  %v42 = vld [vmem:[%s1 + $0x60] sm:$0xff]
  %v43 = vld [vmem:[%s1 + $0x68] sm:$0xff]
  %v44 = vld [vmem:[%s1 + $0x70] sm:$0xff]
  %v45 = vld [vmem:[%s1 + $0x78] sm:$0xff]
  %v46 = vld [vmem:[%s1 + $0x80] sm:$0xff]
  %v47 = vld [vmem:[%s1 + $0x88] sm:$0xff]
  %v48 = vld [vmem:[%s1 + $0x90] sm:$0xff]
  %v49 = vld [vmem:[%s1 + $0x98] sm:$0xff]
  %v50 = vld [vmem:[%s1 + $0xa0] sm:$0xff]
  %v51 = vld [vmem:[%s1 + $0xa8] sm:$0xff]
  %v52 = vld [vmem:[%s1 + $0xb0] sm:$0xff]
  %v53 = vld [vmem:[%s1 + $0xb8] sm:$0xff]
  %v54 = vld [vmem:[%s1 + $0xc0] sm:$0xff]
  %v55 = vld [vmem:[%s1 + $0xc8] sm:$0xff]
  %v56 = vld [vmem:[%s1 + $0xd0] sm:$0xff]
  %v57 = vld [vmem:[%s1 + $0xd8] sm:$0xff]
  %v58 = vld [vmem:[%s1 + $0xe0] sm:$0xff]
  %v59 = vld [vmem:[%s1 + $0xe8] sm:$0xff]
  %v60 = vld [vmem:[%s1 + $0xf0] sm:$0xff]
  %v61 = vld [vmem:[%s1 + $0xf8] sm:$0xff]
  %v62 = vld [vmem:[%s1 + $0x100] sm:$0xff]
  %v63 = vld [vmem:[%s1 + $0x108] sm:$0xff]
  %v64 = vld [vmem:[%s1 + $0x110] sm:$0xff]
  %v65 = vld [vmem:[%s1 + $0x118] sm:$0xff]
  %v66 = vld [vmem:[%s1 + $0x120] sm:$0xff]
  %v67 = vld [vmem:[%s1 + $0x128] sm:$0xff]
  %v68 = vld [vmem:[%s1 + $0x130] sm:$0xff]
  %v69 = vld [vmem:[%s1 + $0x138] sm:$0xff]
  %v70 = vld [vmem:[%s1 + $0x140] sm:$0xff]
  %v71 = vld [vmem:[%s1 + $0x148] sm:$0xff]
  %v72 = vld [vmem:[%s1 + $0x150] sm:$0xff]
  %v73 = vld [vmem:[%s1 + $0x158] sm:$0xff]
  %v74 = vld [vmem:[%s1 + $0x160] sm:$0xff]
  %v75 = vld [vmem:[%s1 + $0x168] sm:$0xff]
  %v76 = vld [vmem:[%s1 + $0x170] sm:$0xff]
  %v77 = vld [vmem:[%s1 + $0x178] sm:$0xff]
  %v78 = vld [vmem:[%s1 + $0x180] sm:$0xff]
  %v79 = vld [vmem:[%s1 + $0x188] sm:$0xff]
  %v80 = vld [vmem:[%s1 + $0x190] sm:$0xff]
  %v81 = vld [vmem:[%s1 + $0x198] sm:$0xff]
  %v82 = vld [vmem:[%s1 + $0x1a0] sm:$0xff]
  %v83 = vld [vmem:[%s1 + $0x1a8] sm:$0xff]
  %v84 = vld [vmem:[%s1 + $0x1b0] sm:$0xff]
  %v85 = vld [vmem:[%s1 + $0x1b8] sm:$0xff]
  %v86 = vld [vmem:[%s1 + $0x1c0] sm:$0xff]
  %v87 = vld [vmem:[%s1 + $0x1c8] sm:$0xff]
  %v88 = vld [vmem:[%s1 + $0x1d0] sm:$0xff]
  %v89 = vld [vmem:[%s1 + $0x1d8] sm:$0xff]
  %v90 = vld [vmem:[%s1 + $0x1e0] sm:$0xff]
  %v91 = vld [vmem:[%s1 + $0x1e8] sm:$0xff]
  %v92 = vld [vmem:[%s1 + $0x1f0] sm:$0xff]
  %v93 = vld [vmem:[%s1 + $0x1f8] sm:$0xff]
  %v94 = vld [vmem:[%s1 + $0x200] sm:$0xff]
  %v95 = vld [vmem:[%s1 + $0x208] sm:$0xff]
  %v96 = vld [vmem:[%s1 + $0x210] sm:$0xff]
  %v97 = vld [vmem:[%s1 + $0x218] sm:$0xff]
  %v98 = vld [vmem:[%s1 + $0x220] sm:$0xff]
  %v99 = vld [vmem:[%s1 + $0x228] sm:$0xff]
  %v100 = vld [vmem:[%s1 + $0x230] sm:$0xff]
  %v101 = vld [vmem:[%s1 + $0x238] sm:$0xff]
  %v102 = vld [vmem:[%s1 + $0x240] sm:$0xff]
  %v103 = vld [vmem:[%s1 + $0x248] sm:$0xff]
  %v104 = vld [vmem:[%s1 + $0x250] sm:$0xff]
  %v105 = vld [vmem:[%s1 + $0x258] sm:$0xff]
  %v106 = vld [vmem:[%s1 + $0x260] sm:$0xff]
  %v107 = vld [vmem:[%s1 + $0x268] sm:$0xff]
  %v108 = vld [vmem:[%s1 + $0x270] sm:$0xff]
  %v109 = vld [vmem:[%s1 + $0x278] sm:$0xff]
  %v110 = vld [vmem:[%s1 + $0x280] sm:$0xff]
  %v111 = vld [vmem:[%s1 + $0x288] sm:$0xff]
  %v112 = vld [vmem:[%s1 + $0x290] sm:$0xff]
  %v113 = vld [vmem:[%s1 + $0x298] sm:$0xff]
  %v114 = vld [vmem:[%s1 + $0x2a0] sm:$0xff]
  %v115 = vld [vmem:[%s1 + $0x2a8] sm:$0xff]
  %v116 = vld [vmem:[%s1 + $0x2b0] sm:$0xff]
  %v117 = vld [vmem:[%s1 + $0x2b8] sm:$0xff]
  %v118 = vld [vmem:[%s1 + $0x2c0] sm:$0xff]
  %v119 = vld [vmem:[%s1 + $0x2c8] sm:$0xff]
  %v120 = vld [vmem:[%s1 + $0x2d0] sm:$0xff]
  %v121 = vld [vmem:[%s1 + $0x2d8] sm:$0xff]
  %v122 = vld [vmem:[%s1 + $0x2e0] sm:$0xff]
  %v123 = vld [vmem:[%s1 + $0x2e8] sm:$0xff]
  %v124 = vld [vmem:[%s1 + $0x2f0] sm:$0xff]
  %v125 = vld [vmem:[%s1 + $0x2f8] sm:$0xff]
  %v126 = vld [vmem:[%s1 + $0x300] sm:$0xff]
  %v127 = vld [vmem:[%s1 + $0x308] sm:$0xff]
  %v128 = vld [vmem:[%s1 + $0x310] sm:$0xff]
  %v129 = vld [vmem:[%s1 + $0x318] sm:$0xff]
  %v130 = vld [vmem:[%s1 + $0x320] sm:$0xff]
  %v131 = vld [vmem:[%s1 + $0x328] sm:$0xff]
  %v132 = vld [vmem:[%s1 + $0x330] sm:$0xff]
  %v133 = vld [vmem:[%s1 + $0x338] sm:$0xff]
  %v134 = vld [vmem:[%s1 + $0x340] sm:$0xff]
  %v135 = vld [vmem:[%s1 + $0x348] sm:$0xff]
  %v136 = vld [vmem:[%s1 + $0x350] sm:$0xff]
  %v137 = vld [vmem:[%s1 + $0x358] sm:$0xff]
  %v138 = vld [vmem:[%s1 + $0x360] sm:$0xff]
  %v139 = vld [vmem:[%s1 + $0x368] sm:$0xff]
  %v140 = vld [vmem:[%s1 + $0x370] sm:$0xff]
  %v141 = vld [vmem:[%s1 + $0x378] sm:$0xff]
  %v142 = vld [vmem:[%s1 + $0x380] sm:$0xff]
  %v143 = vld [vmem:[%s1 + $0x388] sm:$0xff]
  %v144 = vld [vmem:[%s1 + $0x390] sm:$0xff]
  %v145 = vld [vmem:[%s1 + $0x398] sm:$0xff]
  %v146 = vld [vmem:[%s1 + $0x3a0] sm:$0xff]
  %v147 = vld [vmem:[%s1 + $0x3a8] sm:$0xff]
  %v148 = vld [vmem:[%s1 + $0x3b0] sm:$0xff]
  %v149 = vld [vmem:[%s1 + $0x3b8] sm:$0xff]
  %v150 = vld [vmem:[%s1 + $0x3c0] sm:$0xff]
  %v151 = vld [vmem:[%s1 + $0x3c8] sm:$0xff]
  %v152 = vld [vmem:[%s1 + $0x3d0] sm:$0xff]
  %v153 = vld [vmem:[%s1 + $0x3d8] sm:$0xff]
  %v154 = vld [vmem:[%s1 + $0x3e0] sm:$0xff]
  %v155 = vld [vmem:[%s1 + $0x3e8] sm:$0xff]
  %v156 = vld [vmem:[%s1 + $0x3f0] sm:$0xff]
  %v157 = vld [vmem:[%s1 + $0x3f8] sm:$0xff]
  %v158 = vld [vmem:[%s1 + $0x400] sm:$0xff]
  %v159 = vld [vmem:[%s1 + $0x408] sm:$0xff]
  %v160 = vld [vmem:[%s1 + $0x410] sm:$0xff]
  %v161 = vld [vmem:[%s1 + $0x418] sm:$0xff]
  %v162 = vld [vmem:[%s1 + $0x420] sm:$0xff]
  %v163 = vld [vmem:[%s1 + $0x428] sm:$0xff]
  %v164 = vld [vmem:[%s1 + $0x430] sm:$0xff]
  %v165 = vld [vmem:[%s1 + $0x438] sm:$0xff]
  %v166 = vld [vmem:[%s1 + $0x440] sm:$0xff]
  %v167 = vld [vmem:[%s1 + $0x448] sm:$0xff]
  %v168 = vld [vmem:[%s1 + $0x450] sm:$0xff]
  %v169 = vld [vmem:[%s1 + $0x458] sm:$0xff]
  %v170 = vld [vmem:[%s1 + $0x460] sm:$0xff]
  %v171 = vld [vmem:[%s1 + $0x468] sm:$0xff]
  %v172 = vld [vmem:[%s1 + $0x470] sm:$0xff]
  %v173 = vld [vmem:[%s1 + $0x478] sm:$0xff]
  %v174 = vld [vmem:[%s1 + $0x480] sm:$0xff]
  %v175 = vld [vmem:[%s1 + $0x488] sm:$0xff]
  %v176 = vld [vmem:[%s1 + $0x490] sm:$0xff]
  %v177 = vld [vmem:[%s1 + $0x498] sm:$0xff]
  %v178 = vld [vmem:[%s1 + $0x4a0] sm:$0xff]
  %v179 = vld [vmem:[%s1 + $0x4a8] sm:$0xff]
  %v180 = vld [vmem:[%s1 + $0x4b0] sm:$0xff]
  %v181 = vld [vmem:[%s1 + $0x4b8] sm:$0xff]
  %v182 = vld [vmem:[%s1 + $0x4c0] sm:$0xff]
  %v183 = vld [vmem:[%s1 + $0x4c8] sm:$0xff]
  %v184 = vld [vmem:[%s1 + $0x4d0] sm:$0xff]
  %v185 = vld [vmem:[%s1 + $0x4d8] sm:$0xff]
  %v186 = vld [vmem:[%s1 + $0x4e0] sm:$0xff]
  %v187 = vld [vmem:[%s1 + $0x4e8] sm:$0xff]
  %v188 = vld [vmem:[%s1 + $0x4f0] sm:$0xff]
  %v189 = vld [vmem:[%s1 + $0x4f8] sm:$0xff]
  %v190 = vld [vmem:[%s1 + $0x500] sm:$0xff]
  %v191 = vld [vmem:[%s1 + $0x508] sm:$0xff]
  %v192 = vld [vmem:[%s1 + $0x510] sm:$0xff]
  %v193 = vld [vmem:[%s1 + $0x518] sm:$0xff]
  %v194 = vld [vmem:[%s1 + $0x520] sm:$0xff]
  %v195 = vld [vmem:[%s1 + $0x528] sm:$0xff]
  %v196 = vld [vmem:[%s1 + $0x530] sm:$0xff]
  %v197 = vld [vmem:[%s1 + $0x538] sm:$0xff]
  %v198 = vld [vmem:[%s1 + $0x540] sm:$0xff]
  %v199 = vld [vmem:[%s1 + $0x548] sm:$0xff]
  %v200 = vld [vmem:[%s1 + $0x550] sm:$0xff]
  %v201 = vld [vmem:[%s1 + $0x558] sm:$0xff]
  %v202 = vld [vmem:[%s1 + $0x560] sm:$0xff]
  %v203 = vld [vmem:[%s1 + $0x568] sm:$0xff]
  %v204 = vld [vmem:[%s1 + $0x570] sm:$0xff]
  %v205 = vld [vmem:[%s1 + $0x578] sm:$0xff]
  %v206 = vld [vmem:[%s1 + $0x580] sm:$0xff]
  %v207 = vld [vmem:[%s1 + $0x588] sm:$0xff]
  %v208 = vld [vmem:[%s1 + $0x590] sm:$0xff]
  %v209 = vld [vmem:[%s1 + $0x598] sm:$0xff]
  %v210 = vld [vmem:[%s1 + $0x5a0] sm:$0xff]
  %v211 = vld [vmem:[%s1 + $0x5a8] sm:$0xff]
  %v212 = vld [vmem:[%s1 + $0x5b0] sm:$0xff]
  %v213 = vld [vmem:[%s1 + $0x5b8] sm:$0xff]
  %v214 = vld [vmem:[%s1 + $0x5c0] sm:$0xff]
  %v215 = vld [vmem:[%s1 + $0x5c8] sm:$0xff]
  %v216 = vld [vmem:[%s1 + $0x5d0] sm:$0xff]
  %v217 = vld [vmem:[%s1 + $0x5d8] sm:$0xff]
  %v218 = vld [vmem:[%s1 + $0x5e0] sm:$0xff]
  %v219 = vld [vmem:[%s1 + $0x5e8] sm:$0xff]
  %v220 = vld [vmem:[%s1 + $0x5f0] sm:$0xff]
  %v221 = vld [vmem:[%s1 + $0x5f8] sm:$0xff]
  %v222 = vld [vmem:[%s1 + $0x600] sm:$0xff]
  %v223 = vld [vmem:[%s1 + $0x608] sm:$0xff]
  %v224 = vld [vmem:[%s1 + $0x610] sm:$0xff]
  %v225 = vld [vmem:[%s1 + $0x618] sm:$0xff]
  %v226 = vld [vmem:[%s1 + $0x620] sm:$0xff]
  %v227 = vld [vmem:[%s1 + $0x628] sm:$0xff]
  %v228 = vld [vmem:[%s1 + $0x630] sm:$0xff]
  %v229 = vld [vmem:[%s1 + $0x638] sm:$0xff]
  %v230 = vld [vmem:[%s1 + $0x640] sm:$0xff]
  %v231 = vld [vmem:[%s1 + $0x648] sm:$0xff]
  %v232 = vld [vmem:[%s1 + $0x650] sm:$0xff]
  %v233 = vld [vmem:[%s1 + $0x658] sm:$0xff]
  %v234 = vld [vmem:[%s1 + $0x660] sm:$0xff]
  %v235 = vld [vmem:[%s1 + $0x668] sm:$0xff]
  %v236 = vld [vmem:[%s1 + $0x670] sm:$0xff]
  %v237 = vld [vmem:[%s1 + $0x678] sm:$0xff]
  %v238 = vld [vmem:[%s1 + $0x680] sm:$0xff]
  %v239 = vld [vmem:[%s1 + $0x688] sm:$0xff]
  %v240 = vld [vmem:[%s1 + $0x690] sm:$0xff]
  %v241 = vld [vmem:[%s1 + $0x698] sm:$0xff]
  %v242 = vld [vmem:[%s1 + $0x6a0] sm:$0xff]
  %v243 = vld [vmem:[%s1 + $0x6a8] sm:$0xff]
  %v244 = vld [vmem:[%s1 + $0x6b0] sm:$0xff]
  %v245 = vld [vmem:[%s1 + $0x6b8] sm:$0xff]
  %v246 = vld [vmem:[%s1 + $0x6c0] sm:$0xff]
  %v247 = vld [vmem:[%s1 + $0x6c8] sm:$0xff]
  %v248 = vld [vmem:[%s1 + $0x6d0] sm:$0xff]
  %v249 = vld [vmem:[%s1 + $0x6d8] sm:$0xff]
  %v250 = vld [vmem:[%s1 + $0x6e0] sm:$0xff]
  %v251 = vld [vmem:[%s1 + $0x6e8] sm:$0xff]
  %v252 = vld [vmem:[%s1 + $0x6f0] sm:$0xff]
  %v253 = vld [vmem:[%s1 + $0x6f8] sm:$0xff]
  %v254 = vld [vmem:[%s1 + $0x700] sm:$0xff]
  %v255 = vld [vmem:[%s1 + $0x708] sm:$0xff]
  %v256 = vld [vmem:[%s1 + $0x710] sm:$0xff]
  %v257 = vld [vmem:[%s1 + $0x718] sm:$0xff]
  %v258 = vld [vmem:[%s1 + $0x720] sm:$0xff]
  %v259 = vld [vmem:[%s1 + $0x728] sm:$0xff]
  %v260 = vld [vmem:[%s1 + $0x730] sm:$0xff]
  %v261 = vld [vmem:[%s1 + $0x738] sm:$0xff]
  %v262 = vld [vmem:[%s1 + $0x740] sm:$0xff]
  %v263 = vld [vmem:[%s1 + $0x748] sm:$0xff]
  %v264 = vld [vmem:[%s1 + $0x750] sm:$0xff]
  %v265 = vld [vmem:[%s1 + $0x758] sm:$0xff]
  %v266 = vld [vmem:[%s1 + $0x760] sm:$0xff]
  %v267 = vld [vmem:[%s1 + $0x768] sm:$0xff]
  %v268 = vld [vmem:[%s1 + $0x770] sm:$0xff]
  %v269 = vld [vmem:[%s1 + $0x778] sm:$0xff]
  %v270 = vld [vmem:[%s1 + $0x780] sm:$0xff]
  %v271 = vld [vmem:[%s1 + $0x788] sm:$0xff]
  %v272 = vld [vmem:[%s1 + $0x790] sm:$0xff]
  %v273 = vld [vmem:[%s1 + $0x798] sm:$0xff]
  %v274 = vld [vmem:[%s1 + $0x7a0] sm:$0xff]
  %v275 = vld [vmem:[%s1 + $0x7a8] sm:$0xff]
  %v276 = vld [vmem:[%s1 + $0x7b0] sm:$0xff]
  %v277 = vld [vmem:[%s1 + $0x7b8] sm:$0xff]
  %v278 = vld [vmem:[%s1 + $0x7c0] sm:$0xff]
  %v279 = vld [vmem:[%s1 + $0x7c8] sm:$0xff]
  %v280 = vld [vmem:[%s1 + $0x7d0] sm:$0xff]
  %v281 = vld [vmem:[%s1 + $0x7d8] sm:$0xff]
  %v282 = vld [vmem:[%s1 + $0x7e0] sm:$0xff]
  %v283 = vld [vmem:[%s1 + $0x7e8] sm:$0xff]
  %v284 = vld [vmem:[%s1 + $0x7f0] sm:$0xff]
  %v285 = vld [vmem:[%s1 + $0x7f8] sm:$0xff]
  %v286 = vld [vmem:[%s1 + $0x800] sm:$0xff]
  %v287 = vld [vmem:[%s1 + $0x808] sm:$0xff]
  %v288 = vld [vmem:[%s1 + $0x810] sm:$0xff]
  %v289 = vld [vmem:[%s1 + $0x818] sm:$0xff]
  %v290 = vld [vmem:[%s1 + $0x820] sm:$0xff]
  %v291 = vld [vmem:[%s1 + $0x828] sm:$0xff]
  %v292 = vld [vmem:[%s1 + $0x830] sm:$0xff]
  %v293 = vld [vmem:[%s1 + $0x838] sm:$0xff]
  %v294 = vld [vmem:[%s1 + $0x840] sm:$0xff]
  %v295 = vld [vmem:[%s1 + $0x848] sm:$0xff]
  %v296 = vld [vmem:[%s1 + $0x850] sm:$0xff]
  %v297 = vld [vmem:[%s1 + $0x858] sm:$0xff]
  %v298 = vld [vmem:[%s1 + $0x860] sm:$0xff]
  %v299 = vld [vmem:[%s1 + $0x868] sm:$0xff]
  %v300 = vld [vmem:[%s1 + $0x870] sm:$0xff]
  %v301 = vld [vmem:[%s1 + $0x878] sm:$0xff]
  %v302 = vld [vmem:[%s1 + $0x880] sm:$0xff]
  %v303 = vld [vmem:[%s1 + $0x888] sm:$0xff]
  %v304 = vld [vmem:[%s1 + $0x890] sm:$0xff]
  %v305 = vld [vmem:[%s1 + $0x898] sm:$0xff]
  %v306 = vld [vmem:[%s1 + $0x8a0] sm:$0xff]
  %v307 = vld [vmem:[%s1 + $0x8a8] sm:$0xff]
  %v308 = vld [vmem:[%s1 + $0x8b0] sm:$0xff]
  %v309 = vld [vmem:[%s1 + $0x8b8] sm:$0xff]
  %v310 = vld [vmem:[%s1 + $0x8c0] sm:$0xff]
  %v311 = vld [vmem:[%s1 + $0x8c8] sm:$0xff]
  %v312 = vld [vmem:[%s1 + $0x8d0] sm:$0xff]
  %v313 = vld [vmem:[%s1 + $0x8d8] sm:$0xff]
  %v314 = vld [vmem:[%s1 + $0x8e0] sm:$0xff]
  %v315 = vld [vmem:[%s1 + $0x8e8] sm:$0xff]
  %v316 = vld [vmem:[%s1 + $0x8f0] sm:$0xff]
  %v317 = vld [vmem:[%s1 + $0x8f8] sm:$0xff]
  %v318 = vld [vmem:[%s1 + $0x900] sm:$0xff]
  %v319 = vld [vmem:[%s1 + $0x908] sm:$0xff]
  %v320 = vld [vmem:[%s1 + $0x910] sm:$0xff]
  %v321 = vld [vmem:[%s1 + $0x918] sm:$0xff]
  %v322 = vld [vmem:[%s1 + $0x920] sm:$0xff]
  %v323 = vld [vmem:[%s1 + $0x928] sm:$0xff]
  %v324 = vld [vmem:[%s1 + $0x930] sm:$0xff]
  %v325 = vld [vmem:[%s1 + $0x938] sm:$0xff]
  %v326 = vld [vmem:[%s1 + $0x940] sm:$0xff]
  %v327 = vld [vmem:[%s1 + $0x948] sm:$0xff]
  %v328 = vld [vmem:[%s1 + $0x950] sm:$0xff]
  %v329 = vld [vmem:[%s1 + $0x958] sm:$0xff]
  %v330 = vld [vmem:[%s1 + $0x960] sm:$0xff]
  %v331 = vld [vmem:[%s1 + $0x968] sm:$0xff]
  %v332 = vld [vmem:[%s1 + $0x970] sm:$0xff]
  %v333 = vld [vmem:[%s1 + $0x978] sm:$0xff]
  %v334 = vld [vmem:[%s1 + $0x980] sm:$0xff]
  %v335 = vld [vmem:[%s1 + $0x988] sm:$0xff]
  %v336 = vld [vmem:[%s1 + $0x990] sm:$0xff]
  %v337 = vld [vmem:[%s1 + $0x998] sm:$0xff]
  %v338 = vld [vmem:[%s1 + $0x9a0] sm:$0xff]
  %v339 = vld [vmem:[%s1 + $0x9a8] sm:$0xff]
  %v340 = vld [vmem:[%s1 + $0x9b0] sm:$0xff]
  %v341 = vld [vmem:[%s1 + $0x9b8] sm:$0xff]
  %v342 = vld [vmem:[%s1 + $0x9c0] sm:$0xff]
  %v343 = vld [vmem:[%s1 + $0x9c8] sm:$0xff]
  %v344 = vld [vmem:[%s1 + $0x9d0] sm:$0xff]
  %v345 = vld [vmem:[%s1 + $0x9d8] sm:$0xff]
  %v346 = vld [vmem:[%s1 + $0x9e0] sm:$0xff]
  %v347 = vld [vmem:[%s1 + $0x9e8] sm:$0xff]
  %v348 = vld [vmem:[%s1 + $0x9f0] sm:$0xff]
  %v349 = vld [vmem:[%s1 + $0x9f8] sm:$0xff]
  %v350 = vld [vmem:[%s1 + $0xa00] sm:$0xff]
  %v351 = vld [vmem:[%s1 + $0xa08] sm:$0xff]
  %v352 = vld [vmem:[%s1 + $0xa10] sm:$0xff]
  %v353 = vld [vmem:[%s1 + $0xa18] sm:$0xff]
  %v354 = vld [vmem:[%s1 + $0xa20] sm:$0xff]
  %v355 = vld [vmem:[%s1 + $0xa28] sm:$0xff]
  %v356 = vld [vmem:[%s1 + $0xa30] sm:$0xff]
  %v357 = vld [vmem:[%s1 + $0xa38] sm:$0xff]
  %v358 = vld [vmem:[%s1 + $0xa40] sm:$0xff]
  %v359 = vld [vmem:[%s1 + $0xa48] sm:$0xff]
  %v360 = vld [vmem:[%s1 + $0xa50] sm:$0xff]
  %v361 = vld [vmem:[%s1 + $0xa58] sm:$0xff]
  %v362 = vld [vmem:[%s1 + $0xa60] sm:$0xff]
  %v363 = vld [vmem:[%s1 + $0xa68] sm:$0xff]
  %v364 = vld [vmem:[%s1 + $0xa70] sm:$0xff]
  %v365 = vld [vmem:[%s1 + $0xa78] sm:$0xff]
  %v366 = vld [vmem:[%s1 + $0xa80] sm:$0xff]
  %v367 = vld [vmem:[%s1 + $0xa88] sm:$0xff]
  %v368 = vld [vmem:[%s1 + $0xa90] sm:$0xff]
  %v369 = vld [vmem:[%s1 + $0xa98] sm:$0xff]
  %v370 = vld [vmem:[%s1 + $0xaa0] sm:$0xff]
  %v371 = vld [vmem:[%s1 + $0xaa8] sm:$0xff]
  %v372 = vld [vmem:[%s1 + $0xab0] sm:$0xff]
  %v373 = vld [vmem:[%s1 + $0xab8] sm:$0xff]
  %v374 = vld [vmem:[%s1 + $0xac0] sm:$0xff]
  %v375 = vld [vmem:[%s1 + $0xac8] sm:$0xff]
  %v376 = vld [vmem:[%s1 + $0xad0] sm:$0xff]
  %v377 = vld [vmem:[%s1 + $0xad8] sm:$0xff]
  %v378 = vld [vmem:[%s1 + $0xae0] sm:$0xff]
  %v379 = vld [vmem:[%s1 + $0xae8] sm:$0xff]
  %v380 = vld [vmem:[%s1 + $0xaf0] sm:$0xff]
  %v381 = vld [vmem:[%s1 + $0xaf8] sm:$0xff]
  %v382 = vld [vmem:[%s1 + $0xb00] sm:$0xff]
  %v383 = vld [vmem:[%s1 + $0xb08] sm:$0xff]
  %v384 = vld [vmem:[%s1 + $0xb10] sm:$0xff]
  %v385 = vld [vmem:[%s1 + $0xb18] sm:$0xff]
  %v386 = vld [vmem:[%s1 + $0xb20] sm:$0xff]
  %v387 = vld [vmem:[%s1 + $0xb28] sm:$0xff]
  %v388 = vld [vmem:[%s1 + $0xb30] sm:$0xff]
  %v389 = vld [vmem:[%s1 + $0xb38] sm:$0xff]
  %v390 = vld [vmem:[%s1 + $0xb40] sm:$0xff]
  %v391 = vld [vmem:[%s1 + $0xb48] sm:$0xff]
  %v392 = vld [vmem:[%s1 + $0xb50] sm:$0xff]
  %v393 = vld [vmem:[%s1 + $0xb58] sm:$0xff]
  %v394 = vld [vmem:[%s1 + $0xb60] sm:$0xff]
  %v395 = vld [vmem:[%s1 + $0xb68] sm:$0xff]
  %v396 = vld [vmem:[%s1 + $0xb70] sm:$0xff]
  %v397 = vld [vmem:[%s1 + $0xb78] sm:$0xff]
  %v398 = vld [vmem:[%s1 + $0xb80] sm:$0xff]
  %v399 = vld [vmem:[%s1 + $0xb88] sm:$0xff]
  %v400 = vld [vmem:[%s1 + $0xb90] sm:$0xff]
  %v401 = vld [vmem:[%s1 + $0xb98] sm:$0xff]
  %v402 = vld [vmem:[%s1 + $0xba0] sm:$0xff]
  %v403 = vld [vmem:[%s1 + $0xba8] sm:$0xff]
  %v404 = vld [vmem:[%s1 + $0xbb0] sm:$0xff]
  %v405 = vld [vmem:[%s1 + $0xbb8] sm:$0xff]
  %v406 = vld [vmem:[%s1 + $0xbc0] sm:$0xff]
  %v407 = vld [vmem:[%s1 + $0xbc8] sm:$0xff]
  %v408 = vld [vmem:[%s1 + $0xbd0] sm:$0xff]
  %v409 = vld [vmem:[%s1 + $0xbd8] sm:$0xff]
  %v410 = vld [vmem:[%s1 + $0xbe0] sm:$0xff]
  %v411 = vld [vmem:[%s1 + $0xbe8] sm:$0xff]
  %v412 = vld [vmem:[%s1 + $0xbf0] sm:$0xff]
  %v413 = vld [vmem:[%s1 + $0xbf8] sm:$0xff]
  %v414 = vld [vmem:[%s1 + $0xc00] sm:$0xff]
  %v415 = vld [vmem:[%s1 + $0xc08] sm:$0xff]
  %v416 = vld [vmem:[%s1 + $0xc10] sm:$0xff]
  %v417 = vld [vmem:[%s1 + $0xc18] sm:$0xff]
  %v418 = vld [vmem:[%s1 + $0xc20] sm:$0xff]
  %v419 = vld [vmem:[%s1 + $0xc28] sm:$0xff]
  %v420 = vld [vmem:[%s1 + $0xc30] sm:$0xff]
  %v421 = vld [vmem:[%s1 + $0xc38] sm:$0xff]
  %v422 = vld [vmem:[%s1 + $0xc40] sm:$0xff]
  %v423 = vld [vmem:[%s1 + $0xc48] sm:$0xff]
  %v424 = vld [vmem:[%s1 + $0xc50] sm:$0xff]
  %v425 = vld [vmem:[%s1 + $0xc58] sm:$0xff]
  %v426 = vld [vmem:[%s1 + $0xc60] sm:$0xff]
  %v427 = vld [vmem:[%s1 + $0xc68] sm:$0xff]
  %v428 = vld [vmem:[%s1 + $0xc70] sm:$0xff]
  %v429 = vld [vmem:[%s1 + $0xc78] sm:$0xff]
  %v430 = vld [vmem:[%s1 + $0xc80] sm:$0xff]
  %v431 = vld [vmem:[%s1 + $0xc88] sm:$0xff]
  %v432 = vld [vmem:[%s1 + $0xc90] sm:$0xff]
  %v433 = vld [vmem:[%s1 + $0xc98] sm:$0xff]
  %v434 = vld [vmem:[%s1 + $0xca0] sm:$0xff]
  %v435 = vld [vmem:[%s1 + $0xca8] sm:$0xff]
  %v436 = vld [vmem:[%s1 + $0xcb0] sm:$0xff]
  %v437 = vld [vmem:[%s1 + $0xcb8] sm:$0xff]
  %v438 = vld [vmem:[%s1 + $0xcc0] sm:$0xff]
  %v439 = vld [vmem:[%s1 + $0xcc8] sm:$0xff]
  %v440 = vld [vmem:[%s1 + $0xcd0] sm:$0xff]
  %v441 = vld [vmem:[%s1 + $0xcd8] sm:$0xff]
  %v442 = vld [vmem:[%s1 + $0xce0] sm:$0xff]
  %v443 = vld [vmem:[%s1 + $0xce8] sm:$0xff]
  %v444 = vld [vmem:[%s1 + $0xcf0] sm:$0xff]
  %v445 = vld [vmem:[%s1 + $0xcf8] sm:$0xff]
  %v446 = vld [vmem:[%s1 + $0xd00] sm:$0xff]
  %v447 = vld [vmem:[%s1 + $0xd08] sm:$0xff]
  %v448 = vld [vmem:[%s1 + $0xd10] sm:$0xff]
  %v449 = vld [vmem:[%s1 + $0xd18] sm:$0xff]
  %v450 = vld [vmem:[%s1 + $0xd20] sm:$0xff]
  %v451 = vld [vmem:[%s1 + $0xd28] sm:$0xff]
  %v452 = vld [vmem:[%s1 + $0xd30] sm:$0xff]
  %v453 = vld [vmem:[%s1 + $0xd38] sm:$0xff]
  %v454 = vld [vmem:[%s1 + $0xd40] sm:$0xff]
  %v455 = vld [vmem:[%s1 + $0xd48] sm:$0xff]
  %v456 = vld [vmem:[%s1 + $0xd50] sm:$0xff]
  %v457 = vld [vmem:[%s1 + $0xd58] sm:$0xff]
  %v458 = vld [vmem:[%s1 + $0xd60] sm:$0xff]
  %v459 = vld [vmem:[%s1 + $0xd68] sm:$0xff]
  %v460 = vld [vmem:[%s1 + $0xd70] sm:$0xff]
  %v461 = vld [vmem:[%s1 + $0xd78] sm:$0xff]
  %v462 = vld [vmem:[%s1 + $0xd80] sm:$0xff]
  %v463 = vld [vmem:[%s1 + $0xd88] sm:$0xff]
  %v464 = vld [vmem:[%s1 + $0xd90] sm:$0xff]
  %v465 = vld [vmem:[%s1 + $0xd98] sm:$0xff]
  %v466 = vld [vmem:[%s1 + $0xda0] sm:$0xff]
  %v467 = vld [vmem:[%s1 + $0xda8] sm:$0xff]
  %v468 = vld [vmem:[%s1 + $0xdb0] sm:$0xff]
  %v469 = vld [vmem:[%s1 + $0xdb8] sm:$0xff]
  %v470 = vld [vmem:[%s1 + $0xdc0] sm:$0xff]
  %v471 = vld [vmem:[%s1 + $0xdc8] sm:$0xff]
  %v472 = vld [vmem:[%s1 + $0xdd0] sm:$0xff]
  %v473 = vld [vmem:[%s1 + $0xdd8] sm:$0xff]
  %v474 = vld [vmem:[%s1 + $0xde0] sm:$0xff]
  %v475 = vld [vmem:[%s1 + $0xde8] sm:$0xff]
  %v476 = vld [vmem:[%s1 + $0xdf0] sm:$0xff]
  %v477 = vld [vmem:[%s1 + $0xdf8] sm:$0xff]
  %v478 = vld [vmem:[%s1 + $0xe00] sm:$0xff]
  %v479 = vld [vmem:[%s1 + $0xe08] sm:$0xff]
  %v480 = vld [vmem:[%s1 + $0xe10] sm:$0xff]
  %v481 = vld [vmem:[%s1 + $0xe18] sm:$0xff]
  %v482 = vld [vmem:[%s1 + $0xe20] sm:$0xff]
  %v483 = vld [vmem:[%s1 + $0xe28] sm:$0xff]
  %v484 = vld [vmem:[%s1 + $0xe30] sm:$0xff]
  %v485 = vld [vmem:[%s1 + $0xe38] sm:$0xff]
  %v486 = vld [vmem:[%s1 + $0xe40] sm:$0xff]
  %v487 = vld [vmem:[%s1 + $0xe48] sm:$0xff]
  %v488 = vld [vmem:[%s1 + $0xe50] sm:$0xff]
  %v489 = vld [vmem:[%s1 + $0xe58] sm:$0xff]
  %v490 = vld [vmem:[%s1 + $0xe60] sm:$0xff]
  %v491 = vld [vmem:[%s1 + $0xe68] sm:$0xff]
  %v492 = vld [vmem:[%s1 + $0xe70] sm:$0xff]
  %v493 = vld [vmem:[%s1 + $0xe78] sm:$0xff]
  %v494 = vld [vmem:[%s1 + $0xe80] sm:$0xff]
  %v495 = vld [vmem:[%s1 + $0xe88] sm:$0xff]
  %v496 = vld [vmem:[%s1 + $0xe90] sm:$0xff]
  %v497 = vld [vmem:[%s1 + $0xe98] sm:$0xff]
  %v498 = vld [vmem:[%s1 + $0xea0] sm:$0xff]
  %v499 = vld [vmem:[%s1 + $0xea8] sm:$0xff]
  %v500 = vld [vmem:[%s1 + $0xeb0] sm:$0xff]
  %v501 = vld [vmem:[%s1 + $0xeb8] sm:$0xff]
  %v502 = vld [vmem:[%s1 + $0xec0] sm:$0xff]
  %v503 = vld [vmem:[%s1 + $0xec8] sm:$0xff]
  %v504 = vld [vmem:[%s1 + $0xed0] sm:$0xff]
  %v505 = vld [vmem:[%s1 + $0xed8] sm:$0xff]
  %v506 = vld [vmem:[%s1 + $0xee0] sm:$0xff]
  %v507 = vld [vmem:[%s1 + $0xee8] sm:$0xff]
  %v508 = vld [vmem:[%s1 + $0xef0] sm:$0xff]
  %v509 = vld [vmem:[%s1 + $0xef8] sm:$0xff]
  %v510 = vld [vmem:[%s1 + $0xf00] sm:$0xff]
  %v511 = vld [vmem:[%s1 + $0xf08] sm:$0xff]
  %v512 = vld [vmem:[%s1 + $0xf10] sm:$0xff]
  %v513 = vld [vmem:[%s1 + $0xf18] sm:$0xff]
  %v514 = vld [vmem:[%s1 + $0xf20] sm:$0xff]
  %v515 = vld [vmem:[%s1 + $0xf28] sm:$0xff]
  %v516 = vld [vmem:[%s1 + $0xf30] sm:$0xff]
  %v517 = vld [vmem:[%s1 + $0xf38] sm:$0xff]
  %v518 = vld [vmem:[%s1 + $0xf40] sm:$0xff]
  %v519 = vld [vmem:[%s1 + $0xf48] sm:$0xff]
  %v520 = vld [vmem:[%s1 + $0xf50] sm:$0xff]
  %v521 = vld [vmem:[%s1 + $0xf58] sm:$0xff]
  %v522 = vld [vmem:[%s1 + $0xf60] sm:$0xff]
  %v523 = vld [vmem:[%s1 + $0xf68] sm:$0xff]
  %v524 = vld [vmem:[%s1 + $0xf70] sm:$0xff]
  %v525 = vld [vmem:[%s1 + $0xf78] sm:$0xff]
  %v526 = vld [vmem:[%s1 + $0xf80] sm:$0xff]
  %v527 = vld [vmem:[%s1 + $0xf88] sm:$0xff]
  %v528 = vld [vmem:[%s1 + $0xf90] sm:$0xff]
  %v529 = vld [vmem:[%s1 + $0xf98] sm:$0xff]
  %v530 = vld [vmem:[%s1 + $0xfa0] sm:$0xff]
  %v531 = vld [vmem:[%s1 + $0xfa8] sm:$0xff]
  %v532 = vld [vmem:[%s1 + $0xfb0] sm:$0xff]
  %v533 = vld [vmem:[%s1 + $0xfb8] sm:$0xff]
  %v534 = vld [vmem:[%s1 + $0xfc0] sm:$0xff]
  %v535 = vld [vmem:[%s1 + $0xfc8] sm:$0xff]
  %v536 = vld [vmem:[%s1 + $0xfd0] sm:$0xff]
  %v537 = vld [vmem:[%s1 + $0xfd8] sm:$0xff]
  %v538 = vld [vmem:[%s1 + $0xfe0] sm:$0xff]
  %v539 = vld [vmem:[%s1 + $0xfe8] sm:$0xff]
  %v540 = vld [vmem:[%s1 + $0xff0] sm:$0xff]
  %v541 = vld [vmem:[%s1 + $0xff8] sm:$0xff]
  %v542 = vld [vmem:[%s2] sm:$0xf]
  %v544 = vperm.slane %v542, 0
  %v545 = vperm.slane %v542, 1
  %v546 = vperm.slane %v542, 2
  %v547 = vperm.slane %v542, 3
  %553 = vst [vmem:[#allocation1] ss:$4 sm:$0xff] %v26
  %s555 = scalar_lea.vmem [#allocation1], 32
  %556 = vst [vmem:[%s555] ss:$4 sm:$0xff] %v27
  %v557 = vld.sshfl [vmem:[#allocation1] sm:$0xff pattern:$0x73625140]
  %v558 = vld.sshfl [vmem:[#allocation1 + $0x8] sm:$0xff pattern:$0x73625140]
  %v559 = vld.sshfl [vmem:[#allocation1 + $0x10] sm:$0xff pattern:$0x73625140]
  %v560 = vld.sshfl [vmem:[#allocation1 + $0x18] sm:$0xff pattern:$0x73625140]
  %v561 = vld.sshfl [vmem:[#allocation1 + $0x20] sm:$0xff pattern:$0x73625140]
  %v562 = vld.sshfl [vmem:[#allocation1 + $0x28] sm:$0xff pattern:$0x73625140]
  %v563 = vld.sshfl [vmem:[#allocation1 + $0x30] sm:$0xff pattern:$0x73625140]
  %v564 = vld.sshfl [vmem:[#allocation1 + $0x38] sm:$0xff pattern:$0x73625140]
  %566 = vst [vmem:[#allocation1] ss:$4 sm:$0xff] %v28
  %568 = vst [vmem:[%s555] ss:$4 sm:$0xff] %v29
  %v569 = vld.sshfl [vmem:[#allocation1] sm:$0xff pattern:$0x73625140]
  %v570 = vld.sshfl [vmem:[#allocation1 + $0x8] sm:$0xff pattern:$0x73625140]
  %v571 = vld.sshfl [vmem:[#allocation1 + $0x10] sm:$0xff pattern:$0x73625140]
  %v572 = vld.sshfl [vmem:[#allocation1 + $0x18] sm:$0xff pattern:$0x73625140]
  %v573 = vld.sshfl [vmem:[#allocation1 + $0x20] sm:$0xff pattern:$0x73625140]
  %v574 = vld.sshfl [vmem:[#allocation1 + $0x28] sm:$0xff pattern:$0x73625140]
  %v575 = vld.sshfl [vmem:[#allocation1 + $0x30] sm:$0xff pattern:$0x73625140]
  %v576 = vld.sshfl [vmem:[#allocation1 + $0x38] sm:$0xff pattern:$0x73625140]
  %v1105 = vunpack.c.l.b16 %v30
  %v1106 = vunpack.c.h.b16 %v30
  %v1107 = vunpack.c.l.b16 %v31
  %v1108 = vunpack.c.h.b16 %v31
  %v1109 = vunpack.c.l.b16 %v32
  %v1110 = vunpack.c.h.b16 %v32
  %v1111 = vunpack.c.l.b16 %v33
  %v1112 = vunpack.c.h.b16 %v33
  %v1113 = vunpack.c.l.b16 %v34
  %v1114 = vunpack.c.h.b16 %v34
  %v1115 = vunpack.c.l.b16 %v35
  %v1116 = vunpack.c.h.b16 %v35
  %v1117 = vunpack.c.l.b16 %v36
  %v1118 = vunpack.c.h.b16 %v36
  %v1119 = vunpack.c.l.b16 %v37
  %v1120 = vunpack.c.h.b16 %v37
  %v1121 = vunpack.c.l.b16 %v38
  %v1122 = vunpack.c.h.b16 %v38
  %v1123 = vunpack.c.l.b16 %v39
  %v1124 = vunpack.c.h.b16 %v39
  %v1125 = vunpack.c.l.b16 %v40
  %v1126 = vunpack.c.h.b16 %v40
  %v1127 = vunpack.c.l.b16 %v41
  %v1128 = vunpack.c.h.b16 %v41
  %v1129 = vunpack.c.l.b16 %v42
  %v1130 = vunpack.c.h.b16 %v42
  %v1131 = vunpack.c.l.b16 %v43
  %v1132 = vunpack.c.h.b16 %v43
  %v1133 = vunpack.c.l.b16 %v44
  %v1134 = vunpack.c.h.b16 %v44
  %v1135 = vunpack.c.l.b16 %v45
  %v1136 = vunpack.c.h.b16 %v45
  %v1137 = vunpack.c.l.b16 %v46
  %v1138 = vunpack.c.h.b16 %v46
  %v1139 = vunpack.c.l.b16 %v47
  %v1140 = vunpack.c.h.b16 %v47
  %v1141 = vunpack.c.l.b16 %v48
  %v1142 = vunpack.c.h.b16 %v48
  %v1143 = vunpack.c.l.b16 %v49
  %v1144 = vunpack.c.h.b16 %v49
  %v1145 = vunpack.c.l.b16 %v50
  %v1146 = vunpack.c.h.b16 %v50
  %v1147 = vunpack.c.l.b16 %v51
  %v1148 = vunpack.c.h.b16 %v51
  %v1149 = vunpack.c.l.b16 %v52
  %v1150 = vunpack.c.h.b16 %v52
  %v1151 = vunpack.c.l.b16 %v53
  %v1152 = vunpack.c.h.b16 %v53
  %v1153 = vunpack.c.l.b16 %v54
  %v1154 = vunpack.c.h.b16 %v54
  %v1155 = vunpack.c.l.b16 %v55
  %v1156 = vunpack.c.h.b16 %v55
  %v1157 = vunpack.c.l.b16 %v56
  %v1158 = vunpack.c.h.b16 %v56
  %v1159 = vunpack.c.l.b16 %v57
  %v1160 = vunpack.c.h.b16 %v57
  %v1161 = vunpack.c.l.b16 %v58
  %v1162 = vunpack.c.h.b16 %v58
  %v1163 = vunpack.c.l.b16 %v59
  %v1164 = vunpack.c.h.b16 %v59
  %v1165 = vunpack.c.l.b16 %v60
  %v1166 = vunpack.c.h.b16 %v60
  %v1167 = vunpack.c.l.b16 %v61
  %v1168 = vunpack.c.h.b16 %v61
  %v1169 = vunpack.c.l.b16 %v62
  %v1170 = vunpack.c.h.b16 %v62
  %v1171 = vunpack.c.l.b16 %v63
  %v1172 = vunpack.c.h.b16 %v63
  %v1173 = vunpack.c.l.b16 %v64
  %v1174 = vunpack.c.h.b16 %v64
  %v1175 = vunpack.c.l.b16 %v65
  %v1176 = vunpack.c.h.b16 %v65
  %v1177 = vunpack.c.l.b16 %v66
  %v1178 = vunpack.c.h.b16 %v66
  %v1179 = vunpack.c.l.b16 %v67
  %v1180 = vunpack.c.h.b16 %v67
  %v1181 = vunpack.c.l.b16 %v68
  %v1182 = vunpack.c.h.b16 %v68
  %v1183 = vunpack.c.l.b16 %v69
  %v1184 = vunpack.c.h.b16 %v69
  %v1185 = vunpack.c.l.b16 %v70
  %v1186 = vunpack.c.h.b16 %v70
  %v1187 = vunpack.c.l.b16 %v71
  %v1188 = vunpack.c.h.b16 %v71
  %v1189 = vunpack.c.l.b16 %v72
  %v1190 = vunpack.c.h.b16 %v72
  %v1191 = vunpack.c.l.b16 %v73
  %v1192 = vunpack.c.h.b16 %v73
  %v1193 = vunpack.c.l.b16 %v74
  %v1194 = vunpack.c.h.b16 %v74
  %v1195 = vunpack.c.l.b16 %v75
  %v1196 = vunpack.c.h.b16 %v75
  %v1197 = vunpack.c.l.b16 %v76
  %v1198 = vunpack.c.h.b16 %v76
  %v1199 = vunpack.c.l.b16 %v77
  %v1200 = vunpack.c.h.b16 %v77
  %v1201 = vunpack.c.l.b16 %v78
  %v1202 = vunpack.c.h.b16 %v78
  %v1203 = vunpack.c.l.b16 %v79
  %v1204 = vunpack.c.h.b16 %v79
  %v1205 = vunpack.c.l.b16 %v80
  %v1206 = vunpack.c.h.b16 %v80
  %v1207 = vunpack.c.l.b16 %v81
  %v1208 = vunpack.c.h.b16 %v81
  %v1209 = vunpack.c.l.b16 %v82
  %v1210 = vunpack.c.h.b16 %v82
  %v1211 = vunpack.c.l.b16 %v83
  %v1212 = vunpack.c.h.b16 %v83
  %v1213 = vunpack.c.l.b16 %v84
  %v1214 = vunpack.c.h.b16 %v84
  %v1215 = vunpack.c.l.b16 %v85
  %v1216 = vunpack.c.h.b16 %v85
  %v1217 = vunpack.c.l.b16 %v86
  %v1218 = vunpack.c.h.b16 %v86
  %v1219 = vunpack.c.l.b16 %v87
  %v1220 = vunpack.c.h.b16 %v87
  %v1221 = vunpack.c.l.b16 %v88
  %v1222 = vunpack.c.h.b16 %v88
  %v1223 = vunpack.c.l.b16 %v89
  %v1224 = vunpack.c.h.b16 %v89
  %v1225 = vunpack.c.l.b16 %v90
  %v1226 = vunpack.c.h.b16 %v90
  %v1227 = vunpack.c.l.b16 %v91
  %v1228 = vunpack.c.h.b16 %v91
  %v1229 = vunpack.c.l.b16 %v92
  %v1230 = vunpack.c.h.b16 %v92
  %v1231 = vunpack.c.l.b16 %v93
  %v1232 = vunpack.c.h.b16 %v93
  %v1233 = vunpack.c.l.b16 %v94
  %v1234 = vunpack.c.h.b16 %v94
  %v1235 = vunpack.c.l.b16 %v95
  %v1236 = vunpack.c.h.b16 %v95
  %v1237 = vunpack.c.l.b16 %v96
  %v1238 = vunpack.c.h.b16 %v96
  %v1239 = vunpack.c.l.b16 %v97
  %v1240 = vunpack.c.h.b16 %v97
  %v1241 = vunpack.c.l.b16 %v98
  %v1242 = vunpack.c.h.b16 %v98
  %v1243 = vunpack.c.l.b16 %v99
  %v1244 = vunpack.c.h.b16 %v99
  %v1245 = vunpack.c.l.b16 %v100
  %v1246 = vunpack.c.h.b16 %v100
  %v1247 = vunpack.c.l.b16 %v101
  %v1248 = vunpack.c.h.b16 %v101
  %v1249 = vunpack.c.l.b16 %v102
  %v1250 = vunpack.c.h.b16 %v102
  %v1251 = vunpack.c.l.b16 %v103
  %v1252 = vunpack.c.h.b16 %v103
  %v1253 = vunpack.c.l.b16 %v104
  %v1254 = vunpack.c.h.b16 %v104
  %v1255 = vunpack.c.l.b16 %v105
  %v1256 = vunpack.c.h.b16 %v105
  %v1257 = vunpack.c.l.b16 %v106
  %v1258 = vunpack.c.h.b16 %v106
  %v1259 = vunpack.c.l.b16 %v107
  %v1260 = vunpack.c.h.b16 %v107
  %v1261 = vunpack.c.l.b16 %v108
  %v1262 = vunpack.c.h.b16 %v108
  %v1263 = vunpack.c.l.b16 %v109
  %v1264 = vunpack.c.h.b16 %v109
  %v1265 = vunpack.c.l.b16 %v110
  %v1266 = vunpack.c.h.b16 %v110
  %v1267 = vunpack.c.l.b16 %v111
  %v1268 = vunpack.c.h.b16 %v111
  %v1269 = vunpack.c.l.b16 %v112
  %v1270 = vunpack.c.h.b16 %v112
  %v1271 = vunpack.c.l.b16 %v113
  %v1272 = vunpack.c.h.b16 %v113
  %v1273 = vunpack.c.l.b16 %v114
  %v1274 = vunpack.c.h.b16 %v114
  %v1275 = vunpack.c.l.b16 %v115
  %v1276 = vunpack.c.h.b16 %v115
  %v1277 = vunpack.c.l.b16 %v116
  %v1278 = vunpack.c.h.b16 %v116
  %v1279 = vunpack.c.l.b16 %v117
  %v1280 = vunpack.c.h.b16 %v117
  %v1281 = vunpack.c.l.b16 %v118
  %v1282 = vunpack.c.h.b16 %v118
  %v1283 = vunpack.c.l.b16 %v119
  %v1284 = vunpack.c.h.b16 %v119
  %v1285 = vunpack.c.l.b16 %v120
  %v1286 = vunpack.c.h.b16 %v120
  %v1287 = vunpack.c.l.b16 %v121
  %v1288 = vunpack.c.h.b16 %v121
  %v1289 = vunpack.c.l.b16 %v122
  %v1290 = vunpack.c.h.b16 %v122
  %v1291 = vunpack.c.l.b16 %v123
  %v1292 = vunpack.c.h.b16 %v123
  %v1293 = vunpack.c.l.b16 %v124
  %v1294 = vunpack.c.h.b16 %v124
  %v1295 = vunpack.c.l.b16 %v125
  %v1296 = vunpack.c.h.b16 %v125
  %v1297 = vunpack.c.l.b16 %v126
  %v1298 = vunpack.c.h.b16 %v126
  %v1299 = vunpack.c.l.b16 %v127
  %v1300 = vunpack.c.h.b16 %v127
  %v1301 = vunpack.c.l.b16 %v128
  %v1302 = vunpack.c.h.b16 %v128
  %v1303 = vunpack.c.l.b16 %v129
  %v1304 = vunpack.c.h.b16 %v129
  %v1305 = vunpack.c.l.b16 %v130
  %v1306 = vunpack.c.h.b16 %v130
  %v1307 = vunpack.c.l.b16 %v131
  %v1308 = vunpack.c.h.b16 %v131
  %v1309 = vunpack.c.l.b16 %v132
  %v1310 = vunpack.c.h.b16 %v132
  %v1311 = vunpack.c.l.b16 %v133
  %v1312 = vunpack.c.h.b16 %v133
  %v1313 = vunpack.c.l.b16 %v134
  %v1314 = vunpack.c.h.b16 %v134
  %v1315 = vunpack.c.l.b16 %v135
  %v1316 = vunpack.c.h.b16 %v135
  %v1317 = vunpack.c.l.b16 %v136
  %v1318 = vunpack.c.h.b16 %v136
  %v1319 = vunpack.c.l.b16 %v137
  %v1320 = vunpack.c.h.b16 %v137
  %v1321 = vunpack.c.l.b16 %v138
  %v1322 = vunpack.c.h.b16 %v138
  %v1323 = vunpack.c.l.b16 %v139
  %v1324 = vunpack.c.h.b16 %v139
  %v1325 = vunpack.c.l.b16 %v140
  %v1326 = vunpack.c.h.b16 %v140
  %v1327 = vunpack.c.l.b16 %v141
  %v1328 = vunpack.c.h.b16 %v141
  %v1329 = vunpack.c.l.b16 %v142
  %v1330 = vunpack.c.h.b16 %v142
  %v1331 = vunpack.c.l.b16 %v143
  %v1332 = vunpack.c.h.b16 %v143
  %v1333 = vunpack.c.l.b16 %v144
  %v1334 = vunpack.c.h.b16 %v144
  %v1335 = vunpack.c.l.b16 %v145
  %v1336 = vunpack.c.h.b16 %v145
  %v1337 = vunpack.c.l.b16 %v146
  %v1338 = vunpack.c.h.b16 %v146
  %v1339 = vunpack.c.l.b16 %v147
  %v1340 = vunpack.c.h.b16 %v147
  %v1341 = vunpack.c.l.b16 %v148
  %v1342 = vunpack.c.h.b16 %v148
  %v1343 = vunpack.c.l.b16 %v149
  %v1344 = vunpack.c.h.b16 %v149
  %v1345 = vunpack.c.l.b16 %v150
  %v1346 = vunpack.c.h.b16 %v150
  %v1347 = vunpack.c.l.b16 %v151
  %v1348 = vunpack.c.h.b16 %v151
  %v1349 = vunpack.c.l.b16 %v152
  %v1350 = vunpack.c.h.b16 %v152
  %v1351 = vunpack.c.l.b16 %v153
  %v1352 = vunpack.c.h.b16 %v153
  %v1353 = vunpack.c.l.b16 %v154
  %v1354 = vunpack.c.h.b16 %v154
  %v1355 = vunpack.c.l.b16 %v155
  %v1356 = vunpack.c.h.b16 %v155
  %v1357 = vunpack.c.l.b16 %v156
  %v1358 = vunpack.c.h.b16 %v156
  %v1359 = vunpack.c.l.b16 %v157
  %v1360 = vunpack.c.h.b16 %v157
  %v1361 = vunpack.c.l.b16 %v158
  %v1362 = vunpack.c.h.b16 %v158
  %v1363 = vunpack.c.l.b16 %v159
  %v1364 = vunpack.c.h.b16 %v159
  %v1365 = vunpack.c.l.b16 %v160
  %v1366 = vunpack.c.h.b16 %v160
  %v1367 = vunpack.c.l.b16 %v161
  %v1368 = vunpack.c.h.b16 %v161
  %v1369 = vunpack.c.l.b16 %v162
  %v1370 = vunpack.c.h.b16 %v162
  %v1371 = vunpack.c.l.b16 %v163
  %v1372 = vunpack.c.h.b16 %v163
  %v1373 = vunpack.c.l.b16 %v164
  %v1374 = vunpack.c.h.b16 %v164
  %v1375 = vunpack.c.l.b16 %v165
  %v1376 = vunpack.c.h.b16 %v165
  %v1377 = vunpack.c.l.b16 %v166
  %v1378 = vunpack.c.h.b16 %v166
  %v1379 = vunpack.c.l.b16 %v167
  %v1380 = vunpack.c.h.b16 %v167
  %v1381 = vunpack.c.l.b16 %v168
  %v1382 = vunpack.c.h.b16 %v168
  %v1383 = vunpack.c.l.b16 %v169
  %v1384 = vunpack.c.h.b16 %v169
  %v1385 = vunpack.c.l.b16 %v170
  %v1386 = vunpack.c.h.b16 %v170
  %v1387 = vunpack.c.l.b16 %v171
  %v1388 = vunpack.c.h.b16 %v171
  %v1389 = vunpack.c.l.b16 %v172
  %v1390 = vunpack.c.h.b16 %v172
  %v1391 = vunpack.c.l.b16 %v173
  %v1392 = vunpack.c.h.b16 %v173
  %v1393 = vunpack.c.l.b16 %v174
  %v1394 = vunpack.c.h.b16 %v174
  %v1395 = vunpack.c.l.b16 %v175
  %v1396 = vunpack.c.h.b16 %v175
  %v1397 = vunpack.c.l.b16 %v176
  %v1398 = vunpack.c.h.b16 %v176
  %v1399 = vunpack.c.l.b16 %v177
  %v1400 = vunpack.c.h.b16 %v177
  %v1401 = vunpack.c.l.b16 %v178
  %v1402 = vunpack.c.h.b16 %v178
  %v1403 = vunpack.c.l.b16 %v179
  %v1404 = vunpack.c.h.b16 %v179
  %v1405 = vunpack.c.l.b16 %v180
  %v1406 = vunpack.c.h.b16 %v180
  %v1407 = vunpack.c.l.b16 %v181
  %v1408 = vunpack.c.h.b16 %v181
  %v1409 = vunpack.c.l.b16 %v182
  %v1410 = vunpack.c.h.b16 %v182
  %v1411 = vunpack.c.l.b16 %v183
  %v1412 = vunpack.c.h.b16 %v183
  %v1413 = vunpack.c.l.b16 %v184
  %v1414 = vunpack.c.h.b16 %v184
  %v1415 = vunpack.c.l.b16 %v185
  %v1416 = vunpack.c.h.b16 %v185
  %v1417 = vunpack.c.l.b16 %v186
  %v1418 = vunpack.c.h.b16 %v186
  %v1419 = vunpack.c.l.b16 %v187
  %v1420 = vunpack.c.h.b16 %v187
  %v1421 = vunpack.c.l.b16 %v188
  %v1422 = vunpack.c.h.b16 %v188
  %v1423 = vunpack.c.l.b16 %v189
  %v1424 = vunpack.c.h.b16 %v189
  %v1425 = vunpack.c.l.b16 %v190
  %v1426 = vunpack.c.h.b16 %v190
  %v1427 = vunpack.c.l.b16 %v191
  %v1428 = vunpack.c.h.b16 %v191
  %v1429 = vunpack.c.l.b16 %v192
  %v1430 = vunpack.c.h.b16 %v192
  %v1431 = vunpack.c.l.b16 %v193
  %v1432 = vunpack.c.h.b16 %v193
  %v1433 = vunpack.c.l.b16 %v194
  %v1434 = vunpack.c.h.b16 %v194
  %v1435 = vunpack.c.l.b16 %v195
  %v1436 = vunpack.c.h.b16 %v195
  %v1437 = vunpack.c.l.b16 %v196
  %v1438 = vunpack.c.h.b16 %v196
  %v1439 = vunpack.c.l.b16 %v197
  %v1440 = vunpack.c.h.b16 %v197
  %v1441 = vunpack.c.l.b16 %v198
  %v1442 = vunpack.c.h.b16 %v198
  %v1443 = vunpack.c.l.b16 %v199
  %v1444 = vunpack.c.h.b16 %v199
  %v1445 = vunpack.c.l.b16 %v200
  %v1446 = vunpack.c.h.b16 %v200
  %v1447 = vunpack.c.l.b16 %v201
  %v1448 = vunpack.c.h.b16 %v201
  %v1449 = vunpack.c.l.b16 %v202
  %v1450 = vunpack.c.h.b16 %v202
  %v1451 = vunpack.c.l.b16 %v203
  %v1452 = vunpack.c.h.b16 %v203
  %v1453 = vunpack.c.l.b16 %v204
  %v1454 = vunpack.c.h.b16 %v204
  %v1455 = vunpack.c.l.b16 %v205
  %v1456 = vunpack.c.h.b16 %v205
  %v1457 = vunpack.c.l.b16 %v206
  %v1458 = vunpack.c.h.b16 %v206
  %v1459 = vunpack.c.l.b16 %v207
  %v1460 = vunpack.c.h.b16 %v207
  %v1461 = vunpack.c.l.b16 %v208
  %v1462 = vunpack.c.h.b16 %v208
  %v1463 = vunpack.c.l.b16 %v209
  %v1464 = vunpack.c.h.b16 %v209
  %v1465 = vunpack.c.l.b16 %v210
  %v1466 = vunpack.c.h.b16 %v210
  %v1467 = vunpack.c.l.b16 %v211
  %v1468 = vunpack.c.h.b16 %v211
  %v1469 = vunpack.c.l.b16 %v212
  %v1470 = vunpack.c.h.b16 %v212
  %v1471 = vunpack.c.l.b16 %v213
  %v1472 = vunpack.c.h.b16 %v213
  %v1473 = vunpack.c.l.b16 %v214
  %v1474 = vunpack.c.h.b16 %v214
  %v1475 = vunpack.c.l.b16 %v215
  %v1476 = vunpack.c.h.b16 %v215
  %v1477 = vunpack.c.l.b16 %v216
  %v1478 = vunpack.c.h.b16 %v216
  %v1479 = vunpack.c.l.b16 %v217
  %v1480 = vunpack.c.h.b16 %v217
  %v1481 = vunpack.c.l.b16 %v218
  %v1482 = vunpack.c.h.b16 %v218
  %v1483 = vunpack.c.l.b16 %v219
  %v1484 = vunpack.c.h.b16 %v219
  %v1485 = vunpack.c.l.b16 %v220
  %v1486 = vunpack.c.h.b16 %v220
  %v1487 = vunpack.c.l.b16 %v221
  %v1488 = vunpack.c.h.b16 %v221
  %v1489 = vunpack.c.l.b16 %v222
  %v1490 = vunpack.c.h.b16 %v222
  %v1491 = vunpack.c.l.b16 %v223
  %v1492 = vunpack.c.h.b16 %v223
  %v1493 = vunpack.c.l.b16 %v224
  %v1494 = vunpack.c.h.b16 %v224
  %v1495 = vunpack.c.l.b16 %v225
  %v1496 = vunpack.c.h.b16 %v225
  %v1497 = vunpack.c.l.b16 %v226
  %v1498 = vunpack.c.h.b16 %v226
  %v1499 = vunpack.c.l.b16 %v227
  %v1500 = vunpack.c.h.b16 %v227
  %v1501 = vunpack.c.l.b16 %v228
  %v1502 = vunpack.c.h.b16 %v228
  %v1503 = vunpack.c.l.b16 %v229
  %v1504 = vunpack.c.h.b16 %v229
  %v1505 = vunpack.c.l.b16 %v230
  %v1506 = vunpack.c.h.b16 %v230
  %v1507 = vunpack.c.l.b16 %v231
  %v1508 = vunpack.c.h.b16 %v231
  %v1509 = vunpack.c.l.b16 %v232
  %v1510 = vunpack.c.h.b16 %v232
  %v1511 = vunpack.c.l.b16 %v233
  %v1512 = vunpack.c.h.b16 %v233
  %v1513 = vunpack.c.l.b16 %v234
  %v1514 = vunpack.c.h.b16 %v234
  %v1515 = vunpack.c.l.b16 %v235
  %v1516 = vunpack.c.h.b16 %v235
  %v1517 = vunpack.c.l.b16 %v236
  %v1518 = vunpack.c.h.b16 %v236
  %v1519 = vunpack.c.l.b16 %v237
  %v1520 = vunpack.c.h.b16 %v237
  %v1521 = vunpack.c.l.b16 %v238
  %v1522 = vunpack.c.h.b16 %v238
  %v1523 = vunpack.c.l.b16 %v239
  %v1524 = vunpack.c.h.b16 %v239
  %v1525 = vunpack.c.l.b16 %v240
  %v1526 = vunpack.c.h.b16 %v240
  %v1527 = vunpack.c.l.b16 %v241
  %v1528 = vunpack.c.h.b16 %v241
  %v1529 = vunpack.c.l.b16 %v242
  %v1530 = vunpack.c.h.b16 %v242
  %v1531 = vunpack.c.l.b16 %v243
  %v1532 = vunpack.c.h.b16 %v243
  %v1533 = vunpack.c.l.b16 %v244
  %v1534 = vunpack.c.h.b16 %v244
  %v1535 = vunpack.c.l.b16 %v245
  %v1536 = vunpack.c.h.b16 %v245
  %v1537 = vunpack.c.l.b16 %v246
  %v1538 = vunpack.c.h.b16 %v246
  %v1539 = vunpack.c.l.b16 %v247
  %v1540 = vunpack.c.h.b16 %v247
  %v1541 = vunpack.c.l.b16 %v248
  %v1542 = vunpack.c.h.b16 %v248
  %v1543 = vunpack.c.l.b16 %v249
  %v1544 = vunpack.c.h.b16 %v249
  %v1545 = vunpack.c.l.b16 %v250
  %v1546 = vunpack.c.h.b16 %v250
  %v1547 = vunpack.c.l.b16 %v251
  %v1548 = vunpack.c.h.b16 %v251
  %v1549 = vunpack.c.l.b16 %v252
  %v1550 = vunpack.c.h.b16 %v252
  %v1551 = vunpack.c.l.b16 %v253
  %v1552 = vunpack.c.h.b16 %v253
  %v1553 = vunpack.c.l.b16 %v254
  %v1554 = vunpack.c.h.b16 %v254
  %v1555 = vunpack.c.l.b16 %v255
  %v1556 = vunpack.c.h.b16 %v255
  %v1557 = vunpack.c.l.b16 %v256
  %v1558 = vunpack.c.h.b16 %v256
  %v1559 = vunpack.c.l.b16 %v257
  %v1560 = vunpack.c.h.b16 %v257
  %v1561 = vunpack.c.l.b16 %v258
  %v1562 = vunpack.c.h.b16 %v258
  %v1563 = vunpack.c.l.b16 %v259
  %v1564 = vunpack.c.h.b16 %v259
  %v1565 = vunpack.c.l.b16 %v260
  %v1566 = vunpack.c.h.b16 %v260
  %v1567 = vunpack.c.l.b16 %v261
  %v1568 = vunpack.c.h.b16 %v261
  %v1569 = vunpack.c.l.b16 %v262
  %v1570 = vunpack.c.h.b16 %v262
  %v1571 = vunpack.c.l.b16 %v263
  %v1572 = vunpack.c.h.b16 %v263
  %v1573 = vunpack.c.l.b16 %v264
  %v1574 = vunpack.c.h.b16 %v264
  %v1575 = vunpack.c.l.b16 %v265
  %v1576 = vunpack.c.h.b16 %v265
  %v1577 = vunpack.c.l.b16 %v266
  %v1578 = vunpack.c.h.b16 %v266
  %v1579 = vunpack.c.l.b16 %v267
  %v1580 = vunpack.c.h.b16 %v267
  %v1581 = vunpack.c.l.b16 %v268
  %v1582 = vunpack.c.h.b16 %v268
  %v1583 = vunpack.c.l.b16 %v269
  %v1584 = vunpack.c.h.b16 %v269
  %v1585 = vunpack.c.l.b16 %v270
  %v1586 = vunpack.c.h.b16 %v270
  %v1587 = vunpack.c.l.b16 %v271
  %v1588 = vunpack.c.h.b16 %v271
  %v1589 = vunpack.c.l.b16 %v272
  %v1590 = vunpack.c.h.b16 %v272
  %v1591 = vunpack.c.l.b16 %v273
  %v1592 = vunpack.c.h.b16 %v273
  %v1593 = vunpack.c.l.b16 %v274
  %v1594 = vunpack.c.h.b16 %v274
  %v1595 = vunpack.c.l.b16 %v275
  %v1596 = vunpack.c.h.b16 %v275
  %v1597 = vunpack.c.l.b16 %v276
  %v1598 = vunpack.c.h.b16 %v276
  %v1599 = vunpack.c.l.b16 %v277
  %v1600 = vunpack.c.h.b16 %v277
  %v1601 = vunpack.c.l.b16 %v278
  %v1602 = vunpack.c.h.b16 %v278
  %v1603 = vunpack.c.l.b16 %v279
  %v1604 = vunpack.c.h.b16 %v279
  %v1605 = vunpack.c.l.b16 %v280
  %v1606 = vunpack.c.h.b16 %v280
  %v1607 = vunpack.c.l.b16 %v281
  %v1608 = vunpack.c.h.b16 %v281
  %v1609 = vunpack.c.l.b16 %v282
  %v1610 = vunpack.c.h.b16 %v282
  %v1611 = vunpack.c.l.b16 %v283
  %v1612 = vunpack.c.h.b16 %v283
  %v1613 = vunpack.c.l.b16 %v284
  %v1614 = vunpack.c.h.b16 %v284
  %v1615 = vunpack.c.l.b16 %v285
  %v1616 = vunpack.c.h.b16 %v285
  %v1617 = vunpack.c.l.b16 %v286
  %v1618 = vunpack.c.h.b16 %v286
  %v1619 = vunpack.c.l.b16 %v287
  %v1620 = vunpack.c.h.b16 %v287
  %v1621 = vunpack.c.l.b16 %v288
  %v1622 = vunpack.c.h.b16 %v288
  %v1623 = vunpack.c.l.b16 %v289
  %v1624 = vunpack.c.h.b16 %v289
  %v1625 = vunpack.c.l.b16 %v290
  %v1626 = vunpack.c.h.b16 %v290
  %v1627 = vunpack.c.l.b16 %v291
  %v1628 = vunpack.c.h.b16 %v291
  %v1629 = vunpack.c.l.b16 %v292
  %v1630 = vunpack.c.h.b16 %v292
  %v1631 = vunpack.c.l.b16 %v293
  %v1632 = vunpack.c.h.b16 %v293
  %v1633 = vunpack.c.l.b16 %v294
  %v1634 = vunpack.c.h.b16 %v294
  %v1635 = vunpack.c.l.b16 %v295
  %v1636 = vunpack.c.h.b16 %v295
  %v1637 = vunpack.c.l.b16 %v296
  %v1638 = vunpack.c.h.b16 %v296
  %v1639 = vunpack.c.l.b16 %v297
  %v1640 = vunpack.c.h.b16 %v297
  %v1641 = vunpack.c.l.b16 %v298
  %v1642 = vunpack.c.h.b16 %v298
  %v1643 = vunpack.c.l.b16 %v299
  %v1644 = vunpack.c.h.b16 %v299
  %v1645 = vunpack.c.l.b16 %v300
  %v1646 = vunpack.c.h.b16 %v300
  %v1647 = vunpack.c.l.b16 %v301
  %v1648 = vunpack.c.h.b16 %v301
  %v1649 = vunpack.c.l.b16 %v302
  %v1650 = vunpack.c.h.b16 %v302
  %v1651 = vunpack.c.l.b16 %v303
  %v1652 = vunpack.c.h.b16 %v303
  %v1653 = vunpack.c.l.b16 %v304
  %v1654 = vunpack.c.h.b16 %v304
  %v1655 = vunpack.c.l.b16 %v305
  %v1656 = vunpack.c.h.b16 %v305
  %v1657 = vunpack.c.l.b16 %v306
  %v1658 = vunpack.c.h.b16 %v306
  %v1659 = vunpack.c.l.b16 %v307
  %v1660 = vunpack.c.h.b16 %v307
  %v1661 = vunpack.c.l.b16 %v308
  %v1662 = vunpack.c.h.b16 %v308
  %v1663 = vunpack.c.l.b16 %v309
  %v1664 = vunpack.c.h.b16 %v309
  %v1665 = vunpack.c.l.b16 %v310
  %v1666 = vunpack.c.h.b16 %v310
  %v1667 = vunpack.c.l.b16 %v311
  %v1668 = vunpack.c.h.b16 %v311
  %v1669 = vunpack.c.l.b16 %v312
  %v1670 = vunpack.c.h.b16 %v312
  %v1671 = vunpack.c.l.b16 %v313
  %v1672 = vunpack.c.h.b16 %v313
  %v1673 = vunpack.c.l.b16 %v314
  %v1674 = vunpack.c.h.b16 %v314
  %v1675 = vunpack.c.l.b16 %v315
  %v1676 = vunpack.c.h.b16 %v315
  %v1677 = vunpack.c.l.b16 %v316
  %v1678 = vunpack.c.h.b16 %v316
  %v1679 = vunpack.c.l.b16 %v317
  %v1680 = vunpack.c.h.b16 %v317
  %v1681 = vunpack.c.l.b16 %v318
  %v1682 = vunpack.c.h.b16 %v318
  %v1683 = vunpack.c.l.b16 %v319
  %v1684 = vunpack.c.h.b16 %v319
  %v1685 = vunpack.c.l.b16 %v320
  %v1686 = vunpack.c.h.b16 %v320
  %v1687 = vunpack.c.l.b16 %v321
  %v1688 = vunpack.c.h.b16 %v321
  %v1689 = vunpack.c.l.b16 %v322
  %v1690 = vunpack.c.h.b16 %v322
  %v1691 = vunpack.c.l.b16 %v323
  %v1692 = vunpack.c.h.b16 %v323
  %v1693 = vunpack.c.l.b16 %v324
  %v1694 = vunpack.c.h.b16 %v324
  %v1695 = vunpack.c.l.b16 %v325
  %v1696 = vunpack.c.h.b16 %v325
  %v1697 = vunpack.c.l.b16 %v326
  %v1698 = vunpack.c.h.b16 %v326
  %v1699 = vunpack.c.l.b16 %v327
  %v1700 = vunpack.c.h.b16 %v327
  %v1701 = vunpack.c.l.b16 %v328
  %v1702 = vunpack.c.h.b16 %v328
  %v1703 = vunpack.c.l.b16 %v329
  %v1704 = vunpack.c.h.b16 %v329
  %v1705 = vunpack.c.l.b16 %v330
  %v1706 = vunpack.c.h.b16 %v330
  %v1707 = vunpack.c.l.b16 %v331
  %v1708 = vunpack.c.h.b16 %v331
  %v1709 = vunpack.c.l.b16 %v332
  %v1710 = vunpack.c.h.b16 %v332
  %v1711 = vunpack.c.l.b16 %v333
  %v1712 = vunpack.c.h.b16 %v333
  %v1713 = vunpack.c.l.b16 %v334
  %v1714 = vunpack.c.h.b16 %v334
  %v1715 = vunpack.c.l.b16 %v335
  %v1716 = vunpack.c.h.b16 %v335
  %v1717 = vunpack.c.l.b16 %v336
  %v1718 = vunpack.c.h.b16 %v336
  %v1719 = vunpack.c.l.b16 %v337
  %v1720 = vunpack.c.h.b16 %v337
  %v1721 = vunpack.c.l.b16 %v338
  %v1722 = vunpack.c.h.b16 %v338
  %v1723 = vunpack.c.l.b16 %v339
  %v1724 = vunpack.c.h.b16 %v339
  %v1725 = vunpack.c.l.b16 %v340
  %v1726 = vunpack.c.h.b16 %v340
  %v1727 = vunpack.c.l.b16 %v341
  %v1728 = vunpack.c.h.b16 %v341
  %v1729 = vunpack.c.l.b16 %v342
  %v1730 = vunpack.c.h.b16 %v342
  %v1731 = vunpack.c.l.b16 %v343
  %v1732 = vunpack.c.h.b16 %v343
  %v1733 = vunpack.c.l.b16 %v344
  %v1734 = vunpack.c.h.b16 %v344
  %v1735 = vunpack.c.l.b16 %v345
  %v1736 = vunpack.c.h.b16 %v345
  %v1737 = vunpack.c.l.b16 %v346
  %v1738 = vunpack.c.h.b16 %v346
  %v1739 = vunpack.c.l.b16 %v347
  %v1740 = vunpack.c.h.b16 %v347
  %v1741 = vunpack.c.l.b16 %v348
  %v1742 = vunpack.c.h.b16 %v348
  %v1743 = vunpack.c.l.b16 %v349
  %v1744 = vunpack.c.h.b16 %v349
  %v1745 = vunpack.c.l.b16 %v350
  %v1746 = vunpack.c.h.b16 %v350
  %v1747 = vunpack.c.l.b16 %v351
  %v1748 = vunpack.c.h.b16 %v351
  %v1749 = vunpack.c.l.b16 %v352
  %v1750 = vunpack.c.h.b16 %v352
  %v1751 = vunpack.c.l.b16 %v353
  %v1752 = vunpack.c.h.b16 %v353
  %v1753 = vunpack.c.l.b16 %v354
  %v1754 = vunpack.c.h.b16 %v354
  %v1755 = vunpack.c.l.b16 %v355
  %v1756 = vunpack.c.h.b16 %v355
  %v1757 = vunpack.c.l.b16 %v356
  %v1758 = vunpack.c.h.b16 %v356
  %v1759 = vunpack.c.l.b16 %v357
  %v1760 = vunpack.c.h.b16 %v357
  %v1761 = vunpack.c.l.b16 %v358
  %v1762 = vunpack.c.h.b16 %v358
  %v1763 = vunpack.c.l.b16 %v359
  %v1764 = vunpack.c.h.b16 %v359
  %v1765 = vunpack.c.l.b16 %v360
  %v1766 = vunpack.c.h.b16 %v360
  %v1767 = vunpack.c.l.b16 %v361
  %v1768 = vunpack.c.h.b16 %v361
  %v1769 = vunpack.c.l.b16 %v362
  %v1770 = vunpack.c.h.b16 %v362
  %v1771 = vunpack.c.l.b16 %v363
  %v1772 = vunpack.c.h.b16 %v363
  %v1773 = vunpack.c.l.b16 %v364
  %v1774 = vunpack.c.h.b16 %v364
  %v1775 = vunpack.c.l.b16 %v365
  %v1776 = vunpack.c.h.b16 %v365
  %v1777 = vunpack.c.l.b16 %v366
  %v1778 = vunpack.c.h.b16 %v366
  %v1779 = vunpack.c.l.b16 %v367
  %v1780 = vunpack.c.h.b16 %v367
  %v1781 = vunpack.c.l.b16 %v368
  %v1782 = vunpack.c.h.b16 %v368
  %v1783 = vunpack.c.l.b16 %v369
  %v1784 = vunpack.c.h.b16 %v369
  %v1785 = vunpack.c.l.b16 %v370
  %v1786 = vunpack.c.h.b16 %v370
  %v1787 = vunpack.c.l.b16 %v371
  %v1788 = vunpack.c.h.b16 %v371
  %v1789 = vunpack.c.l.b16 %v372
  %v1790 = vunpack.c.h.b16 %v372
  %v1791 = vunpack.c.l.b16 %v373
  %v1792 = vunpack.c.h.b16 %v373
  %v1793 = vunpack.c.l.b16 %v374
  %v1794 = vunpack.c.h.b16 %v374
  %v1795 = vunpack.c.l.b16 %v375
  %v1796 = vunpack.c.h.b16 %v375
  %v1797 = vunpack.c.l.b16 %v376
  %v1798 = vunpack.c.h.b16 %v376
  %v1799 = vunpack.c.l.b16 %v377
  %v1800 = vunpack.c.h.b16 %v377
  %v1801 = vunpack.c.l.b16 %v378
  %v1802 = vunpack.c.h.b16 %v378
  %v1803 = vunpack.c.l.b16 %v379
  %v1804 = vunpack.c.h.b16 %v379
  %v1805 = vunpack.c.l.b16 %v380
  %v1806 = vunpack.c.h.b16 %v380
  %v1807 = vunpack.c.l.b16 %v381
  %v1808 = vunpack.c.h.b16 %v381
  %v1809 = vunpack.c.l.b16 %v382
  %v1810 = vunpack.c.h.b16 %v382
  %v1811 = vunpack.c.l.b16 %v383
  %v1812 = vunpack.c.h.b16 %v383
  %v1813 = vunpack.c.l.b16 %v384
  %v1814 = vunpack.c.h.b16 %v384
  %v1815 = vunpack.c.l.b16 %v385
  %v1816 = vunpack.c.h.b16 %v385
  %v1817 = vunpack.c.l.b16 %v386
  %v1818 = vunpack.c.h.b16 %v386
  %v1819 = vunpack.c.l.b16 %v387
  %v1820 = vunpack.c.h.b16 %v387
  %v1821 = vunpack.c.l.b16 %v388
  %v1822 = vunpack.c.h.b16 %v388
  %v1823 = vunpack.c.l.b16 %v389
  %v1824 = vunpack.c.h.b16 %v389
  %v1825 = vunpack.c.l.b16 %v390
  %v1826 = vunpack.c.h.b16 %v390
  %v1827 = vunpack.c.l.b16 %v391
  %v1828 = vunpack.c.h.b16 %v391
  %v1829 = vunpack.c.l.b16 %v392
  %v1830 = vunpack.c.h.b16 %v392
  %v1831 = vunpack.c.l.b16 %v393
  %v1832 = vunpack.c.h.b16 %v393
  %v1833 = vunpack.c.l.b16 %v394
  %v1834 = vunpack.c.h.b16 %v394
  %v1835 = vunpack.c.l.b16 %v395
  %v1836 = vunpack.c.h.b16 %v395
  %v1837 = vunpack.c.l.b16 %v396
  %v1838 = vunpack.c.h.b16 %v396
  %v1839 = vunpack.c.l.b16 %v397
  %v1840 = vunpack.c.h.b16 %v397
  %v1841 = vunpack.c.l.b16 %v398
  %v1842 = vunpack.c.h.b16 %v398
  %v1843 = vunpack.c.l.b16 %v399
  %v1844 = vunpack.c.h.b16 %v399
  %v1845 = vunpack.c.l.b16 %v400
  %v1846 = vunpack.c.h.b16 %v400
  %v1847 = vunpack.c.l.b16 %v401
  %v1848 = vunpack.c.h.b16 %v401
  %v1849 = vunpack.c.l.b16 %v402
  %v1850 = vunpack.c.h.b16 %v402
  %v1851 = vunpack.c.l.b16 %v403
  %v1852 = vunpack.c.h.b16 %v403
  %v1853 = vunpack.c.l.b16 %v404
  %v1854 = vunpack.c.h.b16 %v404
  %v1855 = vunpack.c.l.b16 %v405
  %v1856 = vunpack.c.h.b16 %v405
  %v1857 = vunpack.c.l.b16 %v406
  %v1858 = vunpack.c.h.b16 %v406
  %v1859 = vunpack.c.l.b16 %v407
  %v1860 = vunpack.c.h.b16 %v407
  %v1861 = vunpack.c.l.b16 %v408
  %v1862 = vunpack.c.h.b16 %v408
  %v1863 = vunpack.c.l.b16 %v409
  %v1864 = vunpack.c.h.b16 %v409
  %v1865 = vunpack.c.l.b16 %v410
  %v1866 = vunpack.c.h.b16 %v410
  %v1867 = vunpack.c.l.b16 %v411
  %v1868 = vunpack.c.h.b16 %v411
  %v1869 = vunpack.c.l.b16 %v412
  %v1870 = vunpack.c.h.b16 %v412
  %v1871 = vunpack.c.l.b16 %v413
  %v1872 = vunpack.c.h.b16 %v413
  %v1873 = vunpack.c.l.b16 %v414
  %v1874 = vunpack.c.h.b16 %v414
  %v1875 = vunpack.c.l.b16 %v415
  %v1876 = vunpack.c.h.b16 %v415
  %v1877 = vunpack.c.l.b16 %v416
  %v1878 = vunpack.c.h.b16 %v416
  %v1879 = vunpack.c.l.b16 %v417
  %v1880 = vunpack.c.h.b16 %v417
  %v1881 = vunpack.c.l.b16 %v418
  %v1882 = vunpack.c.h.b16 %v418
  %v1883 = vunpack.c.l.b16 %v419
  %v1884 = vunpack.c.h.b16 %v419
  %v1885 = vunpack.c.l.b16 %v420
  %v1886 = vunpack.c.h.b16 %v420
  %v1887 = vunpack.c.l.b16 %v421
  %v1888 = vunpack.c.h.b16 %v421
  %v1889 = vunpack.c.l.b16 %v422
  %v1890 = vunpack.c.h.b16 %v422
  %v1891 = vunpack.c.l.b16 %v423
  %v1892 = vunpack.c.h.b16 %v423
  %v1893 = vunpack.c.l.b16 %v424
  %v1894 = vunpack.c.h.b16 %v424
  %v1895 = vunpack.c.l.b16 %v425
  %v1896 = vunpack.c.h.b16 %v425
  %v1897 = vunpack.c.l.b16 %v426
  %v1898 = vunpack.c.h.b16 %v426
  %v1899 = vunpack.c.l.b16 %v427
  %v1900 = vunpack.c.h.b16 %v427
  %v1901 = vunpack.c.l.b16 %v428
  %v1902 = vunpack.c.h.b16 %v428
  %v1903 = vunpack.c.l.b16 %v429
  %v1904 = vunpack.c.h.b16 %v429
  %v1905 = vunpack.c.l.b16 %v430
  %v1906 = vunpack.c.h.b16 %v430
  %v1907 = vunpack.c.l.b16 %v431
  %v1908 = vunpack.c.h.b16 %v431
  %v1909 = vunpack.c.l.b16 %v432
  %v1910 = vunpack.c.h.b16 %v432
  %v1911 = vunpack.c.l.b16 %v433
  %v1912 = vunpack.c.h.b16 %v433
  %v1913 = vunpack.c.l.b16 %v434
  %v1914 = vunpack.c.h.b16 %v434
  %v1915 = vunpack.c.l.b16 %v435
  %v1916 = vunpack.c.h.b16 %v435
  %v1917 = vunpack.c.l.b16 %v436
  %v1918 = vunpack.c.h.b16 %v436
  %v1919 = vunpack.c.l.b16 %v437
  %v1920 = vunpack.c.h.b16 %v437
  %v1921 = vunpack.c.l.b16 %v438
  %v1922 = vunpack.c.h.b16 %v438
  %v1923 = vunpack.c.l.b16 %v439
  %v1924 = vunpack.c.h.b16 %v439
  %v1925 = vunpack.c.l.b16 %v440
  %v1926 = vunpack.c.h.b16 %v440
  %v1927 = vunpack.c.l.b16 %v441
  %v1928 = vunpack.c.h.b16 %v441
  %v1929 = vunpack.c.l.b16 %v442
  %v1930 = vunpack.c.h.b16 %v442
  %v1931 = vunpack.c.l.b16 %v443
  %v1932 = vunpack.c.h.b16 %v443
  %v1933 = vunpack.c.l.b16 %v444
  %v1934 = vunpack.c.h.b16 %v444
  %v1935 = vunpack.c.l.b16 %v445
  %v1936 = vunpack.c.h.b16 %v445
  %v1937 = vunpack.c.l.b16 %v446
  %v1938 = vunpack.c.h.b16 %v446
  %v1939 = vunpack.c.l.b16 %v447
  %v1940 = vunpack.c.h.b16 %v447
  %v1941 = vunpack.c.l.b16 %v448
  %v1942 = vunpack.c.h.b16 %v448
  %v1943 = vunpack.c.l.b16 %v449
  %v1944 = vunpack.c.h.b16 %v449
  %v1945 = vunpack.c.l.b16 %v450
  %v1946 = vunpack.c.h.b16 %v450
  %v1947 = vunpack.c.l.b16 %v451
  %v1948 = vunpack.c.h.b16 %v451
  %v1949 = vunpack.c.l.b16 %v452
  %v1950 = vunpack.c.h.b16 %v452
  %v1951 = vunpack.c.l.b16 %v453
  %v1952 = vunpack.c.h.b16 %v453
  %v1953 = vunpack.c.l.b16 %v454
  %v1954 = vunpack.c.h.b16 %v454
  %v1955 = vunpack.c.l.b16 %v455
  %v1956 = vunpack.c.h.b16 %v455
  %v1957 = vunpack.c.l.b16 %v456
  %v1958 = vunpack.c.h.b16 %v456
  %v1959 = vunpack.c.l.b16 %v457
  %v1960 = vunpack.c.h.b16 %v457
  %v1961 = vunpack.c.l.b16 %v458
  %v1962 = vunpack.c.h.b16 %v458
  %v1963 = vunpack.c.l.b16 %v459
  %v1964 = vunpack.c.h.b16 %v459
  %v1965 = vunpack.c.l.b16 %v460
  %v1966 = vunpack.c.h.b16 %v460
  %v1967 = vunpack.c.l.b16 %v461
  %v1968 = vunpack.c.h.b16 %v461
  %v1969 = vunpack.c.l.b16 %v462
  %v1970 = vunpack.c.h.b16 %v462
  %v1971 = vunpack.c.l.b16 %v463
  %v1972 = vunpack.c.h.b16 %v463
  %v1973 = vunpack.c.l.b16 %v464
  %v1974 = vunpack.c.h.b16 %v464
  %v1975 = vunpack.c.l.b16 %v465
  %v1976 = vunpack.c.h.b16 %v465
  %v1977 = vunpack.c.l.b16 %v466
  %v1978 = vunpack.c.h.b16 %v466
  %v1979 = vunpack.c.l.b16 %v467
  %v1980 = vunpack.c.h.b16 %v467
  %v1981 = vunpack.c.l.b16 %v468
  %v1982 = vunpack.c.h.b16 %v468
  %v1983 = vunpack.c.l.b16 %v469
  %v1984 = vunpack.c.h.b16 %v469
  %v1985 = vunpack.c.l.b16 %v470
  %v1986 = vunpack.c.h.b16 %v470
  %v1987 = vunpack.c.l.b16 %v471
  %v1988 = vunpack.c.h.b16 %v471
  %v1989 = vunpack.c.l.b16 %v472
  %v1990 = vunpack.c.h.b16 %v472
  %v1991 = vunpack.c.l.b16 %v473
  %v1992 = vunpack.c.h.b16 %v473
  %v1993 = vunpack.c.l.b16 %v474
  %v1994 = vunpack.c.h.b16 %v474
  %v1995 = vunpack.c.l.b16 %v475
  %v1996 = vunpack.c.h.b16 %v475
  %v1997 = vunpack.c.l.b16 %v476
  %v1998 = vunpack.c.h.b16 %v476
  %v1999 = vunpack.c.l.b16 %v477
  %v2000 = vunpack.c.h.b16 %v477
  %v2001 = vunpack.c.l.b16 %v478
  %v2002 = vunpack.c.h.b16 %v478
  %v2003 = vunpack.c.l.b16 %v479
  %v2004 = vunpack.c.h.b16 %v479
  %v2005 = vunpack.c.l.b16 %v480
  %v2006 = vunpack.c.h.b16 %v480
  %v2007 = vunpack.c.l.b16 %v481
  %v2008 = vunpack.c.h.b16 %v481
  %v2009 = vunpack.c.l.b16 %v482
  %v2010 = vunpack.c.h.b16 %v482
  %v2011 = vunpack.c.l.b16 %v483
  %v2012 = vunpack.c.h.b16 %v483
  %v2013 = vunpack.c.l.b16 %v484
  %v2014 = vunpack.c.h.b16 %v484
  %v2015 = vunpack.c.l.b16 %v485
  %v2016 = vunpack.c.h.b16 %v485
  %v2017 = vunpack.c.l.b16 %v486
  %v2018 = vunpack.c.h.b16 %v486
  %v2019 = vunpack.c.l.b16 %v487
  %v2020 = vunpack.c.h.b16 %v487
  %v2021 = vunpack.c.l.b16 %v488
  %v2022 = vunpack.c.h.b16 %v488
  %v2023 = vunpack.c.l.b16 %v489
  %v2024 = vunpack.c.h.b16 %v489
  %v2025 = vunpack.c.l.b16 %v490
  %v2026 = vunpack.c.h.b16 %v490
  %v2027 = vunpack.c.l.b16 %v491
  %v2028 = vunpack.c.h.b16 %v491
  %v2029 = vunpack.c.l.b16 %v492
  %v2030 = vunpack.c.h.b16 %v492
  %v2031 = vunpack.c.l.b16 %v493
  %v2032 = vunpack.c.h.b16 %v493
  %v2033 = vunpack.c.l.b16 %v494
  %v2034 = vunpack.c.h.b16 %v494
  %v2035 = vunpack.c.l.b16 %v495
  %v2036 = vunpack.c.h.b16 %v495
  %v2037 = vunpack.c.l.b16 %v496
  %v2038 = vunpack.c.h.b16 %v496
  %v2039 = vunpack.c.l.b16 %v497
  %v2040 = vunpack.c.h.b16 %v497
  %v2041 = vunpack.c.l.b16 %v498
  %v2042 = vunpack.c.h.b16 %v498
  %v2043 = vunpack.c.l.b16 %v499
  %v2044 = vunpack.c.h.b16 %v499
  %v2045 = vunpack.c.l.b16 %v500
  %v2046 = vunpack.c.h.b16 %v500
  %v2047 = vunpack.c.l.b16 %v501
  %v2048 = vunpack.c.h.b16 %v501
  %v2049 = vunpack.c.l.b16 %v502
  %v2050 = vunpack.c.h.b16 %v502
  %v2051 = vunpack.c.l.b16 %v503
  %v2052 = vunpack.c.h.b16 %v503
  %v2053 = vunpack.c.l.b16 %v504
  %v2054 = vunpack.c.h.b16 %v504
  %v2055 = vunpack.c.l.b16 %v505
  %v2056 = vunpack.c.h.b16 %v505
  %v2057 = vunpack.c.l.b16 %v506
  %v2058 = vunpack.c.h.b16 %v506
  %v2059 = vunpack.c.l.b16 %v507
  %v2060 = vunpack.c.h.b16 %v507
  %v2061 = vunpack.c.l.b16 %v508
  %v2062 = vunpack.c.h.b16 %v508
  %v2063 = vunpack.c.l.b16 %v509
  %v2064 = vunpack.c.h.b16 %v509
  %v2065 = vunpack.c.l.b16 %v510
  %v2066 = vunpack.c.h.b16 %v510
  %v2067 = vunpack.c.l.b16 %v511
  %v2068 = vunpack.c.h.b16 %v511
  %v2069 = vunpack.c.l.b16 %v512
  %v2070 = vunpack.c.h.b16 %v512
  %v2071 = vunpack.c.l.b16 %v513
  %v2072 = vunpack.c.h.b16 %v513
  %v2073 = vunpack.c.l.b16 %v514
  %v2074 = vunpack.c.h.b16 %v514
  %v2075 = vunpack.c.l.b16 %v515
  %v2076 = vunpack.c.h.b16 %v515
  %v2077 = vunpack.c.l.b16 %v516
  %v2078 = vunpack.c.h.b16 %v516
  %v2079 = vunpack.c.l.b16 %v517
  %v2080 = vunpack.c.h.b16 %v517
  %v2081 = vunpack.c.l.b16 %v518
  %v2082 = vunpack.c.h.b16 %v518
  %v2083 = vunpack.c.l.b16 %v519
  %v2084 = vunpack.c.h.b16 %v519
  %v2085 = vunpack.c.l.b16 %v520
  %v2086 = vunpack.c.h.b16 %v520
  %v2087 = vunpack.c.l.b16 %v521
  %v2088 = vunpack.c.h.b16 %v521
  %v2089 = vunpack.c.l.b16 %v522
  %v2090 = vunpack.c.h.b16 %v522
  %v2091 = vunpack.c.l.b16 %v523
  %v2092 = vunpack.c.h.b16 %v523
  %v2093 = vunpack.c.l.b16 %v524
  %v2094 = vunpack.c.h.b16 %v524
  %v2095 = vunpack.c.l.b16 %v525
  %v2096 = vunpack.c.h.b16 %v525
  %v2097 = vunpack.c.l.b16 %v526
  %v2098 = vunpack.c.h.b16 %v526
  %v2099 = vunpack.c.l.b16 %v527
  %v2100 = vunpack.c.h.b16 %v527
  %v2101 = vunpack.c.l.b16 %v528
  %v2102 = vunpack.c.h.b16 %v528
  %v2103 = vunpack.c.l.b16 %v529
  %v2104 = vunpack.c.h.b16 %v529
  %v2105 = vunpack.c.l.b16 %v530
  %v2106 = vunpack.c.h.b16 %v530
  %v2107 = vunpack.c.l.b16 %v531
  %v2108 = vunpack.c.h.b16 %v531
  %v2109 = vunpack.c.l.b16 %v532
  %v2110 = vunpack.c.h.b16 %v532
  %v2111 = vunpack.c.l.b16 %v533
  %v2112 = vunpack.c.h.b16 %v533
  %v2113 = vunpack.c.l.b16 %v534
  %v2114 = vunpack.c.h.b16 %v534
  %v2115 = vunpack.c.l.b16 %v535
  %v2116 = vunpack.c.h.b16 %v535
  %v2117 = vunpack.c.l.b16 %v536
  %v2118 = vunpack.c.h.b16 %v536
  %v2119 = vunpack.c.l.b16 %v537
  %v2120 = vunpack.c.h.b16 %v537
  %v2121 = vunpack.c.l.b16 %v538
  %v2122 = vunpack.c.h.b16 %v538
  %v2123 = vunpack.c.l.b16 %v539
  %v2124 = vunpack.c.h.b16 %v539
  %v2125 = vunpack.c.l.b16 %v540
  %v2126 = vunpack.c.h.b16 %v540
  %v2127 = vunpack.c.l.b16 %v541
  %v2128 = vunpack.c.h.b16 %v541
  %v2129 = vpack.c.b16 %v1109, %v1105
  %v2130 = vpack.c.b16 %v1110, %v1106
  %v2131 = vpack.c.b16 %v1111, %v1107
  %v2132 = vpack.c.b16 %v1112, %v1108
  %v2133 = vpack.c.b16 %v1117, %v1113
  %v2134 = vpack.c.b16 %v1118, %v1114
  %v2135 = vpack.c.b16 %v1119, %v1115
  %v2136 = vpack.c.b16 %v1120, %v1116
  %v2137 = vpack.c.b16 %v1125, %v1121
  %v2138 = vpack.c.b16 %v1126, %v1122
  %v2139 = vpack.c.b16 %v1127, %v1123
  %v2140 = vpack.c.b16 %v1128, %v1124
  %v2141 = vpack.c.b16 %v1133, %v1129
  %v2142 = vpack.c.b16 %v1134, %v1130
  %v2143 = vpack.c.b16 %v1135, %v1131
  %v2144 = vpack.c.b16 %v1136, %v1132
  %v2145 = vpack.c.b16 %v1141, %v1137
  %v2146 = vpack.c.b16 %v1142, %v1138
  %v2147 = vpack.c.b16 %v1143, %v1139
  %v2148 = vpack.c.b16 %v1144, %v1140
  %v2149 = vpack.c.b16 %v1149, %v1145
  %v2150 = vpack.c.b16 %v1150, %v1146
  %v2151 = vpack.c.b16 %v1151, %v1147
  %v2152 = vpack.c.b16 %v1152, %v1148
  %v2153 = vpack.c.b16 %v1157, %v1153
  %v2154 = vpack.c.b16 %v1158, %v1154
  %v2155 = vpack.c.b16 %v1159, %v1155
  %v2156 = vpack.c.b16 %v1160, %v1156
  %v2157 = vpack.c.b16 %v1165, %v1161
  %v2158 = vpack.c.b16 %v1166, %v1162
  %v2159 = vpack.c.b16 %v1167, %v1163
  %v2160 = vpack.c.b16 %v1168, %v1164
  %v2161 = vpack.c.b16 %v1173, %v1169
  %v2162 = vpack.c.b16 %v1174, %v1170
  %v2163 = vpack.c.b16 %v1175, %v1171
  %v2164 = vpack.c.b16 %v1176, %v1172
  %v2165 = vpack.c.b16 %v1181, %v1177
  %v2166 = vpack.c.b16 %v1182, %v1178
  %v2167 = vpack.c.b16 %v1183, %v1179
  %v2168 = vpack.c.b16 %v1184, %v1180
  %v2169 = vpack.c.b16 %v1189, %v1185
  %v2170 = vpack.c.b16 %v1190, %v1186
  %v2171 = vpack.c.b16 %v1191, %v1187
  %v2172 = vpack.c.b16 %v1192, %v1188
  %v2173 = vpack.c.b16 %v1197, %v1193
  %v2174 = vpack.c.b16 %v1198, %v1194
  %v2175 = vpack.c.b16 %v1199, %v1195
  %v2176 = vpack.c.b16 %v1200, %v1196
  %v2177 = vpack.c.b16 %v1205, %v1201
  %v2178 = vpack.c.b16 %v1206, %v1202
  %v2179 = vpack.c.b16 %v1207, %v1203
  %v2180 = vpack.c.b16 %v1208, %v1204
  %v2181 = vpack.c.b16 %v1213, %v1209
  %v2182 = vpack.c.b16 %v1214, %v1210
  %v2183 = vpack.c.b16 %v1215, %v1211
  %v2184 = vpack.c.b16 %v1216, %v1212
  %v2185 = vpack.c.b16 %v1221, %v1217
  %v2186 = vpack.c.b16 %v1222, %v1218
  %v2187 = vpack.c.b16 %v1223, %v1219
  %v2188 = vpack.c.b16 %v1224, %v1220
  %v2189 = vpack.c.b16 %v1229, %v1225
  %v2190 = vpack.c.b16 %v1230, %v1226
  %v2191 = vpack.c.b16 %v1231, %v1227
  %v2192 = vpack.c.b16 %v1232, %v1228
  %v2193 = vpack.c.b16 %v1237, %v1233
  %v2194 = vpack.c.b16 %v1238, %v1234
  %v2195 = vpack.c.b16 %v1239, %v1235
  %v2196 = vpack.c.b16 %v1240, %v1236
  %v2197 = vpack.c.b16 %v1245, %v1241
  %v2198 = vpack.c.b16 %v1246, %v1242
  %v2199 = vpack.c.b16 %v1247, %v1243
  %v2200 = vpack.c.b16 %v1248, %v1244
  %v2201 = vpack.c.b16 %v1253, %v1249
  %v2202 = vpack.c.b16 %v1254, %v1250
  %v2203 = vpack.c.b16 %v1255, %v1251
  %v2204 = vpack.c.b16 %v1256, %v1252
  %v2205 = vpack.c.b16 %v1261, %v1257
  %v2206 = vpack.c.b16 %v1262, %v1258
  %v2207 = vpack.c.b16 %v1263, %v1259
  %v2208 = vpack.c.b16 %v1264, %v1260
  %v2209 = vpack.c.b16 %v1269, %v1265
  %v2210 = vpack.c.b16 %v1270, %v1266
  %v2211 = vpack.c.b16 %v1271, %v1267
  %v2212 = vpack.c.b16 %v1272, %v1268
  %v2213 = vpack.c.b16 %v1277, %v1273
  %v2214 = vpack.c.b16 %v1278, %v1274
  %v2215 = vpack.c.b16 %v1279, %v1275
  %v2216 = vpack.c.b16 %v1280, %v1276
  %v2217 = vpack.c.b16 %v1285, %v1281
  %v2218 = vpack.c.b16 %v1286, %v1282
  %v2219 = vpack.c.b16 %v1287, %v1283
  %v2220 = vpack.c.b16 %v1288, %v1284
  %v2221 = vpack.c.b16 %v1293, %v1289
  %v2222 = vpack.c.b16 %v1294, %v1290
  %v2223 = vpack.c.b16 %v1295, %v1291
  %v2224 = vpack.c.b16 %v1296, %v1292
  %v2225 = vpack.c.b16 %v1301, %v1297
  %v2226 = vpack.c.b16 %v1302, %v1298
  %v2227 = vpack.c.b16 %v1303, %v1299
  %v2228 = vpack.c.b16 %v1304, %v1300
  %v2229 = vpack.c.b16 %v1309, %v1305
  %v2230 = vpack.c.b16 %v1310, %v1306
  %v2231 = vpack.c.b16 %v1311, %v1307
  %v2232 = vpack.c.b16 %v1312, %v1308
  %v2233 = vpack.c.b16 %v1317, %v1313
  %v2234 = vpack.c.b16 %v1318, %v1314
  %v2235 = vpack.c.b16 %v1319, %v1315
  %v2236 = vpack.c.b16 %v1320, %v1316
  %v2237 = vpack.c.b16 %v1325, %v1321
  %v2238 = vpack.c.b16 %v1326, %v1322
  %v2239 = vpack.c.b16 %v1327, %v1323
  %v2240 = vpack.c.b16 %v1328, %v1324
  %v2241 = vpack.c.b16 %v1333, %v1329
  %v2242 = vpack.c.b16 %v1334, %v1330
  %v2243 = vpack.c.b16 %v1335, %v1331
  %v2244 = vpack.c.b16 %v1336, %v1332
  %v2245 = vpack.c.b16 %v1341, %v1337
  %v2246 = vpack.c.b16 %v1342, %v1338
  %v2247 = vpack.c.b16 %v1343, %v1339
  %v2248 = vpack.c.b16 %v1344, %v1340
  %v2249 = vpack.c.b16 %v1349, %v1345
  %v2250 = vpack.c.b16 %v1350, %v1346
  %v2251 = vpack.c.b16 %v1351, %v1347
  %v2252 = vpack.c.b16 %v1352, %v1348
  %v2253 = vpack.c.b16 %v1357, %v1353
  %v2254 = vpack.c.b16 %v1358, %v1354
  %v2255 = vpack.c.b16 %v1359, %v1355
  %v2256 = vpack.c.b16 %v1360, %v1356
  %v2257 = vpack.c.b16 %v1365, %v1361
  %v2258 = vpack.c.b16 %v1366, %v1362
  %v2259 = vpack.c.b16 %v1367, %v1363
  %v2260 = vpack.c.b16 %v1368, %v1364
  %v2261 = vpack.c.b16 %v1373, %v1369
  %v2262 = vpack.c.b16 %v1374, %v1370
  %v2263 = vpack.c.b16 %v1375, %v1371
  %v2264 = vpack.c.b16 %v1376, %v1372
  %v2265 = vpack.c.b16 %v1381, %v1377
  %v2266 = vpack.c.b16 %v1382, %v1378
  %v2267 = vpack.c.b16 %v1383, %v1379
  %v2268 = vpack.c.b16 %v1384, %v1380
  %v2269 = vpack.c.b16 %v1389, %v1385
  %v2270 = vpack.c.b16 %v1390, %v1386
  %v2271 = vpack.c.b16 %v1391, %v1387
  %v2272 = vpack.c.b16 %v1392, %v1388
  %v2273 = vpack.c.b16 %v1397, %v1393
  %v2274 = vpack.c.b16 %v1398, %v1394
  %v2275 = vpack.c.b16 %v1399, %v1395
  %v2276 = vpack.c.b16 %v1400, %v1396
  %v2277 = vpack.c.b16 %v1405, %v1401
  %v2278 = vpack.c.b16 %v1406, %v1402
  %v2279 = vpack.c.b16 %v1407, %v1403
  %v2280 = vpack.c.b16 %v1408, %v1404
  %v2281 = vpack.c.b16 %v1413, %v1409
  %v2282 = vpack.c.b16 %v1414, %v1410
  %v2283 = vpack.c.b16 %v1415, %v1411
  %v2284 = vpack.c.b16 %v1416, %v1412
  %v2285 = vpack.c.b16 %v1421, %v1417
  %v2286 = vpack.c.b16 %v1422, %v1418
  %v2287 = vpack.c.b16 %v1423, %v1419
  %v2288 = vpack.c.b16 %v1424, %v1420
  %v2289 = vpack.c.b16 %v1429, %v1425
  %v2290 = vpack.c.b16 %v1430, %v1426
  %v2291 = vpack.c.b16 %v1431, %v1427
  %v2292 = vpack.c.b16 %v1432, %v1428
  %v2293 = vpack.c.b16 %v1437, %v1433
  %v2294 = vpack.c.b16 %v1438, %v1434
  %v2295 = vpack.c.b16 %v1439, %v1435
  %v2296 = vpack.c.b16 %v1440, %v1436
  %v2297 = vpack.c.b16 %v1445, %v1441
  %v2298 = vpack.c.b16 %v1446, %v1442
  %v2299 = vpack.c.b16 %v1447, %v1443
  %v2300 = vpack.c.b16 %v1448, %v1444
  %v2301 = vpack.c.b16 %v1453, %v1449
  %v2302 = vpack.c.b16 %v1454, %v1450
  %v2303 = vpack.c.b16 %v1455, %v1451
  %v2304 = vpack.c.b16 %v1456, %v1452
  %v2305 = vpack.c.b16 %v1461, %v1457
  %v2306 = vpack.c.b16 %v1462, %v1458
  %v2307 = vpack.c.b16 %v1463, %v1459
  %v2308 = vpack.c.b16 %v1464, %v1460
  %v2309 = vpack.c.b16 %v1469, %v1465
  %v2310 = vpack.c.b16 %v1470, %v1466
  %v2311 = vpack.c.b16 %v1471, %v1467
  %v2312 = vpack.c.b16 %v1472, %v1468
  %v2313 = vpack.c.b16 %v1477, %v1473
  %v2314 = vpack.c.b16 %v1478, %v1474
  %v2315 = vpack.c.b16 %v1479, %v1475
  %v2316 = vpack.c.b16 %v1480, %v1476
  %v2317 = vpack.c.b16 %v1485, %v1481
  %v2318 = vpack.c.b16 %v1486, %v1482
  %v2319 = vpack.c.b16 %v1487, %v1483
  %v2320 = vpack.c.b16 %v1488, %v1484
  %v2321 = vpack.c.b16 %v1493, %v1489
  %v2322 = vpack.c.b16 %v1494, %v1490
  %v2323 = vpack.c.b16 %v1495, %v1491
  %v2324 = vpack.c.b16 %v1496, %v1492
  %v2325 = vpack.c.b16 %v1501, %v1497
  %v2326 = vpack.c.b16 %v1502, %v1498
  %v2327 = vpack.c.b16 %v1503, %v1499
  %v2328 = vpack.c.b16 %v1504, %v1500
  %v2329 = vpack.c.b16 %v1509, %v1505
  %v2330 = vpack.c.b16 %v1510, %v1506
  %v2331 = vpack.c.b16 %v1511, %v1507
  %v2332 = vpack.c.b16 %v1512, %v1508
  %v2333 = vpack.c.b16 %v1517, %v1513
  %v2334 = vpack.c.b16 %v1518, %v1514
  %v2335 = vpack.c.b16 %v1519, %v1515
  %v2336 = vpack.c.b16 %v1520, %v1516
  %v2337 = vpack.c.b16 %v1525, %v1521
  %v2338 = vpack.c.b16 %v1526, %v1522
  %v2339 = vpack.c.b16 %v1527, %v1523
  %v2340 = vpack.c.b16 %v1528, %v1524
  %v2341 = vpack.c.b16 %v1533, %v1529
  %v2342 = vpack.c.b16 %v1534, %v1530
  %v2343 = vpack.c.b16 %v1535, %v1531
  %v2344 = vpack.c.b16 %v1536, %v1532
  %v2345 = vpack.c.b16 %v1541, %v1537
  %v2346 = vpack.c.b16 %v1542, %v1538
  %v2347 = vpack.c.b16 %v1543, %v1539
  %v2348 = vpack.c.b16 %v1544, %v1540
  %v2349 = vpack.c.b16 %v1549, %v1545
  %v2350 = vpack.c.b16 %v1550, %v1546
  %v2351 = vpack.c.b16 %v1551, %v1547
  %v2352 = vpack.c.b16 %v1552, %v1548
  %v2353 = vpack.c.b16 %v1557, %v1553
  %v2354 = vpack.c.b16 %v1558, %v1554
  %v2355 = vpack.c.b16 %v1559, %v1555
  %v2356 = vpack.c.b16 %v1560, %v1556
  %v2357 = vpack.c.b16 %v1565, %v1561
  %v2358 = vpack.c.b16 %v1566, %v1562
  %v2359 = vpack.c.b16 %v1567, %v1563
  %v2360 = vpack.c.b16 %v1568, %v1564
  %v2361 = vpack.c.b16 %v1573, %v1569
  %v2362 = vpack.c.b16 %v1574, %v1570
  %v2363 = vpack.c.b16 %v1575, %v1571
  %v2364 = vpack.c.b16 %v1576, %v1572
  %v2365 = vpack.c.b16 %v1581, %v1577
  %v2366 = vpack.c.b16 %v1582, %v1578
  %v2367 = vpack.c.b16 %v1583, %v1579
  %v2368 = vpack.c.b16 %v1584, %v1580
  %v2369 = vpack.c.b16 %v1589, %v1585
  %v2370 = vpack.c.b16 %v1590, %v1586
  %v2371 = vpack.c.b16 %v1591, %v1587
  %v2372 = vpack.c.b16 %v1592, %v1588
  %v2373 = vpack.c.b16 %v1597, %v1593
  %v2374 = vpack.c.b16 %v1598, %v1594
  %v2375 = vpack.c.b16 %v1599, %v1595
  %v2376 = vpack.c.b16 %v1600, %v1596
  %v2377 = vpack.c.b16 %v1605, %v1601
  %v2378 = vpack.c.b16 %v1606, %v1602
  %v2379 = vpack.c.b16 %v1607, %v1603
  %v2380 = vpack.c.b16 %v1608, %v1604
  %v2381 = vpack.c.b16 %v1613, %v1609
  %v2382 = vpack.c.b16 %v1614, %v1610
  %v2383 = vpack.c.b16 %v1615, %v1611
  %v2384 = vpack.c.b16 %v1616, %v1612
  %v2385 = vpack.c.b16 %v1621, %v1617
  %v2386 = vpack.c.b16 %v1622, %v1618
  %v2387 = vpack.c.b16 %v1623, %v1619
  %v2388 = vpack.c.b16 %v1624, %v1620
  %v2389 = vpack.c.b16 %v1629, %v1625
  %v2390 = vpack.c.b16 %v1630, %v1626
  %v2391 = vpack.c.b16 %v1631, %v1627
  %v2392 = vpack.c.b16 %v1632, %v1628
  %v2393 = vpack.c.b16 %v1637, %v1633
  %v2394 = vpack.c.b16 %v1638, %v1634
  %v2395 = vpack.c.b16 %v1639, %v1635
  %v2396 = vpack.c.b16 %v1640, %v1636
  %v2397 = vpack.c.b16 %v1645, %v1641
  %v2398 = vpack.c.b16 %v1646, %v1642
  %v2399 = vpack.c.b16 %v1647, %v1643
  %v2400 = vpack.c.b16 %v1648, %v1644
  %v2401 = vpack.c.b16 %v1653, %v1649
  %v2402 = vpack.c.b16 %v1654, %v1650
  %v2403 = vpack.c.b16 %v1655, %v1651
  %v2404 = vpack.c.b16 %v1656, %v1652
  %v2405 = vpack.c.b16 %v1661, %v1657
  %v2406 = vpack.c.b16 %v1662, %v1658
  %v2407 = vpack.c.b16 %v1663, %v1659
  %v2408 = vpack.c.b16 %v1664, %v1660
  %v2409 = vpack.c.b16 %v1669, %v1665
  %v2410 = vpack.c.b16 %v1670, %v1666
  %v2411 = vpack.c.b16 %v1671, %v1667
  %v2412 = vpack.c.b16 %v1672, %v1668
  %v2413 = vpack.c.b16 %v1677, %v1673
  %v2414 = vpack.c.b16 %v1678, %v1674
  %v2415 = vpack.c.b16 %v1679, %v1675
  %v2416 = vpack.c.b16 %v1680, %v1676
  %v2417 = vpack.c.b16 %v1685, %v1681
  %v2418 = vpack.c.b16 %v1686, %v1682
  %v2419 = vpack.c.b16 %v1687, %v1683
  %v2420 = vpack.c.b16 %v1688, %v1684
  %v2421 = vpack.c.b16 %v1693, %v1689
  %v2422 = vpack.c.b16 %v1694, %v1690
  %v2423 = vpack.c.b16 %v1695, %v1691
  %v2424 = vpack.c.b16 %v1696, %v1692
  %v2425 = vpack.c.b16 %v1701, %v1697
  %v2426 = vpack.c.b16 %v1702, %v1698
  %v2427 = vpack.c.b16 %v1703, %v1699
  %v2428 = vpack.c.b16 %v1704, %v1700
  %v2429 = vpack.c.b16 %v1709, %v1705
  %v2430 = vpack.c.b16 %v1710, %v1706
  %v2431 = vpack.c.b16 %v1711, %v1707
  %v2432 = vpack.c.b16 %v1712, %v1708
  %v2433 = vpack.c.b16 %v1717, %v1713
  %v2434 = vpack.c.b16 %v1718, %v1714
  %v2435 = vpack.c.b16 %v1719, %v1715
  %v2436 = vpack.c.b16 %v1720, %v1716
  %v2437 = vpack.c.b16 %v1725, %v1721
  %v2438 = vpack.c.b16 %v1726, %v1722
  %v2439 = vpack.c.b16 %v1727, %v1723
  %v2440 = vpack.c.b16 %v1728, %v1724
  %v2441 = vpack.c.b16 %v1733, %v1729
  %v2442 = vpack.c.b16 %v1734, %v1730
  %v2443 = vpack.c.b16 %v1735, %v1731
  %v2444 = vpack.c.b16 %v1736, %v1732
  %v2445 = vpack.c.b16 %v1741, %v1737
  %v2446 = vpack.c.b16 %v1742, %v1738
  %v2447 = vpack.c.b16 %v1743, %v1739
  %v2448 = vpack.c.b16 %v1744, %v1740
  %v2449 = vpack.c.b16 %v1749, %v1745
  %v2450 = vpack.c.b16 %v1750, %v1746
  %v2451 = vpack.c.b16 %v1751, %v1747
  %v2452 = vpack.c.b16 %v1752, %v1748
  %v2453 = vpack.c.b16 %v1757, %v1753
  %v2454 = vpack.c.b16 %v1758, %v1754
  %v2455 = vpack.c.b16 %v1759, %v1755
  %v2456 = vpack.c.b16 %v1760, %v1756
  %v2457 = vpack.c.b16 %v1765, %v1761
  %v2458 = vpack.c.b16 %v1766, %v1762
  %v2459 = vpack.c.b16 %v1767, %v1763
  %v2460 = vpack.c.b16 %v1768, %v1764
  %v2461 = vpack.c.b16 %v1773, %v1769
  %v2462 = vpack.c.b16 %v1774, %v1770
  %v2463 = vpack.c.b16 %v1775, %v1771
  %v2464 = vpack.c.b16 %v1776, %v1772
  %v2465 = vpack.c.b16 %v1781, %v1777
  %v2466 = vpack.c.b16 %v1782, %v1778
  %v2467 = vpack.c.b16 %v1783, %v1779
  %v2468 = vpack.c.b16 %v1784, %v1780
  %v2469 = vpack.c.b16 %v1789, %v1785
  %v2470 = vpack.c.b16 %v1790, %v1786
  %v2471 = vpack.c.b16 %v1791, %v1787
  %v2472 = vpack.c.b16 %v1792, %v1788
  %v2473 = vpack.c.b16 %v1797, %v1793
  %v2474 = vpack.c.b16 %v1798, %v1794
  %v2475 = vpack.c.b16 %v1799, %v1795
  %v2476 = vpack.c.b16 %v1800, %v1796
  %v2477 = vpack.c.b16 %v1805, %v1801
  %v2478 = vpack.c.b16 %v1806, %v1802
  %v2479 = vpack.c.b16 %v1807, %v1803
  %v2480 = vpack.c.b16 %v1808, %v1804
  %v2481 = vpack.c.b16 %v1813, %v1809
  %v2482 = vpack.c.b16 %v1814, %v1810
  %v2483 = vpack.c.b16 %v1815, %v1811
  %v2484 = vpack.c.b16 %v1816, %v1812
  %v2485 = vpack.c.b16 %v1821, %v1817
  %v2486 = vpack.c.b16 %v1822, %v1818
  %v2487 = vpack.c.b16 %v1823, %v1819
  %v2488 = vpack.c.b16 %v1824, %v1820
  %v2489 = vpack.c.b16 %v1829, %v1825
  %v2490 = vpack.c.b16 %v1830, %v1826
  %v2491 = vpack.c.b16 %v1831, %v1827
  %v2492 = vpack.c.b16 %v1832, %v1828
  %v2493 = vpack.c.b16 %v1837, %v1833
  %v2494 = vpack.c.b16 %v1838, %v1834
  %v2495 = vpack.c.b16 %v1839, %v1835
  %v2496 = vpack.c.b16 %v1840, %v1836
  %v2497 = vpack.c.b16 %v1845, %v1841
  %v2498 = vpack.c.b16 %v1846, %v1842
  %v2499 = vpack.c.b16 %v1847, %v1843
  %v2500 = vpack.c.b16 %v1848, %v1844
  %v2501 = vpack.c.b16 %v1853, %v1849
  %v2502 = vpack.c.b16 %v1854, %v1850
  %v2503 = vpack.c.b16 %v1855, %v1851
  %v2504 = vpack.c.b16 %v1856, %v1852
  %v2505 = vpack.c.b16 %v1861, %v1857
  %v2506 = vpack.c.b16 %v1862, %v1858
  %v2507 = vpack.c.b16 %v1863, %v1859
  %v2508 = vpack.c.b16 %v1864, %v1860
  %v2509 = vpack.c.b16 %v1869, %v1865
  %v2510 = vpack.c.b16 %v1870, %v1866
  %v2511 = vpack.c.b16 %v1871, %v1867
  %v2512 = vpack.c.b16 %v1872, %v1868
  %v2513 = vpack.c.b16 %v1877, %v1873
  %v2514 = vpack.c.b16 %v1878, %v1874
  %v2515 = vpack.c.b16 %v1879, %v1875
  %v2516 = vpack.c.b16 %v1880, %v1876
  %v2517 = vpack.c.b16 %v1885, %v1881
  %v2518 = vpack.c.b16 %v1886, %v1882
  %v2519 = vpack.c.b16 %v1887, %v1883
  %v2520 = vpack.c.b16 %v1888, %v1884
  %v2521 = vpack.c.b16 %v1893, %v1889
  %v2522 = vpack.c.b16 %v1894, %v1890
  %v2523 = vpack.c.b16 %v1895, %v1891
  %v2524 = vpack.c.b16 %v1896, %v1892
  %v2525 = vpack.c.b16 %v1901, %v1897
  %v2526 = vpack.c.b16 %v1902, %v1898
  %v2527 = vpack.c.b16 %v1903, %v1899
  %v2528 = vpack.c.b16 %v1904, %v1900
  %v2529 = vpack.c.b16 %v1909, %v1905
  %v2530 = vpack.c.b16 %v1910, %v1906
  %v2531 = vpack.c.b16 %v1911, %v1907
  %v2532 = vpack.c.b16 %v1912, %v1908
  %v2533 = vpack.c.b16 %v1917, %v1913
  %v2534 = vpack.c.b16 %v1918, %v1914
  %v2535 = vpack.c.b16 %v1919, %v1915
  %v2536 = vpack.c.b16 %v1920, %v1916
  %v2537 = vpack.c.b16 %v1925, %v1921
  %v2538 = vpack.c.b16 %v1926, %v1922
  %v2539 = vpack.c.b16 %v1927, %v1923
  %v2540 = vpack.c.b16 %v1928, %v1924
  %v2541 = vpack.c.b16 %v1933, %v1929
  %v2542 = vpack.c.b16 %v1934, %v1930
  %v2543 = vpack.c.b16 %v1935, %v1931
  %v2544 = vpack.c.b16 %v1936, %v1932
  %v2545 = vpack.c.b16 %v1941, %v1937
  %v2546 = vpack.c.b16 %v1942, %v1938
  %v2547 = vpack.c.b16 %v1943, %v1939
  %v2548 = vpack.c.b16 %v1944, %v1940
  %v2549 = vpack.c.b16 %v1949, %v1945
  %v2550 = vpack.c.b16 %v1950, %v1946
  %v2551 = vpack.c.b16 %v1951, %v1947
  %v2552 = vpack.c.b16 %v1952, %v1948
  %v2553 = vpack.c.b16 %v1957, %v1953
  %v2554 = vpack.c.b16 %v1958, %v1954
  %v2555 = vpack.c.b16 %v1959, %v1955
  %v2556 = vpack.c.b16 %v1960, %v1956
  %v2557 = vpack.c.b16 %v1965, %v1961
  %v2558 = vpack.c.b16 %v1966, %v1962
  %v2559 = vpack.c.b16 %v1967, %v1963
  %v2560 = vpack.c.b16 %v1968, %v1964
  %v2561 = vpack.c.b16 %v1973, %v1969
  %v2562 = vpack.c.b16 %v1974, %v1970
  %v2563 = vpack.c.b16 %v1975, %v1971
  %v2564 = vpack.c.b16 %v1976, %v1972
  %v2565 = vpack.c.b16 %v1981, %v1977
  %v2566 = vpack.c.b16 %v1982, %v1978
  %v2567 = vpack.c.b16 %v1983, %v1979
  %v2568 = vpack.c.b16 %v1984, %v1980
  %v2569 = vpack.c.b16 %v1989, %v1985
  %v2570 = vpack.c.b16 %v1990, %v1986
  %v2571 = vpack.c.b16 %v1991, %v1987
  %v2572 = vpack.c.b16 %v1992, %v1988
  %v2573 = vpack.c.b16 %v1997, %v1993
  %v2574 = vpack.c.b16 %v1998, %v1994
  %v2575 = vpack.c.b16 %v1999, %v1995
  %v2576 = vpack.c.b16 %v2000, %v1996
  %v2577 = vpack.c.b16 %v2005, %v2001
  %v2578 = vpack.c.b16 %v2006, %v2002
  %v2579 = vpack.c.b16 %v2007, %v2003
  %v2580 = vpack.c.b16 %v2008, %v2004
  %v2581 = vpack.c.b16 %v2013, %v2009
  %v2582 = vpack.c.b16 %v2014, %v2010
  %v2583 = vpack.c.b16 %v2015, %v2011
  %v2584 = vpack.c.b16 %v2016, %v2012
  %v2585 = vpack.c.b16 %v2021, %v2017
  %v2586 = vpack.c.b16 %v2022, %v2018
  %v2587 = vpack.c.b16 %v2023, %v2019
  %v2588 = vpack.c.b16 %v2024, %v2020
  %v2589 = vpack.c.b16 %v2029, %v2025
  %v2590 = vpack.c.b16 %v2030, %v2026
  %v2591 = vpack.c.b16 %v2031, %v2027
  %v2592 = vpack.c.b16 %v2032, %v2028
  %v2593 = vpack.c.b16 %v2037, %v2033
  %v2594 = vpack.c.b16 %v2038, %v2034
  %v2595 = vpack.c.b16 %v2039, %v2035
  %v2596 = vpack.c.b16 %v2040, %v2036
  %v2597 = vpack.c.b16 %v2045, %v2041
  %v2598 = vpack.c.b16 %v2046, %v2042
  %v2599 = vpack.c.b16 %v2047, %v2043
  %v2600 = vpack.c.b16 %v2048, %v2044
  %v2601 = vpack.c.b16 %v2053, %v2049
  %v2602 = vpack.c.b16 %v2054, %v2050
  %v2603 = vpack.c.b16 %v2055, %v2051
  %v2604 = vpack.c.b16 %v2056, %v2052
  %v2605 = vpack.c.b16 %v2061, %v2057
  %v2606 = vpack.c.b16 %v2062, %v2058
  %v2607 = vpack.c.b16 %v2063, %v2059
  %v2608 = vpack.c.b16 %v2064, %v2060
  %v2609 = vpack.c.b16 %v2069, %v2065
  %v2610 = vpack.c.b16 %v2070, %v2066
  %v2611 = vpack.c.b16 %v2071, %v2067
  %v2612 = vpack.c.b16 %v2072, %v2068
  %v2613 = vpack.c.b16 %v2077, %v2073
  %v2614 = vpack.c.b16 %v2078, %v2074
  %v2615 = vpack.c.b16 %v2079, %v2075
  %v2616 = vpack.c.b16 %v2080, %v2076
  %v2617 = vpack.c.b16 %v2085, %v2081
  %v2618 = vpack.c.b16 %v2086, %v2082
  %v2619 = vpack.c.b16 %v2087, %v2083
  %v2620 = vpack.c.b16 %v2088, %v2084
  %v2621 = vpack.c.b16 %v2093, %v2089
  %v2622 = vpack.c.b16 %v2094, %v2090
  %v2623 = vpack.c.b16 %v2095, %v2091
  %v2624 = vpack.c.b16 %v2096, %v2092
  %v2625 = vpack.c.b16 %v2101, %v2097
  %v2626 = vpack.c.b16 %v2102, %v2098
  %v2627 = vpack.c.b16 %v2103, %v2099
  %v2628 = vpack.c.b16 %v2104, %v2100
  %v2629 = vpack.c.b16 %v2109, %v2105
  %v2630 = vpack.c.b16 %v2110, %v2106
  %v2631 = vpack.c.b16 %v2111, %v2107
  %v2632 = vpack.c.b16 %v2112, %v2108
  %v2633 = vpack.c.b16 %v2117, %v2113
  %v2634 = vpack.c.b16 %v2118, %v2114
  %v2635 = vpack.c.b16 %v2119, %v2115
  %v2636 = vpack.c.b16 %v2120, %v2116
  %v2637 = vpack.c.b16 %v2125, %v2121
  %v2638 = vpack.c.b16 %v2126, %v2122
  %v2639 = vpack.c.b16 %v2127, %v2123
  %v2640 = vpack.c.b16 %v2128, %v2124
  %3153 = vmatpush.bf16.msra.mxu0 %v2157
  %3154 = vmatpush.bf16.msra.mxu0 %v2153
  %3155 = vmatpush.bf16.msra.mxu0 %v2149
  %3156 = vmatpush.bf16.msra.mxu0 %v2145
  %3157 = vmatpush.bf16.msra.mxu0 %v2141
  %3158 = vmatpush.bf16.msra.mxu0 %v2137
  %3159 = vmatpush.bf16.msra.mxu0 %v2133
  %3160 = vmatpush.bf16.msra.mxu0 %v2129
  %3161 = vmatmul.bf16.gmra.mxu0 %v557
  %v3162 = vpop.f32.mrf.mxu0
  %v3163 = vadd.f32 %v544, %v3162
  %v3164 = vpop.f32.mrf.mxu0
  %3165 = vdwg.mxu0
  %3166 = vmatpush.bf16.msra.mxu0 %v2189
  %3167 = vmatpush.bf16.msra.mxu0 %v2185
  %3168 = vmatpush.bf16.msra.mxu0 %v2181
  %3169 = vmatpush.bf16.msra.mxu0 %v2177
  %3170 = vmatpush.bf16.msra.mxu0 %v2173
  %3171 = vmatpush.bf16.msra.mxu0 %v2169
  %3172 = vmatpush.bf16.msra.mxu0 %v2165
  %3173 = vmatpush.bf16.msra.mxu0 %v2161
  %3174 = vmatmul.bf16.gmra.mxu0 %v558
  %v3175 = vpop.f32.mrf.mxu0
  %v3176 = vadd.f32 %v3163, %v3175
  %v3177 = vpop.f32.mrf.mxu0
  %3178 = vdwg.mxu0
  %3179 = vmatpush.bf16.msra.mxu0 %v2221
  %3180 = vmatpush.bf16.msra.mxu0 %v2217
  %3181 = vmatpush.bf16.msra.mxu0 %v2213
  %3182 = vmatpush.bf16.msra.mxu0 %v2209
  %3183 = vmatpush.bf16.msra.mxu0 %v2205
  %3184 = vmatpush.bf16.msra.mxu0 %v2201
  %3185 = vmatpush.bf16.msra.mxu0 %v2197
  %3186 = vmatpush.bf16.msra.mxu0 %v2193
  %3187 = vmatmul.bf16.gmra.mxu0 %v559
  %v3188 = vpop.f32.mrf.mxu0
  %v3189 = vadd.f32 %v3176, %v3188
  %v3190 = vpop.f32.mrf.mxu0
  %3191 = vdwg.mxu0
  %3192 = vmatpush.bf16.msra.mxu0 %v2253
  %3193 = vmatpush.bf16.msra.mxu0 %v2249
  %3194 = vmatpush.bf16.msra.mxu0 %v2245
  %3195 = vmatpush.bf16.msra.mxu0 %v2241
  %3196 = vmatpush.bf16.msra.mxu0 %v2237
  %3197 = vmatpush.bf16.msra.mxu0 %v2233
  %3198 = vmatpush.bf16.msra.mxu0 %v2229
  %3199 = vmatpush.bf16.msra.mxu0 %v2225
  %3200 = vmatmul.bf16.gmra.mxu0 %v560
  %v3201 = vpop.f32.mrf.mxu0
  %v3202 = vadd.f32 %v3189, %v3201
  %v3203 = vpop.f32.mrf.mxu0
  %3204 = vdwg.mxu0
  %3205 = vmatpush.bf16.msra.mxu0 %v2285
  %3206 = vmatpush.bf16.msra.mxu0 %v2281
  %3207 = vmatpush.bf16.msra.mxu0 %v2277
  %3208 = vmatpush.bf16.msra.mxu0 %v2273
  %3209 = vmatpush.bf16.msra.mxu0 %v2269
  %3210 = vmatpush.bf16.msra.mxu0 %v2265
  %3211 = vmatpush.bf16.msra.mxu0 %v2261
  %3212 = vmatpush.bf16.msra.mxu0 %v2257
  %3213 = vmatmul.bf16.gmra.mxu0 %v561
  %v3214 = vpop.f32.mrf.mxu0
  %v3215 = vadd.f32 %v3202, %v3214
  %v3216 = vpop.f32.mrf.mxu0
  %3217 = vdwg.mxu0
  %3218 = vmatpush.bf16.msra.mxu0 %v2317
  %3219 = vmatpush.bf16.msra.mxu0 %v2313
  %3220 = vmatpush.bf16.msra.mxu0 %v2309
  %3221 = vmatpush.bf16.msra.mxu0 %v2305
  %3222 = vmatpush.bf16.msra.mxu0 %v2301
  %3223 = vmatpush.bf16.msra.mxu0 %v2297
  %3224 = vmatpush.bf16.msra.mxu0 %v2293
  %3225 = vmatpush.bf16.msra.mxu0 %v2289
  %3226 = vmatmul.bf16.gmra.mxu0 %v562
  %v3227 = vpop.f32.mrf.mxu0
  %v3228 = vadd.f32 %v3215, %v3227
  %v3229 = vpop.f32.mrf.mxu0
  %3230 = vdwg.mxu0
  %3231 = vmatpush.bf16.msra.mxu0 %v2349
  %3232 = vmatpush.bf16.msra.mxu0 %v2345
  %3233 = vmatpush.bf16.msra.mxu0 %v2341
  %3234 = vmatpush.bf16.msra.mxu0 %v2337
  %3235 = vmatpush.bf16.msra.mxu0 %v2333
  %3236 = vmatpush.bf16.msra.mxu0 %v2329
  %3237 = vmatpush.bf16.msra.mxu0 %v2325
  %3238 = vmatpush.bf16.msra.mxu0 %v2321
  %3239 = vmatmul.bf16.gmra.mxu0 %v563
  %v3240 = vpop.f32.mrf.mxu0
  %v3241 = vadd.f32 %v3228, %v3240
  %v3242 = vpop.f32.mrf.mxu0
  %3243 = vdwg.mxu0
  %3244 = vmatpush.bf16.msra.mxu0 %v2381
  %3245 = vmatpush.bf16.msra.mxu0 %v2377
  %3246 = vmatpush.bf16.msra.mxu0 %v2373
  %3247 = vmatpush.bf16.msra.mxu0 %v2369
  %3248 = vmatpush.bf16.msra.mxu0 %v2365
  %3249 = vmatpush.bf16.msra.mxu0 %v2361
  %3250 = vmatpush.bf16.msra.mxu0 %v2357
  %3251 = vmatpush.bf16.msra.mxu0 %v2353
  %3252 = vmatmul.bf16.gmra.mxu0 %v564
  %v3253 = vpop.f32.mrf.mxu0
  %v3254 = vadd.f32 %v3241, %v3253
  %v3255 = vpop.f32.mrf.mxu0
  %3256 = vdwg.mxu0
  %3257 = vmatpush.bf16.msra.mxu0 %v2413
  %3258 = vmatpush.bf16.msra.mxu0 %v2409
  %3259 = vmatpush.bf16.msra.mxu0 %v2405
  %3260 = vmatpush.bf16.msra.mxu0 %v2401
  %3261 = vmatpush.bf16.msra.mxu0 %v2397
  %3262 = vmatpush.bf16.msra.mxu0 %v2393
  %3263 = vmatpush.bf16.msra.mxu0 %v2389
  %3264 = vmatpush.bf16.msra.mxu0 %v2385
  %3265 = vmatmul.bf16.gmra.mxu0 %v569
  %v3266 = vpop.f32.mrf.mxu0
  %v3267 = vadd.f32 %v3254, %v3266
  %v3268 = vpop.f32.mrf.mxu0
  %3269 = vdwg.mxu0
  %3270 = vmatpush.bf16.msra.mxu0 %v2445
  %3271 = vmatpush.bf16.msra.mxu0 %v2441
  %3272 = vmatpush.bf16.msra.mxu0 %v2437
  %3273 = vmatpush.bf16.msra.mxu0 %v2433
  %3274 = vmatpush.bf16.msra.mxu0 %v2429
  %3275 = vmatpush.bf16.msra.mxu0 %v2425
  %3276 = vmatpush.bf16.msra.mxu0 %v2421
  %3277 = vmatpush.bf16.msra.mxu0 %v2417
  %3278 = vmatmul.bf16.gmra.mxu0 %v570
  %v3279 = vpop.f32.mrf.mxu0
  %v3280 = vadd.f32 %v3267, %v3279
  %v3281 = vpop.f32.mrf.mxu0
  %3282 = vdwg.mxu0
  %3283 = vmatpush.bf16.msra.mxu0 %v2477
  %3284 = vmatpush.bf16.msra.mxu0 %v2473
  %3285 = vmatpush.bf16.msra.mxu0 %v2469
  %3286 = vmatpush.bf16.msra.mxu0 %v2465
  %3287 = vmatpush.bf16.msra.mxu0 %v2461
  %3288 = vmatpush.bf16.msra.mxu0 %v2457
  %3289 = vmatpush.bf16.msra.mxu0 %v2453
  %3290 = vmatpush.bf16.msra.mxu0 %v2449
  %3291 = vmatmul.bf16.gmra.mxu0 %v571
  %v3292 = vpop.f32.mrf.mxu0
  %v3293 = vadd.f32 %v3280, %v3292
  %v3294 = vpop.f32.mrf.mxu0
  %3295 = vdwg.mxu0
  %3296 = vmatpush.bf16.msra.mxu0 %v2509
  %3297 = vmatpush.bf16.msra.mxu0 %v2505
  %3298 = vmatpush.bf16.msra.mxu0 %v2501
  %3299 = vmatpush.bf16.msra.mxu0 %v2497
  %3300 = vmatpush.bf16.msra.mxu0 %v2493
  %3301 = vmatpush.bf16.msra.mxu0 %v2489
  %3302 = vmatpush.bf16.msra.mxu0 %v2485
  %3303 = vmatpush.bf16.msra.mxu0 %v2481
  %3304 = vmatmul.bf16.gmra.mxu0 %v572
  %v3305 = vpop.f32.mrf.mxu0
  %v3306 = vadd.f32 %v3293, %v3305
  %v3307 = vpop.f32.mrf.mxu0
  %3308 = vdwg.mxu0
  %3309 = vmatpush.bf16.msra.mxu0 %v2541
  %3310 = vmatpush.bf16.msra.mxu0 %v2537
  %3311 = vmatpush.bf16.msra.mxu0 %v2533
  %3312 = vmatpush.bf16.msra.mxu0 %v2529
  %3313 = vmatpush.bf16.msra.mxu0 %v2525
  %3314 = vmatpush.bf16.msra.mxu0 %v2521
  %3315 = vmatpush.bf16.msra.mxu0 %v2517
  %3316 = vmatpush.bf16.msra.mxu0 %v2513
  %3317 = vmatmul.bf16.gmra.mxu0 %v573
  %v3318 = vpop.f32.mrf.mxu0
  %v3319 = vadd.f32 %v3306, %v3318
  %v3320 = vpop.f32.mrf.mxu0
  %3321 = vdwg.mxu0
  %3322 = vmatpush.bf16.msra.mxu0 %v2573
  %3323 = vmatpush.bf16.msra.mxu0 %v2569
  %3324 = vmatpush.bf16.msra.mxu0 %v2565
  %3325 = vmatpush.bf16.msra.mxu0 %v2561
  %3326 = vmatpush.bf16.msra.mxu0 %v2557
  %3327 = vmatpush.bf16.msra.mxu0 %v2553
  %3328 = vmatpush.bf16.msra.mxu0 %v2549
  %3329 = vmatpush.bf16.msra.mxu0 %v2545
  %3330 = vmatmul.bf16.gmra.mxu0 %v574
  %v3331 = vpop.f32.mrf.mxu0
  %v3332 = vadd.f32 %v3319, %v3331
  %v3333 = vpop.f32.mrf.mxu0
  %3334 = vdwg.mxu0
  %3335 = vmatpush.bf16.msra.mxu0 %v2605
  %3336 = vmatpush.bf16.msra.mxu0 %v2601
  %3337 = vmatpush.bf16.msra.mxu0 %v2597
  %3338 = vmatpush.bf16.msra.mxu0 %v2593
  %3339 = vmatpush.bf16.msra.mxu0 %v2589
  %3340 = vmatpush.bf16.msra.mxu0 %v2585
  %3341 = vmatpush.bf16.msra.mxu0 %v2581
  %3342 = vmatpush.bf16.msra.mxu0 %v2577
  %3343 = vmatmul.bf16.gmra.mxu0 %v575
  %v3344 = vpop.f32.mrf.mxu0
  %v3345 = vadd.f32 %v3332, %v3344
  %v3346 = vpop.f32.mrf.mxu0
  %3347 = vdwg.mxu0
  %3348 = vmatpush.bf16.msra.mxu0 %v2637
  %3349 = vmatpush.bf16.msra.mxu0 %v2633
  %3350 = vmatpush.bf16.msra.mxu0 %v2629
  %3351 = vmatpush.bf16.msra.mxu0 %v2625
  %3352 = vmatpush.bf16.msra.mxu0 %v2621
  %3353 = vmatpush.bf16.msra.mxu0 %v2617
  %3354 = vmatpush.bf16.msra.mxu0 %v2613
  %3355 = vmatpush.bf16.msra.mxu0 %v2609
  %3356 = vmatmul.bf16.gmra.mxu0 %v576
  %v3357 = vpop.f32.mrf.mxu0
  %v3358 = vadd.f32 %v3345, %v3357
  %v3359 = vpop.f32.mrf.mxu0
  %3360 = vdwg.mxu0
  %3361 = vmatpush.bf16.msra.mxu0 %v2158
  %3362 = vmatpush.bf16.msra.mxu0 %v2154
  %3363 = vmatpush.bf16.msra.mxu0 %v2150
  %3364 = vmatpush.bf16.msra.mxu0 %v2146
  %3365 = vmatpush.bf16.msra.mxu0 %v2142
  %3366 = vmatpush.bf16.msra.mxu0 %v2138
  %3367 = vmatpush.bf16.msra.mxu0 %v2134
  %3368 = vmatpush.bf16.msra.mxu0 %v2130
  %3369 = vmatmul.bf16.gmra.mxu0 %v557
  %v3370 = vpop.f32.mrf.mxu0
  %v3371 = vadd.f32 %v545, %v3370
  %v3372 = vpop.f32.mrf.mxu0
  %3373 = vdwg.mxu0
  %3374 = vmatpush.bf16.msra.mxu0 %v2190
  %3375 = vmatpush.bf16.msra.mxu0 %v2186
  %3376 = vmatpush.bf16.msra.mxu0 %v2182
  %3377 = vmatpush.bf16.msra.mxu0 %v2178
  %3378 = vmatpush.bf16.msra.mxu0 %v2174
  %3379 = vmatpush.bf16.msra.mxu0 %v2170
  %3380 = vmatpush.bf16.msra.mxu0 %v2166
  %3381 = vmatpush.bf16.msra.mxu0 %v2162
  %3382 = vmatmul.bf16.gmra.mxu0 %v558
  %v3383 = vpop.f32.mrf.mxu0
  %v3384 = vadd.f32 %v3371, %v3383
  %v3385 = vpop.f32.mrf.mxu0
  %3386 = vdwg.mxu0
  %3387 = vmatpush.bf16.msra.mxu0 %v2222
  %3388 = vmatpush.bf16.msra.mxu0 %v2218
  %3389 = vmatpush.bf16.msra.mxu0 %v2214
  %3390 = vmatpush.bf16.msra.mxu0 %v2210
  %3391 = vmatpush.bf16.msra.mxu0 %v2206
  %3392 = vmatpush.bf16.msra.mxu0 %v2202
  %3393 = vmatpush.bf16.msra.mxu0 %v2198
  %3394 = vmatpush.bf16.msra.mxu0 %v2194
  %3395 = vmatmul.bf16.gmra.mxu0 %v559
  %v3396 = vpop.f32.mrf.mxu0
  %v3397 = vadd.f32 %v3384, %v3396
  %v3398 = vpop.f32.mrf.mxu0
  %3399 = vdwg.mxu0
  %3400 = vmatpush.bf16.msra.mxu0 %v2254
  %3401 = vmatpush.bf16.msra.mxu0 %v2250
  %3402 = vmatpush.bf16.msra.mxu0 %v2246
  %3403 = vmatpush.bf16.msra.mxu0 %v2242
  %3404 = vmatpush.bf16.msra.mxu0 %v2238
  %3405 = vmatpush.bf16.msra.mxu0 %v2234
  %3406 = vmatpush.bf16.msra.mxu0 %v2230
  %3407 = vmatpush.bf16.msra.mxu0 %v2226
  %3408 = vmatmul.bf16.gmra.mxu0 %v560
  %v3409 = vpop.f32.mrf.mxu0
  %v3410 = vadd.f32 %v3397, %v3409
  %v3411 = vpop.f32.mrf.mxu0
  %3412 = vdwg.mxu0
  %3413 = vmatpush.bf16.msra.mxu0 %v2286
  %3414 = vmatpush.bf16.msra.mxu0 %v2282
  %3415 = vmatpush.bf16.msra.mxu0 %v2278
  %3416 = vmatpush.bf16.msra.mxu0 %v2274
  %3417 = vmatpush.bf16.msra.mxu0 %v2270
  %3418 = vmatpush.bf16.msra.mxu0 %v2266
  %3419 = vmatpush.bf16.msra.mxu0 %v2262
  %3420 = vmatpush.bf16.msra.mxu0 %v2258
  %3421 = vmatmul.bf16.gmra.mxu0 %v561
  %v3422 = vpop.f32.mrf.mxu0
  %v3423 = vadd.f32 %v3410, %v3422
  %v3424 = vpop.f32.mrf.mxu0
  %3425 = vdwg.mxu0
  %3426 = vmatpush.bf16.msra.mxu0 %v2318
  %3427 = vmatpush.bf16.msra.mxu0 %v2314
  %3428 = vmatpush.bf16.msra.mxu0 %v2310
  %3429 = vmatpush.bf16.msra.mxu0 %v2306
  %3430 = vmatpush.bf16.msra.mxu0 %v2302
  %3431 = vmatpush.bf16.msra.mxu0 %v2298
  %3432 = vmatpush.bf16.msra.mxu0 %v2294
  %3433 = vmatpush.bf16.msra.mxu0 %v2290
  %3434 = vmatmul.bf16.gmra.mxu0 %v562
  %v3435 = vpop.f32.mrf.mxu0
  %v3436 = vadd.f32 %v3423, %v3435
  %v3437 = vpop.f32.mrf.mxu0
  %3438 = vdwg.mxu0
  %3439 = vmatpush.bf16.msra.mxu0 %v2350
  %3440 = vmatpush.bf16.msra.mxu0 %v2346
  %3441 = vmatpush.bf16.msra.mxu0 %v2342
  %3442 = vmatpush.bf16.msra.mxu0 %v2338
  %3443 = vmatpush.bf16.msra.mxu0 %v2334
  %3444 = vmatpush.bf16.msra.mxu0 %v2330
  %3445 = vmatpush.bf16.msra.mxu0 %v2326
  %3446 = vmatpush.bf16.msra.mxu0 %v2322
  %3447 = vmatmul.bf16.gmra.mxu0 %v563
  %v3448 = vpop.f32.mrf.mxu0
  %v3449 = vadd.f32 %v3436, %v3448
  %v3450 = vpop.f32.mrf.mxu0
  %3451 = vdwg.mxu0
  %3452 = vmatpush.bf16.msra.mxu0 %v2382
  %3453 = vmatpush.bf16.msra.mxu0 %v2378
  %3454 = vmatpush.bf16.msra.mxu0 %v2374
  %3455 = vmatpush.bf16.msra.mxu0 %v2370
  %3456 = vmatpush.bf16.msra.mxu0 %v2366
  %3457 = vmatpush.bf16.msra.mxu0 %v2362
  %3458 = vmatpush.bf16.msra.mxu0 %v2358
  %3459 = vmatpush.bf16.msra.mxu0 %v2354
  %3460 = vmatmul.bf16.gmra.mxu0 %v564
  %v3461 = vpop.f32.mrf.mxu0
  %v3462 = vadd.f32 %v3449, %v3461
  %v3463 = vpop.f32.mrf.mxu0
  %3464 = vdwg.mxu0
  %3465 = vmatpush.bf16.msra.mxu0 %v2414
  %3466 = vmatpush.bf16.msra.mxu0 %v2410
  %3467 = vmatpush.bf16.msra.mxu0 %v2406
  %3468 = vmatpush.bf16.msra.mxu0 %v2402
  %3469 = vmatpush.bf16.msra.mxu0 %v2398
  %3470 = vmatpush.bf16.msra.mxu0 %v2394
  %3471 = vmatpush.bf16.msra.mxu0 %v2390
  %3472 = vmatpush.bf16.msra.mxu0 %v2386
  %3473 = vmatmul.bf16.gmra.mxu0 %v569
  %v3474 = vpop.f32.mrf.mxu0
  %v3475 = vadd.f32 %v3462, %v3474
  %v3476 = vpop.f32.mrf.mxu0
  %3477 = vdwg.mxu0
  %3478 = vmatpush.bf16.msra.mxu0 %v2446
  %3479 = vmatpush.bf16.msra.mxu0 %v2442
  %3480 = vmatpush.bf16.msra.mxu0 %v2438
  %3481 = vmatpush.bf16.msra.mxu0 %v2434
  %3482 = vmatpush.bf16.msra.mxu0 %v2430
  %3483 = vmatpush.bf16.msra.mxu0 %v2426
  %3484 = vmatpush.bf16.msra.mxu0 %v2422
  %3485 = vmatpush.bf16.msra.mxu0 %v2418
  %3486 = vmatmul.bf16.gmra.mxu0 %v570
  %v3487 = vpop.f32.mrf.mxu0
  %v3488 = vadd.f32 %v3475, %v3487
  %v3489 = vpop.f32.mrf.mxu0
  %3490 = vdwg.mxu0
  %3491 = vmatpush.bf16.msra.mxu0 %v2478
  %3492 = vmatpush.bf16.msra.mxu0 %v2474
  %3493 = vmatpush.bf16.msra.mxu0 %v2470
  %3494 = vmatpush.bf16.msra.mxu0 %v2466
  %3495 = vmatpush.bf16.msra.mxu0 %v2462
  %3496 = vmatpush.bf16.msra.mxu0 %v2458
  %3497 = vmatpush.bf16.msra.mxu0 %v2454
  %3498 = vmatpush.bf16.msra.mxu0 %v2450
  %3499 = vmatmul.bf16.gmra.mxu0 %v571
  %v3500 = vpop.f32.mrf.mxu0
  %v3501 = vadd.f32 %v3488, %v3500
  %v3502 = vpop.f32.mrf.mxu0
  %3503 = vdwg.mxu0
  %3504 = vmatpush.bf16.msra.mxu0 %v2510
  %3505 = vmatpush.bf16.msra.mxu0 %v2506
  %3506 = vmatpush.bf16.msra.mxu0 %v2502
  %3507 = vmatpush.bf16.msra.mxu0 %v2498
  %3508 = vmatpush.bf16.msra.mxu0 %v2494
  %3509 = vmatpush.bf16.msra.mxu0 %v2490
  %3510 = vmatpush.bf16.msra.mxu0 %v2486
  %3511 = vmatpush.bf16.msra.mxu0 %v2482
  %3512 = vmatmul.bf16.gmra.mxu0 %v572
  %v3513 = vpop.f32.mrf.mxu0
  %v3514 = vadd.f32 %v3501, %v3513
  %v3515 = vpop.f32.mrf.mxu0
  %3516 = vdwg.mxu0
  %3517 = vmatpush.bf16.msra.mxu0 %v2542
  %3518 = vmatpush.bf16.msra.mxu0 %v2538
  %3519 = vmatpush.bf16.msra.mxu0 %v2534
  %3520 = vmatpush.bf16.msra.mxu0 %v2530
  %3521 = vmatpush.bf16.msra.mxu0 %v2526
  %3522 = vmatpush.bf16.msra.mxu0 %v2522
  %3523 = vmatpush.bf16.msra.mxu0 %v2518
  %3524 = vmatpush.bf16.msra.mxu0 %v2514
  %3525 = vmatmul.bf16.gmra.mxu0 %v573
  %v3526 = vpop.f32.mrf.mxu0
  %v3527 = vadd.f32 %v3514, %v3526
  %v3528 = vpop.f32.mrf.mxu0
  %3529 = vdwg.mxu0
  %3530 = vmatpush.bf16.msra.mxu0 %v2574
  %3531 = vmatpush.bf16.msra.mxu0 %v2570
  %3532 = vmatpush.bf16.msra.mxu0 %v2566
  %3533 = vmatpush.bf16.msra.mxu0 %v2562
  %3534 = vmatpush.bf16.msra.mxu0 %v2558
  %3535 = vmatpush.bf16.msra.mxu0 %v2554
  %3536 = vmatpush.bf16.msra.mxu0 %v2550
  %3537 = vmatpush.bf16.msra.mxu0 %v2546
  %3538 = vmatmul.bf16.gmra.mxu0 %v574
  %v3539 = vpop.f32.mrf.mxu0
  %v3540 = vadd.f32 %v3527, %v3539
  %v3541 = vpop.f32.mrf.mxu0
  %3542 = vdwg.mxu0
  %3543 = vmatpush.bf16.msra.mxu0 %v2606
  %3544 = vmatpush.bf16.msra.mxu0 %v2602
  %3545 = vmatpush.bf16.msra.mxu0 %v2598
  %3546 = vmatpush.bf16.msra.mxu0 %v2594
  %3547 = vmatpush.bf16.msra.mxu0 %v2590
  %3548 = vmatpush.bf16.msra.mxu0 %v2586
  %3549 = vmatpush.bf16.msra.mxu0 %v2582
  %3550 = vmatpush.bf16.msra.mxu0 %v2578
  %3551 = vmatmul.bf16.gmra.mxu0 %v575
  %v3552 = vpop.f32.mrf.mxu0
  %v3553 = vadd.f32 %v3540, %v3552
  %v3554 = vpop.f32.mrf.mxu0
  %3555 = vdwg.mxu0
  %3556 = vmatpush.bf16.msra.mxu0 %v2638
  %3557 = vmatpush.bf16.msra.mxu0 %v2634
  %3558 = vmatpush.bf16.msra.mxu0 %v2630
  %3559 = vmatpush.bf16.msra.mxu0 %v2626
  %3560 = vmatpush.bf16.msra.mxu0 %v2622
  %3561 = vmatpush.bf16.msra.mxu0 %v2618
  %3562 = vmatpush.bf16.msra.mxu0 %v2614
  %3563 = vmatpush.bf16.msra.mxu0 %v2610
  %3564 = vmatmul.bf16.gmra.mxu0 %v576
  %v3565 = vpop.f32.mrf.mxu0
  %v3566 = vadd.f32 %v3553, %v3565
  %v3567 = vpop.f32.mrf.mxu0
  %3568 = vdwg.mxu0
  %3569 = vmatpush.bf16.msra.mxu0 %v2159
  %3570 = vmatpush.bf16.msra.mxu0 %v2155
  %3571 = vmatpush.bf16.msra.mxu0 %v2151
  %3572 = vmatpush.bf16.msra.mxu0 %v2147
  %3573 = vmatpush.bf16.msra.mxu0 %v2143
  %3574 = vmatpush.bf16.msra.mxu0 %v2139
  %3575 = vmatpush.bf16.msra.mxu0 %v2135
  %3576 = vmatpush.bf16.msra.mxu0 %v2131
  %3577 = vmatmul.bf16.gmra.mxu0 %v557
  %v3578 = vpop.f32.mrf.mxu0
  %v3579 = vadd.f32 %v546, %v3578
  %v3580 = vpop.f32.mrf.mxu0
  %3581 = vdwg.mxu0
  %3582 = vmatpush.bf16.msra.mxu0 %v2191
  %3583 = vmatpush.bf16.msra.mxu0 %v2187
  %3584 = vmatpush.bf16.msra.mxu0 %v2183
  %3585 = vmatpush.bf16.msra.mxu0 %v2179
  %3586 = vmatpush.bf16.msra.mxu0 %v2175
  %3587 = vmatpush.bf16.msra.mxu0 %v2171
  %3588 = vmatpush.bf16.msra.mxu0 %v2167
  %3589 = vmatpush.bf16.msra.mxu0 %v2163
  %3590 = vmatmul.bf16.gmra.mxu0 %v558
  %v3591 = vpop.f32.mrf.mxu0
  %v3592 = vadd.f32 %v3579, %v3591
  %v3593 = vpop.f32.mrf.mxu0
  %3594 = vdwg.mxu0
  %3595 = vmatpush.bf16.msra.mxu0 %v2223
  %3596 = vmatpush.bf16.msra.mxu0 %v2219
  %3597 = vmatpush.bf16.msra.mxu0 %v2215
  %3598 = vmatpush.bf16.msra.mxu0 %v2211
  %3599 = vmatpush.bf16.msra.mxu0 %v2207
  %3600 = vmatpush.bf16.msra.mxu0 %v2203
  %3601 = vmatpush.bf16.msra.mxu0 %v2199
  %3602 = vmatpush.bf16.msra.mxu0 %v2195
  %3603 = vmatmul.bf16.gmra.mxu0 %v559
  %v3604 = vpop.f32.mrf.mxu0
  %v3605 = vadd.f32 %v3592, %v3604
  %v3606 = vpop.f32.mrf.mxu0
  %3607 = vdwg.mxu0
  %3608 = vmatpush.bf16.msra.mxu0 %v2255
  %3609 = vmatpush.bf16.msra.mxu0 %v2251
  %3610 = vmatpush.bf16.msra.mxu0 %v2247
  %3611 = vmatpush.bf16.msra.mxu0 %v2243
  %3612 = vmatpush.bf16.msra.mxu0 %v2239
  %3613 = vmatpush.bf16.msra.mxu0 %v2235
  %3614 = vmatpush.bf16.msra.mxu0 %v2231
  %3615 = vmatpush.bf16.msra.mxu0 %v2227
  %3616 = vmatmul.bf16.gmra.mxu0 %v560
  %v3617 = vpop.f32.mrf.mxu0
  %v3618 = vadd.f32 %v3605, %v3617
  %v3619 = vpop.f32.mrf.mxu0
  %3620 = vdwg.mxu0
  %3621 = vmatpush.bf16.msra.mxu0 %v2287
  %3622 = vmatpush.bf16.msra.mxu0 %v2283
  %3623 = vmatpush.bf16.msra.mxu0 %v2279
  %3624 = vmatpush.bf16.msra.mxu0 %v2275
  %3625 = vmatpush.bf16.msra.mxu0 %v2271
  %3626 = vmatpush.bf16.msra.mxu0 %v2267
  %3627 = vmatpush.bf16.msra.mxu0 %v2263
  %3628 = vmatpush.bf16.msra.mxu0 %v2259
  %3629 = vmatmul.bf16.gmra.mxu0 %v561
  %v3630 = vpop.f32.mrf.mxu0
  %v3631 = vadd.f32 %v3618, %v3630
  %v3632 = vpop.f32.mrf.mxu0
  %3633 = vdwg.mxu0
  %3634 = vmatpush.bf16.msra.mxu0 %v2319
  %3635 = vmatpush.bf16.msra.mxu0 %v2315
  %3636 = vmatpush.bf16.msra.mxu0 %v2311
  %3637 = vmatpush.bf16.msra.mxu0 %v2307
  %3638 = vmatpush.bf16.msra.mxu0 %v2303
  %3639 = vmatpush.bf16.msra.mxu0 %v2299
  %3640 = vmatpush.bf16.msra.mxu0 %v2295
  %3641 = vmatpush.bf16.msra.mxu0 %v2291
  %3642 = vmatmul.bf16.gmra.mxu0 %v562
  %v3643 = vpop.f32.mrf.mxu0
  %v3644 = vadd.f32 %v3631, %v3643
  %v3645 = vpop.f32.mrf.mxu0
  %3646 = vdwg.mxu0
  %3647 = vmatpush.bf16.msra.mxu0 %v2351
  %3648 = vmatpush.bf16.msra.mxu0 %v2347
  %3649 = vmatpush.bf16.msra.mxu0 %v2343
  %3650 = vmatpush.bf16.msra.mxu0 %v2339
  %3651 = vmatpush.bf16.msra.mxu0 %v2335
  %3652 = vmatpush.bf16.msra.mxu0 %v2331
  %3653 = vmatpush.bf16.msra.mxu0 %v2327
  %3654 = vmatpush.bf16.msra.mxu0 %v2323
  %3655 = vmatmul.bf16.gmra.mxu0 %v563
  %v3656 = vpop.f32.mrf.mxu0
  %v3657 = vadd.f32 %v3644, %v3656
  %v3658 = vpop.f32.mrf.mxu0
  %3659 = vdwg.mxu0
  %3660 = vmatpush.bf16.msra.mxu0 %v2383
  %3661 = vmatpush.bf16.msra.mxu0 %v2379
  %3662 = vmatpush.bf16.msra.mxu0 %v2375
  %3663 = vmatpush.bf16.msra.mxu0 %v2371
  %3664 = vmatpush.bf16.msra.mxu0 %v2367
  %3665 = vmatpush.bf16.msra.mxu0 %v2363
  %3666 = vmatpush.bf16.msra.mxu0 %v2359
  %3667 = vmatpush.bf16.msra.mxu0 %v2355
  %3668 = vmatmul.bf16.gmra.mxu0 %v564
  %v3669 = vpop.f32.mrf.mxu0
  %v3670 = vadd.f32 %v3657, %v3669
  %v3671 = vpop.f32.mrf.mxu0
  %3672 = vdwg.mxu0
  %3673 = vmatpush.bf16.msra.mxu0 %v2415
  %3674 = vmatpush.bf16.msra.mxu0 %v2411
  %3675 = vmatpush.bf16.msra.mxu0 %v2407
  %3676 = vmatpush.bf16.msra.mxu0 %v2403
  %3677 = vmatpush.bf16.msra.mxu0 %v2399
  %3678 = vmatpush.bf16.msra.mxu0 %v2395
  %3679 = vmatpush.bf16.msra.mxu0 %v2391
  %3680 = vmatpush.bf16.msra.mxu0 %v2387
  %3681 = vmatmul.bf16.gmra.mxu0 %v569
  %v3682 = vpop.f32.mrf.mxu0
  %v3683 = vadd.f32 %v3670, %v3682
  %v3684 = vpop.f32.mrf.mxu0
  %3685 = vdwg.mxu0
  %3686 = vmatpush.bf16.msra.mxu0 %v2447
  %3687 = vmatpush.bf16.msra.mxu0 %v2443
  %3688 = vmatpush.bf16.msra.mxu0 %v2439
  %3689 = vmatpush.bf16.msra.mxu0 %v2435
  %3690 = vmatpush.bf16.msra.mxu0 %v2431
  %3691 = vmatpush.bf16.msra.mxu0 %v2427
  %3692 = vmatpush.bf16.msra.mxu0 %v2423
  %3693 = vmatpush.bf16.msra.mxu0 %v2419
  %3694 = vmatmul.bf16.gmra.mxu0 %v570
  %v3695 = vpop.f32.mrf.mxu0
  %v3696 = vadd.f32 %v3683, %v3695
  %v3697 = vpop.f32.mrf.mxu0
  %3698 = vdwg.mxu0
  %3699 = vmatpush.bf16.msra.mxu0 %v2479
  %3700 = vmatpush.bf16.msra.mxu0 %v2475
  %3701 = vmatpush.bf16.msra.mxu0 %v2471
  %3702 = vmatpush.bf16.msra.mxu0 %v2467
  %3703 = vmatpush.bf16.msra.mxu0 %v2463
  %3704 = vmatpush.bf16.msra.mxu0 %v2459
  %3705 = vmatpush.bf16.msra.mxu0 %v2455
  %3706 = vmatpush.bf16.msra.mxu0 %v2451
  %3707 = vmatmul.bf16.gmra.mxu0 %v571
  %v3708 = vpop.f32.mrf.mxu0
  %v3709 = vadd.f32 %v3696, %v3708
  %v3710 = vpop.f32.mrf.mxu0
  %3711 = vdwg.mxu0
  %3712 = vmatpush.bf16.msra.mxu0 %v2511
  %3713 = vmatpush.bf16.msra.mxu0 %v2507
  %3714 = vmatpush.bf16.msra.mxu0 %v2503
  %3715 = vmatpush.bf16.msra.mxu0 %v2499
  %3716 = vmatpush.bf16.msra.mxu0 %v2495
  %3717 = vmatpush.bf16.msra.mxu0 %v2491
  %3718 = vmatpush.bf16.msra.mxu0 %v2487
  %3719 = vmatpush.bf16.msra.mxu0 %v2483
  %3720 = vmatmul.bf16.gmra.mxu0 %v572
  %v3721 = vpop.f32.mrf.mxu0
  %v3722 = vadd.f32 %v3709, %v3721
  %v3723 = vpop.f32.mrf.mxu0
  %3724 = vdwg.mxu0
  %3725 = vmatpush.bf16.msra.mxu0 %v2543
  %3726 = vmatpush.bf16.msra.mxu0 %v2539
  %3727 = vmatpush.bf16.msra.mxu0 %v2535
  %3728 = vmatpush.bf16.msra.mxu0 %v2531
  %3729 = vmatpush.bf16.msra.mxu0 %v2527
  %3730 = vmatpush.bf16.msra.mxu0 %v2523
  %3731 = vmatpush.bf16.msra.mxu0 %v2519
  %3732 = vmatpush.bf16.msra.mxu0 %v2515
  %3733 = vmatmul.bf16.gmra.mxu0 %v573
  %v3734 = vpop.f32.mrf.mxu0
  %v3735 = vadd.f32 %v3722, %v3734
  %v3736 = vpop.f32.mrf.mxu0
  %3737 = vdwg.mxu0
  %3738 = vmatpush.bf16.msra.mxu0 %v2575
  %3739 = vmatpush.bf16.msra.mxu0 %v2571
  %3740 = vmatpush.bf16.msra.mxu0 %v2567
  %3741 = vmatpush.bf16.msra.mxu0 %v2563
  %3742 = vmatpush.bf16.msra.mxu0 %v2559
  %3743 = vmatpush.bf16.msra.mxu0 %v2555
  %3744 = vmatpush.bf16.msra.mxu0 %v2551
  %3745 = vmatpush.bf16.msra.mxu0 %v2547
  %3746 = vmatmul.bf16.gmra.mxu0 %v574
  %v3747 = vpop.f32.mrf.mxu0
  %v3748 = vadd.f32 %v3735, %v3747
  %v3749 = vpop.f32.mrf.mxu0
  %3750 = vdwg.mxu0
  %3751 = vmatpush.bf16.msra.mxu0 %v2607
  %3752 = vmatpush.bf16.msra.mxu0 %v2603
  %3753 = vmatpush.bf16.msra.mxu0 %v2599
  %3754 = vmatpush.bf16.msra.mxu0 %v2595
  %3755 = vmatpush.bf16.msra.mxu0 %v2591
  %3756 = vmatpush.bf16.msra.mxu0 %v2587
  %3757 = vmatpush.bf16.msra.mxu0 %v2583
  %3758 = vmatpush.bf16.msra.mxu0 %v2579
  %3759 = vmatmul.bf16.gmra.mxu0 %v575
  %v3760 = vpop.f32.mrf.mxu0
  %v3761 = vadd.f32 %v3748, %v3760
  %v3762 = vpop.f32.mrf.mxu0
  %3763 = vdwg.mxu0
  %3764 = vmatpush.bf16.msra.mxu0 %v2639
  %3765 = vmatpush.bf16.msra.mxu0 %v2635
  %3766 = vmatpush.bf16.msra.mxu0 %v2631
  %3767 = vmatpush.bf16.msra.mxu0 %v2627
  %3768 = vmatpush.bf16.msra.mxu0 %v2623
  %3769 = vmatpush.bf16.msra.mxu0 %v2619
  %3770 = vmatpush.bf16.msra.mxu0 %v2615
  %3771 = vmatpush.bf16.msra.mxu0 %v2611
  %3772 = vmatmul.bf16.gmra.mxu0 %v576
  %v3773 = vpop.f32.mrf.mxu0
  %v3774 = vadd.f32 %v3761, %v3773
  %v3775 = vpop.f32.mrf.mxu0
  %3776 = vdwg.mxu0
  %3777 = vmatpush.bf16.msra.mxu0 %v2160
  %3778 = vmatpush.bf16.msra.mxu0 %v2156
  %3779 = vmatpush.bf16.msra.mxu0 %v2152
  %3780 = vmatpush.bf16.msra.mxu0 %v2148
  %3781 = vmatpush.bf16.msra.mxu0 %v2144
  %3782 = vmatpush.bf16.msra.mxu0 %v2140
  %3783 = vmatpush.bf16.msra.mxu0 %v2136
  %3784 = vmatpush.bf16.msra.mxu0 %v2132
  %3785 = vmatmul.bf16.gmra.mxu0 %v557
  %v3786 = vpop.f32.mrf.mxu0
  %v3787 = vadd.f32 %v547, %v3786
  %v3788 = vpop.f32.mrf.mxu0
  %3789 = vdwg.mxu0
  %3790 = vmatpush.bf16.msra.mxu0 %v2192
  %3791 = vmatpush.bf16.msra.mxu0 %v2188
  %3792 = vmatpush.bf16.msra.mxu0 %v2184
  %3793 = vmatpush.bf16.msra.mxu0 %v2180
  %3794 = vmatpush.bf16.msra.mxu0 %v2176
  %3795 = vmatpush.bf16.msra.mxu0 %v2172
  %3796 = vmatpush.bf16.msra.mxu0 %v2168
  %3797 = vmatpush.bf16.msra.mxu0 %v2164
  %3798 = vmatmul.bf16.gmra.mxu0 %v558
  %v3799 = vpop.f32.mrf.mxu0
  %v3800 = vadd.f32 %v3787, %v3799
  %v3801 = vpop.f32.mrf.mxu0
  %3802 = vdwg.mxu0
  %3803 = vmatpush.bf16.msra.mxu0 %v2224
  %3804 = vmatpush.bf16.msra.mxu0 %v2220
  %3805 = vmatpush.bf16.msra.mxu0 %v2216
  %3806 = vmatpush.bf16.msra.mxu0 %v2212
  %3807 = vmatpush.bf16.msra.mxu0 %v2208
  %3808 = vmatpush.bf16.msra.mxu0 %v2204
  %3809 = vmatpush.bf16.msra.mxu0 %v2200
  %3810 = vmatpush.bf16.msra.mxu0 %v2196
  %3811 = vmatmul.bf16.gmra.mxu0 %v559
  %v3812 = vpop.f32.mrf.mxu0
  %v3813 = vadd.f32 %v3800, %v3812
  %v3814 = vpop.f32.mrf.mxu0
  %3815 = vdwg.mxu0
  %3816 = vmatpush.bf16.msra.mxu0 %v2256
  %3817 = vmatpush.bf16.msra.mxu0 %v2252
  %3818 = vmatpush.bf16.msra.mxu0 %v2248
  %3819 = vmatpush.bf16.msra.mxu0 %v2244
  %3820 = vmatpush.bf16.msra.mxu0 %v2240
  %3821 = vmatpush.bf16.msra.mxu0 %v2236
  %3822 = vmatpush.bf16.msra.mxu0 %v2232
  %3823 = vmatpush.bf16.msra.mxu0 %v2228
  %3824 = vmatmul.bf16.gmra.mxu0 %v560
  %v3825 = vpop.f32.mrf.mxu0
  %v3826 = vadd.f32 %v3813, %v3825
  %v3827 = vpop.f32.mrf.mxu0
  %3828 = vdwg.mxu0
  %3829 = vmatpush.bf16.msra.mxu0 %v2288
  %3830 = vmatpush.bf16.msra.mxu0 %v2284
  %3831 = vmatpush.bf16.msra.mxu0 %v2280
  %3832 = vmatpush.bf16.msra.mxu0 %v2276
  %3833 = vmatpush.bf16.msra.mxu0 %v2272
  %3834 = vmatpush.bf16.msra.mxu0 %v2268
  %3835 = vmatpush.bf16.msra.mxu0 %v2264
  %3836 = vmatpush.bf16.msra.mxu0 %v2260
  %3837 = vmatmul.bf16.gmra.mxu0 %v561
  %v3838 = vpop.f32.mrf.mxu0
  %v3839 = vadd.f32 %v3826, %v3838
  %v3840 = vpop.f32.mrf.mxu0
  %3841 = vdwg.mxu0
  %3842 = vmatpush.bf16.msra.mxu0 %v2320
  %3843 = vmatpush.bf16.msra.mxu0 %v2316
  %3844 = vmatpush.bf16.msra.mxu0 %v2312
  %3845 = vmatpush.bf16.msra.mxu0 %v2308
  %3846 = vmatpush.bf16.msra.mxu0 %v2304
  %3847 = vmatpush.bf16.msra.mxu0 %v2300
  %3848 = vmatpush.bf16.msra.mxu0 %v2296
  %3849 = vmatpush.bf16.msra.mxu0 %v2292
  %3850 = vmatmul.bf16.gmra.mxu0 %v562
  %v3851 = vpop.f32.mrf.mxu0
  %v3852 = vadd.f32 %v3839, %v3851
  %v3853 = vpop.f32.mrf.mxu0
  %3854 = vdwg.mxu0
  %3855 = vmatpush.bf16.msra.mxu0 %v2352
  %3856 = vmatpush.bf16.msra.mxu0 %v2348
  %3857 = vmatpush.bf16.msra.mxu0 %v2344
  %3858 = vmatpush.bf16.msra.mxu0 %v2340
  %3859 = vmatpush.bf16.msra.mxu0 %v2336
  %3860 = vmatpush.bf16.msra.mxu0 %v2332
  %3861 = vmatpush.bf16.msra.mxu0 %v2328
  %3862 = vmatpush.bf16.msra.mxu0 %v2324
  %3863 = vmatmul.bf16.gmra.mxu0 %v563
  %v3864 = vpop.f32.mrf.mxu0
  %v3865 = vadd.f32 %v3852, %v3864
  %v3866 = vpop.f32.mrf.mxu0
  %3867 = vdwg.mxu0
  %3868 = vmatpush.bf16.msra.mxu0 %v2384
  %3869 = vmatpush.bf16.msra.mxu0 %v2380
  %3870 = vmatpush.bf16.msra.mxu0 %v2376
  %3871 = vmatpush.bf16.msra.mxu0 %v2372
  %3872 = vmatpush.bf16.msra.mxu0 %v2368
  %3873 = vmatpush.bf16.msra.mxu0 %v2364
  %3874 = vmatpush.bf16.msra.mxu0 %v2360
  %3875 = vmatpush.bf16.msra.mxu0 %v2356
  %3876 = vmatmul.bf16.gmra.mxu0 %v564
  %v3877 = vpop.f32.mrf.mxu0
  %v3878 = vadd.f32 %v3865, %v3877
  %v3879 = vpop.f32.mrf.mxu0
  %3880 = vdwg.mxu0
  %3881 = vmatpush.bf16.msra.mxu0 %v2416
  %3882 = vmatpush.bf16.msra.mxu0 %v2412
  %3883 = vmatpush.bf16.msra.mxu0 %v2408
  %3884 = vmatpush.bf16.msra.mxu0 %v2404
  %3885 = vmatpush.bf16.msra.mxu0 %v2400
  %3886 = vmatpush.bf16.msra.mxu0 %v2396
  %3887 = vmatpush.bf16.msra.mxu0 %v2392
  %3888 = vmatpush.bf16.msra.mxu0 %v2388
  %3889 = vmatmul.bf16.gmra.mxu0 %v569
  %v3890 = vpop.f32.mrf.mxu0
  %v3891 = vadd.f32 %v3878, %v3890
  %v3892 = vpop.f32.mrf.mxu0
  %3893 = vdwg.mxu0
  %3894 = vmatpush.bf16.msra.mxu0 %v2448
  %3895 = vmatpush.bf16.msra.mxu0 %v2444
  %3896 = vmatpush.bf16.msra.mxu0 %v2440
  %3897 = vmatpush.bf16.msra.mxu0 %v2436
  %3898 = vmatpush.bf16.msra.mxu0 %v2432
  %3899 = vmatpush.bf16.msra.mxu0 %v2428
  %3900 = vmatpush.bf16.msra.mxu0 %v2424
  %3901 = vmatpush.bf16.msra.mxu0 %v2420
  %3902 = vmatmul.bf16.gmra.mxu0 %v570
  %v3903 = vpop.f32.mrf.mxu0
  %v3904 = vadd.f32 %v3891, %v3903
  %v3905 = vpop.f32.mrf.mxu0
  %3906 = vdwg.mxu0
  %3907 = vmatpush.bf16.msra.mxu0 %v2480
  %3908 = vmatpush.bf16.msra.mxu0 %v2476
  %3909 = vmatpush.bf16.msra.mxu0 %v2472
  %3910 = vmatpush.bf16.msra.mxu0 %v2468
  %3911 = vmatpush.bf16.msra.mxu0 %v2464
  %3912 = vmatpush.bf16.msra.mxu0 %v2460
  %3913 = vmatpush.bf16.msra.mxu0 %v2456
  %3914 = vmatpush.bf16.msra.mxu0 %v2452
  %3915 = vmatmul.bf16.gmra.mxu0 %v571
  %v3916 = vpop.f32.mrf.mxu0
  %v3917 = vadd.f32 %v3904, %v3916
  %v3918 = vpop.f32.mrf.mxu0
  %3919 = vdwg.mxu0
  %3920 = vmatpush.bf16.msra.mxu0 %v2512
  %3921 = vmatpush.bf16.msra.mxu0 %v2508
  %3922 = vmatpush.bf16.msra.mxu0 %v2504
  %3923 = vmatpush.bf16.msra.mxu0 %v2500
  %3924 = vmatpush.bf16.msra.mxu0 %v2496
  %3925 = vmatpush.bf16.msra.mxu0 %v2492
  %3926 = vmatpush.bf16.msra.mxu0 %v2488
  %3927 = vmatpush.bf16.msra.mxu0 %v2484
  %3928 = vmatmul.bf16.gmra.mxu0 %v572
  %v3929 = vpop.f32.mrf.mxu0
  %v3930 = vadd.f32 %v3917, %v3929
  %v3931 = vpop.f32.mrf.mxu0
  %3932 = vdwg.mxu0
  %3933 = vmatpush.bf16.msra.mxu0 %v2544
  %3934 = vmatpush.bf16.msra.mxu0 %v2540
  %3935 = vmatpush.bf16.msra.mxu0 %v2536
  %3936 = vmatpush.bf16.msra.mxu0 %v2532
  %3937 = vmatpush.bf16.msra.mxu0 %v2528
  %3938 = vmatpush.bf16.msra.mxu0 %v2524
  %3939 = vmatpush.bf16.msra.mxu0 %v2520
  %3940 = vmatpush.bf16.msra.mxu0 %v2516
  %3941 = vmatmul.bf16.gmra.mxu0 %v573
  %v3942 = vpop.f32.mrf.mxu0
  %v3943 = vadd.f32 %v3930, %v3942
  %v3944 = vpop.f32.mrf.mxu0
  %3945 = vdwg.mxu0
  %3946 = vmatpush.bf16.msra.mxu0 %v2576
  %3947 = vmatpush.bf16.msra.mxu0 %v2572
  %3948 = vmatpush.bf16.msra.mxu0 %v2568
  %3949 = vmatpush.bf16.msra.mxu0 %v2564
  %3950 = vmatpush.bf16.msra.mxu0 %v2560
  %3951 = vmatpush.bf16.msra.mxu0 %v2556
  %3952 = vmatpush.bf16.msra.mxu0 %v2552
  %3953 = vmatpush.bf16.msra.mxu0 %v2548
  %3954 = vmatmul.bf16.gmra.mxu0 %v574
  %v3955 = vpop.f32.mrf.mxu0
  %v3956 = vadd.f32 %v3943, %v3955
  %v3957 = vpop.f32.mrf.mxu0
  %3958 = vdwg.mxu0
  %3959 = vmatpush.bf16.msra.mxu0 %v2608
  %3960 = vmatpush.bf16.msra.mxu0 %v2604
  %3961 = vmatpush.bf16.msra.mxu0 %v2600
  %3962 = vmatpush.bf16.msra.mxu0 %v2596
  %3963 = vmatpush.bf16.msra.mxu0 %v2592
  %3964 = vmatpush.bf16.msra.mxu0 %v2588
  %3965 = vmatpush.bf16.msra.mxu0 %v2584
  %3966 = vmatpush.bf16.msra.mxu0 %v2580
  %3967 = vmatmul.bf16.gmra.mxu0 %v575
  %v3968 = vpop.f32.mrf.mxu0
  %v3969 = vadd.f32 %v3956, %v3968
  %v3970 = vpop.f32.mrf.mxu0
  %3971 = vdwg.mxu0
  %3972 = vmatpush.bf16.msra.mxu0 %v2640
  %3973 = vmatpush.bf16.msra.mxu0 %v2636
  %3974 = vmatpush.bf16.msra.mxu0 %v2632
  %3975 = vmatpush.bf16.msra.mxu0 %v2628
  %3976 = vmatpush.bf16.msra.mxu0 %v2624
  %3977 = vmatpush.bf16.msra.mxu0 %v2620
  %3978 = vmatpush.bf16.msra.mxu0 %v2616
  %3979 = vmatpush.bf16.msra.mxu0 %v2612
  %3980 = vmatmul.bf16.gmra.mxu0 %v576
  %v3981 = vpop.f32.mrf.mxu0
  %v3982 = vadd.f32 %v3969, %v3981
  %v3983 = vpop.f32.mrf.mxu0
  %3984 = vdwg.mxu0
  %v3985 = vmax.f32 %v3358, 0.0
  %v3986 = vmax.f32 %v3566, 0.0
  %v3987 = vmax.f32 %v3774, 0.0
  %v3988 = vmax.f32 %v3982, 0.0
  %v3989 = vpack.c.bf16 %v3985, %v3985
  %v3990 = vpack.c.bf16 %v3986, %v3986
  %v3991 = vpack.c.bf16 %v3987, %v3987
  %v3992 = vpack.c.bf16 %v3988, %v3988
  %v3993 = vld [vmem:[%s3] sm:$0xff]
  %v3994 = vld [vmem:[%s3 + $0x8] sm:$0xff]
  %v3995 = vld [vmem:[%s3 + $0x10] sm:$0xff]
  %v3996 = vld [vmem:[%s3 + $0x18] sm:$0xff]
  %v3997 = vld [vmem:[%s3 + $0x20] sm:$0xff]
  %v3998 = vld [vmem:[%s3 + $0x28] sm:$0xff]
  %v3999 = vld [vmem:[%s3 + $0x30] sm:$0xff]
  %v4000 = vld [vmem:[%s3 + $0x38] sm:$0xff]
  %v4001 = vld [vmem:[%s3 + $0x40] sm:$0xff]
  %v4002 = vld [vmem:[%s3 + $0x48] sm:$0xff]
  %v4003 = vld [vmem:[%s3 + $0x50] sm:$0xff]
  %v4004 = vld [vmem:[%s3 + $0x58] sm:$0xff]
  %v4005 = vld [vmem:[%s3 + $0x60] sm:$0xff]
  %v4006 = vld [vmem:[%s3 + $0x68] sm:$0xff]
  %v4007 = vld [vmem:[%s3 + $0x70] sm:$0xff]
  %v4008 = vld [vmem:[%s3 + $0x78] sm:$0xff]
  %v4009 = vld [vmem:[%s3 + $0x80] sm:$0xff]
  %v4010 = vld [vmem:[%s3 + $0x88] sm:$0xff]
  %v4011 = vld [vmem:[%s3 + $0x90] sm:$0xff]
  %v4012 = vld [vmem:[%s3 + $0x98] sm:$0xff]
  %v4013 = vld [vmem:[%s3 + $0xa0] sm:$0xff]
  %v4014 = vld [vmem:[%s3 + $0xa8] sm:$0xff]
  %v4015 = vld [vmem:[%s3 + $0xb0] sm:$0xff]
  %v4016 = vld [vmem:[%s3 + $0xb8] sm:$0xff]
  %v4017 = vld [vmem:[%s3 + $0xc0] sm:$0xff]
  %v4018 = vld [vmem:[%s3 + $0xc8] sm:$0xff]
  %v4019 = vld [vmem:[%s3 + $0xd0] sm:$0xff]
  %v4020 = vld [vmem:[%s3 + $0xd8] sm:$0xff]
  %v4021 = vld [vmem:[%s3 + $0xe0] sm:$0xff]
  %v4022 = vld [vmem:[%s3 + $0xe8] sm:$0xff]
  %v4023 = vld [vmem:[%s3 + $0xf0] sm:$0xff]
  %v4024 = vld [vmem:[%s3 + $0xf8] sm:$0xff]
  %v4025 = vld [vmem:[%s3 + $0x100] sm:$0xff]
  %v4026 = vld [vmem:[%s3 + $0x108] sm:$0xff]
  %v4027 = vld [vmem:[%s3 + $0x110] sm:$0xff]
  %v4028 = vld [vmem:[%s3 + $0x118] sm:$0xff]
  %v4029 = vld [vmem:[%s3 + $0x120] sm:$0xff]
  %v4030 = vld [vmem:[%s3 + $0x128] sm:$0xff]
  %v4031 = vld [vmem:[%s3 + $0x130] sm:$0xff]
  %v4032 = vld [vmem:[%s3 + $0x138] sm:$0xff]
  %v4033 = vld [vmem:[%s3 + $0x140] sm:$0xff]
  %v4034 = vld [vmem:[%s3 + $0x148] sm:$0xff]
  %v4035 = vld [vmem:[%s3 + $0x150] sm:$0xff]
  %v4036 = vld [vmem:[%s3 + $0x158] sm:$0xff]
  %v4037 = vld [vmem:[%s3 + $0x160] sm:$0xff]
  %v4038 = vld [vmem:[%s3 + $0x168] sm:$0xff]
  %v4039 = vld [vmem:[%s3 + $0x170] sm:$0xff]
  %v4040 = vld [vmem:[%s3 + $0x178] sm:$0xff]
  %v4041 = vld [vmem:[%s3 + $0x180] sm:$0xff]
  %v4042 = vld [vmem:[%s3 + $0x188] sm:$0xff]
  %v4043 = vld [vmem:[%s3 + $0x190] sm:$0xff]
  %v4044 = vld [vmem:[%s3 + $0x198] sm:$0xff]
  %v4045 = vld [vmem:[%s3 + $0x1a0] sm:$0xff]
  %v4046 = vld [vmem:[%s3 + $0x1a8] sm:$0xff]
  %v4047 = vld [vmem:[%s3 + $0x1b0] sm:$0xff]
  %v4048 = vld [vmem:[%s3 + $0x1b8] sm:$0xff]
  %v4049 = vld [vmem:[%s3 + $0x1c0] sm:$0xff]
  %v4050 = vld [vmem:[%s3 + $0x1c8] sm:$0xff]
  %v4051 = vld [vmem:[%s3 + $0x1d0] sm:$0xff]
  %v4052 = vld [vmem:[%s3 + $0x1d8] sm:$0xff]
  %v4053 = vld [vmem:[%s3 + $0x1e0] sm:$0xff]
  %v4054 = vld [vmem:[%s3 + $0x1e8] sm:$0xff]
  %v4055 = vld [vmem:[%s3 + $0x1f0] sm:$0xff]
  %v4056 = vld [vmem:[%s3 + $0x1f8] sm:$0xff]
  %v4057 = vld [vmem:[%s4] sm:$0x3]
  %v4059 = vperm.slane %v4057, 0
  %v4060 = vperm.slane %v4057, 1
  %v4127 = vunpack.c.l.b16 %v3993
  %v4128 = vunpack.c.h.b16 %v3993
  %v4129 = vunpack.c.l.b16 %v3994
  %v4130 = vunpack.c.h.b16 %v3994
  %v4131 = vunpack.c.l.b16 %v3995
  %v4132 = vunpack.c.h.b16 %v3995
  %v4133 = vunpack.c.l.b16 %v3996
  %v4134 = vunpack.c.h.b16 %v3996
  %v4135 = vunpack.c.l.b16 %v3997
  %v4136 = vunpack.c.h.b16 %v3997
  %v4137 = vunpack.c.l.b16 %v3998
  %v4138 = vunpack.c.h.b16 %v3998
  %v4139 = vunpack.c.l.b16 %v3999
  %v4140 = vunpack.c.h.b16 %v3999
  %v4141 = vunpack.c.l.b16 %v4000
  %v4142 = vunpack.c.h.b16 %v4000
  %v4143 = vunpack.c.l.b16 %v4001
  %v4144 = vunpack.c.h.b16 %v4001
  %v4145 = vunpack.c.l.b16 %v4002
  %v4146 = vunpack.c.h.b16 %v4002
  %v4147 = vunpack.c.l.b16 %v4003
  %v4148 = vunpack.c.h.b16 %v4003
  %v4149 = vunpack.c.l.b16 %v4004
  %v4150 = vunpack.c.h.b16 %v4004
  %v4151 = vunpack.c.l.b16 %v4005
  %v4152 = vunpack.c.h.b16 %v4005
  %v4153 = vunpack.c.l.b16 %v4006
  %v4154 = vunpack.c.h.b16 %v4006
  %v4155 = vunpack.c.l.b16 %v4007
  %v4156 = vunpack.c.h.b16 %v4007
  %v4157 = vunpack.c.l.b16 %v4008
  %v4158 = vunpack.c.h.b16 %v4008
  %v4159 = vunpack.c.l.b16 %v4009
  %v4160 = vunpack.c.h.b16 %v4009
  %v4161 = vunpack.c.l.b16 %v4010
  %v4162 = vunpack.c.h.b16 %v4010
  %v4163 = vunpack.c.l.b16 %v4011
  %v4164 = vunpack.c.h.b16 %v4011
  %v4165 = vunpack.c.l.b16 %v4012
  %v4166 = vunpack.c.h.b16 %v4012
  %v4167 = vunpack.c.l.b16 %v4013
  %v4168 = vunpack.c.h.b16 %v4013
  %v4169 = vunpack.c.l.b16 %v4014
  %v4170 = vunpack.c.h.b16 %v4014
  %v4171 = vunpack.c.l.b16 %v4015
  %v4172 = vunpack.c.h.b16 %v4015
  %v4173 = vunpack.c.l.b16 %v4016
  %v4174 = vunpack.c.h.b16 %v4016
  %v4175 = vunpack.c.l.b16 %v4017
  %v4176 = vunpack.c.h.b16 %v4017
  %v4177 = vunpack.c.l.b16 %v4018
  %v4178 = vunpack.c.h.b16 %v4018
  %v4179 = vunpack.c.l.b16 %v4019
  %v4180 = vunpack.c.h.b16 %v4019
  %v4181 = vunpack.c.l.b16 %v4020
  %v4182 = vunpack.c.h.b16 %v4020
  %v4183 = vunpack.c.l.b16 %v4021
  %v4184 = vunpack.c.h.b16 %v4021
  %v4185 = vunpack.c.l.b16 %v4022
  %v4186 = vunpack.c.h.b16 %v4022
  %v4187 = vunpack.c.l.b16 %v4023
  %v4188 = vunpack.c.h.b16 %v4023
  %v4189 = vunpack.c.l.b16 %v4024
  %v4190 = vunpack.c.h.b16 %v4024
  %v4191 = vunpack.c.l.b16 %v4025
  %v4192 = vunpack.c.h.b16 %v4025
  %v4193 = vunpack.c.l.b16 %v4026
  %v4194 = vunpack.c.h.b16 %v4026
  %v4195 = vunpack.c.l.b16 %v4027
  %v4196 = vunpack.c.h.b16 %v4027
  %v4197 = vunpack.c.l.b16 %v4028
  %v4198 = vunpack.c.h.b16 %v4028
  %v4199 = vunpack.c.l.b16 %v4029
  %v4200 = vunpack.c.h.b16 %v4029
  %v4201 = vunpack.c.l.b16 %v4030
  %v4202 = vunpack.c.h.b16 %v4030
  %v4203 = vunpack.c.l.b16 %v4031
  %v4204 = vunpack.c.h.b16 %v4031
  %v4205 = vunpack.c.l.b16 %v4032
  %v4206 = vunpack.c.h.b16 %v4032
  %v4207 = vunpack.c.l.b16 %v4033
  %v4208 = vunpack.c.h.b16 %v4033
  %v4209 = vunpack.c.l.b16 %v4034
  %v4210 = vunpack.c.h.b16 %v4034
  %v4211 = vunpack.c.l.b16 %v4035
  %v4212 = vunpack.c.h.b16 %v4035
  %v4213 = vunpack.c.l.b16 %v4036
  %v4214 = vunpack.c.h.b16 %v4036
  %v4215 = vunpack.c.l.b16 %v4037
  %v4216 = vunpack.c.h.b16 %v4037
  %v4217 = vunpack.c.l.b16 %v4038
  %v4218 = vunpack.c.h.b16 %v4038
  %v4219 = vunpack.c.l.b16 %v4039
  %v4220 = vunpack.c.h.b16 %v4039
  %v4221 = vunpack.c.l.b16 %v4040
  %v4222 = vunpack.c.h.b16 %v4040
  %v4223 = vunpack.c.l.b16 %v4041
  %v4224 = vunpack.c.h.b16 %v4041
  %v4225 = vunpack.c.l.b16 %v4042
  %v4226 = vunpack.c.h.b16 %v4042
  %v4227 = vunpack.c.l.b16 %v4043
  %v4228 = vunpack.c.h.b16 %v4043
  %v4229 = vunpack.c.l.b16 %v4044
  %v4230 = vunpack.c.h.b16 %v4044
  %v4231 = vunpack.c.l.b16 %v4045
  %v4232 = vunpack.c.h.b16 %v4045
  %v4233 = vunpack.c.l.b16 %v4046
  %v4234 = vunpack.c.h.b16 %v4046
  %v4235 = vunpack.c.l.b16 %v4047
  %v4236 = vunpack.c.h.b16 %v4047
  %v4237 = vunpack.c.l.b16 %v4048
  %v4238 = vunpack.c.h.b16 %v4048
  %v4239 = vunpack.c.l.b16 %v4049
  %v4240 = vunpack.c.h.b16 %v4049
  %v4241 = vunpack.c.l.b16 %v4050
  %v4242 = vunpack.c.h.b16 %v4050
  %v4243 = vunpack.c.l.b16 %v4051
  %v4244 = vunpack.c.h.b16 %v4051
  %v4245 = vunpack.c.l.b16 %v4052
  %v4246 = vunpack.c.h.b16 %v4052
  %v4247 = vunpack.c.l.b16 %v4053
  %v4248 = vunpack.c.h.b16 %v4053
  %v4249 = vunpack.c.l.b16 %v4054
  %v4250 = vunpack.c.h.b16 %v4054
  %v4251 = vunpack.c.l.b16 %v4055
  %v4252 = vunpack.c.h.b16 %v4055
  %v4253 = vunpack.c.l.b16 %v4056
  %v4254 = vunpack.c.h.b16 %v4056
  %v4255 = vpack.c.b16 %v4129, %v4127
  %v4256 = vpack.c.b16 %v4130, %v4128
  %v4257 = vpack.c.b16 %v4133, %v4131
  %v4258 = vpack.c.b16 %v4134, %v4132
  %v4259 = vpack.c.b16 %v4137, %v4135
  %v4260 = vpack.c.b16 %v4138, %v4136
  %v4261 = vpack.c.b16 %v4141, %v4139
  %v4262 = vpack.c.b16 %v4142, %v4140
  %v4263 = vpack.c.b16 %v4145, %v4143
  %v4264 = vpack.c.b16 %v4146, %v4144
  %v4265 = vpack.c.b16 %v4149, %v4147
  %v4266 = vpack.c.b16 %v4150, %v4148
  %v4267 = vpack.c.b16 %v4153, %v4151
  %v4268 = vpack.c.b16 %v4154, %v4152
  %v4269 = vpack.c.b16 %v4157, %v4155
  %v4270 = vpack.c.b16 %v4158, %v4156
  %v4271 = vpack.c.b16 %v4161, %v4159
  %v4272 = vpack.c.b16 %v4162, %v4160
  %v4273 = vpack.c.b16 %v4165, %v4163
  %v4274 = vpack.c.b16 %v4166, %v4164
  %v4275 = vpack.c.b16 %v4169, %v4167
  %v4276 = vpack.c.b16 %v4170, %v4168
  %v4277 = vpack.c.b16 %v4173, %v4171
  %v4278 = vpack.c.b16 %v4174, %v4172
  %v4279 = vpack.c.b16 %v4177, %v4175
  %v4280 = vpack.c.b16 %v4178, %v4176
  %v4281 = vpack.c.b16 %v4181, %v4179
  %v4282 = vpack.c.b16 %v4182, %v4180
  %v4283 = vpack.c.b16 %v4185, %v4183
  %v4284 = vpack.c.b16 %v4186, %v4184
  %v4285 = vpack.c.b16 %v4189, %v4187
  %v4286 = vpack.c.b16 %v4190, %v4188
  %v4287 = vpack.c.b16 %v4193, %v4191
  %v4288 = vpack.c.b16 %v4194, %v4192
  %v4289 = vpack.c.b16 %v4197, %v4195
  %v4290 = vpack.c.b16 %v4198, %v4196
  %v4291 = vpack.c.b16 %v4201, %v4199
  %v4292 = vpack.c.b16 %v4202, %v4200
  %v4293 = vpack.c.b16 %v4205, %v4203
  %v4294 = vpack.c.b16 %v4206, %v4204
  %v4295 = vpack.c.b16 %v4209, %v4207
  %v4296 = vpack.c.b16 %v4210, %v4208
  %v4297 = vpack.c.b16 %v4213, %v4211
  %v4298 = vpack.c.b16 %v4214, %v4212
  %v4299 = vpack.c.b16 %v4217, %v4215
  %v4300 = vpack.c.b16 %v4218, %v4216
  %v4301 = vpack.c.b16 %v4221, %v4219
  %v4302 = vpack.c.b16 %v4222, %v4220
  %v4303 = vpack.c.b16 %v4225, %v4223
  %v4304 = vpack.c.b16 %v4226, %v4224
  %v4305 = vpack.c.b16 %v4229, %v4227
  %v4306 = vpack.c.b16 %v4230, %v4228
  %v4307 = vpack.c.b16 %v4233, %v4231
  %v4308 = vpack.c.b16 %v4234, %v4232
  %v4309 = vpack.c.b16 %v4237, %v4235
  %v4310 = vpack.c.b16 %v4238, %v4236
  %v4311 = vpack.c.b16 %v4241, %v4239
  %v4312 = vpack.c.b16 %v4242, %v4240
  %v4313 = vpack.c.b16 %v4245, %v4243
  %v4314 = vpack.c.b16 %v4246, %v4244
  %v4315 = vpack.c.b16 %v4249, %v4247
  %v4316 = vpack.c.b16 %v4250, %v4248
  %v4317 = vpack.c.b16 %v4253, %v4251
  %v4318 = vpack.c.b16 %v4254, %v4252
  %4383 = vmatpush.bf16.msra.mxu0 %v4269
  %4384 = vmatpush.bf16.msra.mxu0 %v4267
  %4385 = vmatpush.bf16.msra.mxu0 %v4265
  %4386 = vmatpush.bf16.msra.mxu0 %v4263
  %4387 = vmatpush.bf16.msra.mxu0 %v4261
  %4388 = vmatpush.bf16.msra.mxu0 %v4259
  %4389 = vmatpush.bf16.msra.mxu0 %v4257
  %4390 = vmatpush.bf16.msra.mxu0 %v4255
  %4391 = vmatmul.bf16.gmra.mxu0 %v3989
  %v4392 = vpop.f32.mrf.mxu0
  %v4393 = vadd.f32 %v4059, %v4392
  %v4394 = vpop.f32.mrf.mxu0
  %4395 = vdwg.mxu0
  %4396 = vmatpush.bf16.msra.mxu0 %v4285
  %4397 = vmatpush.bf16.msra.mxu0 %v4283
  %4398 = vmatpush.bf16.msra.mxu0 %v4281
  %4399 = vmatpush.bf16.msra.mxu0 %v4279
  %4400 = vmatpush.bf16.msra.mxu0 %v4277
  %4401 = vmatpush.bf16.msra.mxu0 %v4275
  %4402 = vmatpush.bf16.msra.mxu0 %v4273
  %4403 = vmatpush.bf16.msra.mxu0 %v4271
  %4404 = vmatmul.bf16.gmra.mxu0 %v3990
  %v4405 = vpop.f32.mrf.mxu0
  %v4406 = vadd.f32 %v4393, %v4405
  %v4407 = vpop.f32.mrf.mxu0
  %4408 = vdwg.mxu0
  %4409 = vmatpush.bf16.msra.mxu0 %v4301
  %4410 = vmatpush.bf16.msra.mxu0 %v4299
  %4411 = vmatpush.bf16.msra.mxu0 %v4297
  %4412 = vmatpush.bf16.msra.mxu0 %v4295
  %4413 = vmatpush.bf16.msra.mxu0 %v4293
  %4414 = vmatpush.bf16.msra.mxu0 %v4291
  %4415 = vmatpush.bf16.msra.mxu0 %v4289
  %4416 = vmatpush.bf16.msra.mxu0 %v4287
  %4417 = vmatmul.bf16.gmra.mxu0 %v3991
  %v4418 = vpop.f32.mrf.mxu0
  %v4419 = vadd.f32 %v4406, %v4418
  %v4420 = vpop.f32.mrf.mxu0
  %4421 = vdwg.mxu0
  %4422 = vmatpush.bf16.msra.mxu0 %v4317
  %4423 = vmatpush.bf16.msra.mxu0 %v4315
  %4424 = vmatpush.bf16.msra.mxu0 %v4313
  %4425 = vmatpush.bf16.msra.mxu0 %v4311
  %4426 = vmatpush.bf16.msra.mxu0 %v4309
  %4427 = vmatpush.bf16.msra.mxu0 %v4307
  %4428 = vmatpush.bf16.msra.mxu0 %v4305
  %4429 = vmatpush.bf16.msra.mxu0 %v4303
  %4430 = vmatmul.bf16.gmra.mxu0 %v3992
  %v4431 = vpop.f32.mrf.mxu0
  %v4432 = vadd.f32 %v4419, %v4431
  %v4433 = vpop.f32.mrf.mxu0
  %4434 = vdwg.mxu0
  %4435 = vmatpush.bf16.msra.mxu0 %v4270
  %4436 = vmatpush.bf16.msra.mxu0 %v4268
  %4437 = vmatpush.bf16.msra.mxu0 %v4266
  %4438 = vmatpush.bf16.msra.mxu0 %v4264
  %4439 = vmatpush.bf16.msra.mxu0 %v4262
  %4440 = vmatpush.bf16.msra.mxu0 %v4260
  %4441 = vmatpush.bf16.msra.mxu0 %v4258
  %4442 = vmatpush.bf16.msra.mxu0 %v4256
  %4443 = vmatmul.bf16.gmra.mxu0 %v3989
  %v4444 = vpop.f32.mrf.mxu0
  %v4445 = vadd.f32 %v4060, %v4444
  %v4446 = vpop.f32.mrf.mxu0
  %4447 = vdwg.mxu0
  %4448 = vmatpush.bf16.msra.mxu0 %v4286
  %4449 = vmatpush.bf16.msra.mxu0 %v4284
  %4450 = vmatpush.bf16.msra.mxu0 %v4282
  %4451 = vmatpush.bf16.msra.mxu0 %v4280
  %4452 = vmatpush.bf16.msra.mxu0 %v4278
  %4453 = vmatpush.bf16.msra.mxu0 %v4276
  %4454 = vmatpush.bf16.msra.mxu0 %v4274
  %4455 = vmatpush.bf16.msra.mxu0 %v4272
  %4456 = vmatmul.bf16.gmra.mxu0 %v3990
  %v4457 = vpop.f32.mrf.mxu0
  %v4458 = vadd.f32 %v4445, %v4457
  %v4459 = vpop.f32.mrf.mxu0
  %4460 = vdwg.mxu0
  %4461 = vmatpush.bf16.msra.mxu0 %v4302
  %4462 = vmatpush.bf16.msra.mxu0 %v4300
  %4463 = vmatpush.bf16.msra.mxu0 %v4298
  %4464 = vmatpush.bf16.msra.mxu0 %v4296
  %4465 = vmatpush.bf16.msra.mxu0 %v4294
  %4466 = vmatpush.bf16.msra.mxu0 %v4292
  %4467 = vmatpush.bf16.msra.mxu0 %v4290
  %4468 = vmatpush.bf16.msra.mxu0 %v4288
  %4469 = vmatmul.bf16.gmra.mxu0 %v3991
  %v4470 = vpop.f32.mrf.mxu0
  %v4471 = vadd.f32 %v4458, %v4470
  %v4472 = vpop.f32.mrf.mxu0
  %4473 = vdwg.mxu0
  %4474 = vmatpush.bf16.msra.mxu0 %v4318
  %4475 = vmatpush.bf16.msra.mxu0 %v4316
  %4476 = vmatpush.bf16.msra.mxu0 %v4314
  %4477 = vmatpush.bf16.msra.mxu0 %v4312
  %4478 = vmatpush.bf16.msra.mxu0 %v4310
  %4479 = vmatpush.bf16.msra.mxu0 %v4308
  %4480 = vmatpush.bf16.msra.mxu0 %v4306
  %4481 = vmatpush.bf16.msra.mxu0 %v4304
  %4482 = vmatmul.bf16.gmra.mxu0 %v3992
  %v4483 = vpop.f32.mrf.mxu0
  %v4484 = vadd.f32 %v4471, %v4483
  %v4485 = vpop.f32.mrf.mxu0
  %4486 = vdwg.mxu0
  %v4487 = vmax.f32 %v4432, 0.0
  %v4488 = vmax.f32 %v4484, 0.0
  %v4489 = vpack.c.bf16 %v4487, %v4487
  %v4490 = vpack.c.bf16 %v4488, %v4488
  %v4491 = vld [vmem:[%s5] sm:$0xf]
  %v4492 = vld [vmem:[%s5 + $0x4] sm:$0xf]
  %v4493 = vld [vmem:[%s5 + $0x8] sm:$0xf]
  %v4494 = vld [vmem:[%s5 + $0xc] sm:$0xf]
  %v4495 = vld [vmem:[%s5 + $0x10] sm:$0xf]
  %v4496 = vld [vmem:[%s5 + $0x14] sm:$0xf]
  %v4497 = vld [vmem:[%s5 + $0x18] sm:$0xf]
  %v4498 = vld [vmem:[%s5 + $0x1c] sm:$0xf]
  %v4499 = vld [vmem:[%s5 + $0x20] sm:$0xf]
  %v4500 = vld [vmem:[%s5 + $0x24] sm:$0xf]
  %v4501 = vld [vmem:[%s5 + $0x28] sm:$0xf]
  %v4502 = vld [vmem:[%s5 + $0x2c] sm:$0xf]
  %v4503 = vld [vmem:[%s5 + $0x30] sm:$0xf]
  %v4504 = vld [vmem:[%s5 + $0x34] sm:$0xf]
  %v4505 = vld [vmem:[%s5 + $0x38] sm:$0xf]
  %v4506 = vld [vmem:[%s5 + $0x3c] sm:$0xf]
  %v4507 = vld [vmem:[%s5 + $0x40] sm:$0xf]
  %v4508 = vld [vmem:[%s5 + $0x44] sm:$0xf]
  %v4509 = vld [vmem:[%s5 + $0x48] sm:$0xf]
  %v4510 = vld [vmem:[%s5 + $0x4c] sm:$0xf]
  %v4511 = vld [vmem:[%s5 + $0x50] sm:$0xf]
  %v4512 = vld [vmem:[%s5 + $0x54] sm:$0xf]
  %v4513 = vld [vmem:[%s5 + $0x58] sm:$0xf]
  %v4514 = vld [vmem:[%s5 + $0x5c] sm:$0xf]
  %v4515 = vld [vmem:[%s5 + $0x60] sm:$0xf]
  %v4516 = vld [vmem:[%s5 + $0x64] sm:$0xf]
  %v4517 = vld [vmem:[%s5 + $0x68] sm:$0xf]
  %v4518 = vld [vmem:[%s5 + $0x6c] sm:$0xf]
  %v4519 = vld [vmem:[%s5 + $0x70] sm:$0xf]
  %v4520 = vld [vmem:[%s5 + $0x74] sm:$0xf]
  %v4521 = vld [vmem:[%s5 + $0x78] sm:$0xf]
  %v4522 = vld [vmem:[%s5 + $0x7c] sm:$0xf]
  %v4523 = vld [vmem:[%s6] sm:$0x1]
  %v4525 = vperm.slane %v4523, 0
  %v4559 = vunpack.c.l.b16 %v4491
  %v4560 = vunpack.c.l.b16 %v4492
  %v4561 = vunpack.c.l.b16 %v4493
  %v4562 = vunpack.c.l.b16 %v4494
  %v4563 = vunpack.c.l.b16 %v4495
  %v4564 = vunpack.c.l.b16 %v4496
  %v4565 = vunpack.c.l.b16 %v4497
  %v4566 = vunpack.c.l.b16 %v4498
  %v4567 = vunpack.c.l.b16 %v4499
  %v4568 = vunpack.c.l.b16 %v4500
  %v4569 = vunpack.c.l.b16 %v4501
  %v4570 = vunpack.c.l.b16 %v4502
  %v4571 = vunpack.c.l.b16 %v4503
  %v4572 = vunpack.c.l.b16 %v4504
  %v4573 = vunpack.c.l.b16 %v4505
  %v4574 = vunpack.c.l.b16 %v4506
  %v4575 = vunpack.c.l.b16 %v4507
  %v4576 = vunpack.c.l.b16 %v4508
  %v4577 = vunpack.c.l.b16 %v4509
  %v4578 = vunpack.c.l.b16 %v4510
  %v4579 = vunpack.c.l.b16 %v4511
  %v4580 = vunpack.c.l.b16 %v4512
  %v4581 = vunpack.c.l.b16 %v4513
  %v4582 = vunpack.c.l.b16 %v4514
  %v4583 = vunpack.c.l.b16 %v4515
  %v4584 = vunpack.c.l.b16 %v4516
  %v4585 = vunpack.c.l.b16 %v4517
  %v4586 = vunpack.c.l.b16 %v4518
  %v4587 = vunpack.c.l.b16 %v4519
  %v4588 = vunpack.c.l.b16 %v4520
  %v4589 = vunpack.c.l.b16 %v4521
  %v4590 = vunpack.c.l.b16 %v4522
  %v4591 = vpack.c.b16 %v4560, %v4559
  %v4592 = vpack.c.b16 %v4562, %v4561
  %v4593 = vpack.c.b16 %v4564, %v4563
  %v4594 = vpack.c.b16 %v4566, %v4565
  %v4595 = vpack.c.b16 %v4568, %v4567
  %v4596 = vpack.c.b16 %v4570, %v4569
  %v4597 = vpack.c.b16 %v4572, %v4571
  %v4598 = vpack.c.b16 %v4574, %v4573
  %v4599 = vpack.c.b16 %v4576, %v4575
  %v4600 = vpack.c.b16 %v4578, %v4577
  %v4601 = vpack.c.b16 %v4580, %v4579
  %v4602 = vpack.c.b16 %v4582, %v4581
  %v4603 = vpack.c.b16 %v4584, %v4583
  %v4604 = vpack.c.b16 %v4586, %v4585
  %v4605 = vpack.c.b16 %v4588, %v4587
  %v4606 = vpack.c.b16 %v4590, %v4589
  %4623 = vmatpush.bf16.msra.mxu0 %v4598
  %4624 = vmatpush.bf16.msra.mxu0 %v4597
  %4625 = vmatpush.bf16.msra.mxu0 %v4596
  %4626 = vmatpush.bf16.msra.mxu0 %v4595
  %4627 = vmatpush.bf16.msra.mxu0 %v4594
  %4628 = vmatpush.bf16.msra.mxu0 %v4593
  %4629 = vmatpush.bf16.msra.mxu0 %v4592
  %4630 = vmatpush.bf16.msra.mxu0 %v4591
  %4631 = vmatmul.bf16.gmra.mxu0 %v4489
  %v4632 = vpop.f32.mrf.mxu0
  %v4633 = vadd.f32 %v4525, %v4632
  %v4634 = vpop.f32.mrf.mxu0
  %4635 = vdwg.mxu0
  %4636 = vmatpush.bf16.msra.mxu0 %v4606
  %4637 = vmatpush.bf16.msra.mxu0 %v4605
  %4638 = vmatpush.bf16.msra.mxu0 %v4604
  %4639 = vmatpush.bf16.msra.mxu0 %v4603
  %4640 = vmatpush.bf16.msra.mxu0 %v4602
  %4641 = vmatpush.bf16.msra.mxu0 %v4601
  %4642 = vmatpush.bf16.msra.mxu0 %v4600
  %4643 = vmatpush.bf16.msra.mxu0 %v4599
  %4644 = vmatmul.bf16.gmra.mxu0 %v4490
  %v4645 = vpop.f32.mrf.mxu0
  %v4646 = vadd.f32 %v4633, %v4645
  %v4647 = vpop.f32.mrf.mxu0
  %4648 = vdwg.mxu0
  %4649 = vst [vmem:[%s7] sm:$0xf] %v4646
  // Predicated region
  $region30: #{forward.5} parent=0 // pred_check
    _
  $region31: #{forward.5} parent=0 // pred_check_branch
    %4651 = sbr.rel (0) target = $region33
  $region32: #{forward.5} parent=0 // pred_region
    _
  $region33: #{forward.5} parent=0 // pred_fallthru
    _
  // Predicated region
  $region34: #{forward.5} parent=0 // pred_check
    _
  $region35: #{forward.5} parent=0 // pred_check_branch
    %4653 = sbr.rel (0) target = $region37
  $region36: #{forward.5} parent=0 // pred_region
    _
  $region37: #{forward.5} parent=0 // pred_fallthru
    _

</llo_original>
